<compile_context>
chip_gen: v6e
topology: v6e:2x2x1
jax: 0.10.0
libtpu: 0.0.40
codegen_flags: <defaults>
</compile_context>

<pallas_src>
import functools

import jax
import jax.numpy as jnp
from jax import lax
from jax.experimental import pallas as pl
from jax.experimental.pallas import tpu as pltpu

FEAT = 512          # resnet18 (fc = Identity) feature dim
POS_DIM = 9         # one-hot 3x3 location
FC_OUT = 3584       # nn.Linear(512, 3584)
N_ENC = 6           # encoder patches:  512 * N_ENC + 512 == 3584  =>  N_ENC = 6
N_DEC = 3           # decoder patches (h1, h2, h3)
N_ALL = N_ENC + N_DEC

_LANE = 128
_SUB = 8


def _round_up(x, m):
    return (x + m - 1) // m * m


def _selfie_kernel(patch_ref, pos_ref, we_ref, be_ref, wp_ref, bp_ref,
                   wf_ref, bf_ref, out_ref, *, tb, bf16_epilogue):
    """One batch tile of `tb` samples.

    patch_ref : (N_ALL*tb, Pp)        bf16   rows = [x patches (patch-major), y patches]
    pos_ref   : ((N_ENC+1)*tb, 9)     bf16   rows = [x_pos (patch-major), y_pos]
    we/be     : (Pp, 512) bf16 / (1, 512) f32     stand-in backbone (Normalize folded in)
    wp/bp     : (9, 512)  bf16 / (1, 512) f32     nn.Linear(9, 512)
    wf/bf     : (512, 3584) bf16 / (1, 3584) f32  nn.Linear(512, 3584)
    out_ref   : (tb, 128) f32          columns [0, N_DEC) are the result, rest are 1.0
    """
    f32 = jnp.float32
    bf16 = jnp.bfloat16

    # Normalize((0.5,)*3, (0.5,)*3) == 2*x - 1 is already folded into we/be on the
    # host, so the raw bf16 patch rows go straight into the MXU.
    # One batched backbone matmul for ALL encoder+decoder patches of the tile.
    # TODO(synk): Resize(224) + pretrained resnet18 replaced by Linear+ReLU stand-in.
    feat = jnp.maximum(
        jnp.dot(patch_ref[...], we_ref[...], preferred_element_type=f32)
        + be_ref[...], 0.0)                                # (N_ALL*tb, 512)

    # One batched position matmul for x_pos (6 per sample) + y_pos (1 per sample).
    posf = jnp.maximum(
        jnp.dot(pos_ref[...], wp_ref[...], preferred_element_type=f32)
        + bp_ref[...], 0.0)                                # (7*tb, 512)

    ax = feat[:N_ENC * tb, :] + posf[:N_ENC * tb, :]       # encoder slabs of u
    feat_y = feat[N_ENC * tb:, :]                          # decoder backbone feats
    pos_y = posf[N_ENC * tb:, :]                           # relu(pos(y_pos)), (tb, 512)

    # h = relu(fc(P(y))), one big matmul: (N_DEC*tb, 512) x (512, 3584)
    h = jnp.maximum(
        jnp.dot(feat_y.astype(bf16), wf_ref[...], preferred_element_type=f32)
        + bf_ref[...], 0.0)                                # (N_DEC*tb, 3584)

    if bf16_epilogue:
        # bf16 VALUs (v6e/v7x): halve vreg traffic / VMEM in the score phase.
        # Accumulation & the lane reduce below stay in f32.
        h = h.astype(bf16)
        ax = ax.astype(bf16)
        pos_y = pos_y.astype(bf16)

    # scores[t, j] = <v_t, h_{t,j}> with v_t = [flatten(ax_t, 6*512), pos_y_t].
    # Accumulate the 7 slab products element-wise into ONE (tb, 512) f32 buffer and
    # do a single lane reduce per j (3 XLU reduces/tile total, no M=1 MXU pushes).
    col_idx = lax.broadcasted_iota(jnp.int32, (tb, _LANE), 1)
    score_block = jnp.zeros((tb, _LANE), f32)
    for j in range(N_DEC):
        hj = h[j * tb:(j + 1) * tb, :]                     # (tb, 3584)
        prod = (pos_y * hj[:, N_ENC * FEAT:]).astype(f32)
        for k in range(N_ENC):
            prod = prod + (ax[k * tb:(k + 1) * tb, :]
                           * hj[:, k * FEAT:(k + 1) * FEAT]).astype(f32)
        s = jnp.sum(prod, axis=-1, keepdims=True)          # (tb, 1), f32 reduce
        score_block = jnp.where(col_idx == j, s, score_block)

    # F.softmax(result, dim=1) is over the singleton (unsqueezed) axis, i.e.
    # exp(s - s) / exp(s - s) == 1.0 for every finite score (NaN/Inf still propagate
    # per column), so the EUP exp and the divide are elided.  Columns >= N_DEC hold
    # 1.0 and exist only to make the store lane-dense (unmasked vst, dense DMA).
    out_ref[...] = (score_block - score_block) + 1.0


def init_params(key, patch_pixels):
    ks = jax.random.split(key, 6)

    def uni(k, shape, fan_in):
        lim = 1.0 / jnp.sqrt(jnp.float32(fan_in))
        return jax.random.uniform(k, shape, jnp.float32, -lim, lim)

    we = uni(ks[0], (patch_pixels, FEAT), patch_pixels)   # stand-in backbone encoder
    be = uni(ks[1], (1, FEAT), patch_pixels)
    wp = uni(ks[2], (POS_DIM, FEAT), POS_DIM)             # nn.Linear(9, 512)
    bp = uni(ks[3], (1, FEAT), POS_DIM)
    wf = uni(ks[4], (FEAT, FC_OUT), FEAT)                 # nn.Linear(512, 3584)
    bf = uni(ks[5], (1, FC_OUT), FEAT)
    return we, be, wp, bp, wf, bf


def _device_config(batch):
    """Per-generation tiling / VMEM / epilogue-dtype choices."""
    try:
        kind = jax.devices()[0].device_kind.lower()
    except Exception:  # pragma: no cover - defensive
        kind = ""
    if "v5" in kind:
        # v5e: MXU-bound, no bf16 VPU (bf16 epilogue only adds converts),
        # 128 MiB physical VMEM -> big batch tile, raised scoped limit.
        return dict(batch_tile=256, vmem_limit=96 * 1024 * 1024,
                    bf16_epilogue=False, two_cores=False)
    if "v6" in kind:
        # v6e: bf16 VALUs, 128 MiB physical VMEM, single TensorCore.
        # TB=256 makes the fc matmul M = N_DEC*TB = 768 an exact multiple of 256.
        return dict(batch_tile=256, vmem_limit=96 * 1024 * 1024,
                    bf16_epilogue=True, two_cores=False)
    # v7x / unknown: 64 MiB physical VMEM (keep TB=128, ~32 MiB scoped) and
    # 2 TensorCores -> keep at least 2 grid steps so both cores get work.
    return dict(batch_tile=128, vmem_limit=32 * 1024 * 1024,
                bf16_epilogue=True, two_cores=True)


def selfie_forward(x, x_pos, y, y_pos, params, *, batch_tile=None):
    B, Nx, C, H, W = x.shape
    Ny = y.shape[1]
    assert Nx == N_ENC and Ny == N_DEC, "cat([u, y_pos]) must match fc output width 3584"
    assert FC_OUT == (N_ENC + 1) * FEAT, "score slabs assume fc width == (N_ENC+1)*512"
    P = C * H * W
    Pp = _round_up(P, _LANE)                       # pad contraction dim to lane multiple

    cfg = _device_config(B)
    tile = batch_tile if batch_tile is not None else cfg["batch_tile"]
    TB = min(tile, _round_up(B, _SUB))             # samples per grid step (multiple of 8)
    if cfg["two_cores"]:
        # ensure G >= 2 grid steps when possible so both v7x TensorCores are busy
        TB = min(TB, _round_up(max((B + 1) // 2, 1), _SUB))
    Bp = _round_up(B, TB)
    G = Bp // TB

    we, be, wp, bp, wf, bf = params

    # Fold Normalize((0.5,)*3, (0.5,)*3) == 2*x - 1 into the stand-in backbone:
    #   relu((2x-1) @ we + be) == relu(x @ (2*we) + (be - sum_rows(we)))
    we_f = 2.0 * we
    be_f = be - jnp.sum(we, axis=0, keepdims=True)

    def prep(a, n, d, dp):
        # (B, n, d) -> (G, n*TB, dp): zero-pad batch & feature dims, then make rows
        # patch-major (patch-index major, sample minor) inside every batch tile.
        # TODO(synk): this pad+transpose materializes one patch-major copy in HBM;
        # acceptable here since the kernel is compute-bound.
        a = jnp.pad(a.astype(jnp.float32), ((0, Bp - B), (0, 0), (0, dp - d)))
        a = a.reshape(G, TB, n, dp).transpose(0, 2, 1, 3).reshape(G, n * TB, dp)
        return a.astype(jnp.bfloat16)

    patches = jnp.concatenate(
        [prep(x.reshape(B, N_ENC, P), N_ENC, P, Pp),
         prep(y.reshape(B, N_DEC, P), N_DEC, P, Pp)], axis=1)          # (G, 9*TB, Pp)
    pos = jnp.concatenate(
        [prep(x_pos, N_ENC, POS_DIM, POS_DIM),
         prep(y_pos.reshape(B, 1, POS_DIM), 1, POS_DIM, POS_DIM)],
        axis=1)                                                        # (G, 7*TB, 9)

    we_b = jnp.pad(we_f, ((0, Pp - P), (0, 0))).astype(jnp.bfloat16)   # zero rows: no-op pad
    wp_b = wp.astype(jnp.bfloat16)
    wf_b = wf.astype(jnp.bfloat16)

    def tile_map(i):               # per-batch-tile blocks
        return (i, 0, 0)

    def weight_map(i):             # grid-invariant parameters
        return (0, 0)

    def wspec(shape):              # weights: resident, single-buffered (constant index map)
        return pl.BlockSpec(shape, weight_map, pipeline_mode=pl.Buffered(1))

    out = pl.pallas_call(
        functools.partial(_selfie_kernel, tb=TB,
                          bf16_epilogue=cfg["bf16_epilogue"]),
        out_shape=jax.ShapeDtypeStruct((Bp, _LANE), jnp.float32),
        grid_spec=pltpu.PrefetchScalarGridSpec(
            num_scalar_prefetch=0,
            grid=(G,),
            in_specs=[
                pl.BlockSpec((None, N_ALL * TB, Pp), tile_map),
                pl.BlockSpec((None, (N_ENC + 1) * TB, POS_DIM), tile_map),
                wspec((Pp, FEAT)),
                wspec((1, FEAT)),
                wspec((POS_DIM, FEAT)),
                wspec((1, FEAT)),
                wspec((FEAT, FC_OUT)),
                wspec((1, FC_OUT)),
            ],
            out_specs=pl.BlockSpec((TB, _LANE), lambda i: (i, 0)),
        ),
        compiler_params=pltpu.CompilerParams(
            dimension_semantics=("parallel",),          # batch tiles independent
            vmem_limit_bytes=cfg["vmem_limit"],
        ),
    )(patches, pos, we_b, be_f, wp_b, bp, wf_b, bf)

    # torch: result.squeeze() on (B, 1, Ny) with B>1, Ny>1  ->  (B, Ny)
    return out[:B, :N_DEC]


if __name__ == "__main__":
    key = jax.random.PRNGKey(0)
    k_x, k_y, k_p = jax.random.split(key, 3)

    B, C, H, W = 2, 3, 10, 10                     # 10x10 patches as in get_features()
    x = jax.random.uniform(k_x, (B, N_ENC, C, H, W), jnp.float32)
    y = jax.random.uniform(k_y, (B, N_DEC, C, H, W), jnp.float32)

    # one-hot 3x3 location embeddings
    x_loc = jnp.arange(N_ENC) % POS_DIM
    x_pos = jnp.tile(jax.nn.one_hot(x_loc, POS_DIM, dtype=jnp.float32)[None], (B, 1, 1))  # (B, 6, 9)
    y_pos = jax.nn.one_hot(jnp.full((B,), 7), POS_DIM, dtype=jnp.float32)                 # (B, 9)

    params = init_params(k_p, C * H * W)

    out = selfie_forward(x, x_pos, y, y_pos, params)
    out = jax.block_until_ready(out)
    assert out.shape == (B, N_DEC)
    print("KERNEL_OK")
</pallas_src>

<mosaic_0001>
module attributes {stable_mosaic.version = 11 : i64} {
  func.func @_selfie_kernel(%arg0: i32, %arg1: memref<1x72x384xbf16, #tpu.memory_space<vmem>>, %arg2: memref<1x56x9xbf16, #tpu.memory_space<vmem>>, %arg3: memref<384x512xbf16, #tpu.memory_space<vmem>>, %arg4: memref<1x512xf32, #tpu.memory_space<vmem>>, %arg5: memref<9x512xbf16, #tpu.memory_space<vmem>>, %arg6: memref<1x512xf32, #tpu.memory_space<vmem>>, %arg7: memref<512x3584xbf16, #tpu.memory_space<vmem>>, %arg8: memref<1x3584xf32, #tpu.memory_space<vmem>>, %arg9: memref<8x128xf32, #tpu.memory_space<vmem>>) attributes {dimension_semantics = [#tpu.dimension_semantics<parallel>], iteration_bounds = array<i64: 1>, scalar_prefetch = 0 : i64, scratch_operands = 0 : i64, tpu.core_type = #tpu.core_type<tc>, window_params = [{transform_indices = @transform_0, window_bounds = array<i64: 1, 72, 384>}, {transform_indices = @transform_1, window_bounds = array<i64: 1, 56, 9>}, {pipeline_mode = #tpu.pipeline_mode<synchronous>, transform_indices = @transform_2, window_bounds = array<i64: 384, 512>}, {pipeline_mode = #tpu.pipeline_mode<synchronous>, transform_indices = @transform_3, window_bounds = array<i64: 1, 512>}, {pipeline_mode = #tpu.pipeline_mode<synchronous>, transform_indices = @transform_4, window_bounds = array<i64: 9, 512>}, {pipeline_mode = #tpu.pipeline_mode<synchronous>, transform_indices = @transform_5, window_bounds = array<i64: 1, 512>}, {pipeline_mode = #tpu.pipeline_mode<synchronous>, transform_indices = @transform_6, window_bounds = array<i64: 512, 3584>}, {pipeline_mode = #tpu.pipeline_mode<synchronous>, transform_indices = @transform_7, window_bounds = array<i64: 1, 3584>}, {transform_indices = @transform_8, window_bounds = array<i64: 8, 128>}]} {
    %c0 = arith.constant 0 : index
    %c0_0 = arith.constant 0 : index
    %c0_1 = arith.constant 0 : index
    %0 = vector.load %arg1[%c0, %c0_0, %c0_1] : memref<1x72x384xbf16, #tpu.memory_space<vmem>>, vector<1x72x384xbf16>
    %1 = vector.shape_cast %0 : vector<1x72x384xbf16> to vector<72x384xbf16>
    %c0_2 = arith.constant 0 : index
    %c0_3 = arith.constant 0 : index
    %2 = vector.load %arg3[%c0_2, %c0_3] : memref<384x512xbf16, #tpu.memory_space<vmem>>, vector<384x512xbf16>
    %cst = arith.constant dense<0.000000e+00> : vector<72x512xf32>
    %3 = tpu.matmul %1, %2, %cst {dimension_numbers = #tpu.dot_dimension_numbers<[1], [0], [0], [1], [0, 0, 1, 1], [], []>} : vector<72x384xbf16>, vector<384x512xbf16>, vector<72x512xf32> -> vector<72x512xf32>
    %c0_4 = arith.constant 0 : index
    %c0_5 = arith.constant 0 : index
    %4 = vector.load %arg4[%c0_4, %c0_5] : memref<1x512xf32, #tpu.memory_space<vmem>>, vector<1x512xf32>
    %5 = vector.broadcast %4 : vector<1x512xf32> to vector<72x512xf32>
    %6 = arith.addf %3, %5 : vector<72x512xf32>
    %cst_6 = arith.constant 0.000000e+00 : f32
    %7 = vector.broadcast %cst_6 : f32 to vector<72x512xf32>
    %8 = arith.maximumf %6, %7 : vector<72x512xf32>
    %c0_7 = arith.constant 0 : index
    %c0_8 = arith.constant 0 : index
    %c0_9 = arith.constant 0 : index
    %9 = vector.load %arg2[%c0_7, %c0_8, %c0_9] : memref<1x56x9xbf16, #tpu.memory_space<vmem>>, vector<1x56x9xbf16>
    %10 = vector.shape_cast %9 : vector<1x56x9xbf16> to vector<56x9xbf16>
    %c0_10 = arith.constant 0 : index
    %c0_11 = arith.constant 0 : index
    %11 = vector.load %arg5[%c0_10, %c0_11] : memref<9x512xbf16, #tpu.memory_space<vmem>>, vector<9x512xbf16>
    %cst_12 = arith.constant dense<0.000000e+00> : vector<56x512xf32>
    %12 = tpu.matmul %10, %11, %cst_12 {dimension_numbers = #tpu.dot_dimension_numbers<[1], [0], [0], [1], [0, 0, 1, 1], [], []>} : vector<56x9xbf16>, vector<9x512xbf16>, vector<56x512xf32> -> vector<56x512xf32>
    %c0_13 = arith.constant 0 : index
    %c0_14 = arith.constant 0 : index
    %13 = vector.load %arg6[%c0_13, %c0_14] : memref<1x512xf32, #tpu.memory_space<vmem>>, vector<1x512xf32>
    %14 = vector.broadcast %13 : vector<1x512xf32> to vector<56x512xf32>
    %15 = arith.addf %12, %14 : vector<56x512xf32>
    %cst_15 = arith.constant 0.000000e+00 : f32
    %16 = vector.broadcast %cst_15 : f32 to vector<56x512xf32>
    %17 = arith.maximumf %15, %16 : vector<56x512xf32>
    %18 = vector.extract_strided_slice %8 {offsets = [0, 0], sizes = [48, 512], strides = [1, 1]} : vector<72x512xf32> to vector<48x512xf32>
    %19 = vector.extract_strided_slice %17 {offsets = [0, 0], sizes = [48, 512], strides = [1, 1]} : vector<56x512xf32> to vector<48x512xf32>
    %20 = arith.addf %18, %19 : vector<48x512xf32>
    %21 = vector.extract_strided_slice %8 {offsets = [48, 0], sizes = [24, 512], strides = [1, 1]} : vector<72x512xf32> to vector<24x512xf32>
    %22 = vector.extract_strided_slice %17 {offsets = [48, 0], sizes = [8, 512], strides = [1, 1]} : vector<56x512xf32> to vector<8x512xf32>
    %23 = arith.truncf %21 : vector<24x512xf32> to vector<24x512xbf16>
    %c0_16 = arith.constant 0 : index
    %c0_17 = arith.constant 0 : index
    %24 = vector.load %arg7[%c0_16, %c0_17] : memref<512x3584xbf16, #tpu.memory_space<vmem>>, vector<512x3584xbf16>
    %cst_18 = arith.constant dense<0.000000e+00> : vector<24x3584xf32>
    %25 = tpu.matmul %23, %24, %cst_18 {dimension_numbers = #tpu.dot_dimension_numbers<[1], [0], [0], [1], [0, 0, 1, 1], [], []>} : vector<24x512xbf16>, vector<512x3584xbf16>, vector<24x3584xf32> -> vector<24x3584xf32>
    %c0_19 = arith.constant 0 : index
    %c0_20 = arith.constant 0 : index
    %26 = vector.load %arg8[%c0_19, %c0_20] : memref<1x3584xf32, #tpu.memory_space<vmem>>, vector<1x3584xf32>
    %27 = vector.broadcast %26 : vector<1x3584xf32> to vector<24x3584xf32>
    %28 = arith.addf %25, %27 : vector<24x3584xf32>
    %cst_21 = arith.constant 0.000000e+00 : f32
    %29 = vector.broadcast %cst_21 : f32 to vector<24x3584xf32>
    %30 = arith.maximumf %28, %29 : vector<24x3584xf32>
    %31 = arith.truncf %30 : vector<24x3584xf32> to vector<24x3584xbf16>
    %32 = arith.truncf %20 : vector<48x512xf32> to vector<48x512xbf16>
    %33 = arith.truncf %22 : vector<8x512xf32> to vector<8x512xbf16>
    %34 = tpu.iota {dimensions = array<i32: 1>} : vector<8x128xi32>
    %cst_22 = arith.constant 0.000000e+00 : f32
    %35 = vector.broadcast %cst_22 : f32 to vector<8x128xf32>
    %36 = vector.extract_strided_slice %31 {offsets = [0, 0], sizes = [8, 3584], strides = [1, 1]} : vector<24x3584xbf16> to vector<8x3584xbf16>
    %37 = vector.extract_strided_slice %36 {offsets = [0, 3072], sizes = [8, 512], strides = [1, 1]} : vector<8x3584xbf16> to vector<8x512xbf16>
    %38 = arith.mulf %33, %37 : vector<8x512xbf16>
    %39 = arith.extf %38 : vector<8x512xbf16> to vector<8x512xf32>
    %40 = vector.extract_strided_slice %32 {offsets = [0, 0], sizes = [8, 512], strides = [1, 1]} : vector<48x512xbf16> to vector<8x512xbf16>
    %41 = vector.extract_strided_slice %36 {offsets = [0, 0], sizes = [8, 512], strides = [1, 1]} : vector<8x3584xbf16> to vector<8x512xbf16>
    %42 = arith.mulf %40, %41 : vector<8x512xbf16>
    %43 = arith.extf %42 : vector<8x512xbf16> to vector<8x512xf32>
    %44 = arith.addf %39, %43 : vector<8x512xf32>
    %45 = vector.extract_strided_slice %32 {offsets = [8, 0], sizes = [8, 512], strides = [1, 1]} : vector<48x512xbf16> to vector<8x512xbf16>
    %46 = vector.extract_strided_slice %36 {offsets = [0, 512], sizes = [8, 512], strides = [1, 1]} : vector<8x3584xbf16> to vector<8x512xbf16>
    %47 = arith.mulf %45, %46 : vector<8x512xbf16>
    %48 = arith.extf %47 : vector<8x512xbf16> to vector<8x512xf32>
    %49 = arith.addf %44, %48 : vector<8x512xf32>
    %50 = vector.extract_strided_slice %32 {offsets = [16, 0], sizes = [8, 512], strides = [1, 1]} : vector<48x512xbf16> to vector<8x512xbf16>
    %51 = vector.extract_strided_slice %36 {offsets = [0, 1024], sizes = [8, 512], strides = [1, 1]} : vector<8x3584xbf16> to vector<8x512xbf16>
    %52 = arith.mulf %50, %51 : vector<8x512xbf16>
    %53 = arith.extf %52 : vector<8x512xbf16> to vector<8x512xf32>
    %54 = arith.addf %49, %53 : vector<8x512xf32>
    %55 = vector.extract_strided_slice %32 {offsets = [24, 0], sizes = [8, 512], strides = [1, 1]} : vector<48x512xbf16> to vector<8x512xbf16>
    %56 = vector.extract_strided_slice %36 {offsets = [0, 1536], sizes = [8, 512], strides = [1, 1]} : vector<8x3584xbf16> to vector<8x512xbf16>
    %57 = arith.mulf %55, %56 : vector<8x512xbf16>
    %58 = arith.extf %57 : vector<8x512xbf16> to vector<8x512xf32>
    %59 = arith.addf %54, %58 : vector<8x512xf32>
    %60 = vector.extract_strided_slice %32 {offsets = [32, 0], sizes = [8, 512], strides = [1, 1]} : vector<48x512xbf16> to vector<8x512xbf16>
    %61 = vector.extract_strided_slice %36 {offsets = [0, 2048], sizes = [8, 512], strides = [1, 1]} : vector<8x3584xbf16> to vector<8x512xbf16>
    %62 = arith.mulf %60, %61 : vector<8x512xbf16>
    %63 = arith.extf %62 : vector<8x512xbf16> to vector<8x512xf32>
    %64 = arith.addf %59, %63 : vector<8x512xf32>
    %65 = vector.extract_strided_slice %32 {offsets = [40, 0], sizes = [8, 512], strides = [1, 1]} : vector<48x512xbf16> to vector<8x512xbf16>
    %66 = vector.extract_strided_slice %36 {offsets = [0, 2560], sizes = [8, 512], strides = [1, 1]} : vector<8x3584xbf16> to vector<8x512xbf16>
    %67 = arith.mulf %65, %66 : vector<8x512xbf16>
    %68 = arith.extf %67 : vector<8x512xbf16> to vector<8x512xf32>
    %69 = arith.addf %64, %68 : vector<8x512xf32>
    %cst_23 = arith.constant dense<0.000000e+00> : vector<8xf32>
    %70 = vector.multi_reduction <add>, %69, %cst_23 [1] : vector<8x512xf32> to vector<8xf32>
    %71 = vector.shape_cast %70 : vector<8xf32> to vector<8x1xf32>
    %c0_i32 = arith.constant 0 : i32
    %72 = vector.broadcast %c0_i32 : i32 to vector<8x128xi32>
    %73 = arith.cmpi eq, %34, %72 : vector<8x128xi32>
    %74 = vector.shape_cast %71 : vector<8x1xf32> to vector<8x1xf32>
    %75 = vector.broadcast %74 : vector<8x1xf32> to vector<8x128xf32>
    %76 = arith.select %73, %75, %35 : vector<8x128xi1>, vector<8x128xf32>
    %77 = vector.extract_strided_slice %31 {offsets = [8, 0], sizes = [8, 3584], strides = [1, 1]} : vector<24x3584xbf16> to vector<8x3584xbf16>
    %78 = vector.extract_strided_slice %77 {offsets = [0, 3072], sizes = [8, 512], strides = [1, 1]} : vector<8x3584xbf16> to vector<8x512xbf16>
    %79 = arith.mulf %33, %78 : vector<8x512xbf16>
    %80 = arith.extf %79 : vector<8x512xbf16> to vector<8x512xf32>
    %81 = vector.extract_strided_slice %32 {offsets = [0, 0], sizes = [8, 512], strides = [1, 1]} : vector<48x512xbf16> to vector<8x512xbf16>
    %82 = vector.extract_strided_slice %77 {offsets = [0, 0], sizes = [8, 512], strides = [1, 1]} : vector<8x3584xbf16> to vector<8x512xbf16>
    %83 = arith.mulf %81, %82 : vector<8x512xbf16>
    %84 = arith.extf %83 : vector<8x512xbf16> to vector<8x512xf32>
    %85 = arith.addf %80, %84 : vector<8x512xf32>
    %86 = vector.extract_strided_slice %32 {offsets = [8, 0], sizes = [8, 512], strides = [1, 1]} : vector<48x512xbf16> to vector<8x512xbf16>
    %87 = vector.extract_strided_slice %77 {offsets = [0, 512], sizes = [8, 512], strides = [1, 1]} : vector<8x3584xbf16> to vector<8x512xbf16>
    %88 = arith.mulf %86, %87 : vector<8x512xbf16>
    %89 = arith.extf %88 : vector<8x512xbf16> to vector<8x512xf32>
    %90 = arith.addf %85, %89 : vector<8x512xf32>
    %91 = vector.extract_strided_slice %32 {offsets = [16, 0], sizes = [8, 512], strides = [1, 1]} : vector<48x512xbf16> to vector<8x512xbf16>
    %92 = vector.extract_strided_slice %77 {offsets = [0, 1024], sizes = [8, 512], strides = [1, 1]} : vector<8x3584xbf16> to vector<8x512xbf16>
    %93 = arith.mulf %91, %92 : vector<8x512xbf16>
    %94 = arith.extf %93 : vector<8x512xbf16> to vector<8x512xf32>
    %95 = arith.addf %90, %94 : vector<8x512xf32>
    %96 = vector.extract_strided_slice %32 {offsets = [24, 0], sizes = [8, 512], strides = [1, 1]} : vector<48x512xbf16> to vector<8x512xbf16>
    %97 = vector.extract_strided_slice %77 {offsets = [0, 1536], sizes = [8, 512], strides = [1, 1]} : vector<8x3584xbf16> to vector<8x512xbf16>
    %98 = arith.mulf %96, %97 : vector<8x512xbf16>
    %99 = arith.extf %98 : vector<8x512xbf16> to vector<8x512xf32>
    %100 = arith.addf %95, %99 : vector<8x512xf32>
    %101 = vector.extract_strided_slice %32 {offsets = [32, 0], sizes = [8, 512], strides = [1, 1]} : vector<48x512xbf16> to vector<8x512xbf16>
    %102 = vector.extract_strided_slice %77 {offsets = [0, 2048], sizes = [8, 512], strides = [1, 1]} : vector<8x3584xbf16> to vector<8x512xbf16>
    %103 = arith.mulf %101, %102 : vector<8x512xbf16>
    %104 = arith.extf %103 : vector<8x512xbf16> to vector<8x512xf32>
    %105 = arith.addf %100, %104 : vector<8x512xf32>
    %106 = vector.extract_strided_slice %32 {offsets = [40, 0], sizes = [8, 512], strides = [1, 1]} : vector<48x512xbf16> to vector<8x512xbf16>
    %107 = vector.extract_strided_slice %77 {offsets = [0, 2560], sizes = [8, 512], strides = [1, 1]} : vector<8x3584xbf16> to vector<8x512xbf16>
    %108 = arith.mulf %106, %107 : vector<8x512xbf16>
    %109 = arith.extf %108 : vector<8x512xbf16> to vector<8x512xf32>
    %110 = arith.addf %105, %109 : vector<8x512xf32>
    %cst_24 = arith.constant dense<0.000000e+00> : vector<8xf32>
    %111 = vector.multi_reduction <add>, %110, %cst_24 [1] : vector<8x512xf32> to vector<8xf32>
    %112 = vector.shape_cast %111 : vector<8xf32> to vector<8x1xf32>
    %c1_i32 = arith.constant 1 : i32
    %113 = vector.broadcast %c1_i32 : i32 to vector<8x128xi32>
    %114 = arith.cmpi eq, %34, %113 : vector<8x128xi32>
    %115 = vector.shape_cast %112 : vector<8x1xf32> to vector<8x1xf32>
    %116 = vector.broadcast %115 : vector<8x1xf32> to vector<8x128xf32>
    %117 = arith.select %114, %116, %76 : vector<8x128xi1>, vector<8x128xf32>
    %118 = vector.extract_strided_slice %31 {offsets = [16, 0], sizes = [8, 3584], strides = [1, 1]} : vector<24x3584xbf16> to vector<8x3584xbf16>
    %119 = vector.extract_strided_slice %118 {offsets = [0, 3072], sizes = [8, 512], strides = [1, 1]} : vector<8x3584xbf16> to vector<8x512xbf16>
    %120 = arith.mulf %33, %119 : vector<8x512xbf16>
    %121 = arith.extf %120 : vector<8x512xbf16> to vector<8x512xf32>
    %122 = vector.extract_strided_slice %32 {offsets = [0, 0], sizes = [8, 512], strides = [1, 1]} : vector<48x512xbf16> to vector<8x512xbf16>
    %123 = vector.extract_strided_slice %118 {offsets = [0, 0], sizes = [8, 512], strides = [1, 1]} : vector<8x3584xbf16> to vector<8x512xbf16>
    %124 = arith.mulf %122, %123 : vector<8x512xbf16>
    %125 = arith.extf %124 : vector<8x512xbf16> to vector<8x512xf32>
    %126 = arith.addf %121, %125 : vector<8x512xf32>
    %127 = vector.extract_strided_slice %32 {offsets = [8, 0], sizes = [8, 512], strides = [1, 1]} : vector<48x512xbf16> to vector<8x512xbf16>
    %128 = vector.extract_strided_slice %118 {offsets = [0, 512], sizes = [8, 512], strides = [1, 1]} : vector<8x3584xbf16> to vector<8x512xbf16>
    %129 = arith.mulf %127, %128 : vector<8x512xbf16>
    %130 = arith.extf %129 : vector<8x512xbf16> to vector<8x512xf32>
    %131 = arith.addf %126, %130 : vector<8x512xf32>
    %132 = vector.extract_strided_slice %32 {offsets = [16, 0], sizes = [8, 512], strides = [1, 1]} : vector<48x512xbf16> to vector<8x512xbf16>
    %133 = vector.extract_strided_slice %118 {offsets = [0, 1024], sizes = [8, 512], strides = [1, 1]} : vector<8x3584xbf16> to vector<8x512xbf16>
    %134 = arith.mulf %132, %133 : vector<8x512xbf16>
    %135 = arith.extf %134 : vector<8x512xbf16> to vector<8x512xf32>
    %136 = arith.addf %131, %135 : vector<8x512xf32>
    %137 = vector.extract_strided_slice %32 {offsets = [24, 0], sizes = [8, 512], strides = [1, 1]} : vector<48x512xbf16> to vector<8x512xbf16>
    %138 = vector.extract_strided_slice %118 {offsets = [0, 1536], sizes = [8, 512], strides = [1, 1]} : vector<8x3584xbf16> to vector<8x512xbf16>
    %139 = arith.mulf %137, %138 : vector<8x512xbf16>
    %140 = arith.extf %139 : vector<8x512xbf16> to vector<8x512xf32>
    %141 = arith.addf %136, %140 : vector<8x512xf32>
    %142 = vector.extract_strided_slice %32 {offsets = [32, 0], sizes = [8, 512], strides = [1, 1]} : vector<48x512xbf16> to vector<8x512xbf16>
    %143 = vector.extract_strided_slice %118 {offsets = [0, 2048], sizes = [8, 512], strides = [1, 1]} : vector<8x3584xbf16> to vector<8x512xbf16>
    %144 = arith.mulf %142, %143 : vector<8x512xbf16>
    %145 = arith.extf %144 : vector<8x512xbf16> to vector<8x512xf32>
    %146 = arith.addf %141, %145 : vector<8x512xf32>
    %147 = vector.extract_strided_slice %32 {offsets = [40, 0], sizes = [8, 512], strides = [1, 1]} : vector<48x512xbf16> to vector<8x512xbf16>
    %148 = vector.extract_strided_slice %118 {offsets = [0, 2560], sizes = [8, 512], strides = [1, 1]} : vector<8x3584xbf16> to vector<8x512xbf16>
    %149 = arith.mulf %147, %148 : vector<8x512xbf16>
    %150 = arith.extf %149 : vector<8x512xbf16> to vector<8x512xf32>
    %151 = arith.addf %146, %150 : vector<8x512xf32>
    %cst_25 = arith.constant dense<0.000000e+00> : vector<8xf32>
    %152 = vector.multi_reduction <add>, %151, %cst_25 [1] : vector<8x512xf32> to vector<8xf32>
    %153 = vector.shape_cast %152 : vector<8xf32> to vector<8x1xf32>
    %c2_i32 = arith.constant 2 : i32
    %154 = vector.broadcast %c2_i32 : i32 to vector<8x128xi32>
    %155 = arith.cmpi eq, %34, %154 : vector<8x128xi32>
    %156 = vector.shape_cast %153 : vector<8x1xf32> to vector<8x1xf32>
    %157 = vector.broadcast %156 : vector<8x1xf32> to vector<8x128xf32>
    %158 = arith.select %155, %157, %117 : vector<8x128xi1>, vector<8x128xf32>
    %159 = arith.subf %158, %158 : vector<8x128xf32>
    %cst_26 = arith.constant 1.000000e+00 : f32
    %160 = vector.broadcast %cst_26 : f32 to vector<8x128xf32>
    %161 = arith.addf %159, %160 : vector<8x128xf32>
    %c0_27 = arith.constant 0 : index
    %c0_28 = arith.constant 0 : index
    %162 = vector.load %arg9[%c0_27, %c0_28] : memref<8x128xf32, #tpu.memory_space<vmem>>, vector<8x128xf32>
    tpu.vector_store %arg9[%c0_27, %c0_28], %161 {strides = array<i32>} : memref<8x128xf32, #tpu.memory_space<vmem>>, vector<8x128xf32>,
    return
  }
  func.func @transform_0(%arg0: i32) -> (i32, i32, i32) {
    %c0_i32 = arith.constant 0 : i32
    %c0_i32_0 = arith.constant 0 : i32
    %c0_i32_1 = arith.constant 0 : i32
    return %arg0, %c0_i32, %c0_i32_0 : i32, i32, i32
  }
  func.func @transform_1(%arg0: i32) -> (i32, i32, i32) {
    %c0_i32 = arith.constant 0 : i32
    %c0_i32_0 = arith.constant 0 : i32
    %c0_i32_1 = arith.constant 0 : i32
    return %arg0, %c0_i32, %c0_i32_0 : i32, i32, i32
  }
  func.func @transform_2(%arg0: i32) -> (i32, i32) {
    %c0_i32 = arith.constant 0 : i32
    %c0_i32_0 = arith.constant 0 : i32
    %c0_i32_1 = arith.constant 0 : i32
    return %c0_i32, %c0_i32_0 : i32, i32
  }
  func.func @transform_3(%arg0: i32) -> (i32, i32) {
    %c0_i32 = arith.constant 0 : i32
    %c0_i32_0 = arith.constant 0 : i32
    %c0_i32_1 = arith.constant 0 : i32
    return %c0_i32, %c0_i32_0 : i32, i32
  }
  func.func @transform_4(%arg0: i32) -> (i32, i32) {
    %c0_i32 = arith.constant 0 : i32
    %c0_i32_0 = arith.constant 0 : i32
    %c0_i32_1 = arith.constant 0 : i32
    return %c0_i32, %c0_i32_0 : i32, i32
  }
  func.func @transform_5(%arg0: i32) -> (i32, i32) {
    %c0_i32 = arith.constant 0 : i32
    %c0_i32_0 = arith.constant 0 : i32
    %c0_i32_1 = arith.constant 0 : i32
    return %c0_i32, %c0_i32_0 : i32, i32
  }
  func.func @transform_6(%arg0: i32) -> (i32, i32) {
    %c0_i32 = arith.constant 0 : i32
    %c0_i32_0 = arith.constant 0 : i32
    %c0_i32_1 = arith.constant 0 : i32
    return %c0_i32, %c0_i32_0 : i32, i32
  }
  func.func @transform_7(%arg0: i32) -> (i32, i32) {
    %c0_i32 = arith.constant 0 : i32
    %c0_i32_0 = arith.constant 0 : i32
    %c0_i32_1 = arith.constant 0 : i32
    return %c0_i32, %c0_i32_0 : i32, i32
  }
  func.func @transform_8(%arg0: i32) -> (i32, i32) {
    %c0_i32 = arith.constant 0 : i32
    %c0_i32_0 = arith.constant 0 : i32
    return %arg0, %c0_i32 : i32, i32
  }
}

</mosaic_0001>

<llo_original>
// kernel: tpu_custom_call.1
$region0: #{tpu_custom_call.1}
  #allocation0 [shape = 'u32[]', space=smem, size = 0x4, offset = 0x4, fixed_abs, tag = 'smem constant byte address 0x4 - core index']
  #allocation1 [shape = 'u32[144,128]{1,0:T(1,128)}', space=vmem, size = 0x12000, scoped, tag = 'internal scratch']
  %s0 = inlined_call_operand.hbm [shape: bf16[1,72,384], index: 0, kind: input, shape index: {}]
  %s1 = inlined_call_operand.vmem [shape: bf16[1,56,9], index: 1, kind: input, shape index: {}]
  %s2 = inlined_call_operand.hbm [shape: bf16[384,512], index: 2, kind: input, shape index: {}]
  %s3 = inlined_call_operand.hbm [shape: f32[1,512], index: 3, kind: input, shape index: {}]
  %s4 = inlined_call_operand.hbm [shape: bf16[9,512], index: 4, kind: input, shape index: {}]
  %s5 = inlined_call_operand.hbm [shape: f32[1,512], index: 5, kind: input, shape index: {}]
  %s6 = inlined_call_operand.hbm [shape: bf16[512,3584], index: 6, kind: input, shape index: {}]
  %s7 = inlined_call_operand.hbm [shape: f32[1,3584], index: 7, kind: input, shape index: {}]
  %s8 = inlined_call_operand.hbm [shape: f32[8,128], index: 8, kind: output, shape index: {}]
  %s9 = sld [smem:[#allocation0]]
  $region70: #{tpu_custom_call.1} parent=0
    _
  %s11 = ssub.s32 1, %s9
  %s12 = scalar_select 0, %s11, %s9
  $region1: #{tpu_custom_call.1} parent=0
    #allocation2 [shape = 'u8[55296]{0}', space=vmem, size = 0xd800, scoped, tag = 'input window, operand 0, single buffered']
    #allocation3 [shape = 's32[1]{0}', space=sflag, size = 0x4, scoped, tag = 'scoped memory for tpu_custom_call.1']
    #allocation4 [shape = 's32[1]{0}', space=sflag, size = 0x4, scoped, tag = 'scoped memory for tpu_custom_call.1']
    #allocation5 [shape = 'u8[393216]{0}', space=vmem, size = 0x60000, scoped, tag = 'input window, operand 2, single buffered']
    #allocation6 [shape = 's32[1]{0}', space=sflag, size = 0x4, scoped, tag = 'scoped memory for tpu_custom_call.1']
    #allocation7 [shape = 'u8[2048]{0}', space=vmem, size = 0x800, scoped, tag = 'input window, operand 3, single buffered']
    #allocation8 [shape = 'u8[16384]{0}', space=vmem, size = 0x4000, scoped, tag = 'input window, operand 4, single buffered']
    #allocation9 [shape = 's32[1]{0}', space=sflag, size = 0x4, scoped, tag = 'scoped memory for tpu_custom_call.1']
    #allocation10 [shape = 'u8[2048]{0}', space=vmem, size = 0x800, scoped, tag = 'input window, operand 5, single buffered']
    #allocation11 [shape = 'u8[3670016]{0}', space=vmem, size = 0x380000, scoped, tag = 'input window, operand 6, single buffered']
    #allocation12 [shape = 's32[1]{0}', space=sflag, size = 0x4, scoped, tag = 'scoped memory for tpu_custom_call.1']
    #allocation13 [shape = 'u8[14336]{0}', space=vmem, size = 0x3800, scoped, tag = 'input window, operand 7, single buffered']
    #allocation14 [shape = 'u8[4096]{0}', space=vmem, size = 0x1000, scoped, tag = 'output window, operand 0, single buffered']
    %13 = vsyncpa [#allocation3], 0
    %14 = vsyncpa [#allocation6], 0
    %15 = vsyncpa [#allocation9], 0
    %16 = vsyncpa [#allocation12], 0
    %17 = vsyncpa [#allocation4], 0
    // Predicated region
    $region2: #{tpu_custom_call.1} parent=1 // pred_check
      _
    $region3: #{tpu_custom_call.1} parent=1 // pred_check_branch
      %19 = sbr.rel (0) target = $region5
    $region4: #{tpu_custom_call.1} parent=1 // pred_region
      %s21 = ssub.s32 1728, 1728
      %22 = vsyncadd [#allocation3], %s21
      %s23 = sshll.u32 [#allocation2], 4
      %s24 = int_to_ptr.vmem [resolvable:$true] %s23
      %29 = dma.hbm_to_vmem [thread:$0]  %s0, 1728, %s24, [#allocation3], 192, 192, 12
    $region5: #{tpu_custom_call.1} parent=1 // pred_fallthru
      _
    // Predicated region
    $region6: #{tpu_custom_call.1} parent=1 // pred_check
      _
    $region7: #{tpu_custom_call.1} parent=1 // pred_check_branch
      %31 = sbr.rel (0) target = $region9
    $region8: #{tpu_custom_call.1} parent=1 // pred_region
      _
    $region9: #{tpu_custom_call.1} parent=1 // pred_fallthru
      _
    // Predicated region
    $region10: #{tpu_custom_call.1} parent=1 // pred_check
      _
    $region11: #{tpu_custom_call.1} parent=1 // pred_check_branch
      %33 = sbr.rel (0) target = $region13
    $region12: #{tpu_custom_call.1} parent=1 // pred_region
      %s35 = ssub.s32 12288, 12288
      %36 = vsyncadd [#allocation6], %s35
      %s37 = sshll.u32 [#allocation5], 4
      %s38 = int_to_ptr.vmem [resolvable:$true] %s37
      %43 = dma.hbm_to_vmem [thread:$0]  %s2, 12288, %s38, [#allocation6], 256, 256, 16
    $region13: #{tpu_custom_call.1} parent=1 // pred_fallthru
      _
    // Predicated region
    $region14: #{tpu_custom_call.1} parent=1 // pred_check
      _
    $region15: #{tpu_custom_call.1} parent=1 // pred_check_branch
      %45 = sbr.rel (0) target = $region17
    $region16: #{tpu_custom_call.1} parent=1 // pred_region
      %s47 = ssub.s32 64, 64
      %48 = vsyncadd [#allocation6], %s47
      %s50 = sshll.u32 [#allocation7], 4
      %s51 = int_to_ptr.vmem [resolvable:$true] %s50
      %53 = dma.hbm_to_vmem [thread:$0]  %s3, 64, %s51, [#allocation6]
    $region17: #{tpu_custom_call.1} parent=1 // pred_fallthru
      _
    // Predicated region
    $region18: #{tpu_custom_call.1} parent=1 // pred_check
      _
    $region19: #{tpu_custom_call.1} parent=1 // pred_check_branch
      %55 = sbr.rel (0) target = $region21
    $region20: #{tpu_custom_call.1} parent=1 // pred_region
      %s57 = ssub.s32 512, 512
      %58 = vsyncadd [#allocation9], %s57
      %s59 = sshll.u32 [#allocation8], 4
      %s60 = int_to_ptr.vmem [resolvable:$true] %s59
      %65 = dma.hbm_to_vmem [thread:$0]  %s4, 512, %s60, [#allocation9], 256, 256, 16
    $region21: #{tpu_custom_call.1} parent=1 // pred_fallthru
      _
    // Predicated region
    $region22: #{tpu_custom_call.1} parent=1 // pred_check
      _
    $region23: #{tpu_custom_call.1} parent=1 // pred_check_branch
      %67 = sbr.rel (0) target = $region25
    $region24: #{tpu_custom_call.1} parent=1 // pred_region
      %s69 = ssub.s32 64, 64
      %70 = vsyncadd [#allocation9], %s69
      %s72 = sshll.u32 [#allocation10], 4
      %s73 = int_to_ptr.vmem [resolvable:$true] %s72
      %75 = dma.hbm_to_vmem [thread:$0]  %s5, 64, %s73, [#allocation9]
    $region25: #{tpu_custom_call.1} parent=1 // pred_fallthru
      _
    // Predicated region
    $region26: #{tpu_custom_call.1} parent=1 // pred_check
      _
    $region27: #{tpu_custom_call.1} parent=1 // pred_check_branch
      %77 = sbr.rel (0) target = $region29
    $region28: #{tpu_custom_call.1} parent=1 // pred_region
      %s79 = ssub.s32 114688, 114688
      %80 = vsyncadd [#allocation12], %s79
      %s81 = sshll.u32 [#allocation11], 4
      %s82 = int_to_ptr.vmem [resolvable:$true] %s81
      %87 = dma.hbm_to_vmem [thread:$0]  %s6, 114688, %s82, [#allocation12], 1792, 1792, 112
    $region29: #{tpu_custom_call.1} parent=1 // pred_fallthru
      _
    // Predicated region
    $region30: #{tpu_custom_call.1} parent=1 // pred_check
      _
    $region31: #{tpu_custom_call.1} parent=1 // pred_check_branch
      %89 = sbr.rel (0) target = $region33
    $region32: #{tpu_custom_call.1} parent=1 // pred_region
      %s91 = ssub.s32 448, 448
      %92 = vsyncadd [#allocation12], %s91
      %s94 = sshll.u32 [#allocation13], 4
      %s95 = int_to_ptr.vmem [resolvable:$true] %s94
      %97 = dma.hbm_to_vmem [thread:$0]  %s7, 448, %s95, [#allocation12]
    $region33: #{tpu_custom_call.1} parent=1 // pred_fallthru
      _
    // Predicated region
    $region34: #{tpu_custom_call.1} parent=1 // pred_check
      _
    $region35: #{tpu_custom_call.1} parent=1 // pred_check_branch
      %99 = sbr.rel (0) target = $region37
    $region36: #{tpu_custom_call.1} parent=1 // pred_region
      %100 = dma.done [#allocation3], 1728
    $region37: #{tpu_custom_call.1} parent=1 // pred_fallthru
      _
    // Predicated region
    $region38: #{tpu_custom_call.1} parent=1 // pred_check
      _
    $region39: #{tpu_custom_call.1} parent=1 // pred_check_branch
      %102 = sbr.rel (0) target = $region41
    $region40: #{tpu_custom_call.1} parent=1 // pred_region
      %103 = dma.done [#allocation6], 12288
    $region41: #{tpu_custom_call.1} parent=1 // pred_fallthru
      _
    // Predicated region
    $region42: #{tpu_custom_call.1} parent=1 // pred_check
      _
    $region43: #{tpu_custom_call.1} parent=1 // pred_check_branch
      %105 = sbr.rel (0) target = $region45
    $region44: #{tpu_custom_call.1} parent=1 // pred_region
      %106 = dma.done [#allocation6], 64
    $region45: #{tpu_custom_call.1} parent=1 // pred_fallthru
      _
    // Predicated region
    $region46: #{tpu_custom_call.1} parent=1 // pred_check
      _
    $region47: #{tpu_custom_call.1} parent=1 // pred_check_branch
      %108 = sbr.rel (0) target = $region49
    $region48: #{tpu_custom_call.1} parent=1 // pred_region
      %109 = dma.done [#allocation9], 512
    $region49: #{tpu_custom_call.1} parent=1 // pred_fallthru
      _
    // Predicated region
    $region50: #{tpu_custom_call.1} parent=1 // pred_check
      _
    $region51: #{tpu_custom_call.1} parent=1 // pred_check_branch
      %111 = sbr.rel (0) target = $region53
    $region52: #{tpu_custom_call.1} parent=1 // pred_region
      %112 = dma.done [#allocation9], 64
    $region53: #{tpu_custom_call.1} parent=1 // pred_fallthru
      _
    // Predicated region
    $region54: #{tpu_custom_call.1} parent=1 // pred_check
      _
    $region55: #{tpu_custom_call.1} parent=1 // pred_check_branch
      %114 = sbr.rel (0) target = $region57
    $region56: #{tpu_custom_call.1} parent=1 // pred_region
      %115 = dma.done [#allocation12], 114688
    $region57: #{tpu_custom_call.1} parent=1 // pred_fallthru
      _
    // Predicated region
    $region58: #{tpu_custom_call.1} parent=1 // pred_check
      _
    $region59: #{tpu_custom_call.1} parent=1 // pred_check_branch
      %117 = sbr.rel (0) target = $region61
    $region60: #{tpu_custom_call.1} parent=1 // pred_region
      %118 = dma.done [#allocation12], 448
    $region61: #{tpu_custom_call.1} parent=1 // pred_fallthru
      _
    %v120 = vld [vmem:[#allocation2] sm:$0xff]
    %v121 = vld [vmem:[#allocation2 + $0x8] sm:$0xf]
    %v122 = vld [vmem:[#allocation2 + $0xc] sm:$0xff]
    %v123 = vld [vmem:[#allocation2 + $0x14] sm:$0xf]
    %v124 = vld [vmem:[#allocation2 + $0x18] sm:$0xff]
    %v125 = vld [vmem:[#allocation2 + $0x20] sm:$0xf]
    %v126 = vld [vmem:[#allocation2 + $0x24] sm:$0xff]
    %v127 = vld [vmem:[#allocation2 + $0x2c] sm:$0xf]
    %v128 = vld [vmem:[#allocation2 + $0x30] sm:$0xff]
    %v129 = vld [vmem:[#allocation2 + $0x38] sm:$0xf]
    %v130 = vld [vmem:[#allocation2 + $0x3c] sm:$0xff]
    %v131 = vld [vmem:[#allocation2 + $0x44] sm:$0xf]
    %v132 = vld [vmem:[#allocation2 + $0x48] sm:$0xff]
    %v133 = vld [vmem:[#allocation2 + $0x50] sm:$0xf]
    %v134 = vld [vmem:[#allocation2 + $0x54] sm:$0xff]
    %v135 = vld [vmem:[#allocation2 + $0x5c] sm:$0xf]
    %v136 = vld [vmem:[#allocation2 + $0x60] sm:$0xff]
    %v137 = vld [vmem:[#allocation2 + $0x68] sm:$0xf]
    %v138 = vld [vmem:[#allocation5] sm:$0xff]
    %v139 = vld [vmem:[#allocation5 + $0x8] sm:$0xff]
    %v140 = vld [vmem:[#allocation5 + $0x10] sm:$0xff]
    %v141 = vld [vmem:[#allocation5 + $0x18] sm:$0xff]
    %v142 = vld [vmem:[#allocation5 + $0x20] sm:$0xff]
    %v143 = vld [vmem:[#allocation5 + $0x28] sm:$0xff]
    %v144 = vld [vmem:[#allocation5 + $0x30] sm:$0xff]
    %v145 = vld [vmem:[#allocation5 + $0x38] sm:$0xff]
    %v146 = vld [vmem:[#allocation5 + $0x40] sm:$0xff]
    %v147 = vld [vmem:[#allocation5 + $0x48] sm:$0xff]
    %v148 = vld [vmem:[#allocation5 + $0x50] sm:$0xff]
    %v149 = vld [vmem:[#allocation5 + $0x58] sm:$0xff]
    %v150 = vld [vmem:[#allocation5 + $0x60] sm:$0xff]
    %v151 = vld [vmem:[#allocation5 + $0x68] sm:$0xff]
    %v152 = vld [vmem:[#allocation5 + $0x70] sm:$0xff]
    %v153 = vld [vmem:[#allocation5 + $0x78] sm:$0xff]
    %v154 = vld [vmem:[#allocation5 + $0x80] sm:$0xff]
    %v155 = vld [vmem:[#allocation5 + $0x88] sm:$0xff]
    %v156 = vld [vmem:[#allocation5 + $0x90] sm:$0xff]
    %v157 = vld [vmem:[#allocation5 + $0x98] sm:$0xff]
    %v158 = vld [vmem:[#allocation5 + $0xa0] sm:$0xff]
    %v159 = vld [vmem:[#allocation5 + $0xa8] sm:$0xff]
    %v160 = vld [vmem:[#allocation5 + $0xb0] sm:$0xff]
    %v161 = vld [vmem:[#allocation5 + $0xb8] sm:$0xff]
    %v162 = vld [vmem:[#allocation5 + $0xc0] sm:$0xff]
    %v163 = vld [vmem:[#allocation5 + $0xc8] sm:$0xff]
    %v164 = vld [vmem:[#allocation5 + $0xd0] sm:$0xff]
    %v165 = vld [vmem:[#allocation5 + $0xd8] sm:$0xff]
    %v166 = vld [vmem:[#allocation5 + $0xe0] sm:$0xff]
    %v167 = vld [vmem:[#allocation5 + $0xe8] sm:$0xff]
    %v168 = vld [vmem:[#allocation5 + $0xf0] sm:$0xff]
    %v169 = vld [vmem:[#allocation5 + $0xf8] sm:$0xff]
    %v170 = vld [vmem:[#allocation5 + $0x100] sm:$0xff]
    %v171 = vld [vmem:[#allocation5 + $0x108] sm:$0xff]
    %v172 = vld [vmem:[#allocation5 + $0x110] sm:$0xff]
    %v173 = vld [vmem:[#allocation5 + $0x118] sm:$0xff]
    %v174 = vld [vmem:[#allocation5 + $0x120] sm:$0xff]
    %v175 = vld [vmem:[#allocation5 + $0x128] sm:$0xff]
    %v176 = vld [vmem:[#allocation5 + $0x130] sm:$0xff]
    %v177 = vld [vmem:[#allocation5 + $0x138] sm:$0xff]
    %v178 = vld [vmem:[#allocation5 + $0x140] sm:$0xff]
    %v179 = vld [vmem:[#allocation5 + $0x148] sm:$0xff]
    %v180 = vld [vmem:[#allocation5 + $0x150] sm:$0xff]
    %v181 = vld [vmem:[#allocation5 + $0x158] sm:$0xff]
    %v182 = vld [vmem:[#allocation5 + $0x160] sm:$0xff]
    %v183 = vld [vmem:[#allocation5 + $0x168] sm:$0xff]
    %v184 = vld [vmem:[#allocation5 + $0x170] sm:$0xff]
    %v185 = vld [vmem:[#allocation5 + $0x178] sm:$0xff]
    %v186 = vld [vmem:[#allocation5 + $0x180] sm:$0xff]
    %v187 = vld [vmem:[#allocation5 + $0x188] sm:$0xff]
    %v188 = vld [vmem:[#allocation5 + $0x190] sm:$0xff]
    %v189 = vld [vmem:[#allocation5 + $0x198] sm:$0xff]
    %v190 = vld [vmem:[#allocation5 + $0x1a0] sm:$0xff]
    %v191 = vld [vmem:[#allocation5 + $0x1a8] sm:$0xff]
    %v192 = vld [vmem:[#allocation5 + $0x1b0] sm:$0xff]
    %v193 = vld [vmem:[#allocation5 + $0x1b8] sm:$0xff]
    %v194 = vld [vmem:[#allocation5 + $0x1c0] sm:$0xff]
    %v195 = vld [vmem:[#allocation5 + $0x1c8] sm:$0xff]
    %v196 = vld [vmem:[#allocation5 + $0x1d0] sm:$0xff]
    %v197 = vld [vmem:[#allocation5 + $0x1d8] sm:$0xff]
    %v198 = vld [vmem:[#allocation5 + $0x1e0] sm:$0xff]
    %v199 = vld [vmem:[#allocation5 + $0x1e8] sm:$0xff]
    %v200 = vld [vmem:[#allocation5 + $0x1f0] sm:$0xff]
    %v201 = vld [vmem:[#allocation5 + $0x1f8] sm:$0xff]
    %v202 = vld [vmem:[#allocation5 + $0x200] sm:$0xff]
    %v203 = vld [vmem:[#allocation5 + $0x208] sm:$0xff]
    %v204 = vld [vmem:[#allocation5 + $0x210] sm:$0xff]
    %v205 = vld [vmem:[#allocation5 + $0x218] sm:$0xff]
    %v206 = vld [vmem:[#allocation5 + $0x220] sm:$0xff]
    %v207 = vld [vmem:[#allocation5 + $0x228] sm:$0xff]
    %v208 = vld [vmem:[#allocation5 + $0x230] sm:$0xff]
    %v209 = vld [vmem:[#allocation5 + $0x238] sm:$0xff]
    %v210 = vld [vmem:[#allocation5 + $0x240] sm:$0xff]
    %v211 = vld [vmem:[#allocation5 + $0x248] sm:$0xff]
    %v212 = vld [vmem:[#allocation5 + $0x250] sm:$0xff]
    %v213 = vld [vmem:[#allocation5 + $0x258] sm:$0xff]
    %v214 = vld [vmem:[#allocation5 + $0x260] sm:$0xff]
    %v215 = vld [vmem:[#allocation5 + $0x268] sm:$0xff]
    %v216 = vld [vmem:[#allocation5 + $0x270] sm:$0xff]
    %v217 = vld [vmem:[#allocation5 + $0x278] sm:$0xff]
    %v218 = vld [vmem:[#allocation5 + $0x280] sm:$0xff]
    %v219 = vld [vmem:[#allocation5 + $0x288] sm:$0xff]
    %v220 = vld [vmem:[#allocation5 + $0x290] sm:$0xff]
    %v221 = vld [vmem:[#allocation5 + $0x298] sm:$0xff]
    %v222 = vld [vmem:[#allocation5 + $0x2a0] sm:$0xff]
    %v223 = vld [vmem:[#allocation5 + $0x2a8] sm:$0xff]
    %v224 = vld [vmem:[#allocation5 + $0x2b0] sm:$0xff]
    %v225 = vld [vmem:[#allocation5 + $0x2b8] sm:$0xff]
    %v226 = vld [vmem:[#allocation5 + $0x2c0] sm:$0xff]
    %v227 = vld [vmem:[#allocation5 + $0x2c8] sm:$0xff]
    %v228 = vld [vmem:[#allocation5 + $0x2d0] sm:$0xff]
    %v229 = vld [vmem:[#allocation5 + $0x2d8] sm:$0xff]
    %v230 = vld [vmem:[#allocation5 + $0x2e0] sm:$0xff]
    %v231 = vld [vmem:[#allocation5 + $0x2e8] sm:$0xff]
    %v232 = vld [vmem:[#allocation5 + $0x2f0] sm:$0xff]
    %v233 = vld [vmem:[#allocation5 + $0x2f8] sm:$0xff]
    %v234 = vld [vmem:[#allocation7] sm:$0xf]
    %v236 = vlaneseq
    %v237 = vshrl.u32 %v236, 7
    %v238 = vsub.s32 0, %v237
    %v239 = vrot.slane %v234, %v238
    %v240 = vlaneseq
    %v241 = vshrl.u32 %v240, 7
    %v242 = vsub.s32 1, %v241
    %v243 = vrot.slane %v234, %v242
    %v244 = vlaneseq
    %v245 = vshrl.u32 %v244, 7
    %v246 = vsub.s32 2, %v245
    %v247 = vrot.slane %v234, %v246
    %v248 = vlaneseq
    %v249 = vshrl.u32 %v248, 7
    %v250 = vsub.s32 3, %v249
    %v251 = vrot.slane %v234, %v250
    %v274 = vunpack.c.l.b16 %v120
    %v275 = vunpack.c.h.b16 %v120
    %v276 = vunpack.c.l.b16 %v121
    %v277 = vunpack.c.l.b16 %v122
    %v278 = vunpack.c.h.b16 %v122
    %v279 = vunpack.c.l.b16 %v123
    %v280 = vunpack.c.l.b16 %v124
    %v281 = vunpack.c.h.b16 %v124
    %v282 = vunpack.c.l.b16 %v125
    %v283 = vunpack.c.l.b16 %v126
    %v284 = vunpack.c.h.b16 %v126
    %v285 = vunpack.c.l.b16 %v127
    %v286 = vunpack.c.l.b16 %v128
    %v287 = vunpack.c.h.b16 %v128
    %v288 = vunpack.c.l.b16 %v129
    %v289 = vunpack.c.l.b16 %v130
    %v290 = vunpack.c.h.b16 %v130
    %v291 = vunpack.c.l.b16 %v131
    %v292 = vunpack.c.l.b16 %v132
    %v293 = vunpack.c.h.b16 %v132
    %v294 = vunpack.c.l.b16 %v133
    %v295 = vunpack.c.l.b16 %v134
    %v296 = vunpack.c.h.b16 %v134
    %v297 = vunpack.c.l.b16 %v135
    %v298 = vunpack.c.l.b16 %v136
    %v299 = vunpack.c.h.b16 %v136
    %v300 = vunpack.c.l.b16 %v137
    %v301 = vpack.c.b16 %v277, %v274
    %v302 = vpack.c.b16 %v278, %v275
    %v303 = vpack.c.b16 %v279, %v276
    %v304 = vpack.c.b16 %v283, %v280
    %v305 = vpack.c.b16 %v284, %v281
    %v306 = vpack.c.b16 %v285, %v282
    %v307 = vpack.c.b16 %v289, %v286
    %v308 = vpack.c.b16 %v290, %v287
    %v309 = vpack.c.b16 %v291, %v288
    %v310 = vpack.c.b16 %v295, %v292
    %v311 = vpack.c.b16 %v296, %v293
    %v312 = vpack.c.b16 %v297, %v294
    %v313 = vpack.c.b16 %v298, %v298
    %v314 = vpack.c.b16 %v299, %v299
    %v315 = vpack.c.b16 %v300, %v300
    %v427 = vunpack.c.l.b16 %v138
    %v428 = vunpack.c.h.b16 %v138
    %v429 = vunpack.c.l.b16 %v139
    %v430 = vunpack.c.h.b16 %v139
    %v431 = vunpack.c.l.b16 %v140
    %v432 = vunpack.c.h.b16 %v140
    %v433 = vunpack.c.l.b16 %v141
    %v434 = vunpack.c.h.b16 %v141
    %v435 = vunpack.c.l.b16 %v142
    %v436 = vunpack.c.h.b16 %v142
    %v437 = vunpack.c.l.b16 %v143
    %v438 = vunpack.c.h.b16 %v143
    %v439 = vunpack.c.l.b16 %v144
    %v440 = vunpack.c.h.b16 %v144
    %v441 = vunpack.c.l.b16 %v145
    %v442 = vunpack.c.h.b16 %v145
    %v443 = vunpack.c.l.b16 %v146
    %v444 = vunpack.c.h.b16 %v146
    %v445 = vunpack.c.l.b16 %v147
    %v446 = vunpack.c.h.b16 %v147
    %v447 = vunpack.c.l.b16 %v148
    %v448 = vunpack.c.h.b16 %v148
    %v449 = vunpack.c.l.b16 %v149
    %v450 = vunpack.c.h.b16 %v149
    %v451 = vunpack.c.l.b16 %v150
    %v452 = vunpack.c.h.b16 %v150
    %v453 = vunpack.c.l.b16 %v151
    %v454 = vunpack.c.h.b16 %v151
    %v455 = vunpack.c.l.b16 %v152
    %v456 = vunpack.c.h.b16 %v152
    %v457 = vunpack.c.l.b16 %v153
    %v458 = vunpack.c.h.b16 %v153
    %v459 = vunpack.c.l.b16 %v154
    %v460 = vunpack.c.h.b16 %v154
    %v461 = vunpack.c.l.b16 %v155
    %v462 = vunpack.c.h.b16 %v155
    %v463 = vunpack.c.l.b16 %v156
    %v464 = vunpack.c.h.b16 %v156
    %v465 = vunpack.c.l.b16 %v157
    %v466 = vunpack.c.h.b16 %v157
    %v467 = vunpack.c.l.b16 %v158
    %v468 = vunpack.c.h.b16 %v158
    %v469 = vunpack.c.l.b16 %v159
    %v470 = vunpack.c.h.b16 %v159
    %v471 = vunpack.c.l.b16 %v160
    %v472 = vunpack.c.h.b16 %v160
    %v473 = vunpack.c.l.b16 %v161
    %v474 = vunpack.c.h.b16 %v161
    %v475 = vunpack.c.l.b16 %v162
    %v476 = vunpack.c.h.b16 %v162
    %v477 = vunpack.c.l.b16 %v163
    %v478 = vunpack.c.h.b16 %v163
    %v479 = vunpack.c.l.b16 %v164
    %v480 = vunpack.c.h.b16 %v164
    %v481 = vunpack.c.l.b16 %v165
    %v482 = vunpack.c.h.b16 %v165
    %v483 = vunpack.c.l.b16 %v166
    %v484 = vunpack.c.h.b16 %v166
    %v485 = vunpack.c.l.b16 %v167
    %v486 = vunpack.c.h.b16 %v167
    %v487 = vunpack.c.l.b16 %v168
    %v488 = vunpack.c.h.b16 %v168
    %v489 = vunpack.c.l.b16 %v169
    %v490 = vunpack.c.h.b16 %v169
    %v491 = vunpack.c.l.b16 %v170
    %v492 = vunpack.c.h.b16 %v170
    %v493 = vunpack.c.l.b16 %v171
    %v494 = vunpack.c.h.b16 %v171
    %v495 = vunpack.c.l.b16 %v172
    %v496 = vunpack.c.h.b16 %v172
    %v497 = vunpack.c.l.b16 %v173
    %v498 = vunpack.c.h.b16 %v173
    %v499 = vunpack.c.l.b16 %v174
    %v500 = vunpack.c.h.b16 %v174
    %v501 = vunpack.c.l.b16 %v175
    %v502 = vunpack.c.h.b16 %v175
    %v503 = vunpack.c.l.b16 %v176
    %v504 = vunpack.c.h.b16 %v176
    %v505 = vunpack.c.l.b16 %v177
    %v506 = vunpack.c.h.b16 %v177
    %v507 = vunpack.c.l.b16 %v178
    %v508 = vunpack.c.h.b16 %v178
    %v509 = vunpack.c.l.b16 %v179
    %v510 = vunpack.c.h.b16 %v179
    %v511 = vunpack.c.l.b16 %v180
    %v512 = vunpack.c.h.b16 %v180
    %v513 = vunpack.c.l.b16 %v181
    %v514 = vunpack.c.h.b16 %v181
    %v515 = vunpack.c.l.b16 %v182
    %v516 = vunpack.c.h.b16 %v182
    %v517 = vunpack.c.l.b16 %v183
    %v518 = vunpack.c.h.b16 %v183
    %v519 = vunpack.c.l.b16 %v184
    %v520 = vunpack.c.h.b16 %v184
    %v521 = vunpack.c.l.b16 %v185
    %v522 = vunpack.c.h.b16 %v185
    %v523 = vunpack.c.l.b16 %v186
    %v524 = vunpack.c.h.b16 %v186
    %v525 = vunpack.c.l.b16 %v187
    %v526 = vunpack.c.h.b16 %v187
    %v527 = vunpack.c.l.b16 %v188
    %v528 = vunpack.c.h.b16 %v188
    %v529 = vunpack.c.l.b16 %v189
    %v530 = vunpack.c.h.b16 %v189
    %v531 = vunpack.c.l.b16 %v190
    %v532 = vunpack.c.h.b16 %v190
    %v533 = vunpack.c.l.b16 %v191
    %v534 = vunpack.c.h.b16 %v191
    %v535 = vunpack.c.l.b16 %v192
    %v536 = vunpack.c.h.b16 %v192
    %v537 = vunpack.c.l.b16 %v193
    %v538 = vunpack.c.h.b16 %v193
    %v539 = vunpack.c.l.b16 %v194
    %v540 = vunpack.c.h.b16 %v194
    %v541 = vunpack.c.l.b16 %v195
    %v542 = vunpack.c.h.b16 %v195
    %v543 = vunpack.c.l.b16 %v196
    %v544 = vunpack.c.h.b16 %v196
    %v545 = vunpack.c.l.b16 %v197
    %v546 = vunpack.c.h.b16 %v197
    %v547 = vunpack.c.l.b16 %v198
    %v548 = vunpack.c.h.b16 %v198
    %v549 = vunpack.c.l.b16 %v199
    %v550 = vunpack.c.h.b16 %v199
    %v551 = vunpack.c.l.b16 %v200
    %v552 = vunpack.c.h.b16 %v200
    %v553 = vunpack.c.l.b16 %v201
    %v554 = vunpack.c.h.b16 %v201
    %v555 = vunpack.c.l.b16 %v202
    %v556 = vunpack.c.h.b16 %v202
    %v557 = vunpack.c.l.b16 %v203
    %v558 = vunpack.c.h.b16 %v203
    %v559 = vunpack.c.l.b16 %v204
    %v560 = vunpack.c.h.b16 %v204
    %v561 = vunpack.c.l.b16 %v205
    %v562 = vunpack.c.h.b16 %v205
    %v563 = vunpack.c.l.b16 %v206
    %v564 = vunpack.c.h.b16 %v206
    %v565 = vunpack.c.l.b16 %v207
    %v566 = vunpack.c.h.b16 %v207
    %v567 = vunpack.c.l.b16 %v208
    %v568 = vunpack.c.h.b16 %v208
    %v569 = vunpack.c.l.b16 %v209
    %v570 = vunpack.c.h.b16 %v209
    %v571 = vunpack.c.l.b16 %v210
    %v572 = vunpack.c.h.b16 %v210
    %v573 = vunpack.c.l.b16 %v211
    %v574 = vunpack.c.h.b16 %v211
    %v575 = vunpack.c.l.b16 %v212
    %v576 = vunpack.c.h.b16 %v212
    %v577 = vunpack.c.l.b16 %v213
    %v578 = vunpack.c.h.b16 %v213
    %v579 = vunpack.c.l.b16 %v214
    %v580 = vunpack.c.h.b16 %v214
    %v581 = vunpack.c.l.b16 %v215
    %v582 = vunpack.c.h.b16 %v215
    %v583 = vunpack.c.l.b16 %v216
    %v584 = vunpack.c.h.b16 %v216
    %v585 = vunpack.c.l.b16 %v217
    %v586 = vunpack.c.h.b16 %v217
    %v587 = vunpack.c.l.b16 %v218
    %v588 = vunpack.c.h.b16 %v218
    %v589 = vunpack.c.l.b16 %v219
    %v590 = vunpack.c.h.b16 %v219
    %v591 = vunpack.c.l.b16 %v220
    %v592 = vunpack.c.h.b16 %v220
    %v593 = vunpack.c.l.b16 %v221
    %v594 = vunpack.c.h.b16 %v221
    %v595 = vunpack.c.l.b16 %v222
    %v596 = vunpack.c.h.b16 %v222
    %v597 = vunpack.c.l.b16 %v223
    %v598 = vunpack.c.h.b16 %v223
    %v599 = vunpack.c.l.b16 %v224
    %v600 = vunpack.c.h.b16 %v224
    %v601 = vunpack.c.l.b16 %v225
    %v602 = vunpack.c.h.b16 %v225
    %v603 = vunpack.c.l.b16 %v226
    %v604 = vunpack.c.h.b16 %v226
    %v605 = vunpack.c.l.b16 %v227
    %v606 = vunpack.c.h.b16 %v227
    %v607 = vunpack.c.l.b16 %v228
    %v608 = vunpack.c.h.b16 %v228
    %v609 = vunpack.c.l.b16 %v229
    %v610 = vunpack.c.h.b16 %v229
    %v611 = vunpack.c.l.b16 %v230
    %v612 = vunpack.c.h.b16 %v230
    %v613 = vunpack.c.l.b16 %v231
    %v614 = vunpack.c.h.b16 %v231
    %v615 = vunpack.c.l.b16 %v232
    %v616 = vunpack.c.h.b16 %v232
    %v617 = vunpack.c.l.b16 %v233
    %v618 = vunpack.c.h.b16 %v233
    %v619 = vpack.c.b16 %v431, %v427
    %v620 = vpack.c.b16 %v432, %v428
    %v621 = vpack.c.b16 %v433, %v429
    %v622 = vpack.c.b16 %v434, %v430
    %v623 = vpack.c.b16 %v439, %v435
    %v624 = vpack.c.b16 %v440, %v436
    %v625 = vpack.c.b16 %v441, %v437
    %v626 = vpack.c.b16 %v442, %v438
    %v627 = vpack.c.b16 %v447, %v443
    %v628 = vpack.c.b16 %v448, %v444
    %v629 = vpack.c.b16 %v449, %v445
    %v630 = vpack.c.b16 %v450, %v446
    %v631 = vpack.c.b16 %v455, %v451
    %v632 = vpack.c.b16 %v456, %v452
    %v633 = vpack.c.b16 %v457, %v453
    %v634 = vpack.c.b16 %v458, %v454
    %v635 = vpack.c.b16 %v463, %v459
    %v636 = vpack.c.b16 %v464, %v460
    %v637 = vpack.c.b16 %v465, %v461
    %v638 = vpack.c.b16 %v466, %v462
    %v639 = vpack.c.b16 %v471, %v467
    %v640 = vpack.c.b16 %v472, %v468
    %v641 = vpack.c.b16 %v473, %v469
    %v642 = vpack.c.b16 %v474, %v470
    %v643 = vpack.c.b16 %v479, %v475
    %v644 = vpack.c.b16 %v480, %v476
    %v645 = vpack.c.b16 %v481, %v477
    %v646 = vpack.c.b16 %v482, %v478
    %v647 = vpack.c.b16 %v487, %v483
    %v648 = vpack.c.b16 %v488, %v484
    %v649 = vpack.c.b16 %v489, %v485
    %v650 = vpack.c.b16 %v490, %v486
    %v651 = vpack.c.b16 %v495, %v491
    %v652 = vpack.c.b16 %v496, %v492
    %v653 = vpack.c.b16 %v497, %v493
    %v654 = vpack.c.b16 %v498, %v494
    %v655 = vpack.c.b16 %v503, %v499
    %v656 = vpack.c.b16 %v504, %v500
    %v657 = vpack.c.b16 %v505, %v501
    %v658 = vpack.c.b16 %v506, %v502
    %v659 = vpack.c.b16 %v511, %v507
    %v660 = vpack.c.b16 %v512, %v508
    %v661 = vpack.c.b16 %v513, %v509
    %v662 = vpack.c.b16 %v514, %v510
    %v663 = vpack.c.b16 %v519, %v515
    %v664 = vpack.c.b16 %v520, %v516
    %v665 = vpack.c.b16 %v521, %v517
    %v666 = vpack.c.b16 %v522, %v518
    %v667 = vpack.c.b16 %v527, %v523
    %v668 = vpack.c.b16 %v528, %v524
    %v669 = vpack.c.b16 %v529, %v525
    %v670 = vpack.c.b16 %v530, %v526
    %v671 = vpack.c.b16 %v535, %v531
    %v672 = vpack.c.b16 %v536, %v532
    %v673 = vpack.c.b16 %v537, %v533
    %v674 = vpack.c.b16 %v538, %v534
    %v675 = vpack.c.b16 %v543, %v539
    %v676 = vpack.c.b16 %v544, %v540
    %v677 = vpack.c.b16 %v545, %v541
    %v678 = vpack.c.b16 %v546, %v542
    %v679 = vpack.c.b16 %v551, %v547
    %v680 = vpack.c.b16 %v552, %v548
    %v681 = vpack.c.b16 %v553, %v549
    %v682 = vpack.c.b16 %v554, %v550
    %v683 = vpack.c.b16 %v559, %v555
    %v684 = vpack.c.b16 %v560, %v556
    %v685 = vpack.c.b16 %v561, %v557
    %v686 = vpack.c.b16 %v562, %v558
    %v687 = vpack.c.b16 %v567, %v563
    %v688 = vpack.c.b16 %v568, %v564
    %v689 = vpack.c.b16 %v569, %v565
    %v690 = vpack.c.b16 %v570, %v566
    %v691 = vpack.c.b16 %v575, %v571
    %v692 = vpack.c.b16 %v576, %v572
    %v693 = vpack.c.b16 %v577, %v573
    %v694 = vpack.c.b16 %v578, %v574
    %v695 = vpack.c.b16 %v583, %v579
    %v696 = vpack.c.b16 %v584, %v580
    %v697 = vpack.c.b16 %v585, %v581
    %v698 = vpack.c.b16 %v586, %v582
    %v699 = vpack.c.b16 %v591, %v587
    %v700 = vpack.c.b16 %v592, %v588
    %v701 = vpack.c.b16 %v593, %v589
    %v702 = vpack.c.b16 %v594, %v590
    %v703 = vpack.c.b16 %v599, %v595
    %v704 = vpack.c.b16 %v600, %v596
    %v705 = vpack.c.b16 %v601, %v597
    %v706 = vpack.c.b16 %v602, %v598
    %v707 = vpack.c.b16 %v607, %v603
    %v708 = vpack.c.b16 %v608, %v604
    %v709 = vpack.c.b16 %v609, %v605
    %v710 = vpack.c.b16 %v610, %v606
    %v711 = vpack.c.b16 %v615, %v611
    %v712 = vpack.c.b16 %v616, %v612
    %v713 = vpack.c.b16 %v617, %v613
    %v714 = vpack.c.b16 %v618, %v614
    %811 = vmatprep.subr.bf16.mxu0 %v648
    %812 = vmatpush1.bf16.msra.mxu0 %v647
    %813 = vmatprep.subr.bf16.mxu0 %v644
    %814 = vmatpush1.bf16.msra.mxu0 %v643
    %815 = vmatprep.subr.bf16.mxu0 %v640
    %816 = vmatpush1.bf16.msra.mxu0 %v639
    %817 = vmatprep.subr.bf16.mxu0 %v636
    %818 = vmatpush1.bf16.msra.mxu0 %v635
    %819 = vmatprep.subr.bf16.mxu0 %v632
    %820 = vmatpush1.bf16.msra.mxu0 %v631
    %821 = vmatprep.subr.bf16.mxu0 %v628
    %822 = vmatpush1.bf16.msra.mxu0 %v627
    %823 = vmatprep.subr.bf16.mxu0 %v624
    %824 = vmatpush1.bf16.msra.mxu0 %v623
    %825 = vmatprep.subr.bf16.mxu0 %v620
    %826 = vmatpush1.bf16.msra.mxu0 %v619
    %827 = vmatprep.subr.bf16.mxu0 %v680
    %828 = vmatpush2.bf16.msra.mxu0 %v679
    %829 = vmatprep.subr.bf16.mxu0 %v676
    %830 = vmatpush2.bf16.msra.mxu0 %v675
    %831 = vmatprep.subr.bf16.mxu0 %v672
    %832 = vmatpush2.bf16.msra.mxu0 %v671
    %833 = vmatprep.subr.bf16.mxu0 %v668
    %834 = vmatpush2.bf16.msra.mxu0 %v667
    %835 = vmatprep.subr.bf16.mxu0 %v664
    %836 = vmatpush2.bf16.msra.mxu0 %v663
    %837 = vmatprep.subr.bf16.mxu0 %v660
    %838 = vmatpush2.bf16.msra.mxu0 %v659
    %839 = vmatprep.subr.bf16.mxu0 %v656
    %840 = vmatpush2.bf16.msra.mxu0 %v655
    %841 = vmatprep.subr.bf16.mxu0 %v652
    %842 = vmatpush2.bf16.msra.mxu0 %v651
    %843 = vmatprep.mubr.bf16.mxu0 %v302
    %844 = vmatmul.mubr.bf16.gmra.mxu0 %v301
    %v845 = vpop.f32.mrf.mxu0
    %v846 = vadd.f32 %v239, %v845
    %v847 = vpop.f32.mrf.mxu0
    %v848 = vadd.f32 %v243, %v847
    %v849 = vpop.f32.mrf.mxu0
    %v850 = vadd.f32 %v239, %v849
    %v851 = vpop.f32.mrf.mxu0
    %v852 = vadd.f32 %v243, %v851
    %853 = vmatprep.mubr.bf16.mxu0 %v305
    %854 = vmatmul.mubr.bf16.gmra.mxu0 %v304
    %v855 = vpop.f32.mrf.mxu0
    %v856 = vadd.f32 %v239, %v855
    %v857 = vpop.f32.mrf.mxu0
    %v858 = vadd.f32 %v243, %v857
    %v859 = vpop.f32.mrf.mxu0
    %v860 = vadd.f32 %v239, %v859
    %v861 = vpop.f32.mrf.mxu0
    %v862 = vadd.f32 %v243, %v861
    %863 = vmatprep.mubr.bf16.mxu0 %v308
    %864 = vmatmul.mubr.bf16.gmra.mxu0 %v307
    %v865 = vpop.f32.mrf.mxu0
    %v866 = vadd.f32 %v239, %v865
    %v867 = vpop.f32.mrf.mxu0
    %v868 = vadd.f32 %v243, %v867
    %v869 = vpop.f32.mrf.mxu0
    %v870 = vadd.f32 %v239, %v869
    %v871 = vpop.f32.mrf.mxu0
    %v872 = vadd.f32 %v243, %v871
    %873 = vmatprep.mubr.bf16.mxu0 %v311
    %874 = vmatmul.mubr.bf16.gmra.mxu0 %v310
    %v875 = vpop.f32.mrf.mxu0
    %v876 = vadd.f32 %v239, %v875
    %v877 = vpop.f32.mrf.mxu0
    %v878 = vadd.f32 %v243, %v877
    %v879 = vpop.f32.mrf.mxu0
    %v880 = vadd.f32 %v239, %v879
    %v881 = vpop.f32.mrf.mxu0
    %v882 = vadd.f32 %v243, %v881
    %883 = vmatprep.mubr.bf16.mxu0 %v314
    %884 = vmatmul.mubr.bf16.gmra.mxu0 %v313
    %v885 = vpop.f32.mrf.mxu0
    %v886 = vadd.f32 %v239, %v885
    %v887 = vpop.f32.mrf.mxu0
    %v888 = vadd.f32 %v243, %v887
    %v889 = vpop.f32.mrf.mxu0
    %v890 = vpop.f32.mrf.mxu0
    %891 = vdwg.mxu0
    %892 = vmatprep.subr.bf16.mxu0 %v712
    %893 = vmatpush1.bf16.msra.mxu0 %v711
    %894 = vmatprep.subr.bf16.mxu0 %v708
    %895 = vmatpush1.bf16.msra.mxu0 %v707
    %896 = vmatprep.subr.bf16.mxu0 %v704
    %897 = vmatpush1.bf16.msra.mxu0 %v703
    %898 = vmatprep.subr.bf16.mxu0 %v700
    %899 = vmatpush1.bf16.msra.mxu0 %v699
    %900 = vmatprep.subr.bf16.mxu0 %v696
    %901 = vmatpush1.bf16.msra.mxu0 %v695
    %902 = vmatprep.subr.bf16.mxu0 %v692
    %903 = vmatpush1.bf16.msra.mxu0 %v691
    %904 = vmatprep.subr.bf16.mxu0 %v688
    %905 = vmatpush1.bf16.msra.mxu0 %v687
    %906 = vmatprep.subr.bf16.mxu0 %v684
    %907 = vmatpush1.bf16.msra.mxu0 %v683
    %908 = vmatprep.subr.bf16.mxu0 0
    %909 = vmatpush2.bf16.msra.mxu0 0
    %910 = vmatprep.subr.bf16.mxu0 0
    %911 = vmatpush2.bf16.msra.mxu0 0
    %912 = vmatprep.subr.bf16.mxu0 0
    %913 = vmatpush2.bf16.msra.mxu0 0
    %914 = vmatprep.subr.bf16.mxu0 0
    %915 = vmatpush2.bf16.msra.mxu0 0
    %916 = vmatprep.subr.bf16.mxu0 0
    %917 = vmatpush2.bf16.msra.mxu0 0
    %918 = vmatprep.subr.bf16.mxu0 0
    %919 = vmatpush2.bf16.msra.mxu0 0
    %920 = vmatprep.subr.bf16.mxu0 0
    %921 = vmatpush2.bf16.msra.mxu0 0
    %922 = vmatprep.subr.bf16.mxu0 0
    %923 = vmatpush2.bf16.msra.mxu0 0
    %924 = vmatprep.mubr.bf16.mxu0 0
    %925 = vmatmul.mubr.bf16.gmra.mxu0 %v303
    %v926 = vpop.f32.mrf.mxu0
    %v927 = vadd.f32 %v846, %v926
    %v928 = vpop.f32.mrf.mxu0
    %v929 = vadd.f32 %v848, %v928
    %v930 = vpop.f32.mrf.mxu0
    %v931 = vadd.f32 %v850, %v930
    %v932 = vpop.f32.mrf.mxu0
    %v933 = vadd.f32 %v852, %v932
    %934 = vmatprep.mubr.bf16.mxu0 0
    %935 = vmatmul.mubr.bf16.gmra.mxu0 %v306
    %v936 = vpop.f32.mrf.mxu0
    %v937 = vadd.f32 %v856, %v936
    %v938 = vpop.f32.mrf.mxu0
    %v939 = vadd.f32 %v858, %v938
    %v940 = vpop.f32.mrf.mxu0
    %v941 = vadd.f32 %v860, %v940
    %v942 = vpop.f32.mrf.mxu0
    %v943 = vadd.f32 %v862, %v942
    %944 = vmatprep.mubr.bf16.mxu0 0
    %945 = vmatmul.mubr.bf16.gmra.mxu0 %v309
    %v946 = vpop.f32.mrf.mxu0
    %v947 = vadd.f32 %v866, %v946
    %v948 = vpop.f32.mrf.mxu0
    %v949 = vadd.f32 %v868, %v948
    %v950 = vpop.f32.mrf.mxu0
    %v951 = vadd.f32 %v870, %v950
    %v952 = vpop.f32.mrf.mxu0
    %v953 = vadd.f32 %v872, %v952
    %954 = vmatprep.mubr.bf16.mxu0 0
    %955 = vmatmul.mubr.bf16.gmra.mxu0 %v312
    %v956 = vpop.f32.mrf.mxu0
    %v957 = vadd.f32 %v876, %v956
    %v958 = vpop.f32.mrf.mxu0
    %v959 = vadd.f32 %v878, %v958
    %v960 = vpop.f32.mrf.mxu0
    %v961 = vadd.f32 %v880, %v960
    %v962 = vpop.f32.mrf.mxu0
    %v963 = vadd.f32 %v882, %v962
    %964 = vmatprep.mubr.bf16.mxu0 0
    %965 = vmatmul.mubr.bf16.gmra.mxu0 %v315
    %v966 = vpop.f32.mrf.mxu0
    %v967 = vadd.f32 %v886, %v966
    %v968 = vpop.f32.mrf.mxu0
    %v969 = vadd.f32 %v888, %v968
    %v970 = vpop.f32.mrf.mxu0
    %v971 = vpop.f32.mrf.mxu0
    %972 = vdwg.mxu0
    %973 = vmatprep.subr.bf16.mxu0 %v650
    %974 = vmatpush1.bf16.msra.mxu0 %v649
    %975 = vmatprep.subr.bf16.mxu0 %v646
    %976 = vmatpush1.bf16.msra.mxu0 %v645
    %977 = vmatprep.subr.bf16.mxu0 %v642
    %978 = vmatpush1.bf16.msra.mxu0 %v641
    %979 = vmatprep.subr.bf16.mxu0 %v638
    %980 = vmatpush1.bf16.msra.mxu0 %v637
    %981 = vmatprep.subr.bf16.mxu0 %v634
    %982 = vmatpush1.bf16.msra.mxu0 %v633
    %983 = vmatprep.subr.bf16.mxu0 %v630
    %984 = vmatpush1.bf16.msra.mxu0 %v629
    %985 = vmatprep.subr.bf16.mxu0 %v626
    %986 = vmatpush1.bf16.msra.mxu0 %v625
    %987 = vmatprep.subr.bf16.mxu0 %v622
    %988 = vmatpush1.bf16.msra.mxu0 %v621
    %989 = vmatprep.subr.bf16.mxu0 %v682
    %990 = vmatpush2.bf16.msra.mxu0 %v681
    %991 = vmatprep.subr.bf16.mxu0 %v678
    %992 = vmatpush2.bf16.msra.mxu0 %v677
    %993 = vmatprep.subr.bf16.mxu0 %v674
    %994 = vmatpush2.bf16.msra.mxu0 %v673
    %995 = vmatprep.subr.bf16.mxu0 %v670
    %996 = vmatpush2.bf16.msra.mxu0 %v669
    %997 = vmatprep.subr.bf16.mxu0 %v666
    %998 = vmatpush2.bf16.msra.mxu0 %v665
    %999 = vmatprep.subr.bf16.mxu0 %v662
    %1000 = vmatpush2.bf16.msra.mxu0 %v661
    %1001 = vmatprep.subr.bf16.mxu0 %v658
    %1002 = vmatpush2.bf16.msra.mxu0 %v657
    %1003 = vmatprep.subr.bf16.mxu0 %v654
    %1004 = vmatpush2.bf16.msra.mxu0 %v653
    %1005 = vmatprep.mubr.bf16.mxu0 %v302
    %1006 = vmatmul.mubr.bf16.gmra.mxu0 %v301
    %v1007 = vpop.f32.mrf.mxu0
    %v1008 = vadd.f32 %v247, %v1007
    %v1009 = vpop.f32.mrf.mxu0
    %v1010 = vadd.f32 %v251, %v1009
    %v1011 = vpop.f32.mrf.mxu0
    %v1012 = vadd.f32 %v247, %v1011
    %v1013 = vpop.f32.mrf.mxu0
    %v1014 = vadd.f32 %v251, %v1013
    %1015 = vmatprep.mubr.bf16.mxu0 %v305
    %1016 = vmatmul.mubr.bf16.gmra.mxu0 %v304
    %v1017 = vpop.f32.mrf.mxu0
    %v1018 = vadd.f32 %v247, %v1017
    %v1019 = vpop.f32.mrf.mxu0
    %v1020 = vadd.f32 %v251, %v1019
    %v1021 = vpop.f32.mrf.mxu0
    %v1022 = vadd.f32 %v247, %v1021
    %v1023 = vpop.f32.mrf.mxu0
    %v1024 = vadd.f32 %v251, %v1023
    %1025 = vmatprep.mubr.bf16.mxu0 %v308
    %1026 = vmatmul.mubr.bf16.gmra.mxu0 %v307
    %v1027 = vpop.f32.mrf.mxu0
    %v1028 = vadd.f32 %v247, %v1027
    %v1029 = vpop.f32.mrf.mxu0
    %v1030 = vadd.f32 %v251, %v1029
    %v1031 = vpop.f32.mrf.mxu0
    %v1032 = vadd.f32 %v247, %v1031
    %v1033 = vpop.f32.mrf.mxu0
    %v1034 = vadd.f32 %v251, %v1033
    %1035 = vmatprep.mubr.bf16.mxu0 %v311
    %1036 = vmatmul.mubr.bf16.gmra.mxu0 %v310
    %v1037 = vpop.f32.mrf.mxu0
    %v1038 = vadd.f32 %v247, %v1037
    %v1039 = vpop.f32.mrf.mxu0
    %v1040 = vadd.f32 %v251, %v1039
    %v1041 = vpop.f32.mrf.mxu0
    %v1042 = vadd.f32 %v247, %v1041
    %v1043 = vpop.f32.mrf.mxu0
    %v1044 = vadd.f32 %v251, %v1043
    %1045 = vmatprep.mubr.bf16.mxu0 %v314
    %1046 = vmatmul.mubr.bf16.gmra.mxu0 %v313
    %v1047 = vpop.f32.mrf.mxu0
    %v1048 = vadd.f32 %v247, %v1047
    %v1049 = vpop.f32.mrf.mxu0
    %v1050 = vadd.f32 %v251, %v1049
    %v1051 = vpop.f32.mrf.mxu0
    %v1052 = vpop.f32.mrf.mxu0
    %1053 = vdwg.mxu0
    %1054 = vmatprep.subr.bf16.mxu0 %v714
    %1055 = vmatpush1.bf16.msra.mxu0 %v713
    %1056 = vmatprep.subr.bf16.mxu0 %v710
    %1057 = vmatpush1.bf16.msra.mxu0 %v709
    %1058 = vmatprep.subr.bf16.mxu0 %v706
    %1059 = vmatpush1.bf16.msra.mxu0 %v705
    %1060 = vmatprep.subr.bf16.mxu0 %v702
    %1061 = vmatpush1.bf16.msra.mxu0 %v701
    %1062 = vmatprep.subr.bf16.mxu0 %v698
    %1063 = vmatpush1.bf16.msra.mxu0 %v697
    %1064 = vmatprep.subr.bf16.mxu0 %v694
    %1065 = vmatpush1.bf16.msra.mxu0 %v693
    %1066 = vmatprep.subr.bf16.mxu0 %v690
    %1067 = vmatpush1.bf16.msra.mxu0 %v689
    %1068 = vmatprep.subr.bf16.mxu0 %v686
    %1069 = vmatpush1.bf16.msra.mxu0 %v685
    %1070 = vmatprep.subr.bf16.mxu0 0
    %1071 = vmatpush2.bf16.msra.mxu0 0
    %1072 = vmatprep.subr.bf16.mxu0 0
    %1073 = vmatpush2.bf16.msra.mxu0 0
    %1074 = vmatprep.subr.bf16.mxu0 0
    %1075 = vmatpush2.bf16.msra.mxu0 0
    %1076 = vmatprep.subr.bf16.mxu0 0
    %1077 = vmatpush2.bf16.msra.mxu0 0
    %1078 = vmatprep.subr.bf16.mxu0 0
    %1079 = vmatpush2.bf16.msra.mxu0 0
    %1080 = vmatprep.subr.bf16.mxu0 0
    %1081 = vmatpush2.bf16.msra.mxu0 0
    %1082 = vmatprep.subr.bf16.mxu0 0
    %1083 = vmatpush2.bf16.msra.mxu0 0
    %1084 = vmatprep.subr.bf16.mxu0 0
    %1085 = vmatpush2.bf16.msra.mxu0 0
    %1086 = vmatprep.mubr.bf16.mxu0 0
    %1087 = vmatmul.mubr.bf16.gmra.mxu0 %v303
    %v1088 = vpop.f32.mrf.mxu0
    %v1089 = vadd.f32 %v1008, %v1088
    %v1090 = vpop.f32.mrf.mxu0
    %v1091 = vadd.f32 %v1010, %v1090
    %v1092 = vpop.f32.mrf.mxu0
    %v1093 = vadd.f32 %v1012, %v1092
    %v1094 = vpop.f32.mrf.mxu0
    %v1095 = vadd.f32 %v1014, %v1094
    %1096 = vmatprep.mubr.bf16.mxu0 0
    %1097 = vmatmul.mubr.bf16.gmra.mxu0 %v306
    %v1098 = vpop.f32.mrf.mxu0
    %v1099 = vadd.f32 %v1018, %v1098
    %v1100 = vpop.f32.mrf.mxu0
    %v1101 = vadd.f32 %v1020, %v1100
    %v1102 = vpop.f32.mrf.mxu0
    %v1103 = vadd.f32 %v1022, %v1102
    %v1104 = vpop.f32.mrf.mxu0
    %v1105 = vadd.f32 %v1024, %v1104
    %1106 = vmatprep.mubr.bf16.mxu0 0
    %1107 = vmatmul.mubr.bf16.gmra.mxu0 %v309
    %v1108 = vpop.f32.mrf.mxu0
    %v1109 = vadd.f32 %v1028, %v1108
    %v1110 = vpop.f32.mrf.mxu0
    %v1111 = vadd.f32 %v1030, %v1110
    %v1112 = vpop.f32.mrf.mxu0
    %v1113 = vadd.f32 %v1032, %v1112
    %v1114 = vpop.f32.mrf.mxu0
    %v1115 = vadd.f32 %v1034, %v1114
    %1116 = vmatprep.mubr.bf16.mxu0 0
    %1117 = vmatmul.mubr.bf16.gmra.mxu0 %v312
    %v1118 = vpop.f32.mrf.mxu0
    %v1119 = vadd.f32 %v1038, %v1118
    %v1120 = vpop.f32.mrf.mxu0
    %v1121 = vadd.f32 %v1040, %v1120
    %v1122 = vpop.f32.mrf.mxu0
    %v1123 = vadd.f32 %v1042, %v1122
    %v1124 = vpop.f32.mrf.mxu0
    %v1125 = vadd.f32 %v1044, %v1124
    %1126 = vmatprep.mubr.bf16.mxu0 0
    %1127 = vmatmul.mubr.bf16.gmra.mxu0 %v315
    %v1128 = vpop.f32.mrf.mxu0
    %v1129 = vadd.f32 %v1048, %v1128
    %v1130 = vpop.f32.mrf.mxu0
    %v1131 = vadd.f32 %v1050, %v1130
    %v1132 = vpop.f32.mrf.mxu0
    %v1133 = vpop.f32.mrf.mxu0
    %1134 = vdwg.mxu0
    %v1135 = vmax.f32 %v927, 0.0
    %v1136 = vmax.f32 %v929, 0.0
    %v1137 = vmax.f32 %v1089, 0.0
    %v1138 = vmax.f32 %v1091, 0.0
    %v1139 = vmax.f32 %v931, 0.0
    %v1140 = vmax.f32 %v933, 0.0
    %v1141 = vmax.f32 %v1093, 0.0
    %v1142 = vmax.f32 %v1095, 0.0
    %v1143 = vmax.f32 %v937, 0.0
    %v1144 = vmax.f32 %v939, 0.0
    %v1145 = vmax.f32 %v1099, 0.0
    %v1146 = vmax.f32 %v1101, 0.0
    %v1147 = vmax.f32 %v941, 0.0
    %v1148 = vmax.f32 %v943, 0.0
    %v1149 = vmax.f32 %v1103, 0.0
    %v1150 = vmax.f32 %v1105, 0.0
    %v1151 = vmax.f32 %v947, 0.0
    %v1152 = vmax.f32 %v949, 0.0
    %v1153 = vmax.f32 %v1109, 0.0
    %v1154 = vmax.f32 %v1111, 0.0
    %v1155 = vmax.f32 %v951, 0.0
    %v1156 = vmax.f32 %v953, 0.0
    %v1157 = vmax.f32 %v1113, 0.0
    %v1158 = vmax.f32 %v1115, 0.0
    %v1159 = vmax.f32 %v957, 0.0
    %v1160 = vmax.f32 %v959, 0.0
    %v1161 = vmax.f32 %v1119, 0.0
    %v1162 = vmax.f32 %v1121, 0.0
    %v1163 = vmax.f32 %v961, 0.0
    %v1164 = vmax.f32 %v963, 0.0
    %v1165 = vmax.f32 %v1123, 0.0
    %v1166 = vmax.f32 %v1125, 0.0
    %v1167 = vmax.f32 %v967, 0.0
    %v1168 = vmax.f32 %v969, 0.0
    %v1169 = vmax.f32 %v1129, 0.0
    %v1170 = vmax.f32 %v1131, 0.0
    %v1171 = vld [vmem:[%s1] sm:$0xf]
    %v1172 = vld [vmem:[%s1 + $0x4] sm:$0xf]
    %v1173 = vld [vmem:[%s1 + $0x8] sm:$0xf]
    %v1174 = vld [vmem:[%s1 + $0xc] sm:$0xf]
    %v1175 = vld [vmem:[%s1 + $0x10] sm:$0xf]
    %v1176 = vld [vmem:[%s1 + $0x14] sm:$0xf]
    %v1177 = vld [vmem:[%s1 + $0x18] sm:$0xf]
    %v1178 = vld [vmem:[#allocation8] sm:$0xff]
    %v1179 = vld [vmem:[#allocation8 + $0x8] sm:$0xff]
    %v1180 = vld [vmem:[#allocation8 + $0x10] sm:$0x11]
    %v1181 = vld [vmem:[#allocation8 + $0x18] sm:$0x11]
    %v1182 = vld [vmem:[#allocation10] sm:$0xf]
    %v1184 = vlaneseq
    %v1185 = vshrl.u32 %v1184, 7
    %v1186 = vsub.s32 0, %v1185
    %v1187 = vrot.slane %v1182, %v1186
    %v1188 = vlaneseq
    %v1189 = vshrl.u32 %v1188, 7
    %v1190 = vsub.s32 1, %v1189
    %v1191 = vrot.slane %v1182, %v1190
    %v1192 = vlaneseq
    %v1193 = vshrl.u32 %v1192, 7
    %v1194 = vsub.s32 2, %v1193
    %v1195 = vrot.slane %v1182, %v1194
    %v1196 = vlaneseq
    %v1197 = vshrl.u32 %v1196, 7
    %v1198 = vsub.s32 3, %v1197
    %v1199 = vrot.slane %v1182, %v1198
    %v1211 = vunpack.c.l.b16 %v1171
    %v1212 = vunpack.c.l.b16 %v1172
    %v1213 = vunpack.c.l.b16 %v1173
    %v1214 = vunpack.c.l.b16 %v1174
    %v1215 = vunpack.c.l.b16 %v1175
    %v1216 = vunpack.c.l.b16 %v1176
    %v1217 = vunpack.c.l.b16 %v1177
    %v1218 = vpack.c.b16 %v1212, %v1211
    %v1219 = vpack.c.b16 %v1214, %v1213
    %v1220 = vpack.c.b16 %v1216, %v1215
    %v1221 = vpack.c.b16 %v1217, %v1217
    %v1226 = vunpack.c.l.b16 %v1178
    %v1227 = vunpack.c.h.b16 %v1178
    %v1228 = vunpack.c.l.b16 %v1179
    %v1229 = vunpack.c.h.b16 %v1179
    %v1230 = vunpack.c.l.b16 %v1180
    %v1231 = vunpack.c.h.b16 %v1180
    %v1232 = vunpack.c.l.b16 %v1181
    %v1233 = vunpack.c.h.b16 %v1181
    %v1234 = vpack.c.b16 %v1230, %v1226
    %v1235 = vpack.c.b16 %v1231, %v1227
    %v1236 = vpack.c.b16 %v1232, %v1228
    %v1237 = vpack.c.b16 %v1233, %v1229
    %vm1238 = vcmask 72704
    %v1240 = vsel %vm1238, %v1218, 0
    %v1243 = vsel %vm1238, %v1219, 0
    %v1246 = vsel %vm1238, %v1220, 0
    %v1249 = vsel %vm1238, %v1221, 0
    %vm1251 = vcmask 1043456
    %vm1252 = vcmask 1044480
    %v1253 = vsel %vm1251, 4294967295, 65535
    %v1254 = vsel %vm1252, %v1253, 0
    %v1256 = vand.u32 %v1234, %v1254
    %v1259 = vand.u32 %v1235, %v1254
    %v1262 = vand.u32 %v1236, %v1254
    %v1265 = vand.u32 %v1237, %v1254
    %1267 = vmatprep.subr.bf16.mxu0 0
    %1268 = vmatpush1.bf16.msra.mxu0 0
    %1269 = vmatprep.subr.bf16.mxu0 0
    %1270 = vmatpush1.bf16.msra.mxu0 0
    %1271 = vmatprep.subr.bf16.mxu0 0
    %1272 = vmatpush1.bf16.msra.mxu0 0
    %1273 = vmatprep.subr.bf16.mxu0 0
    %1274 = vmatpush1.bf16.msra.mxu0 0
    %1275 = vmatprep.subr.bf16.mxu0 0
    %1276 = vmatpush1.bf16.msra.mxu0 0
    %1277 = vmatprep.subr.bf16.mxu0 0
    %1278 = vmatpush1.bf16.msra.mxu0 0
    %1279 = vmatprep.subr.bf16.mxu0 0
    %1280 = vmatpush1.bf16.msra.mxu0 0
    %1281 = vmatprep.subr.bf16.mxu0 %v1259
    %1282 = vmatpush1.bf16.msra.mxu0 %v1256
    %1283 = vmatprep.subr.bf16.mxu0 0
    %1284 = vmatpush2.bf16.msra.mxu0 0
    %1285 = vmatprep.subr.bf16.mxu0 0
    %1286 = vmatpush2.bf16.msra.mxu0 0
    %1287 = vmatprep.subr.bf16.mxu0 0
    %1288 = vmatpush2.bf16.msra.mxu0 0
    %1289 = vmatprep.subr.bf16.mxu0 0
    %1290 = vmatpush2.bf16.msra.mxu0 0
    %1291 = vmatprep.subr.bf16.mxu0 0
    %1292 = vmatpush2.bf16.msra.mxu0 0
    %1293 = vmatprep.subr.bf16.mxu0 0
    %1294 = vmatpush2.bf16.msra.mxu0 0
    %1295 = vmatprep.subr.bf16.mxu0 0
    %1296 = vmatpush2.bf16.msra.mxu0 0
    %1297 = vmatprep.subr.bf16.mxu0 0
    %1298 = vmatpush2.bf16.msra.mxu0 0
    %1299 = vmatprep.mubr.bf16.mxu0 0
    %1300 = vmatmul.mubr.bf16.gmra.mxu0 %v1240
    %v1301 = vpop.f32.mrf.mxu0
    %v1302 = vadd.f32 %v1187, %v1301
    %v1303 = vpop.f32.mrf.mxu0
    %v1304 = vadd.f32 %v1191, %v1303
    %v1305 = vpop.f32.mrf.mxu0
    %v1306 = vadd.f32 %v1187, %v1305
    %v1307 = vpop.f32.mrf.mxu0
    %v1308 = vadd.f32 %v1191, %v1307
    %1309 = vmatprep.mubr.bf16.mxu0 0
    %1310 = vmatmul.mubr.bf16.gmra.mxu0 %v1243
    %v1311 = vpop.f32.mrf.mxu0
    %v1312 = vadd.f32 %v1187, %v1311
    %v1313 = vpop.f32.mrf.mxu0
    %v1314 = vadd.f32 %v1191, %v1313
    %v1315 = vpop.f32.mrf.mxu0
    %v1316 = vadd.f32 %v1187, %v1315
    %v1317 = vpop.f32.mrf.mxu0
    %v1318 = vadd.f32 %v1191, %v1317
    %1319 = vmatprep.mubr.bf16.mxu0 0
    %1320 = vmatmul.mubr.bf16.gmra.mxu0 %v1246
    %v1321 = vpop.f32.mrf.mxu0
    %v1322 = vadd.f32 %v1187, %v1321
    %v1323 = vpop.f32.mrf.mxu0
    %v1324 = vadd.f32 %v1191, %v1323
    %v1325 = vpop.f32.mrf.mxu0
    %v1326 = vadd.f32 %v1187, %v1325
    %v1327 = vpop.f32.mrf.mxu0
    %v1328 = vadd.f32 %v1191, %v1327
    %1329 = vmatprep.mubr.bf16.mxu0 0
    %1330 = vmatmul.mubr.bf16.gmra.mxu0 %v1249
    %v1331 = vpop.f32.mrf.mxu0
    %v1332 = vadd.f32 %v1187, %v1331
    %v1333 = vpop.f32.mrf.mxu0
    %v1334 = vadd.f32 %v1191, %v1333
    %v1335 = vpop.f32.mrf.mxu0
    %v1336 = vpop.f32.mrf.mxu0
    %1337 = vdwg.mxu0
    %1338 = vmatprep.subr.bf16.mxu0 0
    %1339 = vmatpush1.bf16.msra.mxu0 0
    %1340 = vmatprep.subr.bf16.mxu0 0
    %1341 = vmatpush1.bf16.msra.mxu0 0
    %1342 = vmatprep.subr.bf16.mxu0 0
    %1343 = vmatpush1.bf16.msra.mxu0 0
    %1344 = vmatprep.subr.bf16.mxu0 0
    %1345 = vmatpush1.bf16.msra.mxu0 0
    %1346 = vmatprep.subr.bf16.mxu0 0
    %1347 = vmatpush1.bf16.msra.mxu0 0
    %1348 = vmatprep.subr.bf16.mxu0 0
    %1349 = vmatpush1.bf16.msra.mxu0 0
    %1350 = vmatprep.subr.bf16.mxu0 0
    %1351 = vmatpush1.bf16.msra.mxu0 0
    %1352 = vmatprep.subr.bf16.mxu0 %v1265
    %1353 = vmatpush1.bf16.msra.mxu0 %v1262
    %1354 = vmatprep.subr.bf16.mxu0 0
    %1355 = vmatpush2.bf16.msra.mxu0 0
    %1356 = vmatprep.subr.bf16.mxu0 0
    %1357 = vmatpush2.bf16.msra.mxu0 0
    %1358 = vmatprep.subr.bf16.mxu0 0
    %1359 = vmatpush2.bf16.msra.mxu0 0
    %1360 = vmatprep.subr.bf16.mxu0 0
    %1361 = vmatpush2.bf16.msra.mxu0 0
    %1362 = vmatprep.subr.bf16.mxu0 0
    %1363 = vmatpush2.bf16.msra.mxu0 0
    %1364 = vmatprep.subr.bf16.mxu0 0
    %1365 = vmatpush2.bf16.msra.mxu0 0
    %1366 = vmatprep.subr.bf16.mxu0 0
    %1367 = vmatpush2.bf16.msra.mxu0 0
    %1368 = vmatprep.subr.bf16.mxu0 0
    %1369 = vmatpush2.bf16.msra.mxu0 0
    %1370 = vmatprep.mubr.bf16.mxu0 0
    %1371 = vmatmul.mubr.bf16.gmra.mxu0 %v1240
    %v1372 = vpop.f32.mrf.mxu0
    %v1373 = vadd.f32 %v1195, %v1372
    %v1374 = vpop.f32.mrf.mxu0
    %v1375 = vadd.f32 %v1199, %v1374
    %v1376 = vpop.f32.mrf.mxu0
    %v1377 = vadd.f32 %v1195, %v1376
    %v1378 = vpop.f32.mrf.mxu0
    %v1379 = vadd.f32 %v1199, %v1378
    %1380 = vmatprep.mubr.bf16.mxu0 0
    %1381 = vmatmul.mubr.bf16.gmra.mxu0 %v1243
    %v1382 = vpop.f32.mrf.mxu0
    %v1383 = vadd.f32 %v1195, %v1382
    %v1384 = vpop.f32.mrf.mxu0
    %v1385 = vadd.f32 %v1199, %v1384
    %v1386 = vpop.f32.mrf.mxu0
    %v1387 = vadd.f32 %v1195, %v1386
    %v1388 = vpop.f32.mrf.mxu0
    %v1389 = vadd.f32 %v1199, %v1388
    %1390 = vmatprep.mubr.bf16.mxu0 0
    %1391 = vmatmul.mubr.bf16.gmra.mxu0 %v1246
    %v1392 = vpop.f32.mrf.mxu0
    %v1393 = vadd.f32 %v1195, %v1392
    %v1394 = vpop.f32.mrf.mxu0
    %v1395 = vadd.f32 %v1199, %v1394
    %v1396 = vpop.f32.mrf.mxu0
    %v1397 = vadd.f32 %v1195, %v1396
    %v1398 = vpop.f32.mrf.mxu0
    %v1399 = vadd.f32 %v1199, %v1398
    %1400 = vmatprep.mubr.bf16.mxu0 0
    %1401 = vmatmul.mubr.bf16.gmra.mxu0 %v1249
    %v1402 = vpop.f32.mrf.mxu0
    %v1403 = vadd.f32 %v1195, %v1402
    %v1404 = vpop.f32.mrf.mxu0
    %v1405 = vadd.f32 %v1199, %v1404
    %v1406 = vpop.f32.mrf.mxu0
    %v1407 = vpop.f32.mrf.mxu0
    %1408 = vdwg.mxu0
    %v1409 = vmax.f32 %v1302, 0.0
    %v1410 = vmax.f32 %v1304, 0.0
    %v1411 = vmax.f32 %v1373, 0.0
    %v1412 = vmax.f32 %v1375, 0.0
    %v1413 = vmax.f32 %v1306, 0.0
    %v1414 = vmax.f32 %v1308, 0.0
    %v1415 = vmax.f32 %v1377, 0.0
    %v1416 = vmax.f32 %v1379, 0.0
    %v1417 = vmax.f32 %v1312, 0.0
    %v1418 = vmax.f32 %v1314, 0.0
    %v1419 = vmax.f32 %v1383, 0.0
    %v1420 = vmax.f32 %v1385, 0.0
    %v1421 = vmax.f32 %v1316, 0.0
    %v1422 = vmax.f32 %v1318, 0.0
    %v1423 = vmax.f32 %v1387, 0.0
    %v1424 = vmax.f32 %v1389, 0.0
    %v1425 = vmax.f32 %v1322, 0.0
    %v1426 = vmax.f32 %v1324, 0.0
    %v1427 = vmax.f32 %v1393, 0.0
    %v1428 = vmax.f32 %v1395, 0.0
    %v1429 = vmax.f32 %v1326, 0.0
    %v1430 = vmax.f32 %v1328, 0.0
    %v1431 = vmax.f32 %v1397, 0.0
    %v1432 = vmax.f32 %v1399, 0.0
    %v1433 = vmax.f32 %v1332, 0.0
    %v1434 = vmax.f32 %v1334, 0.0
    %v1435 = vmax.f32 %v1403, 0.0
    %v1436 = vmax.f32 %v1405, 0.0
    %v1437 = vadd.f32 %v1135, %v1409
    %v1438 = vadd.f32 %v1136, %v1410
    %v1439 = vadd.f32 %v1137, %v1411
    %v1440 = vadd.f32 %v1138, %v1412
    %v1441 = vadd.f32 %v1139, %v1413
    %v1442 = vadd.f32 %v1140, %v1414
    %v1443 = vadd.f32 %v1141, %v1415
    %v1444 = vadd.f32 %v1142, %v1416
    %v1445 = vadd.f32 %v1143, %v1417
    %v1446 = vadd.f32 %v1144, %v1418
    %v1447 = vadd.f32 %v1145, %v1419
    %v1448 = vadd.f32 %v1146, %v1420
    %v1449 = vadd.f32 %v1147, %v1421
    %v1450 = vadd.f32 %v1148, %v1422
    %v1451 = vadd.f32 %v1149, %v1423
    %v1452 = vadd.f32 %v1150, %v1424
    %v1453 = vadd.f32 %v1151, %v1425
    %v1454 = vadd.f32 %v1152, %v1426
    %v1455 = vadd.f32 %v1153, %v1427
    %v1456 = vadd.f32 %v1154, %v1428
    %v1457 = vadd.f32 %v1155, %v1429
    %v1458 = vadd.f32 %v1156, %v1430
    %v1459 = vadd.f32 %v1157, %v1431
    %v1460 = vadd.f32 %v1158, %v1432
    %v1461 = vpack.c.bf16 %v1163, %v1159
    %v1462 = vpack.c.bf16 %v1164, %v1160
    %v1463 = vpack.c.bf16 %v1165, %v1161
    %v1464 = vpack.c.bf16 %v1166, %v1162
    %v1465 = vpack.c.bf16 %v1167, %v1167
    %v1466 = vpack.c.bf16 %v1168, %v1168
    %v1467 = vpack.c.bf16 %v1169, %v1169
    %v1468 = vpack.c.bf16 %v1170, %v1170
    %v1469 = vld [vmem:[#allocation11] sm:$0xff]
    %v1470 = vld [vmem:[#allocation11 + $0x8] sm:$0xff]
    %v1471 = vld [vmem:[#allocation11 + $0x10] sm:$0xff]
    %v1472 = vld [vmem:[#allocation11 + $0x18] sm:$0xff]
    %v1473 = vld [vmem:[#allocation11 + $0x20] sm:$0xff]
    %v1474 = vld [vmem:[#allocation11 + $0x28] sm:$0xff]
    %v1475 = vld [vmem:[#allocation11 + $0x30] sm:$0xff]
    %v1476 = vld [vmem:[#allocation11 + $0x38] sm:$0xff]
    %v1477 = vld [vmem:[#allocation11 + $0x40] sm:$0xff]
    %v1478 = vld [vmem:[#allocation11 + $0x48] sm:$0xff]
    %v1479 = vld [vmem:[#allocation11 + $0x50] sm:$0xff]
    %v1480 = vld [vmem:[#allocation11 + $0x58] sm:$0xff]
    %v1481 = vld [vmem:[#allocation11 + $0x60] sm:$0xff]
    %v1482 = vld [vmem:[#allocation11 + $0x68] sm:$0xff]
    %v1483 = vld [vmem:[#allocation11 + $0x70] sm:$0xff]
    %v1484 = vld [vmem:[#allocation11 + $0x78] sm:$0xff]
    %v1485 = vld [vmem:[#allocation11 + $0x80] sm:$0xff]
    %v1486 = vld [vmem:[#allocation11 + $0x88] sm:$0xff]
    %v1487 = vld [vmem:[#allocation11 + $0x90] sm:$0xff]
    %v1488 = vld [vmem:[#allocation11 + $0x98] sm:$0xff]
    %v1489 = vld [vmem:[#allocation11 + $0xa0] sm:$0xff]
    %v1490 = vld [vmem:[#allocation11 + $0xa8] sm:$0xff]
    %v1491 = vld [vmem:[#allocation11 + $0xb0] sm:$0xff]
    %v1492 = vld [vmem:[#allocation11 + $0xb8] sm:$0xff]
    %v1493 = vld [vmem:[#allocation11 + $0xc0] sm:$0xff]
    %v1494 = vld [vmem:[#allocation11 + $0xc8] sm:$0xff]
    %v1495 = vld [vmem:[#allocation11 + $0xd0] sm:$0xff]
    %v1496 = vld [vmem:[#allocation11 + $0xd8] sm:$0xff]
    %v1497 = vld [vmem:[#allocation11 + $0xe0] sm:$0xff]
    %v1498 = vld [vmem:[#allocation11 + $0xe8] sm:$0xff]
    %v1499 = vld [vmem:[#allocation11 + $0xf0] sm:$0xff]
    %v1500 = vld [vmem:[#allocation11 + $0xf8] sm:$0xff]
    %v1501 = vld [vmem:[#allocation11 + $0x100] sm:$0xff]
    %v1502 = vld [vmem:[#allocation11 + $0x108] sm:$0xff]
    %v1503 = vld [vmem:[#allocation11 + $0x110] sm:$0xff]
    %v1504 = vld [vmem:[#allocation11 + $0x118] sm:$0xff]
    %v1505 = vld [vmem:[#allocation11 + $0x120] sm:$0xff]
    %v1506 = vld [vmem:[#allocation11 + $0x128] sm:$0xff]
    %v1507 = vld [vmem:[#allocation11 + $0x130] sm:$0xff]
    %v1508 = vld [vmem:[#allocation11 + $0x138] sm:$0xff]
    %v1509 = vld [vmem:[#allocation11 + $0x140] sm:$0xff]
    %v1510 = vld [vmem:[#allocation11 + $0x148] sm:$0xff]
    %v1511 = vld [vmem:[#allocation11 + $0x150] sm:$0xff]
    %v1512 = vld [vmem:[#allocation11 + $0x158] sm:$0xff]
    %v1513 = vld [vmem:[#allocation11 + $0x160] sm:$0xff]
    %v1514 = vld [vmem:[#allocation11 + $0x168] sm:$0xff]
    %v1515 = vld [vmem:[#allocation11 + $0x170] sm:$0xff]
    %v1516 = vld [vmem:[#allocation11 + $0x178] sm:$0xff]
    %v1517 = vld [vmem:[#allocation11 + $0x180] sm:$0xff]
    %v1518 = vld [vmem:[#allocation11 + $0x188] sm:$0xff]
    %v1519 = vld [vmem:[#allocation11 + $0x190] sm:$0xff]
    %v1520 = vld [vmem:[#allocation11 + $0x198] sm:$0xff]
    %v1521 = vld [vmem:[#allocation11 + $0x1a0] sm:$0xff]
    %v1522 = vld [vmem:[#allocation11 + $0x1a8] sm:$0xff]
    %v1523 = vld [vmem:[#allocation11 + $0x1b0] sm:$0xff]
    %v1524 = vld [vmem:[#allocation11 + $0x1b8] sm:$0xff]
    %v1525 = vld [vmem:[#allocation11 + $0x1c0] sm:$0xff]
    %v1526 = vld [vmem:[#allocation11 + $0x1c8] sm:$0xff]
    %v1527 = vld [vmem:[#allocation11 + $0x1d0] sm:$0xff]
    %v1528 = vld [vmem:[#allocation11 + $0x1d8] sm:$0xff]
    %v1529 = vld [vmem:[#allocation11 + $0x1e0] sm:$0xff]
    %v1530 = vld [vmem:[#allocation11 + $0x1e8] sm:$0xff]
    %v1531 = vld [vmem:[#allocation11 + $0x1f0] sm:$0xff]
    %v1532 = vld [vmem:[#allocation11 + $0x1f8] sm:$0xff]
    %v1533 = vld [vmem:[#allocation11 + $0x200] sm:$0xff]
    %v1534 = vld [vmem:[#allocation11 + $0x208] sm:$0xff]
    %v1535 = vld [vmem:[#allocation11 + $0x210] sm:$0xff]
    %v1536 = vld [vmem:[#allocation11 + $0x218] sm:$0xff]
    %v1537 = vld [vmem:[#allocation11 + $0x220] sm:$0xff]
    %v1538 = vld [vmem:[#allocation11 + $0x228] sm:$0xff]
    %v1539 = vld [vmem:[#allocation11 + $0x230] sm:$0xff]
    %v1540 = vld [vmem:[#allocation11 + $0x238] sm:$0xff]
    %v1541 = vld [vmem:[#allocation11 + $0x240] sm:$0xff]
    %v1542 = vld [vmem:[#allocation11 + $0x248] sm:$0xff]
    %v1543 = vld [vmem:[#allocation11 + $0x250] sm:$0xff]
    %v1544 = vld [vmem:[#allocation11 + $0x258] sm:$0xff]
    %v1545 = vld [vmem:[#allocation11 + $0x260] sm:$0xff]
    %v1546 = vld [vmem:[#allocation11 + $0x268] sm:$0xff]
    %v1547 = vld [vmem:[#allocation11 + $0x270] sm:$0xff]
    %v1548 = vld [vmem:[#allocation11 + $0x278] sm:$0xff]
    %v1549 = vld [vmem:[#allocation11 + $0x280] sm:$0xff]
    %v1550 = vld [vmem:[#allocation11 + $0x288] sm:$0xff]
    %v1551 = vld [vmem:[#allocation11 + $0x290] sm:$0xff]
    %v1552 = vld [vmem:[#allocation11 + $0x298] sm:$0xff]
    %v1553 = vld [vmem:[#allocation11 + $0x2a0] sm:$0xff]
    %v1554 = vld [vmem:[#allocation11 + $0x2a8] sm:$0xff]
    %v1555 = vld [vmem:[#allocation11 + $0x2b0] sm:$0xff]
    %v1556 = vld [vmem:[#allocation11 + $0x2b8] sm:$0xff]
    %v1557 = vld [vmem:[#allocation11 + $0x2c0] sm:$0xff]
    %v1558 = vld [vmem:[#allocation11 + $0x2c8] sm:$0xff]
    %v1559 = vld [vmem:[#allocation11 + $0x2d0] sm:$0xff]
    %v1560 = vld [vmem:[#allocation11 + $0x2d8] sm:$0xff]
    %v1561 = vld [vmem:[#allocation11 + $0x2e0] sm:$0xff]
    %v1562 = vld [vmem:[#allocation11 + $0x2e8] sm:$0xff]
    %v1563 = vld [vmem:[#allocation11 + $0x2f0] sm:$0xff]
    %v1564 = vld [vmem:[#allocation11 + $0x2f8] sm:$0xff]
    %v1565 = vld [vmem:[#allocation11 + $0x300] sm:$0xff]
    %v1566 = vld [vmem:[#allocation11 + $0x308] sm:$0xff]
    %v1567 = vld [vmem:[#allocation11 + $0x310] sm:$0xff]
    %v1568 = vld [vmem:[#allocation11 + $0x318] sm:$0xff]
    %v1569 = vld [vmem:[#allocation11 + $0x320] sm:$0xff]
    %v1570 = vld [vmem:[#allocation11 + $0x328] sm:$0xff]
    %v1571 = vld [vmem:[#allocation11 + $0x330] sm:$0xff]
    %v1572 = vld [vmem:[#allocation11 + $0x338] sm:$0xff]
    %v1573 = vld [vmem:[#allocation11 + $0x340] sm:$0xff]
    %v1574 = vld [vmem:[#allocation11 + $0x348] sm:$0xff]
    %v1575 = vld [vmem:[#allocation11 + $0x350] sm:$0xff]
    %v1576 = vld [vmem:[#allocation11 + $0x358] sm:$0xff]
    %v1577 = vld [vmem:[#allocation11 + $0x360] sm:$0xff]
    %v1578 = vld [vmem:[#allocation11 + $0x368] sm:$0xff]
    %v1579 = vld [vmem:[#allocation11 + $0x370] sm:$0xff]
    %v1580 = vld [vmem:[#allocation11 + $0x378] sm:$0xff]
    %v1581 = vld [vmem:[#allocation11 + $0x380] sm:$0xff]
    %v1582 = vld [vmem:[#allocation11 + $0x388] sm:$0xff]
    %v1583 = vld [vmem:[#allocation11 + $0x390] sm:$0xff]
    %v1584 = vld [vmem:[#allocation11 + $0x398] sm:$0xff]
    %v1585 = vld [vmem:[#allocation11 + $0x3a0] sm:$0xff]
    %v1586 = vld [vmem:[#allocation11 + $0x3a8] sm:$0xff]
    %v1587 = vld [vmem:[#allocation11 + $0x3b0] sm:$0xff]
    %v1588 = vld [vmem:[#allocation11 + $0x3b8] sm:$0xff]
    %v1589 = vld [vmem:[#allocation11 + $0x3c0] sm:$0xff]
    %v1590 = vld [vmem:[#allocation11 + $0x3c8] sm:$0xff]
    %v1591 = vld [vmem:[#allocation11 + $0x3d0] sm:$0xff]
    %v1592 = vld [vmem:[#allocation11 + $0x3d8] sm:$0xff]
    %v1593 = vld [vmem:[#allocation11 + $0x3e0] sm:$0xff]
    %v1594 = vld [vmem:[#allocation11 + $0x3e8] sm:$0xff]
    %v1595 = vld [vmem:[#allocation11 + $0x3f0] sm:$0xff]
    %v1596 = vld [vmem:[#allocation11 + $0x3f8] sm:$0xff]
    %v1597 = vld [vmem:[#allocation11 + $0x400] sm:$0xff]
    %v1598 = vld [vmem:[#allocation11 + $0x408] sm:$0xff]
    %v1599 = vld [vmem:[#allocation11 + $0x410] sm:$0xff]
    %v1600 = vld [vmem:[#allocation11 + $0x418] sm:$0xff]
    %v1601 = vld [vmem:[#allocation11 + $0x420] sm:$0xff]
    %v1602 = vld [vmem:[#allocation11 + $0x428] sm:$0xff]
    %v1603 = vld [vmem:[#allocation11 + $0x430] sm:$0xff]
    %v1604 = vld [vmem:[#allocation11 + $0x438] sm:$0xff]
    %v1605 = vld [vmem:[#allocation11 + $0x440] sm:$0xff]
    %v1606 = vld [vmem:[#allocation11 + $0x448] sm:$0xff]
    %v1607 = vld [vmem:[#allocation11 + $0x450] sm:$0xff]
    %v1608 = vld [vmem:[#allocation11 + $0x458] sm:$0xff]
    %v1609 = vld [vmem:[#allocation11 + $0x460] sm:$0xff]
    %v1610 = vld [vmem:[#allocation11 + $0x468] sm:$0xff]
    %v1611 = vld [vmem:[#allocation11 + $0x470] sm:$0xff]
    %v1612 = vld [vmem:[#allocation11 + $0x478] sm:$0xff]
    %v1613 = vld [vmem:[#allocation11 + $0x480] sm:$0xff]
    %v1614 = vld [vmem:[#allocation11 + $0x488] sm:$0xff]
    %v1615 = vld [vmem:[#allocation11 + $0x490] sm:$0xff]
    %v1616 = vld [vmem:[#allocation11 + $0x498] sm:$0xff]
    %v1617 = vld [vmem:[#allocation11 + $0x4a0] sm:$0xff]
    %v1618 = vld [vmem:[#allocation11 + $0x4a8] sm:$0xff]
    %v1619 = vld [vmem:[#allocation11 + $0x4b0] sm:$0xff]
    %v1620 = vld [vmem:[#allocation11 + $0x4b8] sm:$0xff]
    %v1621 = vld [vmem:[#allocation11 + $0x4c0] sm:$0xff]
    %v1622 = vld [vmem:[#allocation11 + $0x4c8] sm:$0xff]
    %v1623 = vld [vmem:[#allocation11 + $0x4d0] sm:$0xff]
    %v1624 = vld [vmem:[#allocation11 + $0x4d8] sm:$0xff]
    %v1625 = vld [vmem:[#allocation11 + $0x4e0] sm:$0xff]
    %v1626 = vld [vmem:[#allocation11 + $0x4e8] sm:$0xff]
    %v1627 = vld [vmem:[#allocation11 + $0x4f0] sm:$0xff]
    %v1628 = vld [vmem:[#allocation11 + $0x4f8] sm:$0xff]
    %v1629 = vld [vmem:[#allocation11 + $0x500] sm:$0xff]
    %v1630 = vld [vmem:[#allocation11 + $0x508] sm:$0xff]
    %v1631 = vld [vmem:[#allocation11 + $0x510] sm:$0xff]
    %v1632 = vld [vmem:[#allocation11 + $0x518] sm:$0xff]
    %v1633 = vld [vmem:[#allocation11 + $0x520] sm:$0xff]
    %v1634 = vld [vmem:[#allocation11 + $0x528] sm:$0xff]
    %v1635 = vld [vmem:[#allocation11 + $0x530] sm:$0xff]
    %v1636 = vld [vmem:[#allocation11 + $0x538] sm:$0xff]
    %v1637 = vld [vmem:[#allocation11 + $0x540] sm:$0xff]
    %v1638 = vld [vmem:[#allocation11 + $0x548] sm:$0xff]
    %v1639 = vld [vmem:[#allocation11 + $0x550] sm:$0xff]
    %v1640 = vld [vmem:[#allocation11 + $0x558] sm:$0xff]
    %v1641 = vld [vmem:[#allocation11 + $0x560] sm:$0xff]
    %v1642 = vld [vmem:[#allocation11 + $0x568] sm:$0xff]
    %v1643 = vld [vmem:[#allocation11 + $0x570] sm:$0xff]
    %v1644 = vld [vmem:[#allocation11 + $0x578] sm:$0xff]
    %v1645 = vld [vmem:[#allocation11 + $0x580] sm:$0xff]
    %v1646 = vld [vmem:[#allocation11 + $0x588] sm:$0xff]
    %v1647 = vld [vmem:[#allocation11 + $0x590] sm:$0xff]
    %v1648 = vld [vmem:[#allocation11 + $0x598] sm:$0xff]
    %v1649 = vld [vmem:[#allocation11 + $0x5a0] sm:$0xff]
    %v1650 = vld [vmem:[#allocation11 + $0x5a8] sm:$0xff]
    %v1651 = vld [vmem:[#allocation11 + $0x5b0] sm:$0xff]
    %v1652 = vld [vmem:[#allocation11 + $0x5b8] sm:$0xff]
    %v1653 = vld [vmem:[#allocation11 + $0x5c0] sm:$0xff]
    %v1654 = vld [vmem:[#allocation11 + $0x5c8] sm:$0xff]
    %v1655 = vld [vmem:[#allocation11 + $0x5d0] sm:$0xff]
    %v1656 = vld [vmem:[#allocation11 + $0x5d8] sm:$0xff]
    %v1657 = vld [vmem:[#allocation11 + $0x5e0] sm:$0xff]
    %v1658 = vld [vmem:[#allocation11 + $0x5e8] sm:$0xff]
    %v1659 = vld [vmem:[#allocation11 + $0x5f0] sm:$0xff]
    %v1660 = vld [vmem:[#allocation11 + $0x5f8] sm:$0xff]
    %v1661 = vld [vmem:[#allocation11 + $0x600] sm:$0xff]
    %v1662 = vld [vmem:[#allocation11 + $0x608] sm:$0xff]
    %v1663 = vld [vmem:[#allocation11 + $0x610] sm:$0xff]
    %v1664 = vld [vmem:[#allocation11 + $0x618] sm:$0xff]
    %v1665 = vld [vmem:[#allocation11 + $0x620] sm:$0xff]
    %v1666 = vld [vmem:[#allocation11 + $0x628] sm:$0xff]
    %v1667 = vld [vmem:[#allocation11 + $0x630] sm:$0xff]
    %v1668 = vld [vmem:[#allocation11 + $0x638] sm:$0xff]
    %v1669 = vld [vmem:[#allocation11 + $0x640] sm:$0xff]
    %v1670 = vld [vmem:[#allocation11 + $0x648] sm:$0xff]
    %v1671 = vld [vmem:[#allocation11 + $0x650] sm:$0xff]
    %v1672 = vld [vmem:[#allocation11 + $0x658] sm:$0xff]
    %v1673 = vld [vmem:[#allocation11 + $0x660] sm:$0xff]
    %v1674 = vld [vmem:[#allocation11 + $0x668] sm:$0xff]
    %v1675 = vld [vmem:[#allocation11 + $0x670] sm:$0xff]
    %v1676 = vld [vmem:[#allocation11 + $0x678] sm:$0xff]
    %v1677 = vld [vmem:[#allocation11 + $0x680] sm:$0xff]
    %v1678 = vld [vmem:[#allocation11 + $0x688] sm:$0xff]
    %v1679 = vld [vmem:[#allocation11 + $0x690] sm:$0xff]
    %v1680 = vld [vmem:[#allocation11 + $0x698] sm:$0xff]
    %v1681 = vld [vmem:[#allocation11 + $0x6a0] sm:$0xff]
    %v1682 = vld [vmem:[#allocation11 + $0x6a8] sm:$0xff]
    %v1683 = vld [vmem:[#allocation11 + $0x6b0] sm:$0xff]
    %v1684 = vld [vmem:[#allocation11 + $0x6b8] sm:$0xff]
    %v1685 = vld [vmem:[#allocation11 + $0x6c0] sm:$0xff]
    %v1686 = vld [vmem:[#allocation11 + $0x6c8] sm:$0xff]
    %v1687 = vld [vmem:[#allocation11 + $0x6d0] sm:$0xff]
    %v1688 = vld [vmem:[#allocation11 + $0x6d8] sm:$0xff]
    %v1689 = vld [vmem:[#allocation11 + $0x6e0] sm:$0xff]
    %v1690 = vld [vmem:[#allocation11 + $0x6e8] sm:$0xff]
    %v1691 = vld [vmem:[#allocation11 + $0x6f0] sm:$0xff]
    %v1692 = vld [vmem:[#allocation11 + $0x6f8] sm:$0xff]
    %v1693 = vld [vmem:[#allocation11 + $0x700] sm:$0xff]
    %v1694 = vld [vmem:[#allocation11 + $0x708] sm:$0xff]
    %v1695 = vld [vmem:[#allocation11 + $0x710] sm:$0xff]
    %v1696 = vld [vmem:[#allocation11 + $0x718] sm:$0xff]
    %v1697 = vld [vmem:[#allocation11 + $0x720] sm:$0xff]
    %v1698 = vld [vmem:[#allocation11 + $0x728] sm:$0xff]
    %v1699 = vld [vmem:[#allocation11 + $0x730] sm:$0xff]
    %v1700 = vld [vmem:[#allocation11 + $0x738] sm:$0xff]
    %v1701 = vld [vmem:[#allocation11 + $0x740] sm:$0xff]
    %v1702 = vld [vmem:[#allocation11 + $0x748] sm:$0xff]
    %v1703 = vld [vmem:[#allocation11 + $0x750] sm:$0xff]
    %v1704 = vld [vmem:[#allocation11 + $0x758] sm:$0xff]
    %v1705 = vld [vmem:[#allocation11 + $0x760] sm:$0xff]
    %v1706 = vld [vmem:[#allocation11 + $0x768] sm:$0xff]
    %v1707 = vld [vmem:[#allocation11 + $0x770] sm:$0xff]
    %v1708 = vld [vmem:[#allocation11 + $0x778] sm:$0xff]
    %v1709 = vld [vmem:[#allocation11 + $0x780] sm:$0xff]
    %v1710 = vld [vmem:[#allocation11 + $0x788] sm:$0xff]
    %v1711 = vld [vmem:[#allocation11 + $0x790] sm:$0xff]
    %v1712 = vld [vmem:[#allocation11 + $0x798] sm:$0xff]
    %v1713 = vld [vmem:[#allocation11 + $0x7a0] sm:$0xff]
    %v1714 = vld [vmem:[#allocation11 + $0x7a8] sm:$0xff]
    %v1715 = vld [vmem:[#allocation11 + $0x7b0] sm:$0xff]
    %v1716 = vld [vmem:[#allocation11 + $0x7b8] sm:$0xff]
    %v1717 = vld [vmem:[#allocation11 + $0x7c0] sm:$0xff]
    %v1718 = vld [vmem:[#allocation11 + $0x7c8] sm:$0xff]
    %v1719 = vld [vmem:[#allocation11 + $0x7d0] sm:$0xff]
    %v1720 = vld [vmem:[#allocation11 + $0x7d8] sm:$0xff]
    %v1721 = vld [vmem:[#allocation11 + $0x7e0] sm:$0xff]
    %v1722 = vld [vmem:[#allocation11 + $0x7e8] sm:$0xff]
    %v1723 = vld [vmem:[#allocation11 + $0x7f0] sm:$0xff]
    %v1724 = vld [vmem:[#allocation11 + $0x7f8] sm:$0xff]
    %v1725 = vld [vmem:[#allocation11 + $0x800] sm:$0xff]
    %v1726 = vld [vmem:[#allocation11 + $0x808] sm:$0xff]
    %v1727 = vld [vmem:[#allocation11 + $0x810] sm:$0xff]
    %v1728 = vld [vmem:[#allocation11 + $0x818] sm:$0xff]
    %v1729 = vld [vmem:[#allocation11 + $0x820] sm:$0xff]
    %v1730 = vld [vmem:[#allocation11 + $0x828] sm:$0xff]
    %v1731 = vld [vmem:[#allocation11 + $0x830] sm:$0xff]
    %v1732 = vld [vmem:[#allocation11 + $0x838] sm:$0xff]
    %v1733 = vld [vmem:[#allocation11 + $0x840] sm:$0xff]
    %v1734 = vld [vmem:[#allocation11 + $0x848] sm:$0xff]
    %v1735 = vld [vmem:[#allocation11 + $0x850] sm:$0xff]
    %v1736 = vld [vmem:[#allocation11 + $0x858] sm:$0xff]
    %v1737 = vld [vmem:[#allocation11 + $0x860] sm:$0xff]
    %v1738 = vld [vmem:[#allocation11 + $0x868] sm:$0xff]
    %v1739 = vld [vmem:[#allocation11 + $0x870] sm:$0xff]
    %v1740 = vld [vmem:[#allocation11 + $0x878] sm:$0xff]
    %v1741 = vld [vmem:[#allocation11 + $0x880] sm:$0xff]
    %v1742 = vld [vmem:[#allocation11 + $0x888] sm:$0xff]
    %v1743 = vld [vmem:[#allocation11 + $0x890] sm:$0xff]
    %v1744 = vld [vmem:[#allocation11 + $0x898] sm:$0xff]
    %v1745 = vld [vmem:[#allocation11 + $0x8a0] sm:$0xff]
    %v1746 = vld [vmem:[#allocation11 + $0x8a8] sm:$0xff]
    %v1747 = vld [vmem:[#allocation11 + $0x8b0] sm:$0xff]
    %v1748 = vld [vmem:[#allocation11 + $0x8b8] sm:$0xff]
    %v1749 = vld [vmem:[#allocation11 + $0x8c0] sm:$0xff]
    %v1750 = vld [vmem:[#allocation11 + $0x8c8] sm:$0xff]
    %v1751 = vld [vmem:[#allocation11 + $0x8d0] sm:$0xff]
    %v1752 = vld [vmem:[#allocation11 + $0x8d8] sm:$0xff]
    %v1753 = vld [vmem:[#allocation11 + $0x8e0] sm:$0xff]
    %v1754 = vld [vmem:[#allocation11 + $0x8e8] sm:$0xff]
    %v1755 = vld [vmem:[#allocation11 + $0x8f0] sm:$0xff]
    %v1756 = vld [vmem:[#allocation11 + $0x8f8] sm:$0xff]
    %v1757 = vld [vmem:[#allocation11 + $0x900] sm:$0xff]
    %v1758 = vld [vmem:[#allocation11 + $0x908] sm:$0xff]
    %v1759 = vld [vmem:[#allocation11 + $0x910] sm:$0xff]
    %v1760 = vld [vmem:[#allocation11 + $0x918] sm:$0xff]
    %v1761 = vld [vmem:[#allocation11 + $0x920] sm:$0xff]
    %v1762 = vld [vmem:[#allocation11 + $0x928] sm:$0xff]
    %v1763 = vld [vmem:[#allocation11 + $0x930] sm:$0xff]
    %v1764 = vld [vmem:[#allocation11 + $0x938] sm:$0xff]
    %v1765 = vld [vmem:[#allocation11 + $0x940] sm:$0xff]
    %v1766 = vld [vmem:[#allocation11 + $0x948] sm:$0xff]
    %v1767 = vld [vmem:[#allocation11 + $0x950] sm:$0xff]
    %v1768 = vld [vmem:[#allocation11 + $0x958] sm:$0xff]
    %v1769 = vld [vmem:[#allocation11 + $0x960] sm:$0xff]
    %v1770 = vld [vmem:[#allocation11 + $0x968] sm:$0xff]
    %v1771 = vld [vmem:[#allocation11 + $0x970] sm:$0xff]
    %v1772 = vld [vmem:[#allocation11 + $0x978] sm:$0xff]
    %v1773 = vld [vmem:[#allocation11 + $0x980] sm:$0xff]
    %v1774 = vld [vmem:[#allocation11 + $0x988] sm:$0xff]
    %v1775 = vld [vmem:[#allocation11 + $0x990] sm:$0xff]
    %v1776 = vld [vmem:[#allocation11 + $0x998] sm:$0xff]
    %v1777 = vld [vmem:[#allocation11 + $0x9a0] sm:$0xff]
    %v1778 = vld [vmem:[#allocation11 + $0x9a8] sm:$0xff]
    %v1779 = vld [vmem:[#allocation11 + $0x9b0] sm:$0xff]
    %v1780 = vld [vmem:[#allocation11 + $0x9b8] sm:$0xff]
    %v1781 = vld [vmem:[#allocation11 + $0x9c0] sm:$0xff]
    %v1782 = vld [vmem:[#allocation11 + $0x9c8] sm:$0xff]
    %v1783 = vld [vmem:[#allocation11 + $0x9d0] sm:$0xff]
    %v1784 = vld [vmem:[#allocation11 + $0x9d8] sm:$0xff]
    %v1785 = vld [vmem:[#allocation11 + $0x9e0] sm:$0xff]
    %v1786 = vld [vmem:[#allocation11 + $0x9e8] sm:$0xff]
    %v1787 = vld [vmem:[#allocation11 + $0x9f0] sm:$0xff]
    %v1788 = vld [vmem:[#allocation11 + $0x9f8] sm:$0xff]
    %v1789 = vld [vmem:[#allocation11 + $0xa00] sm:$0xff]
    %v1790 = vld [vmem:[#allocation11 + $0xa08] sm:$0xff]
    %v1791 = vld [vmem:[#allocation11 + $0xa10] sm:$0xff]
    %v1792 = vld [vmem:[#allocation11 + $0xa18] sm:$0xff]
    %v1793 = vld [vmem:[#allocation11 + $0xa20] sm:$0xff]
    %v1794 = vld [vmem:[#allocation11 + $0xa28] sm:$0xff]
    %v1795 = vld [vmem:[#allocation11 + $0xa30] sm:$0xff]
    %v1796 = vld [vmem:[#allocation11 + $0xa38] sm:$0xff]
    %v1797 = vld [vmem:[#allocation11 + $0xa40] sm:$0xff]
    %v1798 = vld [vmem:[#allocation11 + $0xa48] sm:$0xff]
    %v1799 = vld [vmem:[#allocation11 + $0xa50] sm:$0xff]
    %v1800 = vld [vmem:[#allocation11 + $0xa58] sm:$0xff]
    %v1801 = vld [vmem:[#allocation11 + $0xa60] sm:$0xff]
    %v1802 = vld [vmem:[#allocation11 + $0xa68] sm:$0xff]
    %v1803 = vld [vmem:[#allocation11 + $0xa70] sm:$0xff]
    %v1804 = vld [vmem:[#allocation11 + $0xa78] sm:$0xff]
    %v1805 = vld [vmem:[#allocation11 + $0xa80] sm:$0xff]
    %v1806 = vld [vmem:[#allocation11 + $0xa88] sm:$0xff]
    %v1807 = vld [vmem:[#allocation11 + $0xa90] sm:$0xff]
    %v1808 = vld [vmem:[#allocation11 + $0xa98] sm:$0xff]
    %v1809 = vld [vmem:[#allocation11 + $0xaa0] sm:$0xff]
    %v1810 = vld [vmem:[#allocation11 + $0xaa8] sm:$0xff]
    %v1811 = vld [vmem:[#allocation11 + $0xab0] sm:$0xff]
    %v1812 = vld [vmem:[#allocation11 + $0xab8] sm:$0xff]
    %v1813 = vld [vmem:[#allocation11 + $0xac0] sm:$0xff]
    %v1814 = vld [vmem:[#allocation11 + $0xac8] sm:$0xff]
    %v1815 = vld [vmem:[#allocation11 + $0xad0] sm:$0xff]
    %v1816 = vld [vmem:[#allocation11 + $0xad8] sm:$0xff]
    %v1817 = vld [vmem:[#allocation11 + $0xae0] sm:$0xff]
    %v1818 = vld [vmem:[#allocation11 + $0xae8] sm:$0xff]
    %v1819 = vld [vmem:[#allocation11 + $0xaf0] sm:$0xff]
    %v1820 = vld [vmem:[#allocation11 + $0xaf8] sm:$0xff]
    %v1821 = vld [vmem:[#allocation11 + $0xb00] sm:$0xff]
    %v1822 = vld [vmem:[#allocation11 + $0xb08] sm:$0xff]
    %v1823 = vld [vmem:[#allocation11 + $0xb10] sm:$0xff]
    %v1824 = vld [vmem:[#allocation11 + $0xb18] sm:$0xff]
    %v1825 = vld [vmem:[#allocation11 + $0xb20] sm:$0xff]
    %v1826 = vld [vmem:[#allocation11 + $0xb28] sm:$0xff]
    %v1827 = vld [vmem:[#allocation11 + $0xb30] sm:$0xff]
    %v1828 = vld [vmem:[#allocation11 + $0xb38] sm:$0xff]
    %v1829 = vld [vmem:[#allocation11 + $0xb40] sm:$0xff]
    %v1830 = vld [vmem:[#allocation11 + $0xb48] sm:$0xff]
    %v1831 = vld [vmem:[#allocation11 + $0xb50] sm:$0xff]
    %v1832 = vld [vmem:[#allocation11 + $0xb58] sm:$0xff]
    %v1833 = vld [vmem:[#allocation11 + $0xb60] sm:$0xff]
    %v1834 = vld [vmem:[#allocation11 + $0xb68] sm:$0xff]
    %v1835 = vld [vmem:[#allocation11 + $0xb70] sm:$0xff]
    %v1836 = vld [vmem:[#allocation11 + $0xb78] sm:$0xff]
    %v1837 = vld [vmem:[#allocation11 + $0xb80] sm:$0xff]
    %v1838 = vld [vmem:[#allocation11 + $0xb88] sm:$0xff]
    %v1839 = vld [vmem:[#allocation11 + $0xb90] sm:$0xff]
    %v1840 = vld [vmem:[#allocation11 + $0xb98] sm:$0xff]
    %v1841 = vld [vmem:[#allocation11 + $0xba0] sm:$0xff]
    %v1842 = vld [vmem:[#allocation11 + $0xba8] sm:$0xff]
    %v1843 = vld [vmem:[#allocation11 + $0xbb0] sm:$0xff]
    %v1844 = vld [vmem:[#allocation11 + $0xbb8] sm:$0xff]
    %v1845 = vld [vmem:[#allocation11 + $0xbc0] sm:$0xff]
    %v1846 = vld [vmem:[#allocation11 + $0xbc8] sm:$0xff]
    %v1847 = vld [vmem:[#allocation11 + $0xbd0] sm:$0xff]
    %v1848 = vld [vmem:[#allocation11 + $0xbd8] sm:$0xff]
    %v1849 = vld [vmem:[#allocation11 + $0xbe0] sm:$0xff]
    %v1850 = vld [vmem:[#allocation11 + $0xbe8] sm:$0xff]
    %v1851 = vld [vmem:[#allocation11 + $0xbf0] sm:$0xff]
    %v1852 = vld [vmem:[#allocation11 + $0xbf8] sm:$0xff]
    %v1853 = vld [vmem:[#allocation11 + $0xc00] sm:$0xff]
    %v1854 = vld [vmem:[#allocation11 + $0xc08] sm:$0xff]
    %v1855 = vld [vmem:[#allocation11 + $0xc10] sm:$0xff]
    %v1856 = vld [vmem:[#allocation11 + $0xc18] sm:$0xff]
    %v1857 = vld [vmem:[#allocation11 + $0xc20] sm:$0xff]
    %v1858 = vld [vmem:[#allocation11 + $0xc28] sm:$0xff]
    %v1859 = vld [vmem:[#allocation11 + $0xc30] sm:$0xff]
    %v1860 = vld [vmem:[#allocation11 + $0xc38] sm:$0xff]
    %v1861 = vld [vmem:[#allocation11 + $0xc40] sm:$0xff]
    %v1862 = vld [vmem:[#allocation11 + $0xc48] sm:$0xff]
    %v1863 = vld [vmem:[#allocation11 + $0xc50] sm:$0xff]
    %v1864 = vld [vmem:[#allocation11 + $0xc58] sm:$0xff]
    %v1865 = vld [vmem:[#allocation11 + $0xc60] sm:$0xff]
    %v1866 = vld [vmem:[#allocation11 + $0xc68] sm:$0xff]
    %v1867 = vld [vmem:[#allocation11 + $0xc70] sm:$0xff]
    %v1868 = vld [vmem:[#allocation11 + $0xc78] sm:$0xff]
    %v1869 = vld [vmem:[#allocation11 + $0xc80] sm:$0xff]
    %v1870 = vld [vmem:[#allocation11 + $0xc88] sm:$0xff]
    %v1871 = vld [vmem:[#allocation11 + $0xc90] sm:$0xff]
    %v1872 = vld [vmem:[#allocation11 + $0xc98] sm:$0xff]
    %v1873 = vld [vmem:[#allocation11 + $0xca0] sm:$0xff]
    %v1874 = vld [vmem:[#allocation11 + $0xca8] sm:$0xff]
    %v1875 = vld [vmem:[#allocation11 + $0xcb0] sm:$0xff]
    %v1876 = vld [vmem:[#allocation11 + $0xcb8] sm:$0xff]
    %v1877 = vld [vmem:[#allocation11 + $0xcc0] sm:$0xff]
    %v1878 = vld [vmem:[#allocation11 + $0xcc8] sm:$0xff]
    %v1879 = vld [vmem:[#allocation11 + $0xcd0] sm:$0xff]
    %v1880 = vld [vmem:[#allocation11 + $0xcd8] sm:$0xff]
    %v1881 = vld [vmem:[#allocation11 + $0xce0] sm:$0xff]
    %v1882 = vld [vmem:[#allocation11 + $0xce8] sm:$0xff]
    %v1883 = vld [vmem:[#allocation11 + $0xcf0] sm:$0xff]
    %v1884 = vld [vmem:[#allocation11 + $0xcf8] sm:$0xff]
    %v1885 = vld [vmem:[#allocation11 + $0xd00] sm:$0xff]
    %v1886 = vld [vmem:[#allocation11 + $0xd08] sm:$0xff]
    %v1887 = vld [vmem:[#allocation11 + $0xd10] sm:$0xff]
    %v1888 = vld [vmem:[#allocation11 + $0xd18] sm:$0xff]
    %v1889 = vld [vmem:[#allocation11 + $0xd20] sm:$0xff]
    %v1890 = vld [vmem:[#allocation11 + $0xd28] sm:$0xff]
    %v1891 = vld [vmem:[#allocation11 + $0xd30] sm:$0xff]
    %v1892 = vld [vmem:[#allocation11 + $0xd38] sm:$0xff]
    %v1893 = vld [vmem:[#allocation11 + $0xd40] sm:$0xff]
    %v1894 = vld [vmem:[#allocation11 + $0xd48] sm:$0xff]
    %v1895 = vld [vmem:[#allocation11 + $0xd50] sm:$0xff]
    %v1896 = vld [vmem:[#allocation11 + $0xd58] sm:$0xff]
    %v1897 = vld [vmem:[#allocation11 + $0xd60] sm:$0xff]
    %v1898 = vld [vmem:[#allocation11 + $0xd68] sm:$0xff]
    %v1899 = vld [vmem:[#allocation11 + $0xd70] sm:$0xff]
    %v1900 = vld [vmem:[#allocation11 + $0xd78] sm:$0xff]
    %v1901 = vld [vmem:[#allocation11 + $0xd80] sm:$0xff]
    %v1902 = vld [vmem:[#allocation11 + $0xd88] sm:$0xff]
    %v1903 = vld [vmem:[#allocation11 + $0xd90] sm:$0xff]
    %v1904 = vld [vmem:[#allocation11 + $0xd98] sm:$0xff]
    %v1905 = vld [vmem:[#allocation11 + $0xda0] sm:$0xff]
    %v1906 = vld [vmem:[#allocation11 + $0xda8] sm:$0xff]
    %v1907 = vld [vmem:[#allocation11 + $0xdb0] sm:$0xff]
    %v1908 = vld [vmem:[#allocation11 + $0xdb8] sm:$0xff]
    %v1909 = vld [vmem:[#allocation11 + $0xdc0] sm:$0xff]
    %v1910 = vld [vmem:[#allocation11 + $0xdc8] sm:$0xff]
    %v1911 = vld [vmem:[#allocation11 + $0xdd0] sm:$0xff]
    %v1912 = vld [vmem:[#allocation11 + $0xdd8] sm:$0xff]
    %v1913 = vld [vmem:[#allocation11 + $0xde0] sm:$0xff]
    %v1914 = vld [vmem:[#allocation11 + $0xde8] sm:$0xff]
    %v1915 = vld [vmem:[#allocation11 + $0xdf0] sm:$0xff]
    %v1916 = vld [vmem:[#allocation11 + $0xdf8] sm:$0xff]
    %v1917 = vld [vmem:[#allocation11 + $0xe00] sm:$0xff]
    %v1918 = vld [vmem:[#allocation11 + $0xe08] sm:$0xff]
    %v1919 = vld [vmem:[#allocation11 + $0xe10] sm:$0xff]
    %v1920 = vld [vmem:[#allocation11 + $0xe18] sm:$0xff]
    %v1921 = vld [vmem:[#allocation11 + $0xe20] sm:$0xff]
    %v1922 = vld [vmem:[#allocation11 + $0xe28] sm:$0xff]
    %v1923 = vld [vmem:[#allocation11 + $0xe30] sm:$0xff]
    %v1924 = vld [vmem:[#allocation11 + $0xe38] sm:$0xff]
    %v1925 = vld [vmem:[#allocation11 + $0xe40] sm:$0xff]
    %v1926 = vld [vmem:[#allocation11 + $0xe48] sm:$0xff]
    %v1927 = vld [vmem:[#allocation11 + $0xe50] sm:$0xff]
    %v1928 = vld [vmem:[#allocation11 + $0xe58] sm:$0xff]
    %v1929 = vld [vmem:[#allocation11 + $0xe60] sm:$0xff]
    %v1930 = vld [vmem:[#allocation11 + $0xe68] sm:$0xff]
    %v1931 = vld [vmem:[#allocation11 + $0xe70] sm:$0xff]
    %v1932 = vld [vmem:[#allocation11 + $0xe78] sm:$0xff]
    %v1933 = vld [vmem:[#allocation11 + $0xe80] sm:$0xff]
    %v1934 = vld [vmem:[#allocation11 + $0xe88] sm:$0xff]
    %v1935 = vld [vmem:[#allocation11 + $0xe90] sm:$0xff]
    %v1936 = vld [vmem:[#allocation11 + $0xe98] sm:$0xff]
    %v1937 = vld [vmem:[#allocation11 + $0xea0] sm:$0xff]
    %v1938 = vld [vmem:[#allocation11 + $0xea8] sm:$0xff]
    %v1939 = vld [vmem:[#allocation11 + $0xeb0] sm:$0xff]
    %v1940 = vld [vmem:[#allocation11 + $0xeb8] sm:$0xff]
    %v1941 = vld [vmem:[#allocation11 + $0xec0] sm:$0xff]
    %v1942 = vld [vmem:[#allocation11 + $0xec8] sm:$0xff]
    %v1943 = vld [vmem:[#allocation11 + $0xed0] sm:$0xff]
    %v1944 = vld [vmem:[#allocation11 + $0xed8] sm:$0xff]
    %v1945 = vld [vmem:[#allocation11 + $0xee0] sm:$0xff]
    %v1946 = vld [vmem:[#allocation11 + $0xee8] sm:$0xff]
    %v1947 = vld [vmem:[#allocation11 + $0xef0] sm:$0xff]
    %v1948 = vld [vmem:[#allocation11 + $0xef8] sm:$0xff]
    %v1949 = vld [vmem:[#allocation11 + $0xf00] sm:$0xff]
    %v1950 = vld [vmem:[#allocation11 + $0xf08] sm:$0xff]
    %v1951 = vld [vmem:[#allocation11 + $0xf10] sm:$0xff]
    %v1952 = vld [vmem:[#allocation11 + $0xf18] sm:$0xff]
    %v1953 = vld [vmem:[#allocation11 + $0xf20] sm:$0xff]
    %v1954 = vld [vmem:[#allocation11 + $0xf28] sm:$0xff]
    %v1955 = vld [vmem:[#allocation11 + $0xf30] sm:$0xff]
    %v1956 = vld [vmem:[#allocation11 + $0xf38] sm:$0xff]
    %v1957 = vld [vmem:[#allocation11 + $0xf40] sm:$0xff]
    %v1958 = vld [vmem:[#allocation11 + $0xf48] sm:$0xff]
    %v1959 = vld [vmem:[#allocation11 + $0xf50] sm:$0xff]
    %v1960 = vld [vmem:[#allocation11 + $0xf58] sm:$0xff]
    %v1961 = vld [vmem:[#allocation11 + $0xf60] sm:$0xff]
    %v1962 = vld [vmem:[#allocation11 + $0xf68] sm:$0xff]
    %v1963 = vld [vmem:[#allocation11 + $0xf70] sm:$0xff]
    %v1964 = vld [vmem:[#allocation11 + $0xf78] sm:$0xff]
    %v1965 = vld [vmem:[#allocation11 + $0xf80] sm:$0xff]
    %v1966 = vld [vmem:[#allocation11 + $0xf88] sm:$0xff]
    %v1967 = vld [vmem:[#allocation11 + $0xf90] sm:$0xff]
    %v1968 = vld [vmem:[#allocation11 + $0xf98] sm:$0xff]
    %v1969 = vld [vmem:[#allocation11 + $0xfa0] sm:$0xff]
    %v1970 = vld [vmem:[#allocation11 + $0xfa8] sm:$0xff]
    %v1971 = vld [vmem:[#allocation11 + $0xfb0] sm:$0xff]
    %v1972 = vld [vmem:[#allocation11 + $0xfb8] sm:$0xff]
    %v1973 = vld [vmem:[#allocation11 + $0xfc0] sm:$0xff]
    %v1974 = vld [vmem:[#allocation11 + $0xfc8] sm:$0xff]
    %v1975 = vld [vmem:[#allocation11 + $0xfd0] sm:$0xff]
    %v1976 = vld [vmem:[#allocation11 + $0xfd8] sm:$0xff]
    %v1977 = vld [vmem:[#allocation11 + $0xfe0] sm:$0xff]
    %v1978 = vld [vmem:[#allocation11 + $0xfe8] sm:$0xff]
    %v1979 = vld [vmem:[#allocation11 + $0xff0] sm:$0xff]
    %v1980 = vld [vmem:[#allocation11 + $0xff8] sm:$0xff]
    %v1981 = vld [vmem:[#allocation11 + $0x1000] sm:$0xff]
    %v1982 = vld [vmem:[#allocation11 + $0x1008] sm:$0xff]
    %v1983 = vld [vmem:[#allocation11 + $0x1010] sm:$0xff]
    %v1984 = vld [vmem:[#allocation11 + $0x1018] sm:$0xff]
    %v1985 = vld [vmem:[#allocation11 + $0x1020] sm:$0xff]
    %v1986 = vld [vmem:[#allocation11 + $0x1028] sm:$0xff]
    %v1987 = vld [vmem:[#allocation11 + $0x1030] sm:$0xff]
    %v1988 = vld [vmem:[#allocation11 + $0x1038] sm:$0xff]
    %v1989 = vld [vmem:[#allocation11 + $0x1040] sm:$0xff]
    %v1990 = vld [vmem:[#allocation11 + $0x1048] sm:$0xff]
    %v1991 = vld [vmem:[#allocation11 + $0x1050] sm:$0xff]
    %v1992 = vld [vmem:[#allocation11 + $0x1058] sm:$0xff]
    %v1993 = vld [vmem:[#allocation11 + $0x1060] sm:$0xff]
    %v1994 = vld [vmem:[#allocation11 + $0x1068] sm:$0xff]
    %v1995 = vld [vmem:[#allocation11 + $0x1070] sm:$0xff]
    %v1996 = vld [vmem:[#allocation11 + $0x1078] sm:$0xff]
    %v1997 = vld [vmem:[#allocation11 + $0x1080] sm:$0xff]
    %v1998 = vld [vmem:[#allocation11 + $0x1088] sm:$0xff]
    %v1999 = vld [vmem:[#allocation11 + $0x1090] sm:$0xff]
    %v2000 = vld [vmem:[#allocation11 + $0x1098] sm:$0xff]
    %v2001 = vld [vmem:[#allocation11 + $0x10a0] sm:$0xff]
    %v2002 = vld [vmem:[#allocation11 + $0x10a8] sm:$0xff]
    %v2003 = vld [vmem:[#allocation11 + $0x10b0] sm:$0xff]
    %v2004 = vld [vmem:[#allocation11 + $0x10b8] sm:$0xff]
    %v2005 = vld [vmem:[#allocation11 + $0x10c0] sm:$0xff]
    %v2006 = vld [vmem:[#allocation11 + $0x10c8] sm:$0xff]
    %v2007 = vld [vmem:[#allocation11 + $0x10d0] sm:$0xff]
    %v2008 = vld [vmem:[#allocation11 + $0x10d8] sm:$0xff]
    %v2009 = vld [vmem:[#allocation11 + $0x10e0] sm:$0xff]
    %v2010 = vld [vmem:[#allocation11 + $0x10e8] sm:$0xff]
    %v2011 = vld [vmem:[#allocation11 + $0x10f0] sm:$0xff]
    %v2012 = vld [vmem:[#allocation11 + $0x10f8] sm:$0xff]
    %v2013 = vld [vmem:[#allocation11 + $0x1100] sm:$0xff]
    %v2014 = vld [vmem:[#allocation11 + $0x1108] sm:$0xff]
    %v2015 = vld [vmem:[#allocation11 + $0x1110] sm:$0xff]
    %v2016 = vld [vmem:[#allocation11 + $0x1118] sm:$0xff]
    %v2017 = vld [vmem:[#allocation11 + $0x1120] sm:$0xff]
    %v2018 = vld [vmem:[#allocation11 + $0x1128] sm:$0xff]
    %v2019 = vld [vmem:[#allocation11 + $0x1130] sm:$0xff]
    %v2020 = vld [vmem:[#allocation11 + $0x1138] sm:$0xff]
    %v2021 = vld [vmem:[#allocation11 + $0x1140] sm:$0xff]
    %v2022 = vld [vmem:[#allocation11 + $0x1148] sm:$0xff]
    %v2023 = vld [vmem:[#allocation11 + $0x1150] sm:$0xff]
    %v2024 = vld [vmem:[#allocation11 + $0x1158] sm:$0xff]
    %v2025 = vld [vmem:[#allocation11 + $0x1160] sm:$0xff]
    %v2026 = vld [vmem:[#allocation11 + $0x1168] sm:$0xff]
    %v2027 = vld [vmem:[#allocation11 + $0x1170] sm:$0xff]
    %v2028 = vld [vmem:[#allocation11 + $0x1178] sm:$0xff]
    %v2029 = vld [vmem:[#allocation11 + $0x1180] sm:$0xff]
    %v2030 = vld [vmem:[#allocation11 + $0x1188] sm:$0xff]
    %v2031 = vld [vmem:[#allocation11 + $0x1190] sm:$0xff]
    %v2032 = vld [vmem:[#allocation11 + $0x1198] sm:$0xff]
    %v2033 = vld [vmem:[#allocation11 + $0x11a0] sm:$0xff]
    %v2034 = vld [vmem:[#allocation11 + $0x11a8] sm:$0xff]
    %v2035 = vld [vmem:[#allocation11 + $0x11b0] sm:$0xff]
    %v2036 = vld [vmem:[#allocation11 + $0x11b8] sm:$0xff]
    %v2037 = vld [vmem:[#allocation11 + $0x11c0] sm:$0xff]
    %v2038 = vld [vmem:[#allocation11 + $0x11c8] sm:$0xff]
    %v2039 = vld [vmem:[#allocation11 + $0x11d0] sm:$0xff]
    %v2040 = vld [vmem:[#allocation11 + $0x11d8] sm:$0xff]
    %v2041 = vld [vmem:[#allocation11 + $0x11e0] sm:$0xff]
    %v2042 = vld [vmem:[#allocation11 + $0x11e8] sm:$0xff]
    %v2043 = vld [vmem:[#allocation11 + $0x11f0] sm:$0xff]
    %v2044 = vld [vmem:[#allocation11 + $0x11f8] sm:$0xff]
    %v2045 = vld [vmem:[#allocation11 + $0x1200] sm:$0xff]
    %v2046 = vld [vmem:[#allocation11 + $0x1208] sm:$0xff]
    %v2047 = vld [vmem:[#allocation11 + $0x1210] sm:$0xff]
    %v2048 = vld [vmem:[#allocation11 + $0x1218] sm:$0xff]
    %v2049 = vld [vmem:[#allocation11 + $0x1220] sm:$0xff]
    %v2050 = vld [vmem:[#allocation11 + $0x1228] sm:$0xff]
    %v2051 = vld [vmem:[#allocation11 + $0x1230] sm:$0xff]
    %v2052 = vld [vmem:[#allocation11 + $0x1238] sm:$0xff]
    %v2053 = vld [vmem:[#allocation11 + $0x1240] sm:$0xff]
    %v2054 = vld [vmem:[#allocation11 + $0x1248] sm:$0xff]
    %v2055 = vld [vmem:[#allocation11 + $0x1250] sm:$0xff]
    %v2056 = vld [vmem:[#allocation11 + $0x1258] sm:$0xff]
    %v2057 = vld [vmem:[#allocation11 + $0x1260] sm:$0xff]
    %v2058 = vld [vmem:[#allocation11 + $0x1268] sm:$0xff]
    %v2059 = vld [vmem:[#allocation11 + $0x1270] sm:$0xff]
    %v2060 = vld [vmem:[#allocation11 + $0x1278] sm:$0xff]
    %v2061 = vld [vmem:[#allocation11 + $0x1280] sm:$0xff]
    %v2062 = vld [vmem:[#allocation11 + $0x1288] sm:$0xff]
    %v2063 = vld [vmem:[#allocation11 + $0x1290] sm:$0xff]
    %v2064 = vld [vmem:[#allocation11 + $0x1298] sm:$0xff]
    %v2065 = vld [vmem:[#allocation11 + $0x12a0] sm:$0xff]
    %v2066 = vld [vmem:[#allocation11 + $0x12a8] sm:$0xff]
    %v2067 = vld [vmem:[#allocation11 + $0x12b0] sm:$0xff]
    %v2068 = vld [vmem:[#allocation11 + $0x12b8] sm:$0xff]
    %v2069 = vld [vmem:[#allocation11 + $0x12c0] sm:$0xff]
    %v2070 = vld [vmem:[#allocation11 + $0x12c8] sm:$0xff]
    %v2071 = vld [vmem:[#allocation11 + $0x12d0] sm:$0xff]
    %v2072 = vld [vmem:[#allocation11 + $0x12d8] sm:$0xff]
    %v2073 = vld [vmem:[#allocation11 + $0x12e0] sm:$0xff]
    %v2074 = vld [vmem:[#allocation11 + $0x12e8] sm:$0xff]
    %v2075 = vld [vmem:[#allocation11 + $0x12f0] sm:$0xff]
    %v2076 = vld [vmem:[#allocation11 + $0x12f8] sm:$0xff]
    %v2077 = vld [vmem:[#allocation11 + $0x1300] sm:$0xff]
    %v2078 = vld [vmem:[#allocation11 + $0x1308] sm:$0xff]
    %v2079 = vld [vmem:[#allocation11 + $0x1310] sm:$0xff]
    %v2080 = vld [vmem:[#allocation11 + $0x1318] sm:$0xff]
    %v2081 = vld [vmem:[#allocation11 + $0x1320] sm:$0xff]
    %v2082 = vld [vmem:[#allocation11 + $0x1328] sm:$0xff]
    %v2083 = vld [vmem:[#allocation11 + $0x1330] sm:$0xff]
    %v2084 = vld [vmem:[#allocation11 + $0x1338] sm:$0xff]
    %v2085 = vld [vmem:[#allocation11 + $0x1340] sm:$0xff]
    %v2086 = vld [vmem:[#allocation11 + $0x1348] sm:$0xff]
    %v2087 = vld [vmem:[#allocation11 + $0x1350] sm:$0xff]
    %v2088 = vld [vmem:[#allocation11 + $0x1358] sm:$0xff]
    %v2089 = vld [vmem:[#allocation11 + $0x1360] sm:$0xff]
    %v2090 = vld [vmem:[#allocation11 + $0x1368] sm:$0xff]
    %v2091 = vld [vmem:[#allocation11 + $0x1370] sm:$0xff]
    %v2092 = vld [vmem:[#allocation11 + $0x1378] sm:$0xff]
    %v2093 = vld [vmem:[#allocation11 + $0x1380] sm:$0xff]
    %v2094 = vld [vmem:[#allocation11 + $0x1388] sm:$0xff]
    %v2095 = vld [vmem:[#allocation11 + $0x1390] sm:$0xff]
    %v2096 = vld [vmem:[#allocation11 + $0x1398] sm:$0xff]
    %v2097 = vld [vmem:[#allocation11 + $0x13a0] sm:$0xff]
    %v2098 = vld [vmem:[#allocation11 + $0x13a8] sm:$0xff]
    %v2099 = vld [vmem:[#allocation11 + $0x13b0] sm:$0xff]
    %v2100 = vld [vmem:[#allocation11 + $0x13b8] sm:$0xff]
    %v2101 = vld [vmem:[#allocation11 + $0x13c0] sm:$0xff]
    %v2102 = vld [vmem:[#allocation11 + $0x13c8] sm:$0xff]
    %v2103 = vld [vmem:[#allocation11 + $0x13d0] sm:$0xff]
    %v2104 = vld [vmem:[#allocation11 + $0x13d8] sm:$0xff]
    %v2105 = vld [vmem:[#allocation11 + $0x13e0] sm:$0xff]
    %v2106 = vld [vmem:[#allocation11 + $0x13e8] sm:$0xff]
    %v2107 = vld [vmem:[#allocation11 + $0x13f0] sm:$0xff]
    %v2108 = vld [vmem:[#allocation11 + $0x13f8] sm:$0xff]
    %v2109 = vld [vmem:[#allocation11 + $0x1400] sm:$0xff]
    %v2110 = vld [vmem:[#allocation11 + $0x1408] sm:$0xff]
    %v2111 = vld [vmem:[#allocation11 + $0x1410] sm:$0xff]
    %v2112 = vld [vmem:[#allocation11 + $0x1418] sm:$0xff]
    %v2113 = vld [vmem:[#allocation11 + $0x1420] sm:$0xff]
    %v2114 = vld [vmem:[#allocation11 + $0x1428] sm:$0xff]
    %v2115 = vld [vmem:[#allocation11 + $0x1430] sm:$0xff]
    %v2116 = vld [vmem:[#allocation11 + $0x1438] sm:$0xff]
    %v2117 = vld [vmem:[#allocation11 + $0x1440] sm:$0xff]
    %v2118 = vld [vmem:[#allocation11 + $0x1448] sm:$0xff]
    %v2119 = vld [vmem:[#allocation11 + $0x1450] sm:$0xff]
    %v2120 = vld [vmem:[#allocation11 + $0x1458] sm:$0xff]
    %v2121 = vld [vmem:[#allocation11 + $0x1460] sm:$0xff]
    %v2122 = vld [vmem:[#allocation11 + $0x1468] sm:$0xff]
    %v2123 = vld [vmem:[#allocation11 + $0x1470] sm:$0xff]
    %v2124 = vld [vmem:[#allocation11 + $0x1478] sm:$0xff]
    %v2125 = vld [vmem:[#allocation11 + $0x1480] sm:$0xff]
    %v2126 = vld [vmem:[#allocation11 + $0x1488] sm:$0xff]
    %v2127 = vld [vmem:[#allocation11 + $0x1490] sm:$0xff]
    %v2128 = vld [vmem:[#allocation11 + $0x1498] sm:$0xff]
    %v2129 = vld [vmem:[#allocation11 + $0x14a0] sm:$0xff]
    %v2130 = vld [vmem:[#allocation11 + $0x14a8] sm:$0xff]
    %v2131 = vld [vmem:[#allocation11 + $0x14b0] sm:$0xff]
    %v2132 = vld [vmem:[#allocation11 + $0x14b8] sm:$0xff]
    %v2133 = vld [vmem:[#allocation11 + $0x14c0] sm:$0xff]
    %v2134 = vld [vmem:[#allocation11 + $0x14c8] sm:$0xff]
    %v2135 = vld [vmem:[#allocation11 + $0x14d0] sm:$0xff]
    %v2136 = vld [vmem:[#allocation11 + $0x14d8] sm:$0xff]
    %v2137 = vld [vmem:[#allocation11 + $0x14e0] sm:$0xff]
    %v2138 = vld [vmem:[#allocation11 + $0x14e8] sm:$0xff]
    %v2139 = vld [vmem:[#allocation11 + $0x14f0] sm:$0xff]
    %v2140 = vld [vmem:[#allocation11 + $0x14f8] sm:$0xff]
    %v2141 = vld [vmem:[#allocation11 + $0x1500] sm:$0xff]
    %v2142 = vld [vmem:[#allocation11 + $0x1508] sm:$0xff]
    %v2143 = vld [vmem:[#allocation11 + $0x1510] sm:$0xff]
    %v2144 = vld [vmem:[#allocation11 + $0x1518] sm:$0xff]
    %v2145 = vld [vmem:[#allocation11 + $0x1520] sm:$0xff]
    %v2146 = vld [vmem:[#allocation11 + $0x1528] sm:$0xff]
    %v2147 = vld [vmem:[#allocation11 + $0x1530] sm:$0xff]
    %v2148 = vld [vmem:[#allocation11 + $0x1538] sm:$0xff]
    %v2149 = vld [vmem:[#allocation11 + $0x1540] sm:$0xff]
    %v2150 = vld [vmem:[#allocation11 + $0x1548] sm:$0xff]
    %v2151 = vld [vmem:[#allocation11 + $0x1550] sm:$0xff]
    %v2152 = vld [vmem:[#allocation11 + $0x1558] sm:$0xff]
    %v2153 = vld [vmem:[#allocation11 + $0x1560] sm:$0xff]
    %v2154 = vld [vmem:[#allocation11 + $0x1568] sm:$0xff]
    %v2155 = vld [vmem:[#allocation11 + $0x1570] sm:$0xff]
    %v2156 = vld [vmem:[#allocation11 + $0x1578] sm:$0xff]
    %v2157 = vld [vmem:[#allocation11 + $0x1580] sm:$0xff]
    %v2158 = vld [vmem:[#allocation11 + $0x1588] sm:$0xff]
    %v2159 = vld [vmem:[#allocation11 + $0x1590] sm:$0xff]
    %v2160 = vld [vmem:[#allocation11 + $0x1598] sm:$0xff]
    %v2161 = vld [vmem:[#allocation11 + $0x15a0] sm:$0xff]
    %v2162 = vld [vmem:[#allocation11 + $0x15a8] sm:$0xff]
    %v2163 = vld [vmem:[#allocation11 + $0x15b0] sm:$0xff]
    %v2164 = vld [vmem:[#allocation11 + $0x15b8] sm:$0xff]
    %v2165 = vld [vmem:[#allocation11 + $0x15c0] sm:$0xff]
    %v2166 = vld [vmem:[#allocation11 + $0x15c8] sm:$0xff]
    %v2167 = vld [vmem:[#allocation11 + $0x15d0] sm:$0xff]
    %v2168 = vld [vmem:[#allocation11 + $0x15d8] sm:$0xff]
    %v2169 = vld [vmem:[#allocation11 + $0x15e0] sm:$0xff]
    %v2170 = vld [vmem:[#allocation11 + $0x15e8] sm:$0xff]
    %v2171 = vld [vmem:[#allocation11 + $0x15f0] sm:$0xff]
    %v2172 = vld [vmem:[#allocation11 + $0x15f8] sm:$0xff]
    %v2173 = vld [vmem:[#allocation11 + $0x1600] sm:$0xff]
    %v2174 = vld [vmem:[#allocation11 + $0x1608] sm:$0xff]
    %v2175 = vld [vmem:[#allocation11 + $0x1610] sm:$0xff]
    %v2176 = vld [vmem:[#allocation11 + $0x1618] sm:$0xff]
    %v2177 = vld [vmem:[#allocation11 + $0x1620] sm:$0xff]
    %v2178 = vld [vmem:[#allocation11 + $0x1628] sm:$0xff]
    %v2179 = vld [vmem:[#allocation11 + $0x1630] sm:$0xff]
    %v2180 = vld [vmem:[#allocation11 + $0x1638] sm:$0xff]
    %v2181 = vld [vmem:[#allocation11 + $0x1640] sm:$0xff]
    %v2182 = vld [vmem:[#allocation11 + $0x1648] sm:$0xff]
    %v2183 = vld [vmem:[#allocation11 + $0x1650] sm:$0xff]
    %v2184 = vld [vmem:[#allocation11 + $0x1658] sm:$0xff]
    %v2185 = vld [vmem:[#allocation11 + $0x1660] sm:$0xff]
    %v2186 = vld [vmem:[#allocation11 + $0x1668] sm:$0xff]
    %v2187 = vld [vmem:[#allocation11 + $0x1670] sm:$0xff]
    %v2188 = vld [vmem:[#allocation11 + $0x1678] sm:$0xff]
    %v2189 = vld [vmem:[#allocation11 + $0x1680] sm:$0xff]
    %v2190 = vld [vmem:[#allocation11 + $0x1688] sm:$0xff]
    %v2191 = vld [vmem:[#allocation11 + $0x1690] sm:$0xff]
    %v2192 = vld [vmem:[#allocation11 + $0x1698] sm:$0xff]
    %v2193 = vld [vmem:[#allocation11 + $0x16a0] sm:$0xff]
    %v2194 = vld [vmem:[#allocation11 + $0x16a8] sm:$0xff]
    %v2195 = vld [vmem:[#allocation11 + $0x16b0] sm:$0xff]
    %v2196 = vld [vmem:[#allocation11 + $0x16b8] sm:$0xff]
    %v2197 = vld [vmem:[#allocation11 + $0x16c0] sm:$0xff]
    %v2198 = vld [vmem:[#allocation11 + $0x16c8] sm:$0xff]
    %v2199 = vld [vmem:[#allocation11 + $0x16d0] sm:$0xff]
    %v2200 = vld [vmem:[#allocation11 + $0x16d8] sm:$0xff]
    %v2201 = vld [vmem:[#allocation11 + $0x16e0] sm:$0xff]
    %v2202 = vld [vmem:[#allocation11 + $0x16e8] sm:$0xff]
    %v2203 = vld [vmem:[#allocation11 + $0x16f0] sm:$0xff]
    %v2204 = vld [vmem:[#allocation11 + $0x16f8] sm:$0xff]
    %v2205 = vld [vmem:[#allocation11 + $0x1700] sm:$0xff]
    %v2206 = vld [vmem:[#allocation11 + $0x1708] sm:$0xff]
    %v2207 = vld [vmem:[#allocation11 + $0x1710] sm:$0xff]
    %v2208 = vld [vmem:[#allocation11 + $0x1718] sm:$0xff]
    %v2209 = vld [vmem:[#allocation11 + $0x1720] sm:$0xff]
    %v2210 = vld [vmem:[#allocation11 + $0x1728] sm:$0xff]
    %v2211 = vld [vmem:[#allocation11 + $0x1730] sm:$0xff]
    %v2212 = vld [vmem:[#allocation11 + $0x1738] sm:$0xff]
    %v2213 = vld [vmem:[#allocation11 + $0x1740] sm:$0xff]
    %v2214 = vld [vmem:[#allocation11 + $0x1748] sm:$0xff]
    %v2215 = vld [vmem:[#allocation11 + $0x1750] sm:$0xff]
    %v2216 = vld [vmem:[#allocation11 + $0x1758] sm:$0xff]
    %v2217 = vld [vmem:[#allocation11 + $0x1760] sm:$0xff]
    %v2218 = vld [vmem:[#allocation11 + $0x1768] sm:$0xff]
    %v2219 = vld [vmem:[#allocation11 + $0x1770] sm:$0xff]
    %v2220 = vld [vmem:[#allocation11 + $0x1778] sm:$0xff]
    %v2221 = vld [vmem:[#allocation11 + $0x1780] sm:$0xff]
    %v2222 = vld [vmem:[#allocation11 + $0x1788] sm:$0xff]
    %v2223 = vld [vmem:[#allocation11 + $0x1790] sm:$0xff]
    %v2224 = vld [vmem:[#allocation11 + $0x1798] sm:$0xff]
    %v2225 = vld [vmem:[#allocation11 + $0x17a0] sm:$0xff]
    %v2226 = vld [vmem:[#allocation11 + $0x17a8] sm:$0xff]
    %v2227 = vld [vmem:[#allocation11 + $0x17b0] sm:$0xff]
    %v2228 = vld [vmem:[#allocation11 + $0x17b8] sm:$0xff]
    %v2229 = vld [vmem:[#allocation11 + $0x17c0] sm:$0xff]
    %v2230 = vld [vmem:[#allocation11 + $0x17c8] sm:$0xff]
    %v2231 = vld [vmem:[#allocation11 + $0x17d0] sm:$0xff]
    %v2232 = vld [vmem:[#allocation11 + $0x17d8] sm:$0xff]
    %v2233 = vld [vmem:[#allocation11 + $0x17e0] sm:$0xff]
    %v2234 = vld [vmem:[#allocation11 + $0x17e8] sm:$0xff]
    %v2235 = vld [vmem:[#allocation11 + $0x17f0] sm:$0xff]
    %v2236 = vld [vmem:[#allocation11 + $0x17f8] sm:$0xff]
    %v2237 = vld [vmem:[#allocation11 + $0x1800] sm:$0xff]
    %v2238 = vld [vmem:[#allocation11 + $0x1808] sm:$0xff]
    %v2239 = vld [vmem:[#allocation11 + $0x1810] sm:$0xff]
    %v2240 = vld [vmem:[#allocation11 + $0x1818] sm:$0xff]
    %v2241 = vld [vmem:[#allocation11 + $0x1820] sm:$0xff]
    %v2242 = vld [vmem:[#allocation11 + $0x1828] sm:$0xff]
    %v2243 = vld [vmem:[#allocation11 + $0x1830] sm:$0xff]
    %v2244 = vld [vmem:[#allocation11 + $0x1838] sm:$0xff]
    %v2245 = vld [vmem:[#allocation11 + $0x1840] sm:$0xff]
    %v2246 = vld [vmem:[#allocation11 + $0x1848] sm:$0xff]
    %v2247 = vld [vmem:[#allocation11 + $0x1850] sm:$0xff]
    %v2248 = vld [vmem:[#allocation11 + $0x1858] sm:$0xff]
    %v2249 = vld [vmem:[#allocation11 + $0x1860] sm:$0xff]
    %v2250 = vld [vmem:[#allocation11 + $0x1868] sm:$0xff]
    %v2251 = vld [vmem:[#allocation11 + $0x1870] sm:$0xff]
    %v2252 = vld [vmem:[#allocation11 + $0x1878] sm:$0xff]
    %v2253 = vld [vmem:[#allocation11 + $0x1880] sm:$0xff]
    %v2254 = vld [vmem:[#allocation11 + $0x1888] sm:$0xff]
    %v2255 = vld [vmem:[#allocation11 + $0x1890] sm:$0xff]
    %v2256 = vld [vmem:[#allocation11 + $0x1898] sm:$0xff]
    %v2257 = vld [vmem:[#allocation11 + $0x18a0] sm:$0xff]
    %v2258 = vld [vmem:[#allocation11 + $0x18a8] sm:$0xff]
    %v2259 = vld [vmem:[#allocation11 + $0x18b0] sm:$0xff]
    %v2260 = vld [vmem:[#allocation11 + $0x18b8] sm:$0xff]
    %v2261 = vld [vmem:[#allocation11 + $0x18c0] sm:$0xff]
    %v2262 = vld [vmem:[#allocation11 + $0x18c8] sm:$0xff]
    %v2263 = vld [vmem:[#allocation11 + $0x18d0] sm:$0xff]
    %v2264 = vld [vmem:[#allocation11 + $0x18d8] sm:$0xff]
    %v2265 = vld [vmem:[#allocation11 + $0x18e0] sm:$0xff]
    %v2266 = vld [vmem:[#allocation11 + $0x18e8] sm:$0xff]
    %v2267 = vld [vmem:[#allocation11 + $0x18f0] sm:$0xff]
    %v2268 = vld [vmem:[#allocation11 + $0x18f8] sm:$0xff]
    %v2269 = vld [vmem:[#allocation11 + $0x1900] sm:$0xff]
    %v2270 = vld [vmem:[#allocation11 + $0x1908] sm:$0xff]
    %v2271 = vld [vmem:[#allocation11 + $0x1910] sm:$0xff]
    %v2272 = vld [vmem:[#allocation11 + $0x1918] sm:$0xff]
    %v2273 = vld [vmem:[#allocation11 + $0x1920] sm:$0xff]
    %v2274 = vld [vmem:[#allocation11 + $0x1928] sm:$0xff]
    %v2275 = vld [vmem:[#allocation11 + $0x1930] sm:$0xff]
    %v2276 = vld [vmem:[#allocation11 + $0x1938] sm:$0xff]
    %v2277 = vld [vmem:[#allocation11 + $0x1940] sm:$0xff]
    %v2278 = vld [vmem:[#allocation11 + $0x1948] sm:$0xff]
    %v2279 = vld [vmem:[#allocation11 + $0x1950] sm:$0xff]
    %v2280 = vld [vmem:[#allocation11 + $0x1958] sm:$0xff]
    %v2281 = vld [vmem:[#allocation11 + $0x1960] sm:$0xff]
    %v2282 = vld [vmem:[#allocation11 + $0x1968] sm:$0xff]
    %v2283 = vld [vmem:[#allocation11 + $0x1970] sm:$0xff]
    %v2284 = vld [vmem:[#allocation11 + $0x1978] sm:$0xff]
    %v2285 = vld [vmem:[#allocation11 + $0x1980] sm:$0xff]
    %v2286 = vld [vmem:[#allocation11 + $0x1988] sm:$0xff]
    %v2287 = vld [vmem:[#allocation11 + $0x1990] sm:$0xff]
    %v2288 = vld [vmem:[#allocation11 + $0x1998] sm:$0xff]
    %v2289 = vld [vmem:[#allocation11 + $0x19a0] sm:$0xff]
    %v2290 = vld [vmem:[#allocation11 + $0x19a8] sm:$0xff]
    %v2291 = vld [vmem:[#allocation11 + $0x19b0] sm:$0xff]
    %v2292 = vld [vmem:[#allocation11 + $0x19b8] sm:$0xff]
    %v2293 = vld [vmem:[#allocation11 + $0x19c0] sm:$0xff]
    %v2294 = vld [vmem:[#allocation11 + $0x19c8] sm:$0xff]
    %v2295 = vld [vmem:[#allocation11 + $0x19d0] sm:$0xff]
    %v2296 = vld [vmem:[#allocation11 + $0x19d8] sm:$0xff]
    %v2297 = vld [vmem:[#allocation11 + $0x19e0] sm:$0xff]
    %v2298 = vld [vmem:[#allocation11 + $0x19e8] sm:$0xff]
    %v2299 = vld [vmem:[#allocation11 + $0x19f0] sm:$0xff]
    %v2300 = vld [vmem:[#allocation11 + $0x19f8] sm:$0xff]
    %v2301 = vld [vmem:[#allocation11 + $0x1a00] sm:$0xff]
    %v2302 = vld [vmem:[#allocation11 + $0x1a08] sm:$0xff]
    %v2303 = vld [vmem:[#allocation11 + $0x1a10] sm:$0xff]
    %v2304 = vld [vmem:[#allocation11 + $0x1a18] sm:$0xff]
    %v2305 = vld [vmem:[#allocation11 + $0x1a20] sm:$0xff]
    %v2306 = vld [vmem:[#allocation11 + $0x1a28] sm:$0xff]
    %v2307 = vld [vmem:[#allocation11 + $0x1a30] sm:$0xff]
    %v2308 = vld [vmem:[#allocation11 + $0x1a38] sm:$0xff]
    %v2309 = vld [vmem:[#allocation11 + $0x1a40] sm:$0xff]
    %v2310 = vld [vmem:[#allocation11 + $0x1a48] sm:$0xff]
    %v2311 = vld [vmem:[#allocation11 + $0x1a50] sm:$0xff]
    %v2312 = vld [vmem:[#allocation11 + $0x1a58] sm:$0xff]
    %v2313 = vld [vmem:[#allocation11 + $0x1a60] sm:$0xff]
    %v2314 = vld [vmem:[#allocation11 + $0x1a68] sm:$0xff]
    %v2315 = vld [vmem:[#allocation11 + $0x1a70] sm:$0xff]
    %v2316 = vld [vmem:[#allocation11 + $0x1a78] sm:$0xff]
    %v2317 = vld [vmem:[#allocation11 + $0x1a80] sm:$0xff]
    %v2318 = vld [vmem:[#allocation11 + $0x1a88] sm:$0xff]
    %v2319 = vld [vmem:[#allocation11 + $0x1a90] sm:$0xff]
    %v2320 = vld [vmem:[#allocation11 + $0x1a98] sm:$0xff]
    %v2321 = vld [vmem:[#allocation11 + $0x1aa0] sm:$0xff]
    %v2322 = vld [vmem:[#allocation11 + $0x1aa8] sm:$0xff]
    %v2323 = vld [vmem:[#allocation11 + $0x1ab0] sm:$0xff]
    %v2324 = vld [vmem:[#allocation11 + $0x1ab8] sm:$0xff]
    %v2325 = vld [vmem:[#allocation11 + $0x1ac0] sm:$0xff]
    %v2326 = vld [vmem:[#allocation11 + $0x1ac8] sm:$0xff]
    %v2327 = vld [vmem:[#allocation11 + $0x1ad0] sm:$0xff]
    %v2328 = vld [vmem:[#allocation11 + $0x1ad8] sm:$0xff]
    %v2329 = vld [vmem:[#allocation11 + $0x1ae0] sm:$0xff]
    %v2330 = vld [vmem:[#allocation11 + $0x1ae8] sm:$0xff]
    %v2331 = vld [vmem:[#allocation11 + $0x1af0] sm:$0xff]
    %v2332 = vld [vmem:[#allocation11 + $0x1af8] sm:$0xff]
    %v2333 = vld [vmem:[#allocation11 + $0x1b00] sm:$0xff]
    %v2334 = vld [vmem:[#allocation11 + $0x1b08] sm:$0xff]
    %v2335 = vld [vmem:[#allocation11 + $0x1b10] sm:$0xff]
    %v2336 = vld [vmem:[#allocation11 + $0x1b18] sm:$0xff]
    %v2337 = vld [vmem:[#allocation11 + $0x1b20] sm:$0xff]
    %v2338 = vld [vmem:[#allocation11 + $0x1b28] sm:$0xff]
    %v2339 = vld [vmem:[#allocation11 + $0x1b30] sm:$0xff]
    %v2340 = vld [vmem:[#allocation11 + $0x1b38] sm:$0xff]
    %v2341 = vld [vmem:[#allocation11 + $0x1b40] sm:$0xff]
    %v2342 = vld [vmem:[#allocation11 + $0x1b48] sm:$0xff]
    %v2343 = vld [vmem:[#allocation11 + $0x1b50] sm:$0xff]
    %v2344 = vld [vmem:[#allocation11 + $0x1b58] sm:$0xff]
    %v2345 = vld [vmem:[#allocation11 + $0x1b60] sm:$0xff]
    %v2346 = vld [vmem:[#allocation11 + $0x1b68] sm:$0xff]
    %v2347 = vld [vmem:[#allocation11 + $0x1b70] sm:$0xff]
    %v2348 = vld [vmem:[#allocation11 + $0x1b78] sm:$0xff]
    %v2349 = vld [vmem:[#allocation11 + $0x1b80] sm:$0xff]
    %v2350 = vld [vmem:[#allocation11 + $0x1b88] sm:$0xff]
    %v2351 = vld [vmem:[#allocation11 + $0x1b90] sm:$0xff]
    %v2352 = vld [vmem:[#allocation11 + $0x1b98] sm:$0xff]
    %v2353 = vld [vmem:[#allocation11 + $0x1ba0] sm:$0xff]
    %v2354 = vld [vmem:[#allocation11 + $0x1ba8] sm:$0xff]
    %v2355 = vld [vmem:[#allocation11 + $0x1bb0] sm:$0xff]
    %v2356 = vld [vmem:[#allocation11 + $0x1bb8] sm:$0xff]
    %v2357 = vld [vmem:[#allocation11 + $0x1bc0] sm:$0xff]
    %v2358 = vld [vmem:[#allocation11 + $0x1bc8] sm:$0xff]
    %v2359 = vld [vmem:[#allocation11 + $0x1bd0] sm:$0xff]
    %v2360 = vld [vmem:[#allocation11 + $0x1bd8] sm:$0xff]
    %v2361 = vld [vmem:[#allocation11 + $0x1be0] sm:$0xff]
    %v2362 = vld [vmem:[#allocation11 + $0x1be8] sm:$0xff]
    %v2363 = vld [vmem:[#allocation11 + $0x1bf0] sm:$0xff]
    %v2364 = vld [vmem:[#allocation11 + $0x1bf8] sm:$0xff]
    %v2365 = vld [vmem:[#allocation13] sm:$0xff]
    %v2366 = vld [vmem:[#allocation13 + $0x8] sm:$0xff]
    %v2367 = vld [vmem:[#allocation13 + $0x10] sm:$0xff]
    %v2368 = vld [vmem:[#allocation13 + $0x18] sm:$0xf]
    %v2373 = vlaneseq
    %v2374 = vshrl.u32 %v2373, 7
    %v2375 = vsub.s32 0, %v2374
    %v2376 = vrot.slane %v2365, %v2375
    %v2377 = vlaneseq
    %v2378 = vshrl.u32 %v2377, 7
    %v2379 = vsub.s32 1, %v2378
    %v2380 = vrot.slane %v2365, %v2379
    %v2381 = vlaneseq
    %v2382 = vshrl.u32 %v2381, 7
    %v2383 = vsub.s32 2, %v2382
    %v2384 = vrot.slane %v2365, %v2383
    %v2385 = vlaneseq
    %v2386 = vshrl.u32 %v2385, 7
    %v2387 = vsub.s32 3, %v2386
    %v2388 = vrot.slane %v2365, %v2387
    %v2389 = vlaneseq
    %v2390 = vshrl.u32 %v2389, 7
    %v2391 = vsub.s32 4, %v2390
    %v2392 = vrot.slane %v2365, %v2391
    %v2393 = vlaneseq
    %v2394 = vshrl.u32 %v2393, 7
    %v2395 = vsub.s32 5, %v2394
    %v2396 = vrot.slane %v2365, %v2395
    %v2397 = vlaneseq
    %v2398 = vshrl.u32 %v2397, 7
    %v2399 = vsub.s32 6, %v2398
    %v2400 = vrot.slane %v2365, %v2399
    %v2401 = vlaneseq
    %v2402 = vshrl.u32 %v2401, 7
    %v2403 = vsub.s32 7, %v2402
    %v2404 = vrot.slane %v2365, %v2403
    %v2405 = vlaneseq
    %v2406 = vshrl.u32 %v2405, 7
    %v2407 = vsub.s32 0, %v2406
    %v2408 = vrot.slane %v2366, %v2407
    %v2409 = vlaneseq
    %v2410 = vshrl.u32 %v2409, 7
    %v2411 = vsub.s32 1, %v2410
    %v2412 = vrot.slane %v2366, %v2411
    %v2413 = vlaneseq
    %v2414 = vshrl.u32 %v2413, 7
    %v2415 = vsub.s32 2, %v2414
    %v2416 = vrot.slane %v2366, %v2415
    %v2417 = vlaneseq
    %v2418 = vshrl.u32 %v2417, 7
    %v2419 = vsub.s32 3, %v2418
    %v2420 = vrot.slane %v2366, %v2419
    %v2421 = vlaneseq
    %v2422 = vshrl.u32 %v2421, 7
    %v2423 = vsub.s32 4, %v2422
    %v2424 = vrot.slane %v2366, %v2423
    %v2425 = vlaneseq
    %v2426 = vshrl.u32 %v2425, 7
    %v2427 = vsub.s32 5, %v2426
    %v2428 = vrot.slane %v2366, %v2427
    %v2429 = vlaneseq
    %v2430 = vshrl.u32 %v2429, 7
    %v2431 = vsub.s32 6, %v2430
    %v2432 = vrot.slane %v2366, %v2431
    %v2433 = vlaneseq
    %v2434 = vshrl.u32 %v2433, 7
    %v2435 = vsub.s32 7, %v2434
    %v2436 = vrot.slane %v2366, %v2435
    %v2437 = vlaneseq
    %v2438 = vshrl.u32 %v2437, 7
    %v2439 = vsub.s32 0, %v2438
    %v2440 = vrot.slane %v2367, %v2439
    %v2441 = vlaneseq
    %v2442 = vshrl.u32 %v2441, 7
    %v2443 = vsub.s32 1, %v2442
    %v2444 = vrot.slane %v2367, %v2443
    %v2445 = vlaneseq
    %v2446 = vshrl.u32 %v2445, 7
    %v2447 = vsub.s32 2, %v2446
    %v2448 = vrot.slane %v2367, %v2447
    %v2449 = vlaneseq
    %v2450 = vshrl.u32 %v2449, 7
    %v2451 = vsub.s32 3, %v2450
    %v2452 = vrot.slane %v2367, %v2451
    %v2453 = vlaneseq
    %v2454 = vshrl.u32 %v2453, 7
    %v2455 = vsub.s32 4, %v2454
    %v2456 = vrot.slane %v2367, %v2455
    %v2457 = vlaneseq
    %v2458 = vshrl.u32 %v2457, 7
    %v2459 = vsub.s32 5, %v2458
    %v2460 = vrot.slane %v2367, %v2459
    %v2461 = vlaneseq
    %v2462 = vshrl.u32 %v2461, 7
    %v2463 = vsub.s32 6, %v2462
    %v2464 = vrot.slane %v2367, %v2463
    %v2465 = vlaneseq
    %v2466 = vshrl.u32 %v2465, 7
    %v2467 = vsub.s32 7, %v2466
    %v2468 = vrot.slane %v2367, %v2467
    %v2469 = vlaneseq
    %v2470 = vshrl.u32 %v2469, 7
    %v2471 = vsub.s32 0, %v2470
    %v2472 = vrot.slane %v2368, %v2471
    %v2473 = vlaneseq
    %v2474 = vshrl.u32 %v2473, 7
    %v2475 = vsub.s32 1, %v2474
    %v2476 = vrot.slane %v2368, %v2475
    %v2477 = vlaneseq
    %v2478 = vshrl.u32 %v2477, 7
    %v2479 = vsub.s32 2, %v2478
    %v2480 = vrot.slane %v2368, %v2479
    %v2481 = vlaneseq
    %v2482 = vshrl.u32 %v2481, 7
    %v2483 = vsub.s32 3, %v2482
    %v2484 = vrot.slane %v2368, %v2483
    %v3409 = vunpack.c.l.b16 %v1469
    %v3410 = vunpack.c.h.b16 %v1469
    %v3411 = vunpack.c.l.b16 %v1470
    %v3412 = vunpack.c.h.b16 %v1470
    %v3413 = vunpack.c.l.b16 %v1471
    %v3414 = vunpack.c.h.b16 %v1471
    %v3415 = vunpack.c.l.b16 %v1472
    %v3416 = vunpack.c.h.b16 %v1472
    %v3417 = vunpack.c.l.b16 %v1473
    %v3418 = vunpack.c.h.b16 %v1473
    %v3419 = vunpack.c.l.b16 %v1474
    %v3420 = vunpack.c.h.b16 %v1474
    %v3421 = vunpack.c.l.b16 %v1475
    %v3422 = vunpack.c.h.b16 %v1475
    %v3423 = vunpack.c.l.b16 %v1476
    %v3424 = vunpack.c.h.b16 %v1476
    %v3425 = vunpack.c.l.b16 %v1477
    %v3426 = vunpack.c.h.b16 %v1477
    %v3427 = vunpack.c.l.b16 %v1478
    %v3428 = vunpack.c.h.b16 %v1478
    %v3429 = vunpack.c.l.b16 %v1479
    %v3430 = vunpack.c.h.b16 %v1479
    %v3431 = vunpack.c.l.b16 %v1480
    %v3432 = vunpack.c.h.b16 %v1480
    %v3433 = vunpack.c.l.b16 %v1481
    %v3434 = vunpack.c.h.b16 %v1481
    %v3435 = vunpack.c.l.b16 %v1482
    %v3436 = vunpack.c.h.b16 %v1482
    %v3437 = vunpack.c.l.b16 %v1483
    %v3438 = vunpack.c.h.b16 %v1483
    %v3439 = vunpack.c.l.b16 %v1484
    %v3440 = vunpack.c.h.b16 %v1484
    %v3441 = vunpack.c.l.b16 %v1485
    %v3442 = vunpack.c.h.b16 %v1485
    %v3443 = vunpack.c.l.b16 %v1486
    %v3444 = vunpack.c.h.b16 %v1486
    %v3445 = vunpack.c.l.b16 %v1487
    %v3446 = vunpack.c.h.b16 %v1487
    %v3447 = vunpack.c.l.b16 %v1488
    %v3448 = vunpack.c.h.b16 %v1488
    %v3449 = vunpack.c.l.b16 %v1489
    %v3450 = vunpack.c.h.b16 %v1489
    %v3451 = vunpack.c.l.b16 %v1490
    %v3452 = vunpack.c.h.b16 %v1490
    %v3453 = vunpack.c.l.b16 %v1491
    %v3454 = vunpack.c.h.b16 %v1491
    %v3455 = vunpack.c.l.b16 %v1492
    %v3456 = vunpack.c.h.b16 %v1492
    %v3457 = vunpack.c.l.b16 %v1493
    %v3458 = vunpack.c.h.b16 %v1493
    %v3459 = vunpack.c.l.b16 %v1494
    %v3460 = vunpack.c.h.b16 %v1494
    %v3461 = vunpack.c.l.b16 %v1495
    %v3462 = vunpack.c.h.b16 %v1495
    %v3463 = vunpack.c.l.b16 %v1496
    %v3464 = vunpack.c.h.b16 %v1496
    %v3465 = vunpack.c.l.b16 %v1497
    %v3466 = vunpack.c.h.b16 %v1497
    %v3467 = vunpack.c.l.b16 %v1498
    %v3468 = vunpack.c.h.b16 %v1498
    %v3469 = vunpack.c.l.b16 %v1499
    %v3470 = vunpack.c.h.b16 %v1499
    %v3471 = vunpack.c.l.b16 %v1500
    %v3472 = vunpack.c.h.b16 %v1500
    %v3473 = vunpack.c.l.b16 %v1501
    %v3474 = vunpack.c.h.b16 %v1501
    %v3475 = vunpack.c.l.b16 %v1502
    %v3476 = vunpack.c.h.b16 %v1502
    %v3477 = vunpack.c.l.b16 %v1503
    %v3478 = vunpack.c.h.b16 %v1503
    %v3479 = vunpack.c.l.b16 %v1504
    %v3480 = vunpack.c.h.b16 %v1504
    %v3481 = vunpack.c.l.b16 %v1505
    %v3482 = vunpack.c.h.b16 %v1505
    %v3483 = vunpack.c.l.b16 %v1506
    %v3484 = vunpack.c.h.b16 %v1506
    %v3485 = vunpack.c.l.b16 %v1507
    %v3486 = vunpack.c.h.b16 %v1507
    %v3487 = vunpack.c.l.b16 %v1508
    %v3488 = vunpack.c.h.b16 %v1508
    %v3489 = vunpack.c.l.b16 %v1509
    %v3490 = vunpack.c.h.b16 %v1509
    %v3491 = vunpack.c.l.b16 %v1510
    %v3492 = vunpack.c.h.b16 %v1510
    %v3493 = vunpack.c.l.b16 %v1511
    %v3494 = vunpack.c.h.b16 %v1511
    %v3495 = vunpack.c.l.b16 %v1512
    %v3496 = vunpack.c.h.b16 %v1512
    %v3497 = vunpack.c.l.b16 %v1513
    %v3498 = vunpack.c.h.b16 %v1513
    %v3499 = vunpack.c.l.b16 %v1514
    %v3500 = vunpack.c.h.b16 %v1514
    %v3501 = vunpack.c.l.b16 %v1515
    %v3502 = vunpack.c.h.b16 %v1515
    %v3503 = vunpack.c.l.b16 %v1516
    %v3504 = vunpack.c.h.b16 %v1516
    %v3505 = vunpack.c.l.b16 %v1517
    %v3506 = vunpack.c.h.b16 %v1517
    %v3507 = vunpack.c.l.b16 %v1518
    %v3508 = vunpack.c.h.b16 %v1518
    %v3509 = vunpack.c.l.b16 %v1519
    %v3510 = vunpack.c.h.b16 %v1519
    %v3511 = vunpack.c.l.b16 %v1520
    %v3512 = vunpack.c.h.b16 %v1520
    %v3513 = vunpack.c.l.b16 %v1521
    %v3514 = vunpack.c.h.b16 %v1521
    %v3515 = vunpack.c.l.b16 %v1522
    %v3516 = vunpack.c.h.b16 %v1522
    %v3517 = vunpack.c.l.b16 %v1523
    %v3518 = vunpack.c.h.b16 %v1523
    %v3519 = vunpack.c.l.b16 %v1524
    %v3520 = vunpack.c.h.b16 %v1524
    %v3521 = vunpack.c.l.b16 %v1525
    %v3522 = vunpack.c.h.b16 %v1525
    %v3523 = vunpack.c.l.b16 %v1526
    %v3524 = vunpack.c.h.b16 %v1526
    %v3525 = vunpack.c.l.b16 %v1527
    %v3526 = vunpack.c.h.b16 %v1527
    %v3527 = vunpack.c.l.b16 %v1528
    %v3528 = vunpack.c.h.b16 %v1528
    %v3529 = vunpack.c.l.b16 %v1529
    %v3530 = vunpack.c.h.b16 %v1529
    %v3531 = vunpack.c.l.b16 %v1530
    %v3532 = vunpack.c.h.b16 %v1530
    %v3533 = vunpack.c.l.b16 %v1531
    %v3534 = vunpack.c.h.b16 %v1531
    %v3535 = vunpack.c.l.b16 %v1532
    %v3536 = vunpack.c.h.b16 %v1532
    %v3537 = vunpack.c.l.b16 %v1533
    %v3538 = vunpack.c.h.b16 %v1533
    %v3539 = vunpack.c.l.b16 %v1534
    %v3540 = vunpack.c.h.b16 %v1534
    %v3541 = vunpack.c.l.b16 %v1535
    %v3542 = vunpack.c.h.b16 %v1535
    %v3543 = vunpack.c.l.b16 %v1536
    %v3544 = vunpack.c.h.b16 %v1536
    %v3545 = vunpack.c.l.b16 %v1537
    %v3546 = vunpack.c.h.b16 %v1537
    %v3547 = vunpack.c.l.b16 %v1538
    %v3548 = vunpack.c.h.b16 %v1538
    %v3549 = vunpack.c.l.b16 %v1539
    %v3550 = vunpack.c.h.b16 %v1539
    %v3551 = vunpack.c.l.b16 %v1540
    %v3552 = vunpack.c.h.b16 %v1540
    %v3553 = vunpack.c.l.b16 %v1541
    %v3554 = vunpack.c.h.b16 %v1541
    %v3555 = vunpack.c.l.b16 %v1542
    %v3556 = vunpack.c.h.b16 %v1542
    %v3557 = vunpack.c.l.b16 %v1543
    %v3558 = vunpack.c.h.b16 %v1543
    %v3559 = vunpack.c.l.b16 %v1544
    %v3560 = vunpack.c.h.b16 %v1544
    %v3561 = vunpack.c.l.b16 %v1545
    %v3562 = vunpack.c.h.b16 %v1545
    %v3563 = vunpack.c.l.b16 %v1546
    %v3564 = vunpack.c.h.b16 %v1546
    %v3565 = vunpack.c.l.b16 %v1547
    %v3566 = vunpack.c.h.b16 %v1547
    %v3567 = vunpack.c.l.b16 %v1548
    %v3568 = vunpack.c.h.b16 %v1548
    %v3569 = vunpack.c.l.b16 %v1549
    %v3570 = vunpack.c.h.b16 %v1549
    %v3571 = vunpack.c.l.b16 %v1550
    %v3572 = vunpack.c.h.b16 %v1550
    %v3573 = vunpack.c.l.b16 %v1551
    %v3574 = vunpack.c.h.b16 %v1551
    %v3575 = vunpack.c.l.b16 %v1552
    %v3576 = vunpack.c.h.b16 %v1552
    %v3577 = vunpack.c.l.b16 %v1553
    %v3578 = vunpack.c.h.b16 %v1553
    %v3579 = vunpack.c.l.b16 %v1554
    %v3580 = vunpack.c.h.b16 %v1554
    %v3581 = vunpack.c.l.b16 %v1555
    %v3582 = vunpack.c.h.b16 %v1555
    %v3583 = vunpack.c.l.b16 %v1556
    %v3584 = vunpack.c.h.b16 %v1556
    %v3585 = vunpack.c.l.b16 %v1557
    %v3586 = vunpack.c.h.b16 %v1557
    %v3587 = vunpack.c.l.b16 %v1558
    %v3588 = vunpack.c.h.b16 %v1558
    %v3589 = vunpack.c.l.b16 %v1559
    %v3590 = vunpack.c.h.b16 %v1559
    %v3591 = vunpack.c.l.b16 %v1560
    %v3592 = vunpack.c.h.b16 %v1560
    %v3593 = vunpack.c.l.b16 %v1561
    %v3594 = vunpack.c.h.b16 %v1561
    %v3595 = vunpack.c.l.b16 %v1562
    %v3596 = vunpack.c.h.b16 %v1562
    %v3597 = vunpack.c.l.b16 %v1563
    %v3598 = vunpack.c.h.b16 %v1563
    %v3599 = vunpack.c.l.b16 %v1564
    %v3600 = vunpack.c.h.b16 %v1564
    %v3601 = vunpack.c.l.b16 %v1565
    %v3602 = vunpack.c.h.b16 %v1565
    %v3603 = vunpack.c.l.b16 %v1566
    %v3604 = vunpack.c.h.b16 %v1566
    %v3605 = vunpack.c.l.b16 %v1567
    %v3606 = vunpack.c.h.b16 %v1567
    %v3607 = vunpack.c.l.b16 %v1568
    %v3608 = vunpack.c.h.b16 %v1568
    %v3609 = vunpack.c.l.b16 %v1569
    %v3610 = vunpack.c.h.b16 %v1569
    %v3611 = vunpack.c.l.b16 %v1570
    %v3612 = vunpack.c.h.b16 %v1570
    %v3613 = vunpack.c.l.b16 %v1571
    %v3614 = vunpack.c.h.b16 %v1571
    %v3615 = vunpack.c.l.b16 %v1572
    %v3616 = vunpack.c.h.b16 %v1572
    %v3617 = vunpack.c.l.b16 %v1573
    %v3618 = vunpack.c.h.b16 %v1573
    %v3619 = vunpack.c.l.b16 %v1574
    %v3620 = vunpack.c.h.b16 %v1574
    %v3621 = vunpack.c.l.b16 %v1575
    %v3622 = vunpack.c.h.b16 %v1575
    %v3623 = vunpack.c.l.b16 %v1576
    %v3624 = vunpack.c.h.b16 %v1576
    %v3625 = vunpack.c.l.b16 %v1577
    %v3626 = vunpack.c.h.b16 %v1577
    %v3627 = vunpack.c.l.b16 %v1578
    %v3628 = vunpack.c.h.b16 %v1578
    %v3629 = vunpack.c.l.b16 %v1579
    %v3630 = vunpack.c.h.b16 %v1579
    %v3631 = vunpack.c.l.b16 %v1580
    %v3632 = vunpack.c.h.b16 %v1580
    %v3633 = vunpack.c.l.b16 %v1581
    %v3634 = vunpack.c.h.b16 %v1581
    %v3635 = vunpack.c.l.b16 %v1582
    %v3636 = vunpack.c.h.b16 %v1582
    %v3637 = vunpack.c.l.b16 %v1583
    %v3638 = vunpack.c.h.b16 %v1583
    %v3639 = vunpack.c.l.b16 %v1584
    %v3640 = vunpack.c.h.b16 %v1584
    %v3641 = vunpack.c.l.b16 %v1585
    %v3642 = vunpack.c.h.b16 %v1585
    %v3643 = vunpack.c.l.b16 %v1586
    %v3644 = vunpack.c.h.b16 %v1586
    %v3645 = vunpack.c.l.b16 %v1587
    %v3646 = vunpack.c.h.b16 %v1587
    %v3647 = vunpack.c.l.b16 %v1588
    %v3648 = vunpack.c.h.b16 %v1588
    %v3649 = vunpack.c.l.b16 %v1589
    %v3650 = vunpack.c.h.b16 %v1589
    %v3651 = vunpack.c.l.b16 %v1590
    %v3652 = vunpack.c.h.b16 %v1590
    %v3653 = vunpack.c.l.b16 %v1591
    %v3654 = vunpack.c.h.b16 %v1591
    %v3655 = vunpack.c.l.b16 %v1592
    %v3656 = vunpack.c.h.b16 %v1592
    %v3657 = vunpack.c.l.b16 %v1593
    %v3658 = vunpack.c.h.b16 %v1593
    %v3659 = vunpack.c.l.b16 %v1594
    %v3660 = vunpack.c.h.b16 %v1594
    %v3661 = vunpack.c.l.b16 %v1595
    %v3662 = vunpack.c.h.b16 %v1595
    %v3663 = vunpack.c.l.b16 %v1596
    %v3664 = vunpack.c.h.b16 %v1596
    %v3665 = vunpack.c.l.b16 %v1597
    %v3666 = vunpack.c.h.b16 %v1597
    %v3667 = vunpack.c.l.b16 %v1598
    %v3668 = vunpack.c.h.b16 %v1598
    %v3669 = vunpack.c.l.b16 %v1599
    %v3670 = vunpack.c.h.b16 %v1599
    %v3671 = vunpack.c.l.b16 %v1600
    %v3672 = vunpack.c.h.b16 %v1600
    %v3673 = vunpack.c.l.b16 %v1601
    %v3674 = vunpack.c.h.b16 %v1601
    %v3675 = vunpack.c.l.b16 %v1602
    %v3676 = vunpack.c.h.b16 %v1602
    %v3677 = vunpack.c.l.b16 %v1603
    %v3678 = vunpack.c.h.b16 %v1603
    %v3679 = vunpack.c.l.b16 %v1604
    %v3680 = vunpack.c.h.b16 %v1604
    %v3681 = vunpack.c.l.b16 %v1605
    %v3682 = vunpack.c.h.b16 %v1605
    %v3683 = vunpack.c.l.b16 %v1606
    %v3684 = vunpack.c.h.b16 %v1606
    %v3685 = vunpack.c.l.b16 %v1607
    %v3686 = vunpack.c.h.b16 %v1607
    %v3687 = vunpack.c.l.b16 %v1608
    %v3688 = vunpack.c.h.b16 %v1608
    %v3689 = vunpack.c.l.b16 %v1609
    %v3690 = vunpack.c.h.b16 %v1609
    %v3691 = vunpack.c.l.b16 %v1610
    %v3692 = vunpack.c.h.b16 %v1610
    %v3693 = vunpack.c.l.b16 %v1611
    %v3694 = vunpack.c.h.b16 %v1611
    %v3695 = vunpack.c.l.b16 %v1612
    %v3696 = vunpack.c.h.b16 %v1612
    %v3697 = vunpack.c.l.b16 %v1613
    %v3698 = vunpack.c.h.b16 %v1613
    %v3699 = vunpack.c.l.b16 %v1614
    %v3700 = vunpack.c.h.b16 %v1614
    %v3701 = vunpack.c.l.b16 %v1615
    %v3702 = vunpack.c.h.b16 %v1615
    %v3703 = vunpack.c.l.b16 %v1616
    %v3704 = vunpack.c.h.b16 %v1616
    %v3705 = vunpack.c.l.b16 %v1617
    %v3706 = vunpack.c.h.b16 %v1617
    %v3707 = vunpack.c.l.b16 %v1618
    %v3708 = vunpack.c.h.b16 %v1618
    %v3709 = vunpack.c.l.b16 %v1619
    %v3710 = vunpack.c.h.b16 %v1619
    %v3711 = vunpack.c.l.b16 %v1620
    %v3712 = vunpack.c.h.b16 %v1620
    %v3713 = vunpack.c.l.b16 %v1621
    %v3714 = vunpack.c.h.b16 %v1621
    %v3715 = vunpack.c.l.b16 %v1622
    %v3716 = vunpack.c.h.b16 %v1622
    %v3717 = vunpack.c.l.b16 %v1623
    %v3718 = vunpack.c.h.b16 %v1623
    %v3719 = vunpack.c.l.b16 %v1624
    %v3720 = vunpack.c.h.b16 %v1624
    %v3721 = vunpack.c.l.b16 %v1625
    %v3722 = vunpack.c.h.b16 %v1625
    %v3723 = vunpack.c.l.b16 %v1626
    %v3724 = vunpack.c.h.b16 %v1626
    %v3725 = vunpack.c.l.b16 %v1627
    %v3726 = vunpack.c.h.b16 %v1627
    %v3727 = vunpack.c.l.b16 %v1628
    %v3728 = vunpack.c.h.b16 %v1628
    %v3729 = vunpack.c.l.b16 %v1629
    %v3730 = vunpack.c.h.b16 %v1629
    %v3731 = vunpack.c.l.b16 %v1630
    %v3732 = vunpack.c.h.b16 %v1630
    %v3733 = vunpack.c.l.b16 %v1631
    %v3734 = vunpack.c.h.b16 %v1631
    %v3735 = vunpack.c.l.b16 %v1632
    %v3736 = vunpack.c.h.b16 %v1632
    %v3737 = vunpack.c.l.b16 %v1633
    %v3738 = vunpack.c.h.b16 %v1633
    %v3739 = vunpack.c.l.b16 %v1634
    %v3740 = vunpack.c.h.b16 %v1634
    %v3741 = vunpack.c.l.b16 %v1635
    %v3742 = vunpack.c.h.b16 %v1635
    %v3743 = vunpack.c.l.b16 %v1636
    %v3744 = vunpack.c.h.b16 %v1636
    %v3745 = vunpack.c.l.b16 %v1637
    %v3746 = vunpack.c.h.b16 %v1637
    %v3747 = vunpack.c.l.b16 %v1638
    %v3748 = vunpack.c.h.b16 %v1638
    %v3749 = vunpack.c.l.b16 %v1639
    %v3750 = vunpack.c.h.b16 %v1639
    %v3751 = vunpack.c.l.b16 %v1640
    %v3752 = vunpack.c.h.b16 %v1640
    %v3753 = vunpack.c.l.b16 %v1641
    %v3754 = vunpack.c.h.b16 %v1641
    %v3755 = vunpack.c.l.b16 %v1642
    %v3756 = vunpack.c.h.b16 %v1642
    %v3757 = vunpack.c.l.b16 %v1643
    %v3758 = vunpack.c.h.b16 %v1643
    %v3759 = vunpack.c.l.b16 %v1644
    %v3760 = vunpack.c.h.b16 %v1644
    %v3761 = vunpack.c.l.b16 %v1645
    %v3762 = vunpack.c.h.b16 %v1645
    %v3763 = vunpack.c.l.b16 %v1646
    %v3764 = vunpack.c.h.b16 %v1646
    %v3765 = vunpack.c.l.b16 %v1647
    %v3766 = vunpack.c.h.b16 %v1647
    %v3767 = vunpack.c.l.b16 %v1648
    %v3768 = vunpack.c.h.b16 %v1648
    %v3769 = vunpack.c.l.b16 %v1649
    %v3770 = vunpack.c.h.b16 %v1649
    %v3771 = vunpack.c.l.b16 %v1650
    %v3772 = vunpack.c.h.b16 %v1650
    %v3773 = vunpack.c.l.b16 %v1651
    %v3774 = vunpack.c.h.b16 %v1651
    %v3775 = vunpack.c.l.b16 %v1652
    %v3776 = vunpack.c.h.b16 %v1652
    %v3777 = vunpack.c.l.b16 %v1653
    %v3778 = vunpack.c.h.b16 %v1653
    %v3779 = vunpack.c.l.b16 %v1654
    %v3780 = vunpack.c.h.b16 %v1654
    %v3781 = vunpack.c.l.b16 %v1655
    %v3782 = vunpack.c.h.b16 %v1655
    %v3783 = vunpack.c.l.b16 %v1656
    %v3784 = vunpack.c.h.b16 %v1656
    %v3785 = vunpack.c.l.b16 %v1657
    %v3786 = vunpack.c.h.b16 %v1657
    %v3787 = vunpack.c.l.b16 %v1658
    %v3788 = vunpack.c.h.b16 %v1658
    %v3789 = vunpack.c.l.b16 %v1659
    %v3790 = vunpack.c.h.b16 %v1659
    %v3791 = vunpack.c.l.b16 %v1660
    %v3792 = vunpack.c.h.b16 %v1660
    %v3793 = vunpack.c.l.b16 %v1661
    %v3794 = vunpack.c.h.b16 %v1661
    %v3795 = vunpack.c.l.b16 %v1662
    %v3796 = vunpack.c.h.b16 %v1662
    %v3797 = vunpack.c.l.b16 %v1663
    %v3798 = vunpack.c.h.b16 %v1663
    %v3799 = vunpack.c.l.b16 %v1664
    %v3800 = vunpack.c.h.b16 %v1664
    %v3801 = vunpack.c.l.b16 %v1665
    %v3802 = vunpack.c.h.b16 %v1665
    %v3803 = vunpack.c.l.b16 %v1666
    %v3804 = vunpack.c.h.b16 %v1666
    %v3805 = vunpack.c.l.b16 %v1667
    %v3806 = vunpack.c.h.b16 %v1667
    %v3807 = vunpack.c.l.b16 %v1668
    %v3808 = vunpack.c.h.b16 %v1668
    %v3809 = vunpack.c.l.b16 %v1669
    %v3810 = vunpack.c.h.b16 %v1669
    %v3811 = vunpack.c.l.b16 %v1670
    %v3812 = vunpack.c.h.b16 %v1670
    %v3813 = vunpack.c.l.b16 %v1671
    %v3814 = vunpack.c.h.b16 %v1671
    %v3815 = vunpack.c.l.b16 %v1672
    %v3816 = vunpack.c.h.b16 %v1672
    %v3817 = vunpack.c.l.b16 %v1673
    %v3818 = vunpack.c.h.b16 %v1673
    %v3819 = vunpack.c.l.b16 %v1674
    %v3820 = vunpack.c.h.b16 %v1674
    %v3821 = vunpack.c.l.b16 %v1675
    %v3822 = vunpack.c.h.b16 %v1675
    %v3823 = vunpack.c.l.b16 %v1676
    %v3824 = vunpack.c.h.b16 %v1676
    %v3825 = vunpack.c.l.b16 %v1677
    %v3826 = vunpack.c.h.b16 %v1677
    %v3827 = vunpack.c.l.b16 %v1678
    %v3828 = vunpack.c.h.b16 %v1678
    %v3829 = vunpack.c.l.b16 %v1679
    %v3830 = vunpack.c.h.b16 %v1679
    %v3831 = vunpack.c.l.b16 %v1680
    %v3832 = vunpack.c.h.b16 %v1680
    %v3833 = vunpack.c.l.b16 %v1681
    %v3834 = vunpack.c.h.b16 %v1681
    %v3835 = vunpack.c.l.b16 %v1682
    %v3836 = vunpack.c.h.b16 %v1682
    %v3837 = vunpack.c.l.b16 %v1683
    %v3838 = vunpack.c.h.b16 %v1683
    %v3839 = vunpack.c.l.b16 %v1684
    %v3840 = vunpack.c.h.b16 %v1684
    %v3841 = vunpack.c.l.b16 %v1685
    %v3842 = vunpack.c.h.b16 %v1685
    %v3843 = vunpack.c.l.b16 %v1686
    %v3844 = vunpack.c.h.b16 %v1686
    %v3845 = vunpack.c.l.b16 %v1687
    %v3846 = vunpack.c.h.b16 %v1687
    %v3847 = vunpack.c.l.b16 %v1688
    %v3848 = vunpack.c.h.b16 %v1688
    %v3849 = vunpack.c.l.b16 %v1689
    %v3850 = vunpack.c.h.b16 %v1689
    %v3851 = vunpack.c.l.b16 %v1690
    %v3852 = vunpack.c.h.b16 %v1690
    %v3853 = vunpack.c.l.b16 %v1691
    %v3854 = vunpack.c.h.b16 %v1691
    %v3855 = vunpack.c.l.b16 %v1692
    %v3856 = vunpack.c.h.b16 %v1692
    %v3857 = vunpack.c.l.b16 %v1693
    %v3858 = vunpack.c.h.b16 %v1693
    %v3859 = vunpack.c.l.b16 %v1694
    %v3860 = vunpack.c.h.b16 %v1694
    %v3861 = vunpack.c.l.b16 %v1695
    %v3862 = vunpack.c.h.b16 %v1695
    %v3863 = vunpack.c.l.b16 %v1696
    %v3864 = vunpack.c.h.b16 %v1696
    %v3865 = vunpack.c.l.b16 %v1697
    %v3866 = vunpack.c.h.b16 %v1697
    %v3867 = vunpack.c.l.b16 %v1698
    %v3868 = vunpack.c.h.b16 %v1698
    %v3869 = vunpack.c.l.b16 %v1699
    %v3870 = vunpack.c.h.b16 %v1699
    %v3871 = vunpack.c.l.b16 %v1700
    %v3872 = vunpack.c.h.b16 %v1700
    %v3873 = vunpack.c.l.b16 %v1701
    %v3874 = vunpack.c.h.b16 %v1701
    %v3875 = vunpack.c.l.b16 %v1702
    %v3876 = vunpack.c.h.b16 %v1702
    %v3877 = vunpack.c.l.b16 %v1703
    %v3878 = vunpack.c.h.b16 %v1703
    %v3879 = vunpack.c.l.b16 %v1704
    %v3880 = vunpack.c.h.b16 %v1704
    %v3881 = vunpack.c.l.b16 %v1705
    %v3882 = vunpack.c.h.b16 %v1705
    %v3883 = vunpack.c.l.b16 %v1706
    %v3884 = vunpack.c.h.b16 %v1706
    %v3885 = vunpack.c.l.b16 %v1707
    %v3886 = vunpack.c.h.b16 %v1707
    %v3887 = vunpack.c.l.b16 %v1708
    %v3888 = vunpack.c.h.b16 %v1708
    %v3889 = vunpack.c.l.b16 %v1709
    %v3890 = vunpack.c.h.b16 %v1709
    %v3891 = vunpack.c.l.b16 %v1710
    %v3892 = vunpack.c.h.b16 %v1710
    %v3893 = vunpack.c.l.b16 %v1711
    %v3894 = vunpack.c.h.b16 %v1711
    %v3895 = vunpack.c.l.b16 %v1712
    %v3896 = vunpack.c.h.b16 %v1712
    %v3897 = vunpack.c.l.b16 %v1713
    %v3898 = vunpack.c.h.b16 %v1713
    %v3899 = vunpack.c.l.b16 %v1714
    %v3900 = vunpack.c.h.b16 %v1714
    %v3901 = vunpack.c.l.b16 %v1715
    %v3902 = vunpack.c.h.b16 %v1715
    %v3903 = vunpack.c.l.b16 %v1716
    %v3904 = vunpack.c.h.b16 %v1716
    %v3905 = vunpack.c.l.b16 %v1717
    %v3906 = vunpack.c.h.b16 %v1717
    %v3907 = vunpack.c.l.b16 %v1718
    %v3908 = vunpack.c.h.b16 %v1718
    %v3909 = vunpack.c.l.b16 %v1719
    %v3910 = vunpack.c.h.b16 %v1719
    %v3911 = vunpack.c.l.b16 %v1720
    %v3912 = vunpack.c.h.b16 %v1720
    %v3913 = vunpack.c.l.b16 %v1721
    %v3914 = vunpack.c.h.b16 %v1721
    %v3915 = vunpack.c.l.b16 %v1722
    %v3916 = vunpack.c.h.b16 %v1722
    %v3917 = vunpack.c.l.b16 %v1723
    %v3918 = vunpack.c.h.b16 %v1723
    %v3919 = vunpack.c.l.b16 %v1724
    %v3920 = vunpack.c.h.b16 %v1724
    %v3921 = vunpack.c.l.b16 %v1725
    %v3922 = vunpack.c.h.b16 %v1725
    %v3923 = vunpack.c.l.b16 %v1726
    %v3924 = vunpack.c.h.b16 %v1726
    %v3925 = vunpack.c.l.b16 %v1727
    %v3926 = vunpack.c.h.b16 %v1727
    %v3927 = vunpack.c.l.b16 %v1728
    %v3928 = vunpack.c.h.b16 %v1728
    %v3929 = vunpack.c.l.b16 %v1729
    %v3930 = vunpack.c.h.b16 %v1729
    %v3931 = vunpack.c.l.b16 %v1730
    %v3932 = vunpack.c.h.b16 %v1730
    %v3933 = vunpack.c.l.b16 %v1731
    %v3934 = vunpack.c.h.b16 %v1731
    %v3935 = vunpack.c.l.b16 %v1732
    %v3936 = vunpack.c.h.b16 %v1732
    %v3937 = vunpack.c.l.b16 %v1733
    %v3938 = vunpack.c.h.b16 %v1733
    %v3939 = vunpack.c.l.b16 %v1734
    %v3940 = vunpack.c.h.b16 %v1734
    %v3941 = vunpack.c.l.b16 %v1735
    %v3942 = vunpack.c.h.b16 %v1735
    %v3943 = vunpack.c.l.b16 %v1736
    %v3944 = vunpack.c.h.b16 %v1736
    %v3945 = vunpack.c.l.b16 %v1737
    %v3946 = vunpack.c.h.b16 %v1737
    %v3947 = vunpack.c.l.b16 %v1738
    %v3948 = vunpack.c.h.b16 %v1738
    %v3949 = vunpack.c.l.b16 %v1739
    %v3950 = vunpack.c.h.b16 %v1739
    %v3951 = vunpack.c.l.b16 %v1740
    %v3952 = vunpack.c.h.b16 %v1740
    %v3953 = vunpack.c.l.b16 %v1741
    %v3954 = vunpack.c.h.b16 %v1741
    %v3955 = vunpack.c.l.b16 %v1742
    %v3956 = vunpack.c.h.b16 %v1742
    %v3957 = vunpack.c.l.b16 %v1743
    %v3958 = vunpack.c.h.b16 %v1743
    %v3959 = vunpack.c.l.b16 %v1744
    %v3960 = vunpack.c.h.b16 %v1744
    %v3961 = vunpack.c.l.b16 %v1745
    %v3962 = vunpack.c.h.b16 %v1745
    %v3963 = vunpack.c.l.b16 %v1746
    %v3964 = vunpack.c.h.b16 %v1746
    %v3965 = vunpack.c.l.b16 %v1747
    %v3966 = vunpack.c.h.b16 %v1747
    %v3967 = vunpack.c.l.b16 %v1748
    %v3968 = vunpack.c.h.b16 %v1748
    %v3969 = vunpack.c.l.b16 %v1749
    %v3970 = vunpack.c.h.b16 %v1749
    %v3971 = vunpack.c.l.b16 %v1750
    %v3972 = vunpack.c.h.b16 %v1750
    %v3973 = vunpack.c.l.b16 %v1751
    %v3974 = vunpack.c.h.b16 %v1751
    %v3975 = vunpack.c.l.b16 %v1752
    %v3976 = vunpack.c.h.b16 %v1752
    %v3977 = vunpack.c.l.b16 %v1753
    %v3978 = vunpack.c.h.b16 %v1753
    %v3979 = vunpack.c.l.b16 %v1754
    %v3980 = vunpack.c.h.b16 %v1754
    %v3981 = vunpack.c.l.b16 %v1755
    %v3982 = vunpack.c.h.b16 %v1755
    %v3983 = vunpack.c.l.b16 %v1756
    %v3984 = vunpack.c.h.b16 %v1756
    %v3985 = vunpack.c.l.b16 %v1757
    %v3986 = vunpack.c.h.b16 %v1757
    %v3987 = vunpack.c.l.b16 %v1758
    %v3988 = vunpack.c.h.b16 %v1758
    %v3989 = vunpack.c.l.b16 %v1759
    %v3990 = vunpack.c.h.b16 %v1759
    %v3991 = vunpack.c.l.b16 %v1760
    %v3992 = vunpack.c.h.b16 %v1760
    %v3993 = vunpack.c.l.b16 %v1761
    %v3994 = vunpack.c.h.b16 %v1761
    %v3995 = vunpack.c.l.b16 %v1762
    %v3996 = vunpack.c.h.b16 %v1762
    %v3997 = vunpack.c.l.b16 %v1763
    %v3998 = vunpack.c.h.b16 %v1763
    %v3999 = vunpack.c.l.b16 %v1764
    %v4000 = vunpack.c.h.b16 %v1764
    %v4001 = vunpack.c.l.b16 %v1765
    %v4002 = vunpack.c.h.b16 %v1765
    %v4003 = vunpack.c.l.b16 %v1766
    %v4004 = vunpack.c.h.b16 %v1766
    %v4005 = vunpack.c.l.b16 %v1767
    %v4006 = vunpack.c.h.b16 %v1767
    %v4007 = vunpack.c.l.b16 %v1768
    %v4008 = vunpack.c.h.b16 %v1768
    %v4009 = vunpack.c.l.b16 %v1769
    %v4010 = vunpack.c.h.b16 %v1769
    %v4011 = vunpack.c.l.b16 %v1770
    %v4012 = vunpack.c.h.b16 %v1770
    %v4013 = vunpack.c.l.b16 %v1771
    %v4014 = vunpack.c.h.b16 %v1771
    %v4015 = vunpack.c.l.b16 %v1772
    %v4016 = vunpack.c.h.b16 %v1772
    %v4017 = vunpack.c.l.b16 %v1773
    %v4018 = vunpack.c.h.b16 %v1773
    %v4019 = vunpack.c.l.b16 %v1774
    %v4020 = vunpack.c.h.b16 %v1774
    %v4021 = vunpack.c.l.b16 %v1775
    %v4022 = vunpack.c.h.b16 %v1775
    %v4023 = vunpack.c.l.b16 %v1776
    %v4024 = vunpack.c.h.b16 %v1776
    %v4025 = vunpack.c.l.b16 %v1777
    %v4026 = vunpack.c.h.b16 %v1777
    %v4027 = vunpack.c.l.b16 %v1778
    %v4028 = vunpack.c.h.b16 %v1778
    %v4029 = vunpack.c.l.b16 %v1779
    %v4030 = vunpack.c.h.b16 %v1779
    %v4031 = vunpack.c.l.b16 %v1780
    %v4032 = vunpack.c.h.b16 %v1780
    %v4033 = vunpack.c.l.b16 %v1781
    %v4034 = vunpack.c.h.b16 %v1781
    %v4035 = vunpack.c.l.b16 %v1782
    %v4036 = vunpack.c.h.b16 %v1782
    %v4037 = vunpack.c.l.b16 %v1783
    %v4038 = vunpack.c.h.b16 %v1783
    %v4039 = vunpack.c.l.b16 %v1784
    %v4040 = vunpack.c.h.b16 %v1784
    %v4041 = vunpack.c.l.b16 %v1785
    %v4042 = vunpack.c.h.b16 %v1785
    %v4043 = vunpack.c.l.b16 %v1786
    %v4044 = vunpack.c.h.b16 %v1786
    %v4045 = vunpack.c.l.b16 %v1787
    %v4046 = vunpack.c.h.b16 %v1787
    %v4047 = vunpack.c.l.b16 %v1788
    %v4048 = vunpack.c.h.b16 %v1788
    %v4049 = vunpack.c.l.b16 %v1789
    %v4050 = vunpack.c.h.b16 %v1789
    %v4051 = vunpack.c.l.b16 %v1790
    %v4052 = vunpack.c.h.b16 %v1790
    %v4053 = vunpack.c.l.b16 %v1791
    %v4054 = vunpack.c.h.b16 %v1791
    %v4055 = vunpack.c.l.b16 %v1792
    %v4056 = vunpack.c.h.b16 %v1792
    %v4057 = vunpack.c.l.b16 %v1793
    %v4058 = vunpack.c.h.b16 %v1793
    %v4059 = vunpack.c.l.b16 %v1794
    %v4060 = vunpack.c.h.b16 %v1794
    %v4061 = vunpack.c.l.b16 %v1795
    %v4062 = vunpack.c.h.b16 %v1795
    %v4063 = vunpack.c.l.b16 %v1796
    %v4064 = vunpack.c.h.b16 %v1796
    %v4065 = vunpack.c.l.b16 %v1797
    %v4066 = vunpack.c.h.b16 %v1797
    %v4067 = vunpack.c.l.b16 %v1798
    %v4068 = vunpack.c.h.b16 %v1798
    %v4069 = vunpack.c.l.b16 %v1799
    %v4070 = vunpack.c.h.b16 %v1799
    %v4071 = vunpack.c.l.b16 %v1800
    %v4072 = vunpack.c.h.b16 %v1800
    %v4073 = vunpack.c.l.b16 %v1801
    %v4074 = vunpack.c.h.b16 %v1801
    %v4075 = vunpack.c.l.b16 %v1802
    %v4076 = vunpack.c.h.b16 %v1802
    %v4077 = vunpack.c.l.b16 %v1803
    %v4078 = vunpack.c.h.b16 %v1803
    %v4079 = vunpack.c.l.b16 %v1804
    %v4080 = vunpack.c.h.b16 %v1804
    %v4081 = vunpack.c.l.b16 %v1805
    %v4082 = vunpack.c.h.b16 %v1805
    %v4083 = vunpack.c.l.b16 %v1806
    %v4084 = vunpack.c.h.b16 %v1806
    %v4085 = vunpack.c.l.b16 %v1807
    %v4086 = vunpack.c.h.b16 %v1807
    %v4087 = vunpack.c.l.b16 %v1808
    %v4088 = vunpack.c.h.b16 %v1808
    %v4089 = vunpack.c.l.b16 %v1809
    %v4090 = vunpack.c.h.b16 %v1809
    %v4091 = vunpack.c.l.b16 %v1810
    %v4092 = vunpack.c.h.b16 %v1810
    %v4093 = vunpack.c.l.b16 %v1811
    %v4094 = vunpack.c.h.b16 %v1811
    %v4095 = vunpack.c.l.b16 %v1812
    %v4096 = vunpack.c.h.b16 %v1812
    %v4097 = vunpack.c.l.b16 %v1813
    %v4098 = vunpack.c.h.b16 %v1813
    %v4099 = vunpack.c.l.b16 %v1814
    %v4100 = vunpack.c.h.b16 %v1814
    %v4101 = vunpack.c.l.b16 %v1815
    %v4102 = vunpack.c.h.b16 %v1815
    %v4103 = vunpack.c.l.b16 %v1816
    %v4104 = vunpack.c.h.b16 %v1816
    %v4105 = vunpack.c.l.b16 %v1817
    %v4106 = vunpack.c.h.b16 %v1817
    %v4107 = vunpack.c.l.b16 %v1818
    %v4108 = vunpack.c.h.b16 %v1818
    %v4109 = vunpack.c.l.b16 %v1819
    %v4110 = vunpack.c.h.b16 %v1819
    %v4111 = vunpack.c.l.b16 %v1820
    %v4112 = vunpack.c.h.b16 %v1820
    %v4113 = vunpack.c.l.b16 %v1821
    %v4114 = vunpack.c.h.b16 %v1821
    %v4115 = vunpack.c.l.b16 %v1822
    %v4116 = vunpack.c.h.b16 %v1822
    %v4117 = vunpack.c.l.b16 %v1823
    %v4118 = vunpack.c.h.b16 %v1823
    %v4119 = vunpack.c.l.b16 %v1824
    %v4120 = vunpack.c.h.b16 %v1824
    %v4121 = vunpack.c.l.b16 %v1825
    %v4122 = vunpack.c.h.b16 %v1825
    %v4123 = vunpack.c.l.b16 %v1826
    %v4124 = vunpack.c.h.b16 %v1826
    %v4125 = vunpack.c.l.b16 %v1827
    %v4126 = vunpack.c.h.b16 %v1827
    %v4127 = vunpack.c.l.b16 %v1828
    %v4128 = vunpack.c.h.b16 %v1828
    %v4129 = vunpack.c.l.b16 %v1829
    %v4130 = vunpack.c.h.b16 %v1829
    %v4131 = vunpack.c.l.b16 %v1830
    %v4132 = vunpack.c.h.b16 %v1830
    %v4133 = vunpack.c.l.b16 %v1831
    %v4134 = vunpack.c.h.b16 %v1831
    %v4135 = vunpack.c.l.b16 %v1832
    %v4136 = vunpack.c.h.b16 %v1832
    %v4137 = vunpack.c.l.b16 %v1833
    %v4138 = vunpack.c.h.b16 %v1833
    %v4139 = vunpack.c.l.b16 %v1834
    %v4140 = vunpack.c.h.b16 %v1834
    %v4141 = vunpack.c.l.b16 %v1835
    %v4142 = vunpack.c.h.b16 %v1835
    %v4143 = vunpack.c.l.b16 %v1836
    %v4144 = vunpack.c.h.b16 %v1836
    %v4145 = vunpack.c.l.b16 %v1837
    %v4146 = vunpack.c.h.b16 %v1837
    %v4147 = vunpack.c.l.b16 %v1838
    %v4148 = vunpack.c.h.b16 %v1838
    %v4149 = vunpack.c.l.b16 %v1839
    %v4150 = vunpack.c.h.b16 %v1839
    %v4151 = vunpack.c.l.b16 %v1840
    %v4152 = vunpack.c.h.b16 %v1840
    %v4153 = vunpack.c.l.b16 %v1841
    %v4154 = vunpack.c.h.b16 %v1841
    %v4155 = vunpack.c.l.b16 %v1842
    %v4156 = vunpack.c.h.b16 %v1842
    %v4157 = vunpack.c.l.b16 %v1843
    %v4158 = vunpack.c.h.b16 %v1843
    %v4159 = vunpack.c.l.b16 %v1844
    %v4160 = vunpack.c.h.b16 %v1844
    %v4161 = vunpack.c.l.b16 %v1845
    %v4162 = vunpack.c.h.b16 %v1845
    %v4163 = vunpack.c.l.b16 %v1846
    %v4164 = vunpack.c.h.b16 %v1846
    %v4165 = vunpack.c.l.b16 %v1847
    %v4166 = vunpack.c.h.b16 %v1847
    %v4167 = vunpack.c.l.b16 %v1848
    %v4168 = vunpack.c.h.b16 %v1848
    %v4169 = vunpack.c.l.b16 %v1849
    %v4170 = vunpack.c.h.b16 %v1849
    %v4171 = vunpack.c.l.b16 %v1850
    %v4172 = vunpack.c.h.b16 %v1850
    %v4173 = vunpack.c.l.b16 %v1851
    %v4174 = vunpack.c.h.b16 %v1851
    %v4175 = vunpack.c.l.b16 %v1852
    %v4176 = vunpack.c.h.b16 %v1852
    %v4177 = vunpack.c.l.b16 %v1853
    %v4178 = vunpack.c.h.b16 %v1853
    %v4179 = vunpack.c.l.b16 %v1854
    %v4180 = vunpack.c.h.b16 %v1854
    %v4181 = vunpack.c.l.b16 %v1855
    %v4182 = vunpack.c.h.b16 %v1855
    %v4183 = vunpack.c.l.b16 %v1856
    %v4184 = vunpack.c.h.b16 %v1856
    %v4185 = vunpack.c.l.b16 %v1857
    %v4186 = vunpack.c.h.b16 %v1857
    %v4187 = vunpack.c.l.b16 %v1858
    %v4188 = vunpack.c.h.b16 %v1858
    %v4189 = vunpack.c.l.b16 %v1859
    %v4190 = vunpack.c.h.b16 %v1859
    %v4191 = vunpack.c.l.b16 %v1860
    %v4192 = vunpack.c.h.b16 %v1860
    %v4193 = vunpack.c.l.b16 %v1861
    %v4194 = vunpack.c.h.b16 %v1861
    %v4195 = vunpack.c.l.b16 %v1862
    %v4196 = vunpack.c.h.b16 %v1862
    %v4197 = vunpack.c.l.b16 %v1863
    %v4198 = vunpack.c.h.b16 %v1863
    %v4199 = vunpack.c.l.b16 %v1864
    %v4200 = vunpack.c.h.b16 %v1864
    %v4201 = vunpack.c.l.b16 %v1865
    %v4202 = vunpack.c.h.b16 %v1865
    %v4203 = vunpack.c.l.b16 %v1866
    %v4204 = vunpack.c.h.b16 %v1866
    %v4205 = vunpack.c.l.b16 %v1867
    %v4206 = vunpack.c.h.b16 %v1867
    %v4207 = vunpack.c.l.b16 %v1868
    %v4208 = vunpack.c.h.b16 %v1868
    %v4209 = vunpack.c.l.b16 %v1869
    %v4210 = vunpack.c.h.b16 %v1869
    %v4211 = vunpack.c.l.b16 %v1870
    %v4212 = vunpack.c.h.b16 %v1870
    %v4213 = vunpack.c.l.b16 %v1871
    %v4214 = vunpack.c.h.b16 %v1871
    %v4215 = vunpack.c.l.b16 %v1872
    %v4216 = vunpack.c.h.b16 %v1872
    %v4217 = vunpack.c.l.b16 %v1873
    %v4218 = vunpack.c.h.b16 %v1873
    %v4219 = vunpack.c.l.b16 %v1874
    %v4220 = vunpack.c.h.b16 %v1874
    %v4221 = vunpack.c.l.b16 %v1875
    %v4222 = vunpack.c.h.b16 %v1875
    %v4223 = vunpack.c.l.b16 %v1876
    %v4224 = vunpack.c.h.b16 %v1876
    %v4225 = vunpack.c.l.b16 %v1877
    %v4226 = vunpack.c.h.b16 %v1877
    %v4227 = vunpack.c.l.b16 %v1878
    %v4228 = vunpack.c.h.b16 %v1878
    %v4229 = vunpack.c.l.b16 %v1879
    %v4230 = vunpack.c.h.b16 %v1879
    %v4231 = vunpack.c.l.b16 %v1880
    %v4232 = vunpack.c.h.b16 %v1880
    %v4233 = vunpack.c.l.b16 %v1881
    %v4234 = vunpack.c.h.b16 %v1881
    %v4235 = vunpack.c.l.b16 %v1882
    %v4236 = vunpack.c.h.b16 %v1882
    %v4237 = vunpack.c.l.b16 %v1883
    %v4238 = vunpack.c.h.b16 %v1883
    %v4239 = vunpack.c.l.b16 %v1884
    %v4240 = vunpack.c.h.b16 %v1884
    %v4241 = vunpack.c.l.b16 %v1885
    %v4242 = vunpack.c.h.b16 %v1885
    %v4243 = vunpack.c.l.b16 %v1886
    %v4244 = vunpack.c.h.b16 %v1886
    %v4245 = vunpack.c.l.b16 %v1887
    %v4246 = vunpack.c.h.b16 %v1887
    %v4247 = vunpack.c.l.b16 %v1888
    %v4248 = vunpack.c.h.b16 %v1888
    %v4249 = vunpack.c.l.b16 %v1889
    %v4250 = vunpack.c.h.b16 %v1889
    %v4251 = vunpack.c.l.b16 %v1890
    %v4252 = vunpack.c.h.b16 %v1890
    %v4253 = vunpack.c.l.b16 %v1891
    %v4254 = vunpack.c.h.b16 %v1891
    %v4255 = vunpack.c.l.b16 %v1892
    %v4256 = vunpack.c.h.b16 %v1892
    %v4257 = vunpack.c.l.b16 %v1893
    %v4258 = vunpack.c.h.b16 %v1893
    %v4259 = vunpack.c.l.b16 %v1894
    %v4260 = vunpack.c.h.b16 %v1894
    %v4261 = vunpack.c.l.b16 %v1895
    %v4262 = vunpack.c.h.b16 %v1895
    %v4263 = vunpack.c.l.b16 %v1896
    %v4264 = vunpack.c.h.b16 %v1896
    %v4265 = vunpack.c.l.b16 %v1897
    %v4266 = vunpack.c.h.b16 %v1897
    %v4267 = vunpack.c.l.b16 %v1898
    %v4268 = vunpack.c.h.b16 %v1898
    %v4269 = vunpack.c.l.b16 %v1899
    %v4270 = vunpack.c.h.b16 %v1899
    %v4271 = vunpack.c.l.b16 %v1900
    %v4272 = vunpack.c.h.b16 %v1900
    %v4273 = vunpack.c.l.b16 %v1901
    %v4274 = vunpack.c.h.b16 %v1901
    %v4275 = vunpack.c.l.b16 %v1902
    %v4276 = vunpack.c.h.b16 %v1902
    %v4277 = vunpack.c.l.b16 %v1903
    %v4278 = vunpack.c.h.b16 %v1903
    %v4279 = vunpack.c.l.b16 %v1904
    %v4280 = vunpack.c.h.b16 %v1904
    %v4281 = vunpack.c.l.b16 %v1905
    %v4282 = vunpack.c.h.b16 %v1905
    %v4283 = vunpack.c.l.b16 %v1906
    %v4284 = vunpack.c.h.b16 %v1906
    %v4285 = vunpack.c.l.b16 %v1907
    %v4286 = vunpack.c.h.b16 %v1907
    %v4287 = vunpack.c.l.b16 %v1908
    %v4288 = vunpack.c.h.b16 %v1908
    %v4289 = vunpack.c.l.b16 %v1909
    %v4290 = vunpack.c.h.b16 %v1909
    %v4291 = vunpack.c.l.b16 %v1910
    %v4292 = vunpack.c.h.b16 %v1910
    %v4293 = vunpack.c.l.b16 %v1911
    %v4294 = vunpack.c.h.b16 %v1911
    %v4295 = vunpack.c.l.b16 %v1912
    %v4296 = vunpack.c.h.b16 %v1912
    %v4297 = vunpack.c.l.b16 %v1913
    %v4298 = vunpack.c.h.b16 %v1913
    %v4299 = vunpack.c.l.b16 %v1914
    %v4300 = vunpack.c.h.b16 %v1914
    %v4301 = vunpack.c.l.b16 %v1915
    %v4302 = vunpack.c.h.b16 %v1915
    %v4303 = vunpack.c.l.b16 %v1916
    %v4304 = vunpack.c.h.b16 %v1916
    %v4305 = vunpack.c.l.b16 %v1917
    %v4306 = vunpack.c.h.b16 %v1917
    %v4307 = vunpack.c.l.b16 %v1918
    %v4308 = vunpack.c.h.b16 %v1918
    %v4309 = vunpack.c.l.b16 %v1919
    %v4310 = vunpack.c.h.b16 %v1919
    %v4311 = vunpack.c.l.b16 %v1920
    %v4312 = vunpack.c.h.b16 %v1920
    %v4313 = vunpack.c.l.b16 %v1921
    %v4314 = vunpack.c.h.b16 %v1921
    %v4315 = vunpack.c.l.b16 %v1922
    %v4316 = vunpack.c.h.b16 %v1922
    %v4317 = vunpack.c.l.b16 %v1923
    %v4318 = vunpack.c.h.b16 %v1923
    %v4319 = vunpack.c.l.b16 %v1924
    %v4320 = vunpack.c.h.b16 %v1924
    %v4321 = vunpack.c.l.b16 %v1925
    %v4322 = vunpack.c.h.b16 %v1925
    %v4323 = vunpack.c.l.b16 %v1926
    %v4324 = vunpack.c.h.b16 %v1926
    %v4325 = vunpack.c.l.b16 %v1927
    %v4326 = vunpack.c.h.b16 %v1927
    %v4327 = vunpack.c.l.b16 %v1928
    %v4328 = vunpack.c.h.b16 %v1928
    %v4329 = vunpack.c.l.b16 %v1929
    %v4330 = vunpack.c.h.b16 %v1929
    %v4331 = vunpack.c.l.b16 %v1930
    %v4332 = vunpack.c.h.b16 %v1930
    %v4333 = vunpack.c.l.b16 %v1931
    %v4334 = vunpack.c.h.b16 %v1931
    %v4335 = vunpack.c.l.b16 %v1932
    %v4336 = vunpack.c.h.b16 %v1932
    %v4337 = vunpack.c.l.b16 %v1933
    %v4338 = vunpack.c.h.b16 %v1933
    %v4339 = vunpack.c.l.b16 %v1934
    %v4340 = vunpack.c.h.b16 %v1934
    %v4341 = vunpack.c.l.b16 %v1935
    %v4342 = vunpack.c.h.b16 %v1935
    %v4343 = vunpack.c.l.b16 %v1936
    %v4344 = vunpack.c.h.b16 %v1936
    %v4345 = vunpack.c.l.b16 %v1937
    %v4346 = vunpack.c.h.b16 %v1937
    %v4347 = vunpack.c.l.b16 %v1938
    %v4348 = vunpack.c.h.b16 %v1938
    %v4349 = vunpack.c.l.b16 %v1939
    %v4350 = vunpack.c.h.b16 %v1939
    %v4351 = vunpack.c.l.b16 %v1940
    %v4352 = vunpack.c.h.b16 %v1940
    %v4353 = vunpack.c.l.b16 %v1941
    %v4354 = vunpack.c.h.b16 %v1941
    %v4355 = vunpack.c.l.b16 %v1942
    %v4356 = vunpack.c.h.b16 %v1942
    %v4357 = vunpack.c.l.b16 %v1943
    %v4358 = vunpack.c.h.b16 %v1943
    %v4359 = vunpack.c.l.b16 %v1944
    %v4360 = vunpack.c.h.b16 %v1944
    %v4361 = vunpack.c.l.b16 %v1945
    %v4362 = vunpack.c.h.b16 %v1945
    %v4363 = vunpack.c.l.b16 %v1946
    %v4364 = vunpack.c.h.b16 %v1946
    %v4365 = vunpack.c.l.b16 %v1947
    %v4366 = vunpack.c.h.b16 %v1947
    %v4367 = vunpack.c.l.b16 %v1948
    %v4368 = vunpack.c.h.b16 %v1948
    %v4369 = vunpack.c.l.b16 %v1949
    %v4370 = vunpack.c.h.b16 %v1949
    %v4371 = vunpack.c.l.b16 %v1950
    %v4372 = vunpack.c.h.b16 %v1950
    %v4373 = vunpack.c.l.b16 %v1951
    %v4374 = vunpack.c.h.b16 %v1951
    %v4375 = vunpack.c.l.b16 %v1952
    %v4376 = vunpack.c.h.b16 %v1952
    %v4377 = vunpack.c.l.b16 %v1953
    %v4378 = vunpack.c.h.b16 %v1953
    %v4379 = vunpack.c.l.b16 %v1954
    %v4380 = vunpack.c.h.b16 %v1954
    %v4381 = vunpack.c.l.b16 %v1955
    %v4382 = vunpack.c.h.b16 %v1955
    %v4383 = vunpack.c.l.b16 %v1956
    %v4384 = vunpack.c.h.b16 %v1956
    %v4385 = vunpack.c.l.b16 %v1957
    %v4386 = vunpack.c.h.b16 %v1957
    %v4387 = vunpack.c.l.b16 %v1958
    %v4388 = vunpack.c.h.b16 %v1958
    %v4389 = vunpack.c.l.b16 %v1959
    %v4390 = vunpack.c.h.b16 %v1959
    %v4391 = vunpack.c.l.b16 %v1960
    %v4392 = vunpack.c.h.b16 %v1960
    %v4393 = vunpack.c.l.b16 %v1961
    %v4394 = vunpack.c.h.b16 %v1961
    %v4395 = vunpack.c.l.b16 %v1962
    %v4396 = vunpack.c.h.b16 %v1962
    %v4397 = vunpack.c.l.b16 %v1963
    %v4398 = vunpack.c.h.b16 %v1963
    %v4399 = vunpack.c.l.b16 %v1964
    %v4400 = vunpack.c.h.b16 %v1964
    %v4401 = vunpack.c.l.b16 %v1965
    %v4402 = vunpack.c.h.b16 %v1965
    %v4403 = vunpack.c.l.b16 %v1966
    %v4404 = vunpack.c.h.b16 %v1966
    %v4405 = vunpack.c.l.b16 %v1967
    %v4406 = vunpack.c.h.b16 %v1967
    %v4407 = vunpack.c.l.b16 %v1968
    %v4408 = vunpack.c.h.b16 %v1968
    %v4409 = vunpack.c.l.b16 %v1969
    %v4410 = vunpack.c.h.b16 %v1969
    %v4411 = vunpack.c.l.b16 %v1970
    %v4412 = vunpack.c.h.b16 %v1970
    %v4413 = vunpack.c.l.b16 %v1971
    %v4414 = vunpack.c.h.b16 %v1971
    %v4415 = vunpack.c.l.b16 %v1972
    %v4416 = vunpack.c.h.b16 %v1972
    %v4417 = vunpack.c.l.b16 %v1973
    %v4418 = vunpack.c.h.b16 %v1973
    %v4419 = vunpack.c.l.b16 %v1974
    %v4420 = vunpack.c.h.b16 %v1974
    %v4421 = vunpack.c.l.b16 %v1975
    %v4422 = vunpack.c.h.b16 %v1975
    %v4423 = vunpack.c.l.b16 %v1976
    %v4424 = vunpack.c.h.b16 %v1976
    %v4425 = vunpack.c.l.b16 %v1977
    %v4426 = vunpack.c.h.b16 %v1977
    %v4427 = vunpack.c.l.b16 %v1978
    %v4428 = vunpack.c.h.b16 %v1978
    %v4429 = vunpack.c.l.b16 %v1979
    %v4430 = vunpack.c.h.b16 %v1979
    %v4431 = vunpack.c.l.b16 %v1980
    %v4432 = vunpack.c.h.b16 %v1980
    %v4433 = vunpack.c.l.b16 %v1981
    %v4434 = vunpack.c.h.b16 %v1981
    %v4435 = vunpack.c.l.b16 %v1982
    %v4436 = vunpack.c.h.b16 %v1982
    %v4437 = vunpack.c.l.b16 %v1983
    %v4438 = vunpack.c.h.b16 %v1983
    %v4439 = vunpack.c.l.b16 %v1984
    %v4440 = vunpack.c.h.b16 %v1984
    %v4441 = vunpack.c.l.b16 %v1985
    %v4442 = vunpack.c.h.b16 %v1985
    %v4443 = vunpack.c.l.b16 %v1986
    %v4444 = vunpack.c.h.b16 %v1986
    %v4445 = vunpack.c.l.b16 %v1987
    %v4446 = vunpack.c.h.b16 %v1987
    %v4447 = vunpack.c.l.b16 %v1988
    %v4448 = vunpack.c.h.b16 %v1988
    %v4449 = vunpack.c.l.b16 %v1989
    %v4450 = vunpack.c.h.b16 %v1989
    %v4451 = vunpack.c.l.b16 %v1990
    %v4452 = vunpack.c.h.b16 %v1990
    %v4453 = vunpack.c.l.b16 %v1991
    %v4454 = vunpack.c.h.b16 %v1991
    %v4455 = vunpack.c.l.b16 %v1992
    %v4456 = vunpack.c.h.b16 %v1992
    %v4457 = vunpack.c.l.b16 %v1993
    %v4458 = vunpack.c.h.b16 %v1993
    %v4459 = vunpack.c.l.b16 %v1994
    %v4460 = vunpack.c.h.b16 %v1994
    %v4461 = vunpack.c.l.b16 %v1995
    %v4462 = vunpack.c.h.b16 %v1995
    %v4463 = vunpack.c.l.b16 %v1996
    %v4464 = vunpack.c.h.b16 %v1996
    %v4465 = vunpack.c.l.b16 %v1997
    %v4466 = vunpack.c.h.b16 %v1997
    %v4467 = vunpack.c.l.b16 %v1998
    %v4468 = vunpack.c.h.b16 %v1998
    %v4469 = vunpack.c.l.b16 %v1999
    %v4470 = vunpack.c.h.b16 %v1999
    %v4471 = vunpack.c.l.b16 %v2000
    %v4472 = vunpack.c.h.b16 %v2000
    %v4473 = vunpack.c.l.b16 %v2001
    %v4474 = vunpack.c.h.b16 %v2001
    %v4475 = vunpack.c.l.b16 %v2002
    %v4476 = vunpack.c.h.b16 %v2002
    %v4477 = vunpack.c.l.b16 %v2003
    %v4478 = vunpack.c.h.b16 %v2003
    %v4479 = vunpack.c.l.b16 %v2004
    %v4480 = vunpack.c.h.b16 %v2004
    %v4481 = vunpack.c.l.b16 %v2005
    %v4482 = vunpack.c.h.b16 %v2005
    %v4483 = vunpack.c.l.b16 %v2006
    %v4484 = vunpack.c.h.b16 %v2006
    %v4485 = vunpack.c.l.b16 %v2007
    %v4486 = vunpack.c.h.b16 %v2007
    %v4487 = vunpack.c.l.b16 %v2008
    %v4488 = vunpack.c.h.b16 %v2008
    %v4489 = vunpack.c.l.b16 %v2009
    %v4490 = vunpack.c.h.b16 %v2009
    %v4491 = vunpack.c.l.b16 %v2010
    %v4492 = vunpack.c.h.b16 %v2010
    %v4493 = vunpack.c.l.b16 %v2011
    %v4494 = vunpack.c.h.b16 %v2011
    %v4495 = vunpack.c.l.b16 %v2012
    %v4496 = vunpack.c.h.b16 %v2012
    %v4497 = vunpack.c.l.b16 %v2013
    %v4498 = vunpack.c.h.b16 %v2013
    %v4499 = vunpack.c.l.b16 %v2014
    %v4500 = vunpack.c.h.b16 %v2014
    %v4501 = vunpack.c.l.b16 %v2015
    %v4502 = vunpack.c.h.b16 %v2015
    %v4503 = vunpack.c.l.b16 %v2016
    %v4504 = vunpack.c.h.b16 %v2016
    %v4505 = vunpack.c.l.b16 %v2017
    %v4506 = vunpack.c.h.b16 %v2017
    %v4507 = vunpack.c.l.b16 %v2018
    %v4508 = vunpack.c.h.b16 %v2018
    %v4509 = vunpack.c.l.b16 %v2019
    %v4510 = vunpack.c.h.b16 %v2019
    %v4511 = vunpack.c.l.b16 %v2020
    %v4512 = vunpack.c.h.b16 %v2020
    %v4513 = vunpack.c.l.b16 %v2021
    %v4514 = vunpack.c.h.b16 %v2021
    %v4515 = vunpack.c.l.b16 %v2022
    %v4516 = vunpack.c.h.b16 %v2022
    %v4517 = vunpack.c.l.b16 %v2023
    %v4518 = vunpack.c.h.b16 %v2023
    %v4519 = vunpack.c.l.b16 %v2024
    %v4520 = vunpack.c.h.b16 %v2024
    %v4521 = vunpack.c.l.b16 %v2025
    %v4522 = vunpack.c.h.b16 %v2025
    %v4523 = vunpack.c.l.b16 %v2026
    %v4524 = vunpack.c.h.b16 %v2026
    %v4525 = vunpack.c.l.b16 %v2027
    %v4526 = vunpack.c.h.b16 %v2027
    %v4527 = vunpack.c.l.b16 %v2028
    %v4528 = vunpack.c.h.b16 %v2028
    %v4529 = vunpack.c.l.b16 %v2029
    %v4530 = vunpack.c.h.b16 %v2029
    %v4531 = vunpack.c.l.b16 %v2030
    %v4532 = vunpack.c.h.b16 %v2030
    %v4533 = vunpack.c.l.b16 %v2031
    %v4534 = vunpack.c.h.b16 %v2031
    %v4535 = vunpack.c.l.b16 %v2032
    %v4536 = vunpack.c.h.b16 %v2032
    %v4537 = vunpack.c.l.b16 %v2033
    %v4538 = vunpack.c.h.b16 %v2033
    %v4539 = vunpack.c.l.b16 %v2034
    %v4540 = vunpack.c.h.b16 %v2034
    %v4541 = vunpack.c.l.b16 %v2035
    %v4542 = vunpack.c.h.b16 %v2035
    %v4543 = vunpack.c.l.b16 %v2036
    %v4544 = vunpack.c.h.b16 %v2036
    %v4545 = vunpack.c.l.b16 %v2037
    %v4546 = vunpack.c.h.b16 %v2037
    %v4547 = vunpack.c.l.b16 %v2038
    %v4548 = vunpack.c.h.b16 %v2038
    %v4549 = vunpack.c.l.b16 %v2039
    %v4550 = vunpack.c.h.b16 %v2039
    %v4551 = vunpack.c.l.b16 %v2040
    %v4552 = vunpack.c.h.b16 %v2040
    %v4553 = vunpack.c.l.b16 %v2041
    %v4554 = vunpack.c.h.b16 %v2041
    %v4555 = vunpack.c.l.b16 %v2042
    %v4556 = vunpack.c.h.b16 %v2042
    %v4557 = vunpack.c.l.b16 %v2043
    %v4558 = vunpack.c.h.b16 %v2043
    %v4559 = vunpack.c.l.b16 %v2044
    %v4560 = vunpack.c.h.b16 %v2044
    %v4561 = vunpack.c.l.b16 %v2045
    %v4562 = vunpack.c.h.b16 %v2045
    %v4563 = vunpack.c.l.b16 %v2046
    %v4564 = vunpack.c.h.b16 %v2046
    %v4565 = vunpack.c.l.b16 %v2047
    %v4566 = vunpack.c.h.b16 %v2047
    %v4567 = vunpack.c.l.b16 %v2048
    %v4568 = vunpack.c.h.b16 %v2048
    %v4569 = vunpack.c.l.b16 %v2049
    %v4570 = vunpack.c.h.b16 %v2049
    %v4571 = vunpack.c.l.b16 %v2050
    %v4572 = vunpack.c.h.b16 %v2050
    %v4573 = vunpack.c.l.b16 %v2051
    %v4574 = vunpack.c.h.b16 %v2051
    %v4575 = vunpack.c.l.b16 %v2052
    %v4576 = vunpack.c.h.b16 %v2052
    %v4577 = vunpack.c.l.b16 %v2053
    %v4578 = vunpack.c.h.b16 %v2053
    %v4579 = vunpack.c.l.b16 %v2054
    %v4580 = vunpack.c.h.b16 %v2054
    %v4581 = vunpack.c.l.b16 %v2055
    %v4582 = vunpack.c.h.b16 %v2055
    %v4583 = vunpack.c.l.b16 %v2056
    %v4584 = vunpack.c.h.b16 %v2056
    %v4585 = vunpack.c.l.b16 %v2057
    %v4586 = vunpack.c.h.b16 %v2057
    %v4587 = vunpack.c.l.b16 %v2058
    %v4588 = vunpack.c.h.b16 %v2058
    %v4589 = vunpack.c.l.b16 %v2059
    %v4590 = vunpack.c.h.b16 %v2059
    %v4591 = vunpack.c.l.b16 %v2060
    %v4592 = vunpack.c.h.b16 %v2060
    %v4593 = vunpack.c.l.b16 %v2061
    %v4594 = vunpack.c.h.b16 %v2061
    %v4595 = vunpack.c.l.b16 %v2062
    %v4596 = vunpack.c.h.b16 %v2062
    %v4597 = vunpack.c.l.b16 %v2063
    %v4598 = vunpack.c.h.b16 %v2063
    %v4599 = vunpack.c.l.b16 %v2064
    %v4600 = vunpack.c.h.b16 %v2064
    %v4601 = vunpack.c.l.b16 %v2065
    %v4602 = vunpack.c.h.b16 %v2065
    %v4603 = vunpack.c.l.b16 %v2066
    %v4604 = vunpack.c.h.b16 %v2066
    %v4605 = vunpack.c.l.b16 %v2067
    %v4606 = vunpack.c.h.b16 %v2067
    %v4607 = vunpack.c.l.b16 %v2068
    %v4608 = vunpack.c.h.b16 %v2068
    %v4609 = vunpack.c.l.b16 %v2069
    %v4610 = vunpack.c.h.b16 %v2069
    %v4611 = vunpack.c.l.b16 %v2070
    %v4612 = vunpack.c.h.b16 %v2070
    %v4613 = vunpack.c.l.b16 %v2071
    %v4614 = vunpack.c.h.b16 %v2071
    %v4615 = vunpack.c.l.b16 %v2072
    %v4616 = vunpack.c.h.b16 %v2072
    %v4617 = vunpack.c.l.b16 %v2073
    %v4618 = vunpack.c.h.b16 %v2073
    %v4619 = vunpack.c.l.b16 %v2074
    %v4620 = vunpack.c.h.b16 %v2074
    %v4621 = vunpack.c.l.b16 %v2075
    %v4622 = vunpack.c.h.b16 %v2075
    %v4623 = vunpack.c.l.b16 %v2076
    %v4624 = vunpack.c.h.b16 %v2076
    %v4625 = vunpack.c.l.b16 %v2077
    %v4626 = vunpack.c.h.b16 %v2077
    %v4627 = vunpack.c.l.b16 %v2078
    %v4628 = vunpack.c.h.b16 %v2078
    %v4629 = vunpack.c.l.b16 %v2079
    %v4630 = vunpack.c.h.b16 %v2079
    %v4631 = vunpack.c.l.b16 %v2080
    %v4632 = vunpack.c.h.b16 %v2080
    %v4633 = vunpack.c.l.b16 %v2081
    %v4634 = vunpack.c.h.b16 %v2081
    %v4635 = vunpack.c.l.b16 %v2082
    %v4636 = vunpack.c.h.b16 %v2082
    %v4637 = vunpack.c.l.b16 %v2083
    %v4638 = vunpack.c.h.b16 %v2083
    %v4639 = vunpack.c.l.b16 %v2084
    %v4640 = vunpack.c.h.b16 %v2084
    %v4641 = vunpack.c.l.b16 %v2085
    %v4642 = vunpack.c.h.b16 %v2085
    %v4643 = vunpack.c.l.b16 %v2086
    %v4644 = vunpack.c.h.b16 %v2086
    %v4645 = vunpack.c.l.b16 %v2087
    %v4646 = vunpack.c.h.b16 %v2087
    %v4647 = vunpack.c.l.b16 %v2088
    %v4648 = vunpack.c.h.b16 %v2088
    %v4649 = vunpack.c.l.b16 %v2089
    %v4650 = vunpack.c.h.b16 %v2089
    %v4651 = vunpack.c.l.b16 %v2090
    %v4652 = vunpack.c.h.b16 %v2090
    %v4653 = vunpack.c.l.b16 %v2091
    %v4654 = vunpack.c.h.b16 %v2091
    %v4655 = vunpack.c.l.b16 %v2092
    %v4656 = vunpack.c.h.b16 %v2092
    %v4657 = vunpack.c.l.b16 %v2093
    %v4658 = vunpack.c.h.b16 %v2093
    %v4659 = vunpack.c.l.b16 %v2094
    %v4660 = vunpack.c.h.b16 %v2094
    %v4661 = vunpack.c.l.b16 %v2095
    %v4662 = vunpack.c.h.b16 %v2095
    %v4663 = vunpack.c.l.b16 %v2096
    %v4664 = vunpack.c.h.b16 %v2096
    %v4665 = vunpack.c.l.b16 %v2097
    %v4666 = vunpack.c.h.b16 %v2097
    %v4667 = vunpack.c.l.b16 %v2098
    %v4668 = vunpack.c.h.b16 %v2098
    %v4669 = vunpack.c.l.b16 %v2099
    %v4670 = vunpack.c.h.b16 %v2099
    %v4671 = vunpack.c.l.b16 %v2100
    %v4672 = vunpack.c.h.b16 %v2100
    %v4673 = vunpack.c.l.b16 %v2101
    %v4674 = vunpack.c.h.b16 %v2101
    %v4675 = vunpack.c.l.b16 %v2102
    %v4676 = vunpack.c.h.b16 %v2102
    %v4677 = vunpack.c.l.b16 %v2103
    %v4678 = vunpack.c.h.b16 %v2103
    %v4679 = vunpack.c.l.b16 %v2104
    %v4680 = vunpack.c.h.b16 %v2104
    %v4681 = vunpack.c.l.b16 %v2105
    %v4682 = vunpack.c.h.b16 %v2105
    %v4683 = vunpack.c.l.b16 %v2106
    %v4684 = vunpack.c.h.b16 %v2106
    %v4685 = vunpack.c.l.b16 %v2107
    %v4686 = vunpack.c.h.b16 %v2107
    %v4687 = vunpack.c.l.b16 %v2108
    %v4688 = vunpack.c.h.b16 %v2108
    %v4689 = vunpack.c.l.b16 %v2109
    %v4690 = vunpack.c.h.b16 %v2109
    %v4691 = vunpack.c.l.b16 %v2110
    %v4692 = vunpack.c.h.b16 %v2110
    %v4693 = vunpack.c.l.b16 %v2111
    %v4694 = vunpack.c.h.b16 %v2111
    %v4695 = vunpack.c.l.b16 %v2112
    %v4696 = vunpack.c.h.b16 %v2112
    %v4697 = vunpack.c.l.b16 %v2113
    %v4698 = vunpack.c.h.b16 %v2113
    %v4699 = vunpack.c.l.b16 %v2114
    %v4700 = vunpack.c.h.b16 %v2114
    %v4701 = vunpack.c.l.b16 %v2115
    %v4702 = vunpack.c.h.b16 %v2115
    %v4703 = vunpack.c.l.b16 %v2116
    %v4704 = vunpack.c.h.b16 %v2116
    %v4705 = vunpack.c.l.b16 %v2117
    %v4706 = vunpack.c.h.b16 %v2117
    %v4707 = vunpack.c.l.b16 %v2118
    %v4708 = vunpack.c.h.b16 %v2118
    %v4709 = vunpack.c.l.b16 %v2119
    %v4710 = vunpack.c.h.b16 %v2119
    %v4711 = vunpack.c.l.b16 %v2120
    %v4712 = vunpack.c.h.b16 %v2120
    %v4713 = vunpack.c.l.b16 %v2121
    %v4714 = vunpack.c.h.b16 %v2121
    %v4715 = vunpack.c.l.b16 %v2122
    %v4716 = vunpack.c.h.b16 %v2122
    %v4717 = vunpack.c.l.b16 %v2123
    %v4718 = vunpack.c.h.b16 %v2123
    %v4719 = vunpack.c.l.b16 %v2124
    %v4720 = vunpack.c.h.b16 %v2124
    %v4721 = vunpack.c.l.b16 %v2125
    %v4722 = vunpack.c.h.b16 %v2125
    %v4723 = vunpack.c.l.b16 %v2126
    %v4724 = vunpack.c.h.b16 %v2126
    %v4725 = vunpack.c.l.b16 %v2127
    %v4726 = vunpack.c.h.b16 %v2127
    %v4727 = vunpack.c.l.b16 %v2128
    %v4728 = vunpack.c.h.b16 %v2128
    %v4729 = vunpack.c.l.b16 %v2129
    %v4730 = vunpack.c.h.b16 %v2129
    %v4731 = vunpack.c.l.b16 %v2130
    %v4732 = vunpack.c.h.b16 %v2130
    %v4733 = vunpack.c.l.b16 %v2131
    %v4734 = vunpack.c.h.b16 %v2131
    %v4735 = vunpack.c.l.b16 %v2132
    %v4736 = vunpack.c.h.b16 %v2132
    %v4737 = vunpack.c.l.b16 %v2133
    %v4738 = vunpack.c.h.b16 %v2133
    %v4739 = vunpack.c.l.b16 %v2134
    %v4740 = vunpack.c.h.b16 %v2134
    %v4741 = vunpack.c.l.b16 %v2135
    %v4742 = vunpack.c.h.b16 %v2135
    %v4743 = vunpack.c.l.b16 %v2136
    %v4744 = vunpack.c.h.b16 %v2136
    %v4745 = vunpack.c.l.b16 %v2137
    %v4746 = vunpack.c.h.b16 %v2137
    %v4747 = vunpack.c.l.b16 %v2138
    %v4748 = vunpack.c.h.b16 %v2138
    %v4749 = vunpack.c.l.b16 %v2139
    %v4750 = vunpack.c.h.b16 %v2139
    %v4751 = vunpack.c.l.b16 %v2140
    %v4752 = vunpack.c.h.b16 %v2140
    %v4753 = vunpack.c.l.b16 %v2141
    %v4754 = vunpack.c.h.b16 %v2141
    %v4755 = vunpack.c.l.b16 %v2142
    %v4756 = vunpack.c.h.b16 %v2142
    %v4757 = vunpack.c.l.b16 %v2143
    %v4758 = vunpack.c.h.b16 %v2143
    %v4759 = vunpack.c.l.b16 %v2144
    %v4760 = vunpack.c.h.b16 %v2144
    %v4761 = vunpack.c.l.b16 %v2145
    %v4762 = vunpack.c.h.b16 %v2145
    %v4763 = vunpack.c.l.b16 %v2146
    %v4764 = vunpack.c.h.b16 %v2146
    %v4765 = vunpack.c.l.b16 %v2147
    %v4766 = vunpack.c.h.b16 %v2147
    %v4767 = vunpack.c.l.b16 %v2148
    %v4768 = vunpack.c.h.b16 %v2148
    %v4769 = vunpack.c.l.b16 %v2149
    %v4770 = vunpack.c.h.b16 %v2149
    %v4771 = vunpack.c.l.b16 %v2150
    %v4772 = vunpack.c.h.b16 %v2150
    %v4773 = vunpack.c.l.b16 %v2151
    %v4774 = vunpack.c.h.b16 %v2151
    %v4775 = vunpack.c.l.b16 %v2152
    %v4776 = vunpack.c.h.b16 %v2152
    %v4777 = vunpack.c.l.b16 %v2153
    %v4778 = vunpack.c.h.b16 %v2153
    %v4779 = vunpack.c.l.b16 %v2154
    %v4780 = vunpack.c.h.b16 %v2154
    %v4781 = vunpack.c.l.b16 %v2155
    %v4782 = vunpack.c.h.b16 %v2155
    %v4783 = vunpack.c.l.b16 %v2156
    %v4784 = vunpack.c.h.b16 %v2156
    %v4785 = vunpack.c.l.b16 %v2157
    %v4786 = vunpack.c.h.b16 %v2157
    %v4787 = vunpack.c.l.b16 %v2158
    %v4788 = vunpack.c.h.b16 %v2158
    %v4789 = vunpack.c.l.b16 %v2159
    %v4790 = vunpack.c.h.b16 %v2159
    %v4791 = vunpack.c.l.b16 %v2160
    %v4792 = vunpack.c.h.b16 %v2160
    %v4793 = vunpack.c.l.b16 %v2161
    %v4794 = vunpack.c.h.b16 %v2161
    %v4795 = vunpack.c.l.b16 %v2162
    %v4796 = vunpack.c.h.b16 %v2162
    %v4797 = vunpack.c.l.b16 %v2163
    %v4798 = vunpack.c.h.b16 %v2163
    %v4799 = vunpack.c.l.b16 %v2164
    %v4800 = vunpack.c.h.b16 %v2164
    %v4801 = vunpack.c.l.b16 %v2165
    %v4802 = vunpack.c.h.b16 %v2165
    %v4803 = vunpack.c.l.b16 %v2166
    %v4804 = vunpack.c.h.b16 %v2166
    %v4805 = vunpack.c.l.b16 %v2167
    %v4806 = vunpack.c.h.b16 %v2167
    %v4807 = vunpack.c.l.b16 %v2168
    %v4808 = vunpack.c.h.b16 %v2168
    %v4809 = vunpack.c.l.b16 %v2169
    %v4810 = vunpack.c.h.b16 %v2169
    %v4811 = vunpack.c.l.b16 %v2170
    %v4812 = vunpack.c.h.b16 %v2170
    %v4813 = vunpack.c.l.b16 %v2171
    %v4814 = vunpack.c.h.b16 %v2171
    %v4815 = vunpack.c.l.b16 %v2172
    %v4816 = vunpack.c.h.b16 %v2172
    %v4817 = vunpack.c.l.b16 %v2173
    %v4818 = vunpack.c.h.b16 %v2173
    %v4819 = vunpack.c.l.b16 %v2174
    %v4820 = vunpack.c.h.b16 %v2174
    %v4821 = vunpack.c.l.b16 %v2175
    %v4822 = vunpack.c.h.b16 %v2175
    %v4823 = vunpack.c.l.b16 %v2176
    %v4824 = vunpack.c.h.b16 %v2176
    %v4825 = vunpack.c.l.b16 %v2177
    %v4826 = vunpack.c.h.b16 %v2177
    %v4827 = vunpack.c.l.b16 %v2178
    %v4828 = vunpack.c.h.b16 %v2178
    %v4829 = vunpack.c.l.b16 %v2179
    %v4830 = vunpack.c.h.b16 %v2179
    %v4831 = vunpack.c.l.b16 %v2180
    %v4832 = vunpack.c.h.b16 %v2180
    %v4833 = vunpack.c.l.b16 %v2181
    %v4834 = vunpack.c.h.b16 %v2181
    %v4835 = vunpack.c.l.b16 %v2182
    %v4836 = vunpack.c.h.b16 %v2182
    %v4837 = vunpack.c.l.b16 %v2183
    %v4838 = vunpack.c.h.b16 %v2183
    %v4839 = vunpack.c.l.b16 %v2184
    %v4840 = vunpack.c.h.b16 %v2184
    %v4841 = vunpack.c.l.b16 %v2185
    %v4842 = vunpack.c.h.b16 %v2185
    %v4843 = vunpack.c.l.b16 %v2186
    %v4844 = vunpack.c.h.b16 %v2186
    %v4845 = vunpack.c.l.b16 %v2187
    %v4846 = vunpack.c.h.b16 %v2187
    %v4847 = vunpack.c.l.b16 %v2188
    %v4848 = vunpack.c.h.b16 %v2188
    %v4849 = vunpack.c.l.b16 %v2189
    %v4850 = vunpack.c.h.b16 %v2189
    %v4851 = vunpack.c.l.b16 %v2190
    %v4852 = vunpack.c.h.b16 %v2190
    %v4853 = vunpack.c.l.b16 %v2191
    %v4854 = vunpack.c.h.b16 %v2191
    %v4855 = vunpack.c.l.b16 %v2192
    %v4856 = vunpack.c.h.b16 %v2192
    %v4857 = vunpack.c.l.b16 %v2193
    %v4858 = vunpack.c.h.b16 %v2193
    %v4859 = vunpack.c.l.b16 %v2194
    %v4860 = vunpack.c.h.b16 %v2194
    %v4861 = vunpack.c.l.b16 %v2195
    %v4862 = vunpack.c.h.b16 %v2195
    %v4863 = vunpack.c.l.b16 %v2196
    %v4864 = vunpack.c.h.b16 %v2196
    %v4865 = vunpack.c.l.b16 %v2197
    %v4866 = vunpack.c.h.b16 %v2197
    %v4867 = vunpack.c.l.b16 %v2198
    %v4868 = vunpack.c.h.b16 %v2198
    %v4869 = vunpack.c.l.b16 %v2199
    %v4870 = vunpack.c.h.b16 %v2199
    %v4871 = vunpack.c.l.b16 %v2200
    %v4872 = vunpack.c.h.b16 %v2200
    %v4873 = vunpack.c.l.b16 %v2201
    %v4874 = vunpack.c.h.b16 %v2201
    %v4875 = vunpack.c.l.b16 %v2202
    %v4876 = vunpack.c.h.b16 %v2202
    %v4877 = vunpack.c.l.b16 %v2203
    %v4878 = vunpack.c.h.b16 %v2203
    %v4879 = vunpack.c.l.b16 %v2204
    %v4880 = vunpack.c.h.b16 %v2204
    %v4881 = vunpack.c.l.b16 %v2205
    %v4882 = vunpack.c.h.b16 %v2205
    %v4883 = vunpack.c.l.b16 %v2206
    %v4884 = vunpack.c.h.b16 %v2206
    %v4885 = vunpack.c.l.b16 %v2207
    %v4886 = vunpack.c.h.b16 %v2207
    %v4887 = vunpack.c.l.b16 %v2208
    %v4888 = vunpack.c.h.b16 %v2208
    %v4889 = vunpack.c.l.b16 %v2209
    %v4890 = vunpack.c.h.b16 %v2209
    %v4891 = vunpack.c.l.b16 %v2210
    %v4892 = vunpack.c.h.b16 %v2210
    %v4893 = vunpack.c.l.b16 %v2211
    %v4894 = vunpack.c.h.b16 %v2211
    %v4895 = vunpack.c.l.b16 %v2212
    %v4896 = vunpack.c.h.b16 %v2212
    %v4897 = vunpack.c.l.b16 %v2213
    %v4898 = vunpack.c.h.b16 %v2213
    %v4899 = vunpack.c.l.b16 %v2214
    %v4900 = vunpack.c.h.b16 %v2214
    %v4901 = vunpack.c.l.b16 %v2215
    %v4902 = vunpack.c.h.b16 %v2215
    %v4903 = vunpack.c.l.b16 %v2216
    %v4904 = vunpack.c.h.b16 %v2216
    %v4905 = vunpack.c.l.b16 %v2217
    %v4906 = vunpack.c.h.b16 %v2217
    %v4907 = vunpack.c.l.b16 %v2218
    %v4908 = vunpack.c.h.b16 %v2218
    %v4909 = vunpack.c.l.b16 %v2219
    %v4910 = vunpack.c.h.b16 %v2219
    %v4911 = vunpack.c.l.b16 %v2220
    %v4912 = vunpack.c.h.b16 %v2220
    %v4913 = vunpack.c.l.b16 %v2221
    %v4914 = vunpack.c.h.b16 %v2221
    %v4915 = vunpack.c.l.b16 %v2222
    %v4916 = vunpack.c.h.b16 %v2222
    %v4917 = vunpack.c.l.b16 %v2223
    %v4918 = vunpack.c.h.b16 %v2223
    %v4919 = vunpack.c.l.b16 %v2224
    %v4920 = vunpack.c.h.b16 %v2224
    %v4921 = vunpack.c.l.b16 %v2225
    %v4922 = vunpack.c.h.b16 %v2225
    %v4923 = vunpack.c.l.b16 %v2226
    %v4924 = vunpack.c.h.b16 %v2226
    %v4925 = vunpack.c.l.b16 %v2227
    %v4926 = vunpack.c.h.b16 %v2227
    %v4927 = vunpack.c.l.b16 %v2228
    %v4928 = vunpack.c.h.b16 %v2228
    %v4929 = vunpack.c.l.b16 %v2229
    %v4930 = vunpack.c.h.b16 %v2229
    %v4931 = vunpack.c.l.b16 %v2230
    %v4932 = vunpack.c.h.b16 %v2230
    %v4933 = vunpack.c.l.b16 %v2231
    %v4934 = vunpack.c.h.b16 %v2231
    %v4935 = vunpack.c.l.b16 %v2232
    %v4936 = vunpack.c.h.b16 %v2232
    %v4937 = vunpack.c.l.b16 %v2233
    %v4938 = vunpack.c.h.b16 %v2233
    %v4939 = vunpack.c.l.b16 %v2234
    %v4940 = vunpack.c.h.b16 %v2234
    %v4941 = vunpack.c.l.b16 %v2235
    %v4942 = vunpack.c.h.b16 %v2235
    %v4943 = vunpack.c.l.b16 %v2236
    %v4944 = vunpack.c.h.b16 %v2236
    %v4945 = vunpack.c.l.b16 %v2237
    %v4946 = vunpack.c.h.b16 %v2237
    %v4947 = vunpack.c.l.b16 %v2238
    %v4948 = vunpack.c.h.b16 %v2238
    %v4949 = vunpack.c.l.b16 %v2239
    %v4950 = vunpack.c.h.b16 %v2239
    %v4951 = vunpack.c.l.b16 %v2240
    %v4952 = vunpack.c.h.b16 %v2240
    %v4953 = vunpack.c.l.b16 %v2241
    %v4954 = vunpack.c.h.b16 %v2241
    %v4955 = vunpack.c.l.b16 %v2242
    %v4956 = vunpack.c.h.b16 %v2242
    %v4957 = vunpack.c.l.b16 %v2243
    %v4958 = vunpack.c.h.b16 %v2243
    %v4959 = vunpack.c.l.b16 %v2244
    %v4960 = vunpack.c.h.b16 %v2244
    %v4961 = vunpack.c.l.b16 %v2245
    %v4962 = vunpack.c.h.b16 %v2245
    %v4963 = vunpack.c.l.b16 %v2246
    %v4964 = vunpack.c.h.b16 %v2246
    %v4965 = vunpack.c.l.b16 %v2247
    %v4966 = vunpack.c.h.b16 %v2247
    %v4967 = vunpack.c.l.b16 %v2248
    %v4968 = vunpack.c.h.b16 %v2248
    %v4969 = vunpack.c.l.b16 %v2249
    %v4970 = vunpack.c.h.b16 %v2249
    %v4971 = vunpack.c.l.b16 %v2250
    %v4972 = vunpack.c.h.b16 %v2250
    %v4973 = vunpack.c.l.b16 %v2251
    %v4974 = vunpack.c.h.b16 %v2251
    %v4975 = vunpack.c.l.b16 %v2252
    %v4976 = vunpack.c.h.b16 %v2252
    %v4977 = vunpack.c.l.b16 %v2253
    %v4978 = vunpack.c.h.b16 %v2253
    %v4979 = vunpack.c.l.b16 %v2254
    %v4980 = vunpack.c.h.b16 %v2254
    %v4981 = vunpack.c.l.b16 %v2255
    %v4982 = vunpack.c.h.b16 %v2255
    %v4983 = vunpack.c.l.b16 %v2256
    %v4984 = vunpack.c.h.b16 %v2256
    %v4985 = vunpack.c.l.b16 %v2257
    %v4986 = vunpack.c.h.b16 %v2257
    %v4987 = vunpack.c.l.b16 %v2258
    %v4988 = vunpack.c.h.b16 %v2258
    %v4989 = vunpack.c.l.b16 %v2259
    %v4990 = vunpack.c.h.b16 %v2259
    %v4991 = vunpack.c.l.b16 %v2260
    %v4992 = vunpack.c.h.b16 %v2260
    %v4993 = vunpack.c.l.b16 %v2261
    %v4994 = vunpack.c.h.b16 %v2261
    %v4995 = vunpack.c.l.b16 %v2262
    %v4996 = vunpack.c.h.b16 %v2262
    %v4997 = vunpack.c.l.b16 %v2263
    %v4998 = vunpack.c.h.b16 %v2263
    %v4999 = vunpack.c.l.b16 %v2264
    %v5000 = vunpack.c.h.b16 %v2264
    %v5001 = vunpack.c.l.b16 %v2265
    %v5002 = vunpack.c.h.b16 %v2265
    %v5003 = vunpack.c.l.b16 %v2266
    %v5004 = vunpack.c.h.b16 %v2266
    %v5005 = vunpack.c.l.b16 %v2267
    %v5006 = vunpack.c.h.b16 %v2267
    %v5007 = vunpack.c.l.b16 %v2268
    %v5008 = vunpack.c.h.b16 %v2268
    %v5009 = vunpack.c.l.b16 %v2269
    %v5010 = vunpack.c.h.b16 %v2269
    %v5011 = vunpack.c.l.b16 %v2270
    %v5012 = vunpack.c.h.b16 %v2270
    %v5013 = vunpack.c.l.b16 %v2271
    %v5014 = vunpack.c.h.b16 %v2271
    %v5015 = vunpack.c.l.b16 %v2272
    %v5016 = vunpack.c.h.b16 %v2272
    %v5017 = vunpack.c.l.b16 %v2273
    %v5018 = vunpack.c.h.b16 %v2273
    %v5019 = vunpack.c.l.b16 %v2274
    %v5020 = vunpack.c.h.b16 %v2274
    %v5021 = vunpack.c.l.b16 %v2275
    %v5022 = vunpack.c.h.b16 %v2275
    %v5023 = vunpack.c.l.b16 %v2276
    %v5024 = vunpack.c.h.b16 %v2276
    %v5025 = vunpack.c.l.b16 %v2277
    %v5026 = vunpack.c.h.b16 %v2277
    %v5027 = vunpack.c.l.b16 %v2278
    %v5028 = vunpack.c.h.b16 %v2278
    %v5029 = vunpack.c.l.b16 %v2279
    %v5030 = vunpack.c.h.b16 %v2279
    %v5031 = vunpack.c.l.b16 %v2280
    %v5032 = vunpack.c.h.b16 %v2280
    %v5033 = vunpack.c.l.b16 %v2281
    %v5034 = vunpack.c.h.b16 %v2281
    %v5035 = vunpack.c.l.b16 %v2282
    %v5036 = vunpack.c.h.b16 %v2282
    %v5037 = vunpack.c.l.b16 %v2283
    %v5038 = vunpack.c.h.b16 %v2283
    %v5039 = vunpack.c.l.b16 %v2284
    %v5040 = vunpack.c.h.b16 %v2284
    %v5041 = vunpack.c.l.b16 %v2285
    %v5042 = vunpack.c.h.b16 %v2285
    %v5043 = vunpack.c.l.b16 %v2286
    %v5044 = vunpack.c.h.b16 %v2286
    %v5045 = vunpack.c.l.b16 %v2287
    %v5046 = vunpack.c.h.b16 %v2287
    %v5047 = vunpack.c.l.b16 %v2288
    %v5048 = vunpack.c.h.b16 %v2288
    %v5049 = vunpack.c.l.b16 %v2289
    %v5050 = vunpack.c.h.b16 %v2289
    %v5051 = vunpack.c.l.b16 %v2290
    %v5052 = vunpack.c.h.b16 %v2290
    %v5053 = vunpack.c.l.b16 %v2291
    %v5054 = vunpack.c.h.b16 %v2291
    %v5055 = vunpack.c.l.b16 %v2292
    %v5056 = vunpack.c.h.b16 %v2292
    %v5057 = vunpack.c.l.b16 %v2293
    %v5058 = vunpack.c.h.b16 %v2293
    %v5059 = vunpack.c.l.b16 %v2294
    %v5060 = vunpack.c.h.b16 %v2294
    %v5061 = vunpack.c.l.b16 %v2295
    %v5062 = vunpack.c.h.b16 %v2295
    %v5063 = vunpack.c.l.b16 %v2296
    %v5064 = vunpack.c.h.b16 %v2296
    %v5065 = vunpack.c.l.b16 %v2297
    %v5066 = vunpack.c.h.b16 %v2297
    %v5067 = vunpack.c.l.b16 %v2298
    %v5068 = vunpack.c.h.b16 %v2298
    %v5069 = vunpack.c.l.b16 %v2299
    %v5070 = vunpack.c.h.b16 %v2299
    %v5071 = vunpack.c.l.b16 %v2300
    %v5072 = vunpack.c.h.b16 %v2300
    %v5073 = vunpack.c.l.b16 %v2301
    %v5074 = vunpack.c.h.b16 %v2301
    %v5075 = vunpack.c.l.b16 %v2302
    %v5076 = vunpack.c.h.b16 %v2302
    %v5077 = vunpack.c.l.b16 %v2303
    %v5078 = vunpack.c.h.b16 %v2303
    %v5079 = vunpack.c.l.b16 %v2304
    %v5080 = vunpack.c.h.b16 %v2304
    %v5081 = vunpack.c.l.b16 %v2305
    %v5082 = vunpack.c.h.b16 %v2305
    %v5083 = vunpack.c.l.b16 %v2306
    %v5084 = vunpack.c.h.b16 %v2306
    %v5085 = vunpack.c.l.b16 %v2307
    %v5086 = vunpack.c.h.b16 %v2307
    %v5087 = vunpack.c.l.b16 %v2308
    %v5088 = vunpack.c.h.b16 %v2308
    %v5089 = vunpack.c.l.b16 %v2309
    %v5090 = vunpack.c.h.b16 %v2309
    %v5091 = vunpack.c.l.b16 %v2310
    %v5092 = vunpack.c.h.b16 %v2310
    %v5093 = vunpack.c.l.b16 %v2311
    %v5094 = vunpack.c.h.b16 %v2311
    %v5095 = vunpack.c.l.b16 %v2312
    %v5096 = vunpack.c.h.b16 %v2312
    %v5097 = vunpack.c.l.b16 %v2313
    %v5098 = vunpack.c.h.b16 %v2313
    %v5099 = vunpack.c.l.b16 %v2314
    %v5100 = vunpack.c.h.b16 %v2314
    %v5101 = vunpack.c.l.b16 %v2315
    %v5102 = vunpack.c.h.b16 %v2315
    %v5103 = vunpack.c.l.b16 %v2316
    %v5104 = vunpack.c.h.b16 %v2316
    %v5105 = vunpack.c.l.b16 %v2317
    %v5106 = vunpack.c.h.b16 %v2317
    %v5107 = vunpack.c.l.b16 %v2318
    %v5108 = vunpack.c.h.b16 %v2318
    %v5109 = vunpack.c.l.b16 %v2319
    %v5110 = vunpack.c.h.b16 %v2319
    %v5111 = vunpack.c.l.b16 %v2320
    %v5112 = vunpack.c.h.b16 %v2320
    %v5113 = vunpack.c.l.b16 %v2321
    %v5114 = vunpack.c.h.b16 %v2321
    %v5115 = vunpack.c.l.b16 %v2322
    %v5116 = vunpack.c.h.b16 %v2322
    %v5117 = vunpack.c.l.b16 %v2323
    %v5118 = vunpack.c.h.b16 %v2323
    %v5119 = vunpack.c.l.b16 %v2324
    %v5120 = vunpack.c.h.b16 %v2324
    %v5121 = vunpack.c.l.b16 %v2325
    %v5122 = vunpack.c.h.b16 %v2325
    %v5123 = vunpack.c.l.b16 %v2326
    %v5124 = vunpack.c.h.b16 %v2326
    %v5125 = vunpack.c.l.b16 %v2327
    %v5126 = vunpack.c.h.b16 %v2327
    %v5127 = vunpack.c.l.b16 %v2328
    %v5128 = vunpack.c.h.b16 %v2328
    %v5129 = vunpack.c.l.b16 %v2329
    %v5130 = vunpack.c.h.b16 %v2329
    %v5131 = vunpack.c.l.b16 %v2330
    %v5132 = vunpack.c.h.b16 %v2330
    %v5133 = vunpack.c.l.b16 %v2331
    %v5134 = vunpack.c.h.b16 %v2331
    %v5135 = vunpack.c.l.b16 %v2332
    %v5136 = vunpack.c.h.b16 %v2332
    %v5137 = vunpack.c.l.b16 %v2333
    %v5138 = vunpack.c.h.b16 %v2333
    %v5139 = vunpack.c.l.b16 %v2334
    %v5140 = vunpack.c.h.b16 %v2334
    %v5141 = vunpack.c.l.b16 %v2335
    %v5142 = vunpack.c.h.b16 %v2335
    %v5143 = vunpack.c.l.b16 %v2336
    %v5144 = vunpack.c.h.b16 %v2336
    %v5145 = vunpack.c.l.b16 %v2337
    %v5146 = vunpack.c.h.b16 %v2337
    %v5147 = vunpack.c.l.b16 %v2338
    %v5148 = vunpack.c.h.b16 %v2338
    %v5149 = vunpack.c.l.b16 %v2339
    %v5150 = vunpack.c.h.b16 %v2339
    %v5151 = vunpack.c.l.b16 %v2340
    %v5152 = vunpack.c.h.b16 %v2340
    %v5153 = vunpack.c.l.b16 %v2341
    %v5154 = vunpack.c.h.b16 %v2341
    %v5155 = vunpack.c.l.b16 %v2342
    %v5156 = vunpack.c.h.b16 %v2342
    %v5157 = vunpack.c.l.b16 %v2343
    %v5158 = vunpack.c.h.b16 %v2343
    %v5159 = vunpack.c.l.b16 %v2344
    %v5160 = vunpack.c.h.b16 %v2344
    %v5161 = vunpack.c.l.b16 %v2345
    %v5162 = vunpack.c.h.b16 %v2345
    %v5163 = vunpack.c.l.b16 %v2346
    %v5164 = vunpack.c.h.b16 %v2346
    %v5165 = vunpack.c.l.b16 %v2347
    %v5166 = vunpack.c.h.b16 %v2347
    %v5167 = vunpack.c.l.b16 %v2348
    %v5168 = vunpack.c.h.b16 %v2348
    %v5169 = vunpack.c.l.b16 %v2349
    %v5170 = vunpack.c.h.b16 %v2349
    %v5171 = vunpack.c.l.b16 %v2350
    %v5172 = vunpack.c.h.b16 %v2350
    %v5173 = vunpack.c.l.b16 %v2351
    %v5174 = vunpack.c.h.b16 %v2351
    %v5175 = vunpack.c.l.b16 %v2352
    %v5176 = vunpack.c.h.b16 %v2352
    %v5177 = vunpack.c.l.b16 %v2353
    %v5178 = vunpack.c.h.b16 %v2353
    %v5179 = vunpack.c.l.b16 %v2354
    %v5180 = vunpack.c.h.b16 %v2354
    %v5181 = vunpack.c.l.b16 %v2355
    %v5182 = vunpack.c.h.b16 %v2355
    %v5183 = vunpack.c.l.b16 %v2356
    %v5184 = vunpack.c.h.b16 %v2356
    %v5185 = vunpack.c.l.b16 %v2357
    %v5186 = vunpack.c.h.b16 %v2357
    %v5187 = vunpack.c.l.b16 %v2358
    %v5188 = vunpack.c.h.b16 %v2358
    %v5189 = vunpack.c.l.b16 %v2359
    %v5190 = vunpack.c.h.b16 %v2359
    %v5191 = vunpack.c.l.b16 %v2360
    %v5192 = vunpack.c.h.b16 %v2360
    %v5193 = vunpack.c.l.b16 %v2361
    %v5194 = vunpack.c.h.b16 %v2361
    %v5195 = vunpack.c.l.b16 %v2362
    %v5196 = vunpack.c.h.b16 %v2362
    %v5197 = vunpack.c.l.b16 %v2363
    %v5198 = vunpack.c.h.b16 %v2363
    %v5199 = vunpack.c.l.b16 %v2364
    %v5200 = vunpack.c.h.b16 %v2364
    %v5201 = vpack.c.b16 %v3437, %v3409
    %v5202 = vpack.c.b16 %v3438, %v3410
    %v5203 = vpack.c.b16 %v3439, %v3411
    %v5204 = vpack.c.b16 %v3440, %v3412
    %v5205 = vpack.c.b16 %v3441, %v3413
    %v5206 = vpack.c.b16 %v3442, %v3414
    %v5207 = vpack.c.b16 %v3443, %v3415
    %v5208 = vpack.c.b16 %v3444, %v3416
    %v5209 = vpack.c.b16 %v3445, %v3417
    %v5210 = vpack.c.b16 %v3446, %v3418
    %v5211 = vpack.c.b16 %v3447, %v3419
    %v5212 = vpack.c.b16 %v3448, %v3420
    %v5213 = vpack.c.b16 %v3449, %v3421
    %v5214 = vpack.c.b16 %v3450, %v3422
    %v5215 = vpack.c.b16 %v3451, %v3423
    %v5216 = vpack.c.b16 %v3452, %v3424
    %v5217 = vpack.c.b16 %v3453, %v3425
    %v5218 = vpack.c.b16 %v3454, %v3426
    %v5219 = vpack.c.b16 %v3455, %v3427
    %v5220 = vpack.c.b16 %v3456, %v3428
    %v5221 = vpack.c.b16 %v3457, %v3429
    %v5222 = vpack.c.b16 %v3458, %v3430
    %v5223 = vpack.c.b16 %v3459, %v3431
    %v5224 = vpack.c.b16 %v3460, %v3432
    %v5225 = vpack.c.b16 %v3461, %v3433
    %v5226 = vpack.c.b16 %v3462, %v3434
    %v5227 = vpack.c.b16 %v3463, %v3435
    %v5228 = vpack.c.b16 %v3464, %v3436
    %v5229 = vpack.c.b16 %v3493, %v3465
    %v5230 = vpack.c.b16 %v3494, %v3466
    %v5231 = vpack.c.b16 %v3495, %v3467
    %v5232 = vpack.c.b16 %v3496, %v3468
    %v5233 = vpack.c.b16 %v3497, %v3469
    %v5234 = vpack.c.b16 %v3498, %v3470
    %v5235 = vpack.c.b16 %v3499, %v3471
    %v5236 = vpack.c.b16 %v3500, %v3472
    %v5237 = vpack.c.b16 %v3501, %v3473
    %v5238 = vpack.c.b16 %v3502, %v3474
    %v5239 = vpack.c.b16 %v3503, %v3475
    %v5240 = vpack.c.b16 %v3504, %v3476
    %v5241 = vpack.c.b16 %v3505, %v3477
    %v5242 = vpack.c.b16 %v3506, %v3478
    %v5243 = vpack.c.b16 %v3507, %v3479
    %v5244 = vpack.c.b16 %v3508, %v3480
    %v5245 = vpack.c.b16 %v3509, %v3481
    %v5246 = vpack.c.b16 %v3510, %v3482
    %v5247 = vpack.c.b16 %v3511, %v3483
    %v5248 = vpack.c.b16 %v3512, %v3484
    %v5249 = vpack.c.b16 %v3513, %v3485
    %v5250 = vpack.c.b16 %v3514, %v3486
    %v5251 = vpack.c.b16 %v3515, %v3487
    %v5252 = vpack.c.b16 %v3516, %v3488
    %v5253 = vpack.c.b16 %v3517, %v3489
    %v5254 = vpack.c.b16 %v3518, %v3490
    %v5255 = vpack.c.b16 %v3519, %v3491
    %v5256 = vpack.c.b16 %v3520, %v3492
    %v5257 = vpack.c.b16 %v3549, %v3521
    %v5258 = vpack.c.b16 %v3550, %v3522
    %v5259 = vpack.c.b16 %v3551, %v3523
    %v5260 = vpack.c.b16 %v3552, %v3524
    %v5261 = vpack.c.b16 %v3553, %v3525
    %v5262 = vpack.c.b16 %v3554, %v3526
    %v5263 = vpack.c.b16 %v3555, %v3527
    %v5264 = vpack.c.b16 %v3556, %v3528
    %v5265 = vpack.c.b16 %v3557, %v3529
    %v5266 = vpack.c.b16 %v3558, %v3530
    %v5267 = vpack.c.b16 %v3559, %v3531
    %v5268 = vpack.c.b16 %v3560, %v3532
    %v5269 = vpack.c.b16 %v3561, %v3533
    %v5270 = vpack.c.b16 %v3562, %v3534
    %v5271 = vpack.c.b16 %v3563, %v3535
    %v5272 = vpack.c.b16 %v3564, %v3536
    %v5273 = vpack.c.b16 %v3565, %v3537
    %v5274 = vpack.c.b16 %v3566, %v3538
    %v5275 = vpack.c.b16 %v3567, %v3539
    %v5276 = vpack.c.b16 %v3568, %v3540
    %v5277 = vpack.c.b16 %v3569, %v3541
    %v5278 = vpack.c.b16 %v3570, %v3542
    %v5279 = vpack.c.b16 %v3571, %v3543
    %v5280 = vpack.c.b16 %v3572, %v3544
    %v5281 = vpack.c.b16 %v3573, %v3545
    %v5282 = vpack.c.b16 %v3574, %v3546
    %v5283 = vpack.c.b16 %v3575, %v3547
    %v5284 = vpack.c.b16 %v3576, %v3548
    %v5285 = vpack.c.b16 %v3605, %v3577
    %v5286 = vpack.c.b16 %v3606, %v3578
    %v5287 = vpack.c.b16 %v3607, %v3579
    %v5288 = vpack.c.b16 %v3608, %v3580
    %v5289 = vpack.c.b16 %v3609, %v3581
    %v5290 = vpack.c.b16 %v3610, %v3582
    %v5291 = vpack.c.b16 %v3611, %v3583
    %v5292 = vpack.c.b16 %v3612, %v3584
    %v5293 = vpack.c.b16 %v3613, %v3585
    %v5294 = vpack.c.b16 %v3614, %v3586
    %v5295 = vpack.c.b16 %v3615, %v3587
    %v5296 = vpack.c.b16 %v3616, %v3588
    %v5297 = vpack.c.b16 %v3617, %v3589
    %v5298 = vpack.c.b16 %v3618, %v3590
    %v5299 = vpack.c.b16 %v3619, %v3591
    %v5300 = vpack.c.b16 %v3620, %v3592
    %v5301 = vpack.c.b16 %v3621, %v3593
    %v5302 = vpack.c.b16 %v3622, %v3594
    %v5303 = vpack.c.b16 %v3623, %v3595
    %v5304 = vpack.c.b16 %v3624, %v3596
    %v5305 = vpack.c.b16 %v3625, %v3597
    %v5306 = vpack.c.b16 %v3626, %v3598
    %v5307 = vpack.c.b16 %v3627, %v3599
    %v5308 = vpack.c.b16 %v3628, %v3600
    %v5309 = vpack.c.b16 %v3629, %v3601
    %v5310 = vpack.c.b16 %v3630, %v3602
    %v5311 = vpack.c.b16 %v3631, %v3603
    %v5312 = vpack.c.b16 %v3632, %v3604
    %v5313 = vpack.c.b16 %v3661, %v3633
    %v5314 = vpack.c.b16 %v3662, %v3634
    %v5315 = vpack.c.b16 %v3663, %v3635
    %v5316 = vpack.c.b16 %v3664, %v3636
    %v5317 = vpack.c.b16 %v3665, %v3637
    %v5318 = vpack.c.b16 %v3666, %v3638
    %v5319 = vpack.c.b16 %v3667, %v3639
    %v5320 = vpack.c.b16 %v3668, %v3640
    %v5321 = vpack.c.b16 %v3669, %v3641
    %v5322 = vpack.c.b16 %v3670, %v3642
    %v5323 = vpack.c.b16 %v3671, %v3643
    %v5324 = vpack.c.b16 %v3672, %v3644
    %v5325 = vpack.c.b16 %v3673, %v3645
    %v5326 = vpack.c.b16 %v3674, %v3646
    %v5327 = vpack.c.b16 %v3675, %v3647
    %v5328 = vpack.c.b16 %v3676, %v3648
    %v5329 = vpack.c.b16 %v3677, %v3649
    %v5330 = vpack.c.b16 %v3678, %v3650
    %v5331 = vpack.c.b16 %v3679, %v3651
    %v5332 = vpack.c.b16 %v3680, %v3652
    %v5333 = vpack.c.b16 %v3681, %v3653
    %v5334 = vpack.c.b16 %v3682, %v3654
    %v5335 = vpack.c.b16 %v3683, %v3655
    %v5336 = vpack.c.b16 %v3684, %v3656
    %v5337 = vpack.c.b16 %v3685, %v3657
    %v5338 = vpack.c.b16 %v3686, %v3658
    %v5339 = vpack.c.b16 %v3687, %v3659
    %v5340 = vpack.c.b16 %v3688, %v3660
    %v5341 = vpack.c.b16 %v3717, %v3689
    %v5342 = vpack.c.b16 %v3718, %v3690
    %v5343 = vpack.c.b16 %v3719, %v3691
    %v5344 = vpack.c.b16 %v3720, %v3692
    %v5345 = vpack.c.b16 %v3721, %v3693
    %v5346 = vpack.c.b16 %v3722, %v3694
    %v5347 = vpack.c.b16 %v3723, %v3695
    %v5348 = vpack.c.b16 %v3724, %v3696
    %v5349 = vpack.c.b16 %v3725, %v3697
    %v5350 = vpack.c.b16 %v3726, %v3698
    %v5351 = vpack.c.b16 %v3727, %v3699
    %v5352 = vpack.c.b16 %v3728, %v3700
    %v5353 = vpack.c.b16 %v3729, %v3701
    %v5354 = vpack.c.b16 %v3730, %v3702
    %v5355 = vpack.c.b16 %v3731, %v3703
    %v5356 = vpack.c.b16 %v3732, %v3704
    %v5357 = vpack.c.b16 %v3733, %v3705
    %v5358 = vpack.c.b16 %v3734, %v3706
    %v5359 = vpack.c.b16 %v3735, %v3707
    %v5360 = vpack.c.b16 %v3736, %v3708
    %v5361 = vpack.c.b16 %v3737, %v3709
    %v5362 = vpack.c.b16 %v3738, %v3710
    %v5363 = vpack.c.b16 %v3739, %v3711
    %v5364 = vpack.c.b16 %v3740, %v3712
    %v5365 = vpack.c.b16 %v3741, %v3713
    %v5366 = vpack.c.b16 %v3742, %v3714
    %v5367 = vpack.c.b16 %v3743, %v3715
    %v5368 = vpack.c.b16 %v3744, %v3716
    %v5369 = vpack.c.b16 %v3773, %v3745
    %v5370 = vpack.c.b16 %v3774, %v3746
    %v5371 = vpack.c.b16 %v3775, %v3747
    %v5372 = vpack.c.b16 %v3776, %v3748
    %v5373 = vpack.c.b16 %v3777, %v3749
    %v5374 = vpack.c.b16 %v3778, %v3750
    %v5375 = vpack.c.b16 %v3779, %v3751
    %v5376 = vpack.c.b16 %v3780, %v3752
    %v5377 = vpack.c.b16 %v3781, %v3753
    %v5378 = vpack.c.b16 %v3782, %v3754
    %v5379 = vpack.c.b16 %v3783, %v3755
    %v5380 = vpack.c.b16 %v3784, %v3756
    %v5381 = vpack.c.b16 %v3785, %v3757
    %v5382 = vpack.c.b16 %v3786, %v3758
    %v5383 = vpack.c.b16 %v3787, %v3759
    %v5384 = vpack.c.b16 %v3788, %v3760
    %v5385 = vpack.c.b16 %v3789, %v3761
    %v5386 = vpack.c.b16 %v3790, %v3762
    %v5387 = vpack.c.b16 %v3791, %v3763
    %v5388 = vpack.c.b16 %v3792, %v3764
    %v5389 = vpack.c.b16 %v3793, %v3765
    %v5390 = vpack.c.b16 %v3794, %v3766
    %v5391 = vpack.c.b16 %v3795, %v3767
    %v5392 = vpack.c.b16 %v3796, %v3768
    %v5393 = vpack.c.b16 %v3797, %v3769
    %v5394 = vpack.c.b16 %v3798, %v3770
    %v5395 = vpack.c.b16 %v3799, %v3771
    %v5396 = vpack.c.b16 %v3800, %v3772
    %v5397 = vpack.c.b16 %v3829, %v3801
    %v5398 = vpack.c.b16 %v3830, %v3802
    %v5399 = vpack.c.b16 %v3831, %v3803
    %v5400 = vpack.c.b16 %v3832, %v3804
    %v5401 = vpack.c.b16 %v3833, %v3805
    %v5402 = vpack.c.b16 %v3834, %v3806
    %v5403 = vpack.c.b16 %v3835, %v3807
    %v5404 = vpack.c.b16 %v3836, %v3808
    %v5405 = vpack.c.b16 %v3837, %v3809
    %v5406 = vpack.c.b16 %v3838, %v3810
    %v5407 = vpack.c.b16 %v3839, %v3811
    %v5408 = vpack.c.b16 %v3840, %v3812
    %v5409 = vpack.c.b16 %v3841, %v3813
    %v5410 = vpack.c.b16 %v3842, %v3814
    %v5411 = vpack.c.b16 %v3843, %v3815
    %v5412 = vpack.c.b16 %v3844, %v3816
    %v5413 = vpack.c.b16 %v3845, %v3817
    %v5414 = vpack.c.b16 %v3846, %v3818
    %v5415 = vpack.c.b16 %v3847, %v3819
    %v5416 = vpack.c.b16 %v3848, %v3820
    %v5417 = vpack.c.b16 %v3849, %v3821
    %v5418 = vpack.c.b16 %v3850, %v3822
    %v5419 = vpack.c.b16 %v3851, %v3823
    %v5420 = vpack.c.b16 %v3852, %v3824
    %v5421 = vpack.c.b16 %v3853, %v3825
    %v5422 = vpack.c.b16 %v3854, %v3826
    %v5423 = vpack.c.b16 %v3855, %v3827
    %v5424 = vpack.c.b16 %v3856, %v3828
    %v5425 = vpack.c.b16 %v3885, %v3857
    %v5426 = vpack.c.b16 %v3886, %v3858
    %v5427 = vpack.c.b16 %v3887, %v3859
    %v5428 = vpack.c.b16 %v3888, %v3860
    %v5429 = vpack.c.b16 %v3889, %v3861
    %v5430 = vpack.c.b16 %v3890, %v3862
    %v5431 = vpack.c.b16 %v3891, %v3863
    %v5432 = vpack.c.b16 %v3892, %v3864
    %v5433 = vpack.c.b16 %v3893, %v3865
    %v5434 = vpack.c.b16 %v3894, %v3866
    %v5435 = vpack.c.b16 %v3895, %v3867
    %v5436 = vpack.c.b16 %v3896, %v3868
    %v5437 = vpack.c.b16 %v3897, %v3869
    %v5438 = vpack.c.b16 %v3898, %v3870
    %v5439 = vpack.c.b16 %v3899, %v3871
    %v5440 = vpack.c.b16 %v3900, %v3872
    %v5441 = vpack.c.b16 %v3901, %v3873
    %v5442 = vpack.c.b16 %v3902, %v3874
    %v5443 = vpack.c.b16 %v3903, %v3875
    %v5444 = vpack.c.b16 %v3904, %v3876
    %v5445 = vpack.c.b16 %v3905, %v3877
    %v5446 = vpack.c.b16 %v3906, %v3878
    %v5447 = vpack.c.b16 %v3907, %v3879
    %v5448 = vpack.c.b16 %v3908, %v3880
    %v5449 = vpack.c.b16 %v3909, %v3881
    %v5450 = vpack.c.b16 %v3910, %v3882
    %v5451 = vpack.c.b16 %v3911, %v3883
    %v5452 = vpack.c.b16 %v3912, %v3884
    %v5453 = vpack.c.b16 %v3941, %v3913
    %v5454 = vpack.c.b16 %v3942, %v3914
    %v5455 = vpack.c.b16 %v3943, %v3915
    %v5456 = vpack.c.b16 %v3944, %v3916
    %v5457 = vpack.c.b16 %v3945, %v3917
    %v5458 = vpack.c.b16 %v3946, %v3918
    %v5459 = vpack.c.b16 %v3947, %v3919
    %v5460 = vpack.c.b16 %v3948, %v3920
    %v5461 = vpack.c.b16 %v3949, %v3921
    %v5462 = vpack.c.b16 %v3950, %v3922
    %v5463 = vpack.c.b16 %v3951, %v3923
    %v5464 = vpack.c.b16 %v3952, %v3924
    %v5465 = vpack.c.b16 %v3953, %v3925
    %v5466 = vpack.c.b16 %v3954, %v3926
    %v5467 = vpack.c.b16 %v3955, %v3927
    %v5468 = vpack.c.b16 %v3956, %v3928
    %v5469 = vpack.c.b16 %v3957, %v3929
    %v5470 = vpack.c.b16 %v3958, %v3930
    %v5471 = vpack.c.b16 %v3959, %v3931
    %v5472 = vpack.c.b16 %v3960, %v3932
    %v5473 = vpack.c.b16 %v3961, %v3933
    %v5474 = vpack.c.b16 %v3962, %v3934
    %v5475 = vpack.c.b16 %v3963, %v3935
    %v5476 = vpack.c.b16 %v3964, %v3936
    %v5477 = vpack.c.b16 %v3965, %v3937
    %v5478 = vpack.c.b16 %v3966, %v3938
    %v5479 = vpack.c.b16 %v3967, %v3939
    %v5480 = vpack.c.b16 %v3968, %v3940
    %v5481 = vpack.c.b16 %v3997, %v3969
    %v5482 = vpack.c.b16 %v3998, %v3970
    %v5483 = vpack.c.b16 %v3999, %v3971
    %v5484 = vpack.c.b16 %v4000, %v3972
    %v5485 = vpack.c.b16 %v4001, %v3973
    %v5486 = vpack.c.b16 %v4002, %v3974
    %v5487 = vpack.c.b16 %v4003, %v3975
    %v5488 = vpack.c.b16 %v4004, %v3976
    %v5489 = vpack.c.b16 %v4005, %v3977
    %v5490 = vpack.c.b16 %v4006, %v3978
    %v5491 = vpack.c.b16 %v4007, %v3979
    %v5492 = vpack.c.b16 %v4008, %v3980
    %v5493 = vpack.c.b16 %v4009, %v3981
    %v5494 = vpack.c.b16 %v4010, %v3982
    %v5495 = vpack.c.b16 %v4011, %v3983
    %v5496 = vpack.c.b16 %v4012, %v3984
    %v5497 = vpack.c.b16 %v4013, %v3985
    %v5498 = vpack.c.b16 %v4014, %v3986
    %v5499 = vpack.c.b16 %v4015, %v3987
    %v5500 = vpack.c.b16 %v4016, %v3988
    %v5501 = vpack.c.b16 %v4017, %v3989
    %v5502 = vpack.c.b16 %v4018, %v3990
    %v5503 = vpack.c.b16 %v4019, %v3991
    %v5504 = vpack.c.b16 %v4020, %v3992
    %v5505 = vpack.c.b16 %v4021, %v3993
    %v5506 = vpack.c.b16 %v4022, %v3994
    %v5507 = vpack.c.b16 %v4023, %v3995
    %v5508 = vpack.c.b16 %v4024, %v3996
    %v5509 = vpack.c.b16 %v4053, %v4025
    %v5510 = vpack.c.b16 %v4054, %v4026
    %v5511 = vpack.c.b16 %v4055, %v4027
    %v5512 = vpack.c.b16 %v4056, %v4028
    %v5513 = vpack.c.b16 %v4057, %v4029
    %v5514 = vpack.c.b16 %v4058, %v4030
    %v5515 = vpack.c.b16 %v4059, %v4031
    %v5516 = vpack.c.b16 %v4060, %v4032
    %v5517 = vpack.c.b16 %v4061, %v4033
    %v5518 = vpack.c.b16 %v4062, %v4034
    %v5519 = vpack.c.b16 %v4063, %v4035
    %v5520 = vpack.c.b16 %v4064, %v4036
    %v5521 = vpack.c.b16 %v4065, %v4037
    %v5522 = vpack.c.b16 %v4066, %v4038
    %v5523 = vpack.c.b16 %v4067, %v4039
    %v5524 = vpack.c.b16 %v4068, %v4040
    %v5525 = vpack.c.b16 %v4069, %v4041
    %v5526 = vpack.c.b16 %v4070, %v4042
    %v5527 = vpack.c.b16 %v4071, %v4043
    %v5528 = vpack.c.b16 %v4072, %v4044
    %v5529 = vpack.c.b16 %v4073, %v4045
    %v5530 = vpack.c.b16 %v4074, %v4046
    %v5531 = vpack.c.b16 %v4075, %v4047
    %v5532 = vpack.c.b16 %v4076, %v4048
    %v5533 = vpack.c.b16 %v4077, %v4049
    %v5534 = vpack.c.b16 %v4078, %v4050
    %v5535 = vpack.c.b16 %v4079, %v4051
    %v5536 = vpack.c.b16 %v4080, %v4052
    %v5537 = vpack.c.b16 %v4109, %v4081
    %v5538 = vpack.c.b16 %v4110, %v4082
    %v5539 = vpack.c.b16 %v4111, %v4083
    %v5540 = vpack.c.b16 %v4112, %v4084
    %v5541 = vpack.c.b16 %v4113, %v4085
    %v5542 = vpack.c.b16 %v4114, %v4086
    %v5543 = vpack.c.b16 %v4115, %v4087
    %v5544 = vpack.c.b16 %v4116, %v4088
    %v5545 = vpack.c.b16 %v4117, %v4089
    %v5546 = vpack.c.b16 %v4118, %v4090
    %v5547 = vpack.c.b16 %v4119, %v4091
    %v5548 = vpack.c.b16 %v4120, %v4092
    %v5549 = vpack.c.b16 %v4121, %v4093
    %v5550 = vpack.c.b16 %v4122, %v4094
    %v5551 = vpack.c.b16 %v4123, %v4095
    %v5552 = vpack.c.b16 %v4124, %v4096
    %v5553 = vpack.c.b16 %v4125, %v4097
    %v5554 = vpack.c.b16 %v4126, %v4098
    %v5555 = vpack.c.b16 %v4127, %v4099
    %v5556 = vpack.c.b16 %v4128, %v4100
    %v5557 = vpack.c.b16 %v4129, %v4101
    %v5558 = vpack.c.b16 %v4130, %v4102
    %v5559 = vpack.c.b16 %v4131, %v4103
    %v5560 = vpack.c.b16 %v4132, %v4104
    %v5561 = vpack.c.b16 %v4133, %v4105
    %v5562 = vpack.c.b16 %v4134, %v4106
    %v5563 = vpack.c.b16 %v4135, %v4107
    %v5564 = vpack.c.b16 %v4136, %v4108
    %v5565 = vpack.c.b16 %v4165, %v4137
    %v5566 = vpack.c.b16 %v4166, %v4138
    %v5567 = vpack.c.b16 %v4167, %v4139
    %v5568 = vpack.c.b16 %v4168, %v4140
    %v5569 = vpack.c.b16 %v4169, %v4141
    %v5570 = vpack.c.b16 %v4170, %v4142
    %v5571 = vpack.c.b16 %v4171, %v4143
    %v5572 = vpack.c.b16 %v4172, %v4144
    %v5573 = vpack.c.b16 %v4173, %v4145
    %v5574 = vpack.c.b16 %v4174, %v4146
    %v5575 = vpack.c.b16 %v4175, %v4147
    %v5576 = vpack.c.b16 %v4176, %v4148
    %v5577 = vpack.c.b16 %v4177, %v4149
    %v5578 = vpack.c.b16 %v4178, %v4150
    %v5579 = vpack.c.b16 %v4179, %v4151
    %v5580 = vpack.c.b16 %v4180, %v4152
    %v5581 = vpack.c.b16 %v4181, %v4153
    %v5582 = vpack.c.b16 %v4182, %v4154
    %v5583 = vpack.c.b16 %v4183, %v4155
    %v5584 = vpack.c.b16 %v4184, %v4156
    %v5585 = vpack.c.b16 %v4185, %v4157
    %v5586 = vpack.c.b16 %v4186, %v4158
    %v5587 = vpack.c.b16 %v4187, %v4159
    %v5588 = vpack.c.b16 %v4188, %v4160
    %v5589 = vpack.c.b16 %v4189, %v4161
    %v5590 = vpack.c.b16 %v4190, %v4162
    %v5591 = vpack.c.b16 %v4191, %v4163
    %v5592 = vpack.c.b16 %v4192, %v4164
    %v5593 = vpack.c.b16 %v4221, %v4193
    %v5594 = vpack.c.b16 %v4222, %v4194
    %v5595 = vpack.c.b16 %v4223, %v4195
    %v5596 = vpack.c.b16 %v4224, %v4196
    %v5597 = vpack.c.b16 %v4225, %v4197
    %v5598 = vpack.c.b16 %v4226, %v4198
    %v5599 = vpack.c.b16 %v4227, %v4199
    %v5600 = vpack.c.b16 %v4228, %v4200
    %v5601 = vpack.c.b16 %v4229, %v4201
    %v5602 = vpack.c.b16 %v4230, %v4202
    %v5603 = vpack.c.b16 %v4231, %v4203
    %v5604 = vpack.c.b16 %v4232, %v4204
    %v5605 = vpack.c.b16 %v4233, %v4205
    %v5606 = vpack.c.b16 %v4234, %v4206
    %v5607 = vpack.c.b16 %v4235, %v4207
    %v5608 = vpack.c.b16 %v4236, %v4208
    %v5609 = vpack.c.b16 %v4237, %v4209
    %v5610 = vpack.c.b16 %v4238, %v4210
    %v5611 = vpack.c.b16 %v4239, %v4211
    %v5612 = vpack.c.b16 %v4240, %v4212
    %v5613 = vpack.c.b16 %v4241, %v4213
    %v5614 = vpack.c.b16 %v4242, %v4214
    %v5615 = vpack.c.b16 %v4243, %v4215
    %v5616 = vpack.c.b16 %v4244, %v4216
    %v5617 = vpack.c.b16 %v4245, %v4217
    %v5618 = vpack.c.b16 %v4246, %v4218
    %v5619 = vpack.c.b16 %v4247, %v4219
    %v5620 = vpack.c.b16 %v4248, %v4220
    %v5621 = vpack.c.b16 %v4277, %v4249
    %v5622 = vpack.c.b16 %v4278, %v4250
    %v5623 = vpack.c.b16 %v4279, %v4251
    %v5624 = vpack.c.b16 %v4280, %v4252
    %v5625 = vpack.c.b16 %v4281, %v4253
    %v5626 = vpack.c.b16 %v4282, %v4254
    %v5627 = vpack.c.b16 %v4283, %v4255
    %v5628 = vpack.c.b16 %v4284, %v4256
    %v5629 = vpack.c.b16 %v4285, %v4257
    %v5630 = vpack.c.b16 %v4286, %v4258
    %v5631 = vpack.c.b16 %v4287, %v4259
    %v5632 = vpack.c.b16 %v4288, %v4260
    %v5633 = vpack.c.b16 %v4289, %v4261
    %v5634 = vpack.c.b16 %v4290, %v4262
    %v5635 = vpack.c.b16 %v4291, %v4263
    %v5636 = vpack.c.b16 %v4292, %v4264
    %v5637 = vpack.c.b16 %v4293, %v4265
    %v5638 = vpack.c.b16 %v4294, %v4266
    %v5639 = vpack.c.b16 %v4295, %v4267
    %v5640 = vpack.c.b16 %v4296, %v4268
    %v5641 = vpack.c.b16 %v4297, %v4269
    %v5642 = vpack.c.b16 %v4298, %v4270
    %v5643 = vpack.c.b16 %v4299, %v4271
    %v5644 = vpack.c.b16 %v4300, %v4272
    %v5645 = vpack.c.b16 %v4301, %v4273
    %v5646 = vpack.c.b16 %v4302, %v4274
    %v5647 = vpack.c.b16 %v4303, %v4275
    %v5648 = vpack.c.b16 %v4304, %v4276
    %v5649 = vpack.c.b16 %v4333, %v4305
    %v5650 = vpack.c.b16 %v4334, %v4306
    %v5651 = vpack.c.b16 %v4335, %v4307
    %v5652 = vpack.c.b16 %v4336, %v4308
    %v5653 = vpack.c.b16 %v4337, %v4309
    %v5654 = vpack.c.b16 %v4338, %v4310
    %v5655 = vpack.c.b16 %v4339, %v4311
    %v5656 = vpack.c.b16 %v4340, %v4312
    %v5657 = vpack.c.b16 %v4341, %v4313
    %v5658 = vpack.c.b16 %v4342, %v4314
    %v5659 = vpack.c.b16 %v4343, %v4315
    %v5660 = vpack.c.b16 %v4344, %v4316
    %v5661 = vpack.c.b16 %v4345, %v4317
    %v5662 = vpack.c.b16 %v4346, %v4318
    %v5663 = vpack.c.b16 %v4347, %v4319
    %v5664 = vpack.c.b16 %v4348, %v4320
    %v5665 = vpack.c.b16 %v4349, %v4321
    %v5666 = vpack.c.b16 %v4350, %v4322
    %v5667 = vpack.c.b16 %v4351, %v4323
    %v5668 = vpack.c.b16 %v4352, %v4324
    %v5669 = vpack.c.b16 %v4353, %v4325
    %v5670 = vpack.c.b16 %v4354, %v4326
    %v5671 = vpack.c.b16 %v4355, %v4327
    %v5672 = vpack.c.b16 %v4356, %v4328
    %v5673 = vpack.c.b16 %v4357, %v4329
    %v5674 = vpack.c.b16 %v4358, %v4330
    %v5675 = vpack.c.b16 %v4359, %v4331
    %v5676 = vpack.c.b16 %v4360, %v4332
    %v5677 = vpack.c.b16 %v4389, %v4361
    %v5678 = vpack.c.b16 %v4390, %v4362
    %v5679 = vpack.c.b16 %v4391, %v4363
    %v5680 = vpack.c.b16 %v4392, %v4364
    %v5681 = vpack.c.b16 %v4393, %v4365
    %v5682 = vpack.c.b16 %v4394, %v4366
    %v5683 = vpack.c.b16 %v4395, %v4367
    %v5684 = vpack.c.b16 %v4396, %v4368
    %v5685 = vpack.c.b16 %v4397, %v4369
    %v5686 = vpack.c.b16 %v4398, %v4370
    %v5687 = vpack.c.b16 %v4399, %v4371
    %v5688 = vpack.c.b16 %v4400, %v4372
    %v5689 = vpack.c.b16 %v4401, %v4373
    %v5690 = vpack.c.b16 %v4402, %v4374
    %v5691 = vpack.c.b16 %v4403, %v4375
    %v5692 = vpack.c.b16 %v4404, %v4376
    %v5693 = vpack.c.b16 %v4405, %v4377
    %v5694 = vpack.c.b16 %v4406, %v4378
    %v5695 = vpack.c.b16 %v4407, %v4379
    %v5696 = vpack.c.b16 %v4408, %v4380
    %v5697 = vpack.c.b16 %v4409, %v4381
    %v5698 = vpack.c.b16 %v4410, %v4382
    %v5699 = vpack.c.b16 %v4411, %v4383
    %v5700 = vpack.c.b16 %v4412, %v4384
    %v5701 = vpack.c.b16 %v4413, %v4385
    %v5702 = vpack.c.b16 %v4414, %v4386
    %v5703 = vpack.c.b16 %v4415, %v4387
    %v5704 = vpack.c.b16 %v4416, %v4388
    %v5705 = vpack.c.b16 %v4445, %v4417
    %v5706 = vpack.c.b16 %v4446, %v4418
    %v5707 = vpack.c.b16 %v4447, %v4419
    %v5708 = vpack.c.b16 %v4448, %v4420
    %v5709 = vpack.c.b16 %v4449, %v4421
    %v5710 = vpack.c.b16 %v4450, %v4422
    %v5711 = vpack.c.b16 %v4451, %v4423
    %v5712 = vpack.c.b16 %v4452, %v4424
    %v5713 = vpack.c.b16 %v4453, %v4425
    %v5714 = vpack.c.b16 %v4454, %v4426
    %v5715 = vpack.c.b16 %v4455, %v4427
    %v5716 = vpack.c.b16 %v4456, %v4428
    %v5717 = vpack.c.b16 %v4457, %v4429
    %v5718 = vpack.c.b16 %v4458, %v4430
    %v5719 = vpack.c.b16 %v4459, %v4431
    %v5720 = vpack.c.b16 %v4460, %v4432
    %v5721 = vpack.c.b16 %v4461, %v4433
    %v5722 = vpack.c.b16 %v4462, %v4434
    %v5723 = vpack.c.b16 %v4463, %v4435
    %v5724 = vpack.c.b16 %v4464, %v4436
    %v5725 = vpack.c.b16 %v4465, %v4437
    %v5726 = vpack.c.b16 %v4466, %v4438
    %v5727 = vpack.c.b16 %v4467, %v4439
    %v5728 = vpack.c.b16 %v4468, %v4440
    %v5729 = vpack.c.b16 %v4469, %v4441
    %v5730 = vpack.c.b16 %v4470, %v4442
    %v5731 = vpack.c.b16 %v4471, %v4443
    %v5732 = vpack.c.b16 %v4472, %v4444
    %v5733 = vpack.c.b16 %v4501, %v4473
    %v5734 = vpack.c.b16 %v4502, %v4474
    %v5735 = vpack.c.b16 %v4503, %v4475
    %v5736 = vpack.c.b16 %v4504, %v4476
    %v5737 = vpack.c.b16 %v4505, %v4477
    %v5738 = vpack.c.b16 %v4506, %v4478
    %v5739 = vpack.c.b16 %v4507, %v4479
    %v5740 = vpack.c.b16 %v4508, %v4480
    %v5741 = vpack.c.b16 %v4509, %v4481
    %v5742 = vpack.c.b16 %v4510, %v4482
    %v5743 = vpack.c.b16 %v4511, %v4483
    %v5744 = vpack.c.b16 %v4512, %v4484
    %v5745 = vpack.c.b16 %v4513, %v4485
    %v5746 = vpack.c.b16 %v4514, %v4486
    %v5747 = vpack.c.b16 %v4515, %v4487
    %v5748 = vpack.c.b16 %v4516, %v4488
    %v5749 = vpack.c.b16 %v4517, %v4489
    %v5750 = vpack.c.b16 %v4518, %v4490
    %v5751 = vpack.c.b16 %v4519, %v4491
    %v5752 = vpack.c.b16 %v4520, %v4492
    %v5753 = vpack.c.b16 %v4521, %v4493
    %v5754 = vpack.c.b16 %v4522, %v4494
    %v5755 = vpack.c.b16 %v4523, %v4495
    %v5756 = vpack.c.b16 %v4524, %v4496
    %v5757 = vpack.c.b16 %v4525, %v4497
    %v5758 = vpack.c.b16 %v4526, %v4498
    %v5759 = vpack.c.b16 %v4527, %v4499
    %v5760 = vpack.c.b16 %v4528, %v4500
    %v5761 = vpack.c.b16 %v4557, %v4529
    %v5762 = vpack.c.b16 %v4558, %v4530
    %v5763 = vpack.c.b16 %v4559, %v4531
    %v5764 = vpack.c.b16 %v4560, %v4532
    %v5765 = vpack.c.b16 %v4561, %v4533
    %v5766 = vpack.c.b16 %v4562, %v4534
    %v5767 = vpack.c.b16 %v4563, %v4535
    %v5768 = vpack.c.b16 %v4564, %v4536
    %v5769 = vpack.c.b16 %v4565, %v4537
    %v5770 = vpack.c.b16 %v4566, %v4538
    %v5771 = vpack.c.b16 %v4567, %v4539
    %v5772 = vpack.c.b16 %v4568, %v4540
    %v5773 = vpack.c.b16 %v4569, %v4541
    %v5774 = vpack.c.b16 %v4570, %v4542
    %v5775 = vpack.c.b16 %v4571, %v4543
    %v5776 = vpack.c.b16 %v4572, %v4544
    %v5777 = vpack.c.b16 %v4573, %v4545
    %v5778 = vpack.c.b16 %v4574, %v4546
    %v5779 = vpack.c.b16 %v4575, %v4547
    %v5780 = vpack.c.b16 %v4576, %v4548
    %v5781 = vpack.c.b16 %v4577, %v4549
    %v5782 = vpack.c.b16 %v4578, %v4550
    %v5783 = vpack.c.b16 %v4579, %v4551
    %v5784 = vpack.c.b16 %v4580, %v4552
    %v5785 = vpack.c.b16 %v4581, %v4553
    %v5786 = vpack.c.b16 %v4582, %v4554
    %v5787 = vpack.c.b16 %v4583, %v4555
    %v5788 = vpack.c.b16 %v4584, %v4556
    %v5789 = vpack.c.b16 %v4613, %v4585
    %v5790 = vpack.c.b16 %v4614, %v4586
    %v5791 = vpack.c.b16 %v4615, %v4587
    %v5792 = vpack.c.b16 %v4616, %v4588
    %v5793 = vpack.c.b16 %v4617, %v4589
    %v5794 = vpack.c.b16 %v4618, %v4590
    %v5795 = vpack.c.b16 %v4619, %v4591
    %v5796 = vpack.c.b16 %v4620, %v4592
    %v5797 = vpack.c.b16 %v4621, %v4593
    %v5798 = vpack.c.b16 %v4622, %v4594
    %v5799 = vpack.c.b16 %v4623, %v4595
    %v5800 = vpack.c.b16 %v4624, %v4596
    %v5801 = vpack.c.b16 %v4625, %v4597
    %v5802 = vpack.c.b16 %v4626, %v4598
    %v5803 = vpack.c.b16 %v4627, %v4599
    %v5804 = vpack.c.b16 %v4628, %v4600
    %v5805 = vpack.c.b16 %v4629, %v4601
    %v5806 = vpack.c.b16 %v4630, %v4602
    %v5807 = vpack.c.b16 %v4631, %v4603
    %v5808 = vpack.c.b16 %v4632, %v4604
    %v5809 = vpack.c.b16 %v4633, %v4605
    %v5810 = vpack.c.b16 %v4634, %v4606
    %v5811 = vpack.c.b16 %v4635, %v4607
    %v5812 = vpack.c.b16 %v4636, %v4608
    %v5813 = vpack.c.b16 %v4637, %v4609
    %v5814 = vpack.c.b16 %v4638, %v4610
    %v5815 = vpack.c.b16 %v4639, %v4611
    %v5816 = vpack.c.b16 %v4640, %v4612
    %v5817 = vpack.c.b16 %v4669, %v4641
    %v5818 = vpack.c.b16 %v4670, %v4642
    %v5819 = vpack.c.b16 %v4671, %v4643
    %v5820 = vpack.c.b16 %v4672, %v4644
    %v5821 = vpack.c.b16 %v4673, %v4645
    %v5822 = vpack.c.b16 %v4674, %v4646
    %v5823 = vpack.c.b16 %v4675, %v4647
    %v5824 = vpack.c.b16 %v4676, %v4648
    %v5825 = vpack.c.b16 %v4677, %v4649
    %v5826 = vpack.c.b16 %v4678, %v4650
    %v5827 = vpack.c.b16 %v4679, %v4651
    %v5828 = vpack.c.b16 %v4680, %v4652
    %v5829 = vpack.c.b16 %v4681, %v4653
    %v5830 = vpack.c.b16 %v4682, %v4654
    %v5831 = vpack.c.b16 %v4683, %v4655
    %v5832 = vpack.c.b16 %v4684, %v4656
    %v5833 = vpack.c.b16 %v4685, %v4657
    %v5834 = vpack.c.b16 %v4686, %v4658
    %v5835 = vpack.c.b16 %v4687, %v4659
    %v5836 = vpack.c.b16 %v4688, %v4660
    %v5837 = vpack.c.b16 %v4689, %v4661
    %v5838 = vpack.c.b16 %v4690, %v4662
    %v5839 = vpack.c.b16 %v4691, %v4663
    %v5840 = vpack.c.b16 %v4692, %v4664
    %v5841 = vpack.c.b16 %v4693, %v4665
    %v5842 = vpack.c.b16 %v4694, %v4666
    %v5843 = vpack.c.b16 %v4695, %v4667
    %v5844 = vpack.c.b16 %v4696, %v4668
    %v5845 = vpack.c.b16 %v4725, %v4697
    %v5846 = vpack.c.b16 %v4726, %v4698
    %v5847 = vpack.c.b16 %v4727, %v4699
    %v5848 = vpack.c.b16 %v4728, %v4700
    %v5849 = vpack.c.b16 %v4729, %v4701
    %v5850 = vpack.c.b16 %v4730, %v4702
    %v5851 = vpack.c.b16 %v4731, %v4703
    %v5852 = vpack.c.b16 %v4732, %v4704
    %v5853 = vpack.c.b16 %v4733, %v4705
    %v5854 = vpack.c.b16 %v4734, %v4706
    %v5855 = vpack.c.b16 %v4735, %v4707
    %v5856 = vpack.c.b16 %v4736, %v4708
    %v5857 = vpack.c.b16 %v4737, %v4709
    %v5858 = vpack.c.b16 %v4738, %v4710
    %v5859 = vpack.c.b16 %v4739, %v4711
    %v5860 = vpack.c.b16 %v4740, %v4712
    %v5861 = vpack.c.b16 %v4741, %v4713
    %v5862 = vpack.c.b16 %v4742, %v4714
    %v5863 = vpack.c.b16 %v4743, %v4715
    %v5864 = vpack.c.b16 %v4744, %v4716
    %v5865 = vpack.c.b16 %v4745, %v4717
    %v5866 = vpack.c.b16 %v4746, %v4718
    %v5867 = vpack.c.b16 %v4747, %v4719
    %v5868 = vpack.c.b16 %v4748, %v4720
    %v5869 = vpack.c.b16 %v4749, %v4721
    %v5870 = vpack.c.b16 %v4750, %v4722
    %v5871 = vpack.c.b16 %v4751, %v4723
    %v5872 = vpack.c.b16 %v4752, %v4724
    %v5873 = vpack.c.b16 %v4781, %v4753
    %v5874 = vpack.c.b16 %v4782, %v4754
    %v5875 = vpack.c.b16 %v4783, %v4755
    %v5876 = vpack.c.b16 %v4784, %v4756
    %v5877 = vpack.c.b16 %v4785, %v4757
    %v5878 = vpack.c.b16 %v4786, %v4758
    %v5879 = vpack.c.b16 %v4787, %v4759
    %v5880 = vpack.c.b16 %v4788, %v4760
    %v5881 = vpack.c.b16 %v4789, %v4761
    %v5882 = vpack.c.b16 %v4790, %v4762
    %v5883 = vpack.c.b16 %v4791, %v4763
    %v5884 = vpack.c.b16 %v4792, %v4764
    %v5885 = vpack.c.b16 %v4793, %v4765
    %v5886 = vpack.c.b16 %v4794, %v4766
    %v5887 = vpack.c.b16 %v4795, %v4767
    %v5888 = vpack.c.b16 %v4796, %v4768
    %v5889 = vpack.c.b16 %v4797, %v4769
    %v5890 = vpack.c.b16 %v4798, %v4770
    %v5891 = vpack.c.b16 %v4799, %v4771
    %v5892 = vpack.c.b16 %v4800, %v4772
    %v5893 = vpack.c.b16 %v4801, %v4773
    %v5894 = vpack.c.b16 %v4802, %v4774
    %v5895 = vpack.c.b16 %v4803, %v4775
    %v5896 = vpack.c.b16 %v4804, %v4776
    %v5897 = vpack.c.b16 %v4805, %v4777
    %v5898 = vpack.c.b16 %v4806, %v4778
    %v5899 = vpack.c.b16 %v4807, %v4779
    %v5900 = vpack.c.b16 %v4808, %v4780
    %v5901 = vpack.c.b16 %v4837, %v4809
    %v5902 = vpack.c.b16 %v4838, %v4810
    %v5903 = vpack.c.b16 %v4839, %v4811
    %v5904 = vpack.c.b16 %v4840, %v4812
    %v5905 = vpack.c.b16 %v4841, %v4813
    %v5906 = vpack.c.b16 %v4842, %v4814
    %v5907 = vpack.c.b16 %v4843, %v4815
    %v5908 = vpack.c.b16 %v4844, %v4816
    %v5909 = vpack.c.b16 %v4845, %v4817
    %v5910 = vpack.c.b16 %v4846, %v4818
    %v5911 = vpack.c.b16 %v4847, %v4819
    %v5912 = vpack.c.b16 %v4848, %v4820
    %v5913 = vpack.c.b16 %v4849, %v4821
    %v5914 = vpack.c.b16 %v4850, %v4822
    %v5915 = vpack.c.b16 %v4851, %v4823
    %v5916 = vpack.c.b16 %v4852, %v4824
    %v5917 = vpack.c.b16 %v4853, %v4825
    %v5918 = vpack.c.b16 %v4854, %v4826
    %v5919 = vpack.c.b16 %v4855, %v4827
    %v5920 = vpack.c.b16 %v4856, %v4828
    %v5921 = vpack.c.b16 %v4857, %v4829
    %v5922 = vpack.c.b16 %v4858, %v4830
    %v5923 = vpack.c.b16 %v4859, %v4831
    %v5924 = vpack.c.b16 %v4860, %v4832
    %v5925 = vpack.c.b16 %v4861, %v4833
    %v5926 = vpack.c.b16 %v4862, %v4834
    %v5927 = vpack.c.b16 %v4863, %v4835
    %v5928 = vpack.c.b16 %v4864, %v4836
    %v5929 = vpack.c.b16 %v4893, %v4865
    %v5930 = vpack.c.b16 %v4894, %v4866
    %v5931 = vpack.c.b16 %v4895, %v4867
    %v5932 = vpack.c.b16 %v4896, %v4868
    %v5933 = vpack.c.b16 %v4897, %v4869
    %v5934 = vpack.c.b16 %v4898, %v4870
    %v5935 = vpack.c.b16 %v4899, %v4871
    %v5936 = vpack.c.b16 %v4900, %v4872
    %v5937 = vpack.c.b16 %v4901, %v4873
    %v5938 = vpack.c.b16 %v4902, %v4874
    %v5939 = vpack.c.b16 %v4903, %v4875
    %v5940 = vpack.c.b16 %v4904, %v4876
    %v5941 = vpack.c.b16 %v4905, %v4877
    %v5942 = vpack.c.b16 %v4906, %v4878
    %v5943 = vpack.c.b16 %v4907, %v4879
    %v5944 = vpack.c.b16 %v4908, %v4880
    %v5945 = vpack.c.b16 %v4909, %v4881
    %v5946 = vpack.c.b16 %v4910, %v4882
    %v5947 = vpack.c.b16 %v4911, %v4883
    %v5948 = vpack.c.b16 %v4912, %v4884
    %v5949 = vpack.c.b16 %v4913, %v4885
    %v5950 = vpack.c.b16 %v4914, %v4886
    %v5951 = vpack.c.b16 %v4915, %v4887
    %v5952 = vpack.c.b16 %v4916, %v4888
    %v5953 = vpack.c.b16 %v4917, %v4889
    %v5954 = vpack.c.b16 %v4918, %v4890
    %v5955 = vpack.c.b16 %v4919, %v4891
    %v5956 = vpack.c.b16 %v4920, %v4892
    %v5957 = vpack.c.b16 %v4949, %v4921
    %v5958 = vpack.c.b16 %v4950, %v4922
    %v5959 = vpack.c.b16 %v4951, %v4923
    %v5960 = vpack.c.b16 %v4952, %v4924
    %v5961 = vpack.c.b16 %v4953, %v4925
    %v5962 = vpack.c.b16 %v4954, %v4926
    %v5963 = vpack.c.b16 %v4955, %v4927
    %v5964 = vpack.c.b16 %v4956, %v4928
    %v5965 = vpack.c.b16 %v4957, %v4929
    %v5966 = vpack.c.b16 %v4958, %v4930
    %v5967 = vpack.c.b16 %v4959, %v4931
    %v5968 = vpack.c.b16 %v4960, %v4932
    %v5969 = vpack.c.b16 %v4961, %v4933
    %v5970 = vpack.c.b16 %v4962, %v4934
    %v5971 = vpack.c.b16 %v4963, %v4935
    %v5972 = vpack.c.b16 %v4964, %v4936
    %v5973 = vpack.c.b16 %v4965, %v4937
    %v5974 = vpack.c.b16 %v4966, %v4938
    %v5975 = vpack.c.b16 %v4967, %v4939
    %v5976 = vpack.c.b16 %v4968, %v4940
    %v5977 = vpack.c.b16 %v4969, %v4941
    %v5978 = vpack.c.b16 %v4970, %v4942
    %v5979 = vpack.c.b16 %v4971, %v4943
    %v5980 = vpack.c.b16 %v4972, %v4944
    %v5981 = vpack.c.b16 %v4973, %v4945
    %v5982 = vpack.c.b16 %v4974, %v4946
    %v5983 = vpack.c.b16 %v4975, %v4947
    %v5984 = vpack.c.b16 %v4976, %v4948
    %v5985 = vpack.c.b16 %v5005, %v4977
    %v5986 = vpack.c.b16 %v5006, %v4978
    %v5987 = vpack.c.b16 %v5007, %v4979
    %v5988 = vpack.c.b16 %v5008, %v4980
    %v5989 = vpack.c.b16 %v5009, %v4981
    %v5990 = vpack.c.b16 %v5010, %v4982
    %v5991 = vpack.c.b16 %v5011, %v4983
    %v5992 = vpack.c.b16 %v5012, %v4984
    %v5993 = vpack.c.b16 %v5013, %v4985
    %v5994 = vpack.c.b16 %v5014, %v4986
    %v5995 = vpack.c.b16 %v5015, %v4987
    %v5996 = vpack.c.b16 %v5016, %v4988
    %v5997 = vpack.c.b16 %v5017, %v4989
    %v5998 = vpack.c.b16 %v5018, %v4990
    %v5999 = vpack.c.b16 %v5019, %v4991
    %v6000 = vpack.c.b16 %v5020, %v4992
    %v6001 = vpack.c.b16 %v5021, %v4993
    %v6002 = vpack.c.b16 %v5022, %v4994
    %v6003 = vpack.c.b16 %v5023, %v4995
    %v6004 = vpack.c.b16 %v5024, %v4996
    %v6005 = vpack.c.b16 %v5025, %v4997
    %v6006 = vpack.c.b16 %v5026, %v4998
    %v6007 = vpack.c.b16 %v5027, %v4999
    %v6008 = vpack.c.b16 %v5028, %v5000
    %v6009 = vpack.c.b16 %v5029, %v5001
    %v6010 = vpack.c.b16 %v5030, %v5002
    %v6011 = vpack.c.b16 %v5031, %v5003
    %v6012 = vpack.c.b16 %v5032, %v5004
    %v6013 = vpack.c.b16 %v5061, %v5033
    %v6014 = vpack.c.b16 %v5062, %v5034
    %v6015 = vpack.c.b16 %v5063, %v5035
    %v6016 = vpack.c.b16 %v5064, %v5036
    %v6017 = vpack.c.b16 %v5065, %v5037
    %v6018 = vpack.c.b16 %v5066, %v5038
    %v6019 = vpack.c.b16 %v5067, %v5039
    %v6020 = vpack.c.b16 %v5068, %v5040
    %v6021 = vpack.c.b16 %v5069, %v5041
    %v6022 = vpack.c.b16 %v5070, %v5042
    %v6023 = vpack.c.b16 %v5071, %v5043
    %v6024 = vpack.c.b16 %v5072, %v5044
    %v6025 = vpack.c.b16 %v5073, %v5045
    %v6026 = vpack.c.b16 %v5074, %v5046
    %v6027 = vpack.c.b16 %v5075, %v5047
    %v6028 = vpack.c.b16 %v5076, %v5048
    %v6029 = vpack.c.b16 %v5077, %v5049
    %v6030 = vpack.c.b16 %v5078, %v5050
    %v6031 = vpack.c.b16 %v5079, %v5051
    %v6032 = vpack.c.b16 %v5080, %v5052
    %v6033 = vpack.c.b16 %v5081, %v5053
    %v6034 = vpack.c.b16 %v5082, %v5054
    %v6035 = vpack.c.b16 %v5083, %v5055
    %v6036 = vpack.c.b16 %v5084, %v5056
    %v6037 = vpack.c.b16 %v5085, %v5057
    %v6038 = vpack.c.b16 %v5086, %v5058
    %v6039 = vpack.c.b16 %v5087, %v5059
    %v6040 = vpack.c.b16 %v5088, %v5060
    %v6041 = vpack.c.b16 %v5117, %v5089
    %v6042 = vpack.c.b16 %v5118, %v5090
    %v6043 = vpack.c.b16 %v5119, %v5091
    %v6044 = vpack.c.b16 %v5120, %v5092
    %v6045 = vpack.c.b16 %v5121, %v5093
    %v6046 = vpack.c.b16 %v5122, %v5094
    %v6047 = vpack.c.b16 %v5123, %v5095
    %v6048 = vpack.c.b16 %v5124, %v5096
    %v6049 = vpack.c.b16 %v5125, %v5097
    %v6050 = vpack.c.b16 %v5126, %v5098
    %v6051 = vpack.c.b16 %v5127, %v5099
    %v6052 = vpack.c.b16 %v5128, %v5100
    %v6053 = vpack.c.b16 %v5129, %v5101
    %v6054 = vpack.c.b16 %v5130, %v5102
    %v6055 = vpack.c.b16 %v5131, %v5103
    %v6056 = vpack.c.b16 %v5132, %v5104
    %v6057 = vpack.c.b16 %v5133, %v5105
    %v6058 = vpack.c.b16 %v5134, %v5106
    %v6059 = vpack.c.b16 %v5135, %v5107
    %v6060 = vpack.c.b16 %v5136, %v5108
    %v6061 = vpack.c.b16 %v5137, %v5109
    %v6062 = vpack.c.b16 %v5138, %v5110
    %v6063 = vpack.c.b16 %v5139, %v5111
    %v6064 = vpack.c.b16 %v5140, %v5112
    %v6065 = vpack.c.b16 %v5141, %v5113
    %v6066 = vpack.c.b16 %v5142, %v5114
    %v6067 = vpack.c.b16 %v5143, %v5115
    %v6068 = vpack.c.b16 %v5144, %v5116
    %v6069 = vpack.c.b16 %v5173, %v5145
    %v6070 = vpack.c.b16 %v5174, %v5146
    %v6071 = vpack.c.b16 %v5175, %v5147
    %v6072 = vpack.c.b16 %v5176, %v5148
    %v6073 = vpack.c.b16 %v5177, %v5149
    %v6074 = vpack.c.b16 %v5178, %v5150
    %v6075 = vpack.c.b16 %v5179, %v5151
    %v6076 = vpack.c.b16 %v5180, %v5152
    %v6077 = vpack.c.b16 %v5181, %v5153
    %v6078 = vpack.c.b16 %v5182, %v5154
    %v6079 = vpack.c.b16 %v5183, %v5155
    %v6080 = vpack.c.b16 %v5184, %v5156
    %v6081 = vpack.c.b16 %v5185, %v5157
    %v6082 = vpack.c.b16 %v5186, %v5158
    %v6083 = vpack.c.b16 %v5187, %v5159
    %v6084 = vpack.c.b16 %v5188, %v5160
    %v6085 = vpack.c.b16 %v5189, %v5161
    %v6086 = vpack.c.b16 %v5190, %v5162
    %v6087 = vpack.c.b16 %v5191, %v5163
    %v6088 = vpack.c.b16 %v5192, %v5164
    %v6089 = vpack.c.b16 %v5193, %v5165
    %v6090 = vpack.c.b16 %v5194, %v5166
    %v6091 = vpack.c.b16 %v5195, %v5167
    %v6092 = vpack.c.b16 %v5196, %v5168
    %v6093 = vpack.c.b16 %v5197, %v5169
    %v6094 = vpack.c.b16 %v5198, %v5170
    %v6095 = vpack.c.b16 %v5199, %v5171
    %v6096 = vpack.c.b16 %v5200, %v5172
    %6993 = vmatprep.subr.bf16.mxu0 %v5398
    %6994 = vmatpush1.bf16.msra.mxu0 %v5397
    %6995 = vmatprep.subr.bf16.mxu0 %v5370
    %6996 = vmatpush1.bf16.msra.mxu0 %v5369
    %6997 = vmatprep.subr.bf16.mxu0 %v5342
    %6998 = vmatpush1.bf16.msra.mxu0 %v5341
    %6999 = vmatprep.subr.bf16.mxu0 %v5314
    %7000 = vmatpush1.bf16.msra.mxu0 %v5313
    %7001 = vmatprep.subr.bf16.mxu0 %v5286
    %7002 = vmatpush1.bf16.msra.mxu0 %v5285
    %7003 = vmatprep.subr.bf16.mxu0 %v5258
    %7004 = vmatpush1.bf16.msra.mxu0 %v5257
    %7005 = vmatprep.subr.bf16.mxu0 %v5230
    %7006 = vmatpush1.bf16.msra.mxu0 %v5229
    %7007 = vmatprep.subr.bf16.mxu0 %v5202
    %7008 = vmatpush1.bf16.msra.mxu0 %v5201
    %7009 = vmatprep.subr.bf16.mxu0 %v5622
    %7010 = vmatpush2.bf16.msra.mxu0 %v5621
    %7011 = vmatprep.subr.bf16.mxu0 %v5594
    %7012 = vmatpush2.bf16.msra.mxu0 %v5593
    %7013 = vmatprep.subr.bf16.mxu0 %v5566
    %7014 = vmatpush2.bf16.msra.mxu0 %v5565
    %7015 = vmatprep.subr.bf16.mxu0 %v5538
    %7016 = vmatpush2.bf16.msra.mxu0 %v5537
    %7017 = vmatprep.subr.bf16.mxu0 %v5510
    %7018 = vmatpush2.bf16.msra.mxu0 %v5509
    %7019 = vmatprep.subr.bf16.mxu0 %v5482
    %7020 = vmatpush2.bf16.msra.mxu0 %v5481
    %7021 = vmatprep.subr.bf16.mxu0 %v5454
    %7022 = vmatpush2.bf16.msra.mxu0 %v5453
    %7023 = vmatprep.subr.bf16.mxu0 %v5426
    %7024 = vmatpush2.bf16.msra.mxu0 %v5425
    %7025 = vmatprep.mubr.bf16.mxu0 %v1462
    %7026 = vmatmul.mubr.bf16.gmra.mxu0 %v1461
    %v7027 = vpop.f32.mrf.mxu0
    %v7028 = vadd.f32 %v2376, %v7027
    %v7029 = vpop.f32.mrf.mxu0
    %v7030 = vadd.f32 %v2380, %v7029
    %v7031 = vpop.f32.mrf.mxu0
    %v7032 = vadd.f32 %v2376, %v7031
    %v7033 = vpop.f32.mrf.mxu0
    %v7034 = vadd.f32 %v2380, %v7033
    %7035 = vmatprep.mubr.bf16.mxu0 %v1466
    %7036 = vmatmul.mubr.bf16.gmra.mxu0 %v1465
    %v7037 = vpop.f32.mrf.mxu0
    %v7038 = vadd.f32 %v2376, %v7037
    %v7039 = vpop.f32.mrf.mxu0
    %v7040 = vadd.f32 %v2380, %v7039
    %v7041 = vpop.f32.mrf.mxu0
    %v7042 = vpop.f32.mrf.mxu0
    %7043 = vdwg.mxu0
    %7044 = vmatprep.subr.bf16.mxu0 %v5846
    %7045 = vmatpush1.bf16.msra.mxu0 %v5845
    %7046 = vmatprep.subr.bf16.mxu0 %v5818
    %7047 = vmatpush1.bf16.msra.mxu0 %v5817
    %7048 = vmatprep.subr.bf16.mxu0 %v5790
    %7049 = vmatpush1.bf16.msra.mxu0 %v5789
    %7050 = vmatprep.subr.bf16.mxu0 %v5762
    %7051 = vmatpush1.bf16.msra.mxu0 %v5761
    %7052 = vmatprep.subr.bf16.mxu0 %v5734
    %7053 = vmatpush1.bf16.msra.mxu0 %v5733
    %7054 = vmatprep.subr.bf16.mxu0 %v5706
    %7055 = vmatpush1.bf16.msra.mxu0 %v5705
    %7056 = vmatprep.subr.bf16.mxu0 %v5678
    %7057 = vmatpush1.bf16.msra.mxu0 %v5677
    %7058 = vmatprep.subr.bf16.mxu0 %v5650
    %7059 = vmatpush1.bf16.msra.mxu0 %v5649
    %7060 = vmatprep.subr.bf16.mxu0 %v6070
    %7061 = vmatpush2.bf16.msra.mxu0 %v6069
    %7062 = vmatprep.subr.bf16.mxu0 %v6042
    %7063 = vmatpush2.bf16.msra.mxu0 %v6041
    %7064 = vmatprep.subr.bf16.mxu0 %v6014
    %7065 = vmatpush2.bf16.msra.mxu0 %v6013
    %7066 = vmatprep.subr.bf16.mxu0 %v5986
    %7067 = vmatpush2.bf16.msra.mxu0 %v5985
    %7068 = vmatprep.subr.bf16.mxu0 %v5958
    %7069 = vmatpush2.bf16.msra.mxu0 %v5957
    %7070 = vmatprep.subr.bf16.mxu0 %v5930
    %7071 = vmatpush2.bf16.msra.mxu0 %v5929
    %7072 = vmatprep.subr.bf16.mxu0 %v5902
    %7073 = vmatpush2.bf16.msra.mxu0 %v5901
    %7074 = vmatprep.subr.bf16.mxu0 %v5874
    %7075 = vmatpush2.bf16.msra.mxu0 %v5873
    %7076 = vmatprep.mubr.bf16.mxu0 %v1464
    %7077 = vmatmul.mubr.bf16.gmra.mxu0 %v1463
    %v7078 = vpop.f32.mrf.mxu0
    %v7079 = vadd.f32 %v7028, %v7078
    %v7080 = vpop.f32.mrf.mxu0
    %v7081 = vadd.f32 %v7030, %v7080
    %v7082 = vpop.f32.mrf.mxu0
    %v7083 = vadd.f32 %v7032, %v7082
    %v7084 = vpop.f32.mrf.mxu0
    %v7085 = vadd.f32 %v7034, %v7084
    %7086 = vmatprep.mubr.bf16.mxu0 %v1468
    %7087 = vmatmul.mubr.bf16.gmra.mxu0 %v1467
    %v7088 = vpop.f32.mrf.mxu0
    %v7089 = vadd.f32 %v7038, %v7088
    %v7090 = vpop.f32.mrf.mxu0
    %v7091 = vadd.f32 %v7040, %v7090
    %v7092 = vpop.f32.mrf.mxu0
    %v7093 = vpop.f32.mrf.mxu0
    %7094 = vdwg.mxu0
    %7095 = vmatprep.subr.bf16.mxu0 %v5400
    %7096 = vmatpush1.bf16.msra.mxu0 %v5399
    %7097 = vmatprep.subr.bf16.mxu0 %v5372
    %7098 = vmatpush1.bf16.msra.mxu0 %v5371
    %7099 = vmatprep.subr.bf16.mxu0 %v5344
    %7100 = vmatpush1.bf16.msra.mxu0 %v5343
    %7101 = vmatprep.subr.bf16.mxu0 %v5316
    %7102 = vmatpush1.bf16.msra.mxu0 %v5315
    %7103 = vmatprep.subr.bf16.mxu0 %v5288
    %7104 = vmatpush1.bf16.msra.mxu0 %v5287
    %7105 = vmatprep.subr.bf16.mxu0 %v5260
    %7106 = vmatpush1.bf16.msra.mxu0 %v5259
    %7107 = vmatprep.subr.bf16.mxu0 %v5232
    %7108 = vmatpush1.bf16.msra.mxu0 %v5231
    %7109 = vmatprep.subr.bf16.mxu0 %v5204
    %7110 = vmatpush1.bf16.msra.mxu0 %v5203
    %7111 = vmatprep.subr.bf16.mxu0 %v5624
    %7112 = vmatpush2.bf16.msra.mxu0 %v5623
    %7113 = vmatprep.subr.bf16.mxu0 %v5596
    %7114 = vmatpush2.bf16.msra.mxu0 %v5595
    %7115 = vmatprep.subr.bf16.mxu0 %v5568
    %7116 = vmatpush2.bf16.msra.mxu0 %v5567
    %7117 = vmatprep.subr.bf16.mxu0 %v5540
    %7118 = vmatpush2.bf16.msra.mxu0 %v5539
    %7119 = vmatprep.subr.bf16.mxu0 %v5512
    %7120 = vmatpush2.bf16.msra.mxu0 %v5511
    %7121 = vmatprep.subr.bf16.mxu0 %v5484
    %7122 = vmatpush2.bf16.msra.mxu0 %v5483
    %7123 = vmatprep.subr.bf16.mxu0 %v5456
    %7124 = vmatpush2.bf16.msra.mxu0 %v5455
    %7125 = vmatprep.subr.bf16.mxu0 %v5428
    %7126 = vmatpush2.bf16.msra.mxu0 %v5427
    %7127 = vmatprep.mubr.bf16.mxu0 %v1462
    %7128 = vmatmul.mubr.bf16.gmra.mxu0 %v1461
    %v7129 = vpop.f32.mrf.mxu0
    %v7130 = vadd.f32 %v2384, %v7129
    %v7131 = vpop.f32.mrf.mxu0
    %v7132 = vadd.f32 %v2388, %v7131
    %v7133 = vpop.f32.mrf.mxu0
    %v7134 = vadd.f32 %v2384, %v7133
    %v7135 = vpop.f32.mrf.mxu0
    %v7136 = vadd.f32 %v2388, %v7135
    %7137 = vmatprep.mubr.bf16.mxu0 %v1466
    %7138 = vmatmul.mubr.bf16.gmra.mxu0 %v1465
    %v7139 = vpop.f32.mrf.mxu0
    %v7140 = vadd.f32 %v2384, %v7139
    %v7141 = vpop.f32.mrf.mxu0
    %v7142 = vadd.f32 %v2388, %v7141
    %v7143 = vpop.f32.mrf.mxu0
    %v7144 = vpop.f32.mrf.mxu0
    %7145 = vdwg.mxu0
    %7146 = vmatprep.subr.bf16.mxu0 %v5848
    %7147 = vmatpush1.bf16.msra.mxu0 %v5847
    %7148 = vmatprep.subr.bf16.mxu0 %v5820
    %7149 = vmatpush1.bf16.msra.mxu0 %v5819
    %7150 = vmatprep.subr.bf16.mxu0 %v5792
    %7151 = vmatpush1.bf16.msra.mxu0 %v5791
    %7152 = vmatprep.subr.bf16.mxu0 %v5764
    %7153 = vmatpush1.bf16.msra.mxu0 %v5763
    %7154 = vmatprep.subr.bf16.mxu0 %v5736
    %7155 = vmatpush1.bf16.msra.mxu0 %v5735
    %7156 = vmatprep.subr.bf16.mxu0 %v5708
    %7157 = vmatpush1.bf16.msra.mxu0 %v5707
    %7158 = vmatprep.subr.bf16.mxu0 %v5680
    %7159 = vmatpush1.bf16.msra.mxu0 %v5679
    %7160 = vmatprep.subr.bf16.mxu0 %v5652
    %7161 = vmatpush1.bf16.msra.mxu0 %v5651
    %7162 = vmatprep.subr.bf16.mxu0 %v6072
    %7163 = vmatpush2.bf16.msra.mxu0 %v6071
    %7164 = vmatprep.subr.bf16.mxu0 %v6044
    %7165 = vmatpush2.bf16.msra.mxu0 %v6043
    %7166 = vmatprep.subr.bf16.mxu0 %v6016
    %7167 = vmatpush2.bf16.msra.mxu0 %v6015
    %7168 = vmatprep.subr.bf16.mxu0 %v5988
    %7169 = vmatpush2.bf16.msra.mxu0 %v5987
    %7170 = vmatprep.subr.bf16.mxu0 %v5960
    %7171 = vmatpush2.bf16.msra.mxu0 %v5959
    %7172 = vmatprep.subr.bf16.mxu0 %v5932
    %7173 = vmatpush2.bf16.msra.mxu0 %v5931
    %7174 = vmatprep.subr.bf16.mxu0 %v5904
    %7175 = vmatpush2.bf16.msra.mxu0 %v5903
    %7176 = vmatprep.subr.bf16.mxu0 %v5876
    %7177 = vmatpush2.bf16.msra.mxu0 %v5875
    %7178 = vmatprep.mubr.bf16.mxu0 %v1464
    %7179 = vmatmul.mubr.bf16.gmra.mxu0 %v1463
    %v7180 = vpop.f32.mrf.mxu0
    %v7181 = vadd.f32 %v7130, %v7180
    %v7182 = vpop.f32.mrf.mxu0
    %v7183 = vadd.f32 %v7132, %v7182
    %v7184 = vpop.f32.mrf.mxu0
    %v7185 = vadd.f32 %v7134, %v7184
    %v7186 = vpop.f32.mrf.mxu0
    %v7187 = vadd.f32 %v7136, %v7186
    %7188 = vmatprep.mubr.bf16.mxu0 %v1468
    %7189 = vmatmul.mubr.bf16.gmra.mxu0 %v1467
    %v7190 = vpop.f32.mrf.mxu0
    %v7191 = vadd.f32 %v7140, %v7190
    %v7192 = vpop.f32.mrf.mxu0
    %v7193 = vadd.f32 %v7142, %v7192
    %v7194 = vpop.f32.mrf.mxu0
    %v7195 = vpop.f32.mrf.mxu0
    %7196 = vdwg.mxu0
    %7197 = vmatprep.subr.bf16.mxu0 %v5402
    %7198 = vmatpush1.bf16.msra.mxu0 %v5401
    %7199 = vmatprep.subr.bf16.mxu0 %v5374
    %7200 = vmatpush1.bf16.msra.mxu0 %v5373
    %7201 = vmatprep.subr.bf16.mxu0 %v5346
    %7202 = vmatpush1.bf16.msra.mxu0 %v5345
    %7203 = vmatprep.subr.bf16.mxu0 %v5318
    %7204 = vmatpush1.bf16.msra.mxu0 %v5317
    %7205 = vmatprep.subr.bf16.mxu0 %v5290
    %7206 = vmatpush1.bf16.msra.mxu0 %v5289
    %7207 = vmatprep.subr.bf16.mxu0 %v5262
    %7208 = vmatpush1.bf16.msra.mxu0 %v5261
    %7209 = vmatprep.subr.bf16.mxu0 %v5234
    %7210 = vmatpush1.bf16.msra.mxu0 %v5233
    %7211 = vmatprep.subr.bf16.mxu0 %v5206
    %7212 = vmatpush1.bf16.msra.mxu0 %v5205
    %7213 = vmatprep.subr.bf16.mxu0 %v5626
    %7214 = vmatpush2.bf16.msra.mxu0 %v5625
    %7215 = vmatprep.subr.bf16.mxu0 %v5598
    %7216 = vmatpush2.bf16.msra.mxu0 %v5597
    %7217 = vmatprep.subr.bf16.mxu0 %v5570
    %7218 = vmatpush2.bf16.msra.mxu0 %v5569
    %7219 = vmatprep.subr.bf16.mxu0 %v5542
    %7220 = vmatpush2.bf16.msra.mxu0 %v5541
    %7221 = vmatprep.subr.bf16.mxu0 %v5514
    %7222 = vmatpush2.bf16.msra.mxu0 %v5513
    %7223 = vmatprep.subr.bf16.mxu0 %v5486
    %7224 = vmatpush2.bf16.msra.mxu0 %v5485
    %7225 = vmatprep.subr.bf16.mxu0 %v5458
    %7226 = vmatpush2.bf16.msra.mxu0 %v5457
    %7227 = vmatprep.subr.bf16.mxu0 %v5430
    %7228 = vmatpush2.bf16.msra.mxu0 %v5429
    %7229 = vmatprep.mubr.bf16.mxu0 %v1462
    %7230 = vmatmul.mubr.bf16.gmra.mxu0 %v1461
    %v7231 = vpop.f32.mrf.mxu0
    %v7232 = vadd.f32 %v2392, %v7231
    %v7233 = vpop.f32.mrf.mxu0
    %v7234 = vadd.f32 %v2396, %v7233
    %v7235 = vpop.f32.mrf.mxu0
    %v7236 = vadd.f32 %v2392, %v7235
    %v7237 = vpop.f32.mrf.mxu0
    %v7238 = vadd.f32 %v2396, %v7237
    %7239 = vmatprep.mubr.bf16.mxu0 %v1466
    %7240 = vmatmul.mubr.bf16.gmra.mxu0 %v1465
    %v7241 = vpop.f32.mrf.mxu0
    %v7242 = vadd.f32 %v2392, %v7241
    %v7243 = vpop.f32.mrf.mxu0
    %v7244 = vadd.f32 %v2396, %v7243
    %v7245 = vpop.f32.mrf.mxu0
    %v7246 = vpop.f32.mrf.mxu0
    %7247 = vdwg.mxu0
    %7248 = vmatprep.subr.bf16.mxu0 %v5850
    %7249 = vmatpush1.bf16.msra.mxu0 %v5849
    %7250 = vmatprep.subr.bf16.mxu0 %v5822
    %7251 = vmatpush1.bf16.msra.mxu0 %v5821
    %7252 = vmatprep.subr.bf16.mxu0 %v5794
    %7253 = vmatpush1.bf16.msra.mxu0 %v5793
    %7254 = vmatprep.subr.bf16.mxu0 %v5766
    %7255 = vmatpush1.bf16.msra.mxu0 %v5765
    %7256 = vmatprep.subr.bf16.mxu0 %v5738
    %7257 = vmatpush1.bf16.msra.mxu0 %v5737
    %7258 = vmatprep.subr.bf16.mxu0 %v5710
    %7259 = vmatpush1.bf16.msra.mxu0 %v5709
    %7260 = vmatprep.subr.bf16.mxu0 %v5682
    %7261 = vmatpush1.bf16.msra.mxu0 %v5681
    %7262 = vmatprep.subr.bf16.mxu0 %v5654
    %7263 = vmatpush1.bf16.msra.mxu0 %v5653
    %7264 = vmatprep.subr.bf16.mxu0 %v6074
    %7265 = vmatpush2.bf16.msra.mxu0 %v6073
    %7266 = vmatprep.subr.bf16.mxu0 %v6046
    %7267 = vmatpush2.bf16.msra.mxu0 %v6045
    %7268 = vmatprep.subr.bf16.mxu0 %v6018
    %7269 = vmatpush2.bf16.msra.mxu0 %v6017
    %7270 = vmatprep.subr.bf16.mxu0 %v5990
    %7271 = vmatpush2.bf16.msra.mxu0 %v5989
    %7272 = vmatprep.subr.bf16.mxu0 %v5962
    %7273 = vmatpush2.bf16.msra.mxu0 %v5961
    %7274 = vmatprep.subr.bf16.mxu0 %v5934
    %7275 = vmatpush2.bf16.msra.mxu0 %v5933
    %7276 = vmatprep.subr.bf16.mxu0 %v5906
    %7277 = vmatpush2.bf16.msra.mxu0 %v5905
    %7278 = vmatprep.subr.bf16.mxu0 %v5878
    %7279 = vmatpush2.bf16.msra.mxu0 %v5877
    %7280 = vmatprep.mubr.bf16.mxu0 %v1464
    %7281 = vmatmul.mubr.bf16.gmra.mxu0 %v1463
    %v7282 = vpop.f32.mrf.mxu0
    %v7283 = vadd.f32 %v7232, %v7282
    %v7284 = vpop.f32.mrf.mxu0
    %v7285 = vadd.f32 %v7234, %v7284
    %v7286 = vpop.f32.mrf.mxu0
    %v7287 = vadd.f32 %v7236, %v7286
    %v7288 = vpop.f32.mrf.mxu0
    %v7289 = vadd.f32 %v7238, %v7288
    %7290 = vmatprep.mubr.bf16.mxu0 %v1468
    %7291 = vmatmul.mubr.bf16.gmra.mxu0 %v1467
    %v7292 = vpop.f32.mrf.mxu0
    %v7293 = vadd.f32 %v7242, %v7292
    %v7294 = vpop.f32.mrf.mxu0
    %v7295 = vadd.f32 %v7244, %v7294
    %v7296 = vpop.f32.mrf.mxu0
    %v7297 = vpop.f32.mrf.mxu0
    %7298 = vdwg.mxu0
    %7299 = vmatprep.subr.bf16.mxu0 %v5404
    %7300 = vmatpush1.bf16.msra.mxu0 %v5403
    %7301 = vmatprep.subr.bf16.mxu0 %v5376
    %7302 = vmatpush1.bf16.msra.mxu0 %v5375
    %7303 = vmatprep.subr.bf16.mxu0 %v5348
    %7304 = vmatpush1.bf16.msra.mxu0 %v5347
    %7305 = vmatprep.subr.bf16.mxu0 %v5320
    %7306 = vmatpush1.bf16.msra.mxu0 %v5319
    %7307 = vmatprep.subr.bf16.mxu0 %v5292
    %7308 = vmatpush1.bf16.msra.mxu0 %v5291
    %7309 = vmatprep.subr.bf16.mxu0 %v5264
    %7310 = vmatpush1.bf16.msra.mxu0 %v5263
    %7311 = vmatprep.subr.bf16.mxu0 %v5236
    %7312 = vmatpush1.bf16.msra.mxu0 %v5235
    %7313 = vmatprep.subr.bf16.mxu0 %v5208
    %7314 = vmatpush1.bf16.msra.mxu0 %v5207
    %7315 = vmatprep.subr.bf16.mxu0 %v5628
    %7316 = vmatpush2.bf16.msra.mxu0 %v5627
    %7317 = vmatprep.subr.bf16.mxu0 %v5600
    %7318 = vmatpush2.bf16.msra.mxu0 %v5599
    %7319 = vmatprep.subr.bf16.mxu0 %v5572
    %7320 = vmatpush2.bf16.msra.mxu0 %v5571
    %7321 = vmatprep.subr.bf16.mxu0 %v5544
    %7322 = vmatpush2.bf16.msra.mxu0 %v5543
    %7323 = vmatprep.subr.bf16.mxu0 %v5516
    %7324 = vmatpush2.bf16.msra.mxu0 %v5515
    %7325 = vmatprep.subr.bf16.mxu0 %v5488
    %7326 = vmatpush2.bf16.msra.mxu0 %v5487
    %7327 = vmatprep.subr.bf16.mxu0 %v5460
    %7328 = vmatpush2.bf16.msra.mxu0 %v5459
    %7329 = vmatprep.subr.bf16.mxu0 %v5432
    %7330 = vmatpush2.bf16.msra.mxu0 %v5431
    %7331 = vmatprep.mubr.bf16.mxu0 %v1462
    %7332 = vmatmul.mubr.bf16.gmra.mxu0 %v1461
    %v7333 = vpop.f32.mrf.mxu0
    %v7334 = vadd.f32 %v2400, %v7333
    %v7335 = vpop.f32.mrf.mxu0
    %v7336 = vadd.f32 %v2404, %v7335
    %v7337 = vpop.f32.mrf.mxu0
    %v7338 = vadd.f32 %v2400, %v7337
    %v7339 = vpop.f32.mrf.mxu0
    %v7340 = vadd.f32 %v2404, %v7339
    %7341 = vmatprep.mubr.bf16.mxu0 %v1466
    %7342 = vmatmul.mubr.bf16.gmra.mxu0 %v1465
    %v7343 = vpop.f32.mrf.mxu0
    %v7344 = vadd.f32 %v2400, %v7343
    %v7345 = vpop.f32.mrf.mxu0
    %v7346 = vadd.f32 %v2404, %v7345
    %v7347 = vpop.f32.mrf.mxu0
    %v7348 = vpop.f32.mrf.mxu0
    %7349 = vdwg.mxu0
    %7350 = vmatprep.subr.bf16.mxu0 %v5852
    %7351 = vmatpush1.bf16.msra.mxu0 %v5851
    %7352 = vmatprep.subr.bf16.mxu0 %v5824
    %7353 = vmatpush1.bf16.msra.mxu0 %v5823
    %7354 = vmatprep.subr.bf16.mxu0 %v5796
    %7355 = vmatpush1.bf16.msra.mxu0 %v5795
    %7356 = vmatprep.subr.bf16.mxu0 %v5768
    %7357 = vmatpush1.bf16.msra.mxu0 %v5767
    %7358 = vmatprep.subr.bf16.mxu0 %v5740
    %7359 = vmatpush1.bf16.msra.mxu0 %v5739
    %7360 = vmatprep.subr.bf16.mxu0 %v5712
    %7361 = vmatpush1.bf16.msra.mxu0 %v5711
    %7362 = vmatprep.subr.bf16.mxu0 %v5684
    %7363 = vmatpush1.bf16.msra.mxu0 %v5683
    %7364 = vmatprep.subr.bf16.mxu0 %v5656
    %7365 = vmatpush1.bf16.msra.mxu0 %v5655
    %7366 = vmatprep.subr.bf16.mxu0 %v6076
    %7367 = vmatpush2.bf16.msra.mxu0 %v6075
    %7368 = vmatprep.subr.bf16.mxu0 %v6048
    %7369 = vmatpush2.bf16.msra.mxu0 %v6047
    %7370 = vmatprep.subr.bf16.mxu0 %v6020
    %7371 = vmatpush2.bf16.msra.mxu0 %v6019
    %7372 = vmatprep.subr.bf16.mxu0 %v5992
    %7373 = vmatpush2.bf16.msra.mxu0 %v5991
    %7374 = vmatprep.subr.bf16.mxu0 %v5964
    %7375 = vmatpush2.bf16.msra.mxu0 %v5963
    %7376 = vmatprep.subr.bf16.mxu0 %v5936
    %7377 = vmatpush2.bf16.msra.mxu0 %v5935
    %7378 = vmatprep.subr.bf16.mxu0 %v5908
    %7379 = vmatpush2.bf16.msra.mxu0 %v5907
    %7380 = vmatprep.subr.bf16.mxu0 %v5880
    %7381 = vmatpush2.bf16.msra.mxu0 %v5879
    %7382 = vmatprep.mubr.bf16.mxu0 %v1464
    %7383 = vmatmul.mubr.bf16.gmra.mxu0 %v1463
    %v7384 = vpop.f32.mrf.mxu0
    %v7385 = vadd.f32 %v7334, %v7384
    %v7386 = vpop.f32.mrf.mxu0
    %v7387 = vadd.f32 %v7336, %v7386
    %v7388 = vpop.f32.mrf.mxu0
    %v7389 = vadd.f32 %v7338, %v7388
    %v7390 = vpop.f32.mrf.mxu0
    %v7391 = vadd.f32 %v7340, %v7390
    %7392 = vmatprep.mubr.bf16.mxu0 %v1468
    %7393 = vmatmul.mubr.bf16.gmra.mxu0 %v1467
    %v7394 = vpop.f32.mrf.mxu0
    %v7395 = vadd.f32 %v7344, %v7394
    %v7396 = vpop.f32.mrf.mxu0
    %v7397 = vadd.f32 %v7346, %v7396
    %v7398 = vpop.f32.mrf.mxu0
    %v7399 = vpop.f32.mrf.mxu0
    %7400 = vdwg.mxu0
    %7401 = vmatprep.subr.bf16.mxu0 %v5406
    %7402 = vmatpush1.bf16.msra.mxu0 %v5405
    %7403 = vmatprep.subr.bf16.mxu0 %v5378
    %7404 = vmatpush1.bf16.msra.mxu0 %v5377
    %7405 = vmatprep.subr.bf16.mxu0 %v5350
    %7406 = vmatpush1.bf16.msra.mxu0 %v5349
    %7407 = vmatprep.subr.bf16.mxu0 %v5322
    %7408 = vmatpush1.bf16.msra.mxu0 %v5321
    %7409 = vmatprep.subr.bf16.mxu0 %v5294
    %7410 = vmatpush1.bf16.msra.mxu0 %v5293
    %7411 = vmatprep.subr.bf16.mxu0 %v5266
    %7412 = vmatpush1.bf16.msra.mxu0 %v5265
    %7413 = vmatprep.subr.bf16.mxu0 %v5238
    %7414 = vmatpush1.bf16.msra.mxu0 %v5237
    %7415 = vmatprep.subr.bf16.mxu0 %v5210
    %7416 = vmatpush1.bf16.msra.mxu0 %v5209
    %7417 = vmatprep.subr.bf16.mxu0 %v5630
    %7418 = vmatpush2.bf16.msra.mxu0 %v5629
    %7419 = vmatprep.subr.bf16.mxu0 %v5602
    %7420 = vmatpush2.bf16.msra.mxu0 %v5601
    %7421 = vmatprep.subr.bf16.mxu0 %v5574
    %7422 = vmatpush2.bf16.msra.mxu0 %v5573
    %7423 = vmatprep.subr.bf16.mxu0 %v5546
    %7424 = vmatpush2.bf16.msra.mxu0 %v5545
    %7425 = vmatprep.subr.bf16.mxu0 %v5518
    %7426 = vmatpush2.bf16.msra.mxu0 %v5517
    %7427 = vmatprep.subr.bf16.mxu0 %v5490
    %7428 = vmatpush2.bf16.msra.mxu0 %v5489
    %7429 = vmatprep.subr.bf16.mxu0 %v5462
    %7430 = vmatpush2.bf16.msra.mxu0 %v5461
    %7431 = vmatprep.subr.bf16.mxu0 %v5434
    %7432 = vmatpush2.bf16.msra.mxu0 %v5433
    %7433 = vmatprep.mubr.bf16.mxu0 %v1462
    %7434 = vmatmul.mubr.bf16.gmra.mxu0 %v1461
    %v7435 = vpop.f32.mrf.mxu0
    %v7436 = vadd.f32 %v2408, %v7435
    %v7437 = vpop.f32.mrf.mxu0
    %v7438 = vadd.f32 %v2412, %v7437
    %v7439 = vpop.f32.mrf.mxu0
    %v7440 = vadd.f32 %v2408, %v7439
    %v7441 = vpop.f32.mrf.mxu0
    %v7442 = vadd.f32 %v2412, %v7441
    %7443 = vmatprep.mubr.bf16.mxu0 %v1466
    %7444 = vmatmul.mubr.bf16.gmra.mxu0 %v1465
    %v7445 = vpop.f32.mrf.mxu0
    %v7446 = vadd.f32 %v2408, %v7445
    %v7447 = vpop.f32.mrf.mxu0
    %v7448 = vadd.f32 %v2412, %v7447
    %v7449 = vpop.f32.mrf.mxu0
    %v7450 = vpop.f32.mrf.mxu0
    %7451 = vdwg.mxu0
    %7452 = vmatprep.subr.bf16.mxu0 %v5854
    %7453 = vmatpush1.bf16.msra.mxu0 %v5853
    %7454 = vmatprep.subr.bf16.mxu0 %v5826
    %7455 = vmatpush1.bf16.msra.mxu0 %v5825
    %7456 = vmatprep.subr.bf16.mxu0 %v5798
    %7457 = vmatpush1.bf16.msra.mxu0 %v5797
    %7458 = vmatprep.subr.bf16.mxu0 %v5770
    %7459 = vmatpush1.bf16.msra.mxu0 %v5769
    %7460 = vmatprep.subr.bf16.mxu0 %v5742
    %7461 = vmatpush1.bf16.msra.mxu0 %v5741
    %7462 = vmatprep.subr.bf16.mxu0 %v5714
    %7463 = vmatpush1.bf16.msra.mxu0 %v5713
    %7464 = vmatprep.subr.bf16.mxu0 %v5686
    %7465 = vmatpush1.bf16.msra.mxu0 %v5685
    %7466 = vmatprep.subr.bf16.mxu0 %v5658
    %7467 = vmatpush1.bf16.msra.mxu0 %v5657
    %7468 = vmatprep.subr.bf16.mxu0 %v6078
    %7469 = vmatpush2.bf16.msra.mxu0 %v6077
    %7470 = vmatprep.subr.bf16.mxu0 %v6050
    %7471 = vmatpush2.bf16.msra.mxu0 %v6049
    %7472 = vmatprep.subr.bf16.mxu0 %v6022
    %7473 = vmatpush2.bf16.msra.mxu0 %v6021
    %7474 = vmatprep.subr.bf16.mxu0 %v5994
    %7475 = vmatpush2.bf16.msra.mxu0 %v5993
    %7476 = vmatprep.subr.bf16.mxu0 %v5966
    %7477 = vmatpush2.bf16.msra.mxu0 %v5965
    %7478 = vmatprep.subr.bf16.mxu0 %v5938
    %7479 = vmatpush2.bf16.msra.mxu0 %v5937
    %7480 = vmatprep.subr.bf16.mxu0 %v5910
    %7481 = vmatpush2.bf16.msra.mxu0 %v5909
    %7482 = vmatprep.subr.bf16.mxu0 %v5882
    %7483 = vmatpush2.bf16.msra.mxu0 %v5881
    %7484 = vmatprep.mubr.bf16.mxu0 %v1464
    %7485 = vmatmul.mubr.bf16.gmra.mxu0 %v1463
    %v7486 = vpop.f32.mrf.mxu0
    %v7487 = vadd.f32 %v7436, %v7486
    %v7488 = vpop.f32.mrf.mxu0
    %v7489 = vadd.f32 %v7438, %v7488
    %v7490 = vpop.f32.mrf.mxu0
    %v7491 = vadd.f32 %v7440, %v7490
    %v7492 = vpop.f32.mrf.mxu0
    %v7493 = vadd.f32 %v7442, %v7492
    %7494 = vmatprep.mubr.bf16.mxu0 %v1468
    %7495 = vmatmul.mubr.bf16.gmra.mxu0 %v1467
    %v7496 = vpop.f32.mrf.mxu0
    %v7497 = vadd.f32 %v7446, %v7496
    %v7498 = vpop.f32.mrf.mxu0
    %v7499 = vadd.f32 %v7448, %v7498
    %v7500 = vpop.f32.mrf.mxu0
    %v7501 = vpop.f32.mrf.mxu0
    %7502 = vdwg.mxu0
    %7503 = vmatprep.subr.bf16.mxu0 %v5408
    %7504 = vmatpush1.bf16.msra.mxu0 %v5407
    %7505 = vmatprep.subr.bf16.mxu0 %v5380
    %7506 = vmatpush1.bf16.msra.mxu0 %v5379
    %7507 = vmatprep.subr.bf16.mxu0 %v5352
    %7508 = vmatpush1.bf16.msra.mxu0 %v5351
    %7509 = vmatprep.subr.bf16.mxu0 %v5324
    %7510 = vmatpush1.bf16.msra.mxu0 %v5323
    %7511 = vmatprep.subr.bf16.mxu0 %v5296
    %7512 = vmatpush1.bf16.msra.mxu0 %v5295
    %7513 = vmatprep.subr.bf16.mxu0 %v5268
    %7514 = vmatpush1.bf16.msra.mxu0 %v5267
    %7515 = vmatprep.subr.bf16.mxu0 %v5240
    %7516 = vmatpush1.bf16.msra.mxu0 %v5239
    %7517 = vmatprep.subr.bf16.mxu0 %v5212
    %7518 = vmatpush1.bf16.msra.mxu0 %v5211
    %7519 = vmatprep.subr.bf16.mxu0 %v5632
    %7520 = vmatpush2.bf16.msra.mxu0 %v5631
    %7521 = vmatprep.subr.bf16.mxu0 %v5604
    %7522 = vmatpush2.bf16.msra.mxu0 %v5603
    %7523 = vmatprep.subr.bf16.mxu0 %v5576
    %7524 = vmatpush2.bf16.msra.mxu0 %v5575
    %7525 = vmatprep.subr.bf16.mxu0 %v5548
    %7526 = vmatpush2.bf16.msra.mxu0 %v5547
    %7527 = vmatprep.subr.bf16.mxu0 %v5520
    %7528 = vmatpush2.bf16.msra.mxu0 %v5519
    %7529 = vmatprep.subr.bf16.mxu0 %v5492
    %7530 = vmatpush2.bf16.msra.mxu0 %v5491
    %7531 = vmatprep.subr.bf16.mxu0 %v5464
    %7532 = vmatpush2.bf16.msra.mxu0 %v5463
    %7533 = vmatprep.subr.bf16.mxu0 %v5436
    %7534 = vmatpush2.bf16.msra.mxu0 %v5435
    %7535 = vmatprep.mubr.bf16.mxu0 %v1462
    %7536 = vmatmul.mubr.bf16.gmra.mxu0 %v1461
    %v7537 = vpop.f32.mrf.mxu0
    %v7538 = vadd.f32 %v2416, %v7537
    %v7539 = vpop.f32.mrf.mxu0
    %v7540 = vadd.f32 %v2420, %v7539
    %v7541 = vpop.f32.mrf.mxu0
    %v7542 = vadd.f32 %v2416, %v7541
    %v7543 = vpop.f32.mrf.mxu0
    %v7544 = vadd.f32 %v2420, %v7543
    %7545 = vmatprep.mubr.bf16.mxu0 %v1466
    %7546 = vmatmul.mubr.bf16.gmra.mxu0 %v1465
    %v7547 = vpop.f32.mrf.mxu0
    %v7548 = vadd.f32 %v2416, %v7547
    %v7549 = vpop.f32.mrf.mxu0
    %v7550 = vadd.f32 %v2420, %v7549
    %v7551 = vpop.f32.mrf.mxu0
    %v7552 = vpop.f32.mrf.mxu0
    %7553 = vdwg.mxu0
    %7554 = vmatprep.subr.bf16.mxu0 %v5856
    %7555 = vmatpush1.bf16.msra.mxu0 %v5855
    %7556 = vmatprep.subr.bf16.mxu0 %v5828
    %7557 = vmatpush1.bf16.msra.mxu0 %v5827
    %7558 = vmatprep.subr.bf16.mxu0 %v5800
    %7559 = vmatpush1.bf16.msra.mxu0 %v5799
    %7560 = vmatprep.subr.bf16.mxu0 %v5772
    %7561 = vmatpush1.bf16.msra.mxu0 %v5771
    %7562 = vmatprep.subr.bf16.mxu0 %v5744
    %7563 = vmatpush1.bf16.msra.mxu0 %v5743
    %7564 = vmatprep.subr.bf16.mxu0 %v5716
    %7565 = vmatpush1.bf16.msra.mxu0 %v5715
    %7566 = vmatprep.subr.bf16.mxu0 %v5688
    %7567 = vmatpush1.bf16.msra.mxu0 %v5687
    %7568 = vmatprep.subr.bf16.mxu0 %v5660
    %7569 = vmatpush1.bf16.msra.mxu0 %v5659
    %7570 = vmatprep.subr.bf16.mxu0 %v6080
    %7571 = vmatpush2.bf16.msra.mxu0 %v6079
    %7572 = vmatprep.subr.bf16.mxu0 %v6052
    %7573 = vmatpush2.bf16.msra.mxu0 %v6051
    %7574 = vmatprep.subr.bf16.mxu0 %v6024
    %7575 = vmatpush2.bf16.msra.mxu0 %v6023
    %7576 = vmatprep.subr.bf16.mxu0 %v5996
    %7577 = vmatpush2.bf16.msra.mxu0 %v5995
    %7578 = vmatprep.subr.bf16.mxu0 %v5968
    %7579 = vmatpush2.bf16.msra.mxu0 %v5967
    %7580 = vmatprep.subr.bf16.mxu0 %v5940
    %7581 = vmatpush2.bf16.msra.mxu0 %v5939
    %7582 = vmatprep.subr.bf16.mxu0 %v5912
    %7583 = vmatpush2.bf16.msra.mxu0 %v5911
    %7584 = vmatprep.subr.bf16.mxu0 %v5884
    %7585 = vmatpush2.bf16.msra.mxu0 %v5883
    %7586 = vmatprep.mubr.bf16.mxu0 %v1464
    %7587 = vmatmul.mubr.bf16.gmra.mxu0 %v1463
    %v7588 = vpop.f32.mrf.mxu0
    %v7589 = vadd.f32 %v7538, %v7588
    %v7590 = vpop.f32.mrf.mxu0
    %v7591 = vadd.f32 %v7540, %v7590
    %v7592 = vpop.f32.mrf.mxu0
    %v7593 = vadd.f32 %v7542, %v7592
    %v7594 = vpop.f32.mrf.mxu0
    %v7595 = vadd.f32 %v7544, %v7594
    %7596 = vmatprep.mubr.bf16.mxu0 %v1468
    %7597 = vmatmul.mubr.bf16.gmra.mxu0 %v1467
    %v7598 = vpop.f32.mrf.mxu0
    %v7599 = vadd.f32 %v7548, %v7598
    %v7600 = vpop.f32.mrf.mxu0
    %v7601 = vadd.f32 %v7550, %v7600
    %v7602 = vpop.f32.mrf.mxu0
    %v7603 = vpop.f32.mrf.mxu0
    %7604 = vdwg.mxu0
    %7605 = vmatprep.subr.bf16.mxu0 %v5410
    %7606 = vmatpush1.bf16.msra.mxu0 %v5409
    %7607 = vmatprep.subr.bf16.mxu0 %v5382
    %7608 = vmatpush1.bf16.msra.mxu0 %v5381
    %7609 = vmatprep.subr.bf16.mxu0 %v5354
    %7610 = vmatpush1.bf16.msra.mxu0 %v5353
    %7611 = vmatprep.subr.bf16.mxu0 %v5326
    %7612 = vmatpush1.bf16.msra.mxu0 %v5325
    %7613 = vmatprep.subr.bf16.mxu0 %v5298
    %7614 = vmatpush1.bf16.msra.mxu0 %v5297
    %7615 = vmatprep.subr.bf16.mxu0 %v5270
    %7616 = vmatpush1.bf16.msra.mxu0 %v5269
    %7617 = vmatprep.subr.bf16.mxu0 %v5242
    %7618 = vmatpush1.bf16.msra.mxu0 %v5241
    %7619 = vmatprep.subr.bf16.mxu0 %v5214
    %7620 = vmatpush1.bf16.msra.mxu0 %v5213
    %7621 = vmatprep.subr.bf16.mxu0 %v5634
    %7622 = vmatpush2.bf16.msra.mxu0 %v5633
    %7623 = vmatprep.subr.bf16.mxu0 %v5606
    %7624 = vmatpush2.bf16.msra.mxu0 %v5605
    %7625 = vmatprep.subr.bf16.mxu0 %v5578
    %7626 = vmatpush2.bf16.msra.mxu0 %v5577
    %7627 = vmatprep.subr.bf16.mxu0 %v5550
    %7628 = vmatpush2.bf16.msra.mxu0 %v5549
    %7629 = vmatprep.subr.bf16.mxu0 %v5522
    %7630 = vmatpush2.bf16.msra.mxu0 %v5521
    %7631 = vmatprep.subr.bf16.mxu0 %v5494
    %7632 = vmatpush2.bf16.msra.mxu0 %v5493
    %7633 = vmatprep.subr.bf16.mxu0 %v5466
    %7634 = vmatpush2.bf16.msra.mxu0 %v5465
    %7635 = vmatprep.subr.bf16.mxu0 %v5438
    %7636 = vmatpush2.bf16.msra.mxu0 %v5437
    %7637 = vmatprep.mubr.bf16.mxu0 %v1462
    %7638 = vmatmul.mubr.bf16.gmra.mxu0 %v1461
    %v7639 = vpop.f32.mrf.mxu0
    %v7640 = vadd.f32 %v2424, %v7639
    %v7641 = vpop.f32.mrf.mxu0
    %v7642 = vadd.f32 %v2428, %v7641
    %v7643 = vpop.f32.mrf.mxu0
    %v7644 = vadd.f32 %v2424, %v7643
    %v7645 = vpop.f32.mrf.mxu0
    %v7646 = vadd.f32 %v2428, %v7645
    %7647 = vmatprep.mubr.bf16.mxu0 %v1466
    %7648 = vmatmul.mubr.bf16.gmra.mxu0 %v1465
    %v7649 = vpop.f32.mrf.mxu0
    %v7650 = vadd.f32 %v2424, %v7649
    %v7651 = vpop.f32.mrf.mxu0
    %v7652 = vadd.f32 %v2428, %v7651
    %v7653 = vpop.f32.mrf.mxu0
    %v7654 = vpop.f32.mrf.mxu0
    %7655 = vdwg.mxu0
    %7656 = vmatprep.subr.bf16.mxu0 %v5858
    %7657 = vmatpush1.bf16.msra.mxu0 %v5857
    %7658 = vmatprep.subr.bf16.mxu0 %v5830
    %7659 = vmatpush1.bf16.msra.mxu0 %v5829
    %7660 = vmatprep.subr.bf16.mxu0 %v5802
    %7661 = vmatpush1.bf16.msra.mxu0 %v5801
    %7662 = vmatprep.subr.bf16.mxu0 %v5774
    %7663 = vmatpush1.bf16.msra.mxu0 %v5773
    %7664 = vmatprep.subr.bf16.mxu0 %v5746
    %7665 = vmatpush1.bf16.msra.mxu0 %v5745
    %7666 = vmatprep.subr.bf16.mxu0 %v5718
    %7667 = vmatpush1.bf16.msra.mxu0 %v5717
    %7668 = vmatprep.subr.bf16.mxu0 %v5690
    %7669 = vmatpush1.bf16.msra.mxu0 %v5689
    %7670 = vmatprep.subr.bf16.mxu0 %v5662
    %7671 = vmatpush1.bf16.msra.mxu0 %v5661
    %7672 = vmatprep.subr.bf16.mxu0 %v6082
    %7673 = vmatpush2.bf16.msra.mxu0 %v6081
    %7674 = vmatprep.subr.bf16.mxu0 %v6054
    %7675 = vmatpush2.bf16.msra.mxu0 %v6053
    %7676 = vmatprep.subr.bf16.mxu0 %v6026
    %7677 = vmatpush2.bf16.msra.mxu0 %v6025
    %7678 = vmatprep.subr.bf16.mxu0 %v5998
    %7679 = vmatpush2.bf16.msra.mxu0 %v5997
    %7680 = vmatprep.subr.bf16.mxu0 %v5970
    %7681 = vmatpush2.bf16.msra.mxu0 %v5969
    %7682 = vmatprep.subr.bf16.mxu0 %v5942
    %7683 = vmatpush2.bf16.msra.mxu0 %v5941
    %7684 = vmatprep.subr.bf16.mxu0 %v5914
    %7685 = vmatpush2.bf16.msra.mxu0 %v5913
    %7686 = vmatprep.subr.bf16.mxu0 %v5886
    %7687 = vmatpush2.bf16.msra.mxu0 %v5885
    %7688 = vmatprep.mubr.bf16.mxu0 %v1464
    %7689 = vmatmul.mubr.bf16.gmra.mxu0 %v1463
    %v7690 = vpop.f32.mrf.mxu0
    %v7691 = vadd.f32 %v7640, %v7690
    %v7692 = vpop.f32.mrf.mxu0
    %v7693 = vadd.f32 %v7642, %v7692
    %v7694 = vpop.f32.mrf.mxu0
    %v7695 = vadd.f32 %v7644, %v7694
    %v7696 = vpop.f32.mrf.mxu0
    %v7697 = vadd.f32 %v7646, %v7696
    %7698 = vmatprep.mubr.bf16.mxu0 %v1468
    %7699 = vmatmul.mubr.bf16.gmra.mxu0 %v1467
    %v7700 = vpop.f32.mrf.mxu0
    %v7701 = vadd.f32 %v7650, %v7700
    %v7702 = vpop.f32.mrf.mxu0
    %v7703 = vadd.f32 %v7652, %v7702
    %v7704 = vpop.f32.mrf.mxu0
    %v7705 = vpop.f32.mrf.mxu0
    %7706 = vdwg.mxu0
    %7707 = vmatprep.subr.bf16.mxu0 %v5412
    %7708 = vmatpush1.bf16.msra.mxu0 %v5411
    %7709 = vmatprep.subr.bf16.mxu0 %v5384
    %7710 = vmatpush1.bf16.msra.mxu0 %v5383
    %7711 = vmatprep.subr.bf16.mxu0 %v5356
    %7712 = vmatpush1.bf16.msra.mxu0 %v5355
    %7713 = vmatprep.subr.bf16.mxu0 %v5328
    %7714 = vmatpush1.bf16.msra.mxu0 %v5327
    %7715 = vmatprep.subr.bf16.mxu0 %v5300
    %7716 = vmatpush1.bf16.msra.mxu0 %v5299
    %7717 = vmatprep.subr.bf16.mxu0 %v5272
    %7718 = vmatpush1.bf16.msra.mxu0 %v5271
    %7719 = vmatprep.subr.bf16.mxu0 %v5244
    %7720 = vmatpush1.bf16.msra.mxu0 %v5243
    %7721 = vmatprep.subr.bf16.mxu0 %v5216
    %7722 = vmatpush1.bf16.msra.mxu0 %v5215
    %7723 = vmatprep.subr.bf16.mxu0 %v5636
    %7724 = vmatpush2.bf16.msra.mxu0 %v5635
    %7725 = vmatprep.subr.bf16.mxu0 %v5608
    %7726 = vmatpush2.bf16.msra.mxu0 %v5607
    %7727 = vmatprep.subr.bf16.mxu0 %v5580
    %7728 = vmatpush2.bf16.msra.mxu0 %v5579
    %7729 = vmatprep.subr.bf16.mxu0 %v5552
    %7730 = vmatpush2.bf16.msra.mxu0 %v5551
    %7731 = vmatprep.subr.bf16.mxu0 %v5524
    %7732 = vmatpush2.bf16.msra.mxu0 %v5523
    %7733 = vmatprep.subr.bf16.mxu0 %v5496
    %7734 = vmatpush2.bf16.msra.mxu0 %v5495
    %7735 = vmatprep.subr.bf16.mxu0 %v5468
    %7736 = vmatpush2.bf16.msra.mxu0 %v5467
    %7737 = vmatprep.subr.bf16.mxu0 %v5440
    %7738 = vmatpush2.bf16.msra.mxu0 %v5439
    %7739 = vmatprep.mubr.bf16.mxu0 %v1462
    %7740 = vmatmul.mubr.bf16.gmra.mxu0 %v1461
    %v7741 = vpop.f32.mrf.mxu0
    %v7742 = vadd.f32 %v2432, %v7741
    %v7743 = vpop.f32.mrf.mxu0
    %v7744 = vadd.f32 %v2436, %v7743
    %v7745 = vpop.f32.mrf.mxu0
    %v7746 = vadd.f32 %v2432, %v7745
    %v7747 = vpop.f32.mrf.mxu0
    %v7748 = vadd.f32 %v2436, %v7747
    %7749 = vmatprep.mubr.bf16.mxu0 %v1466
    %7750 = vmatmul.mubr.bf16.gmra.mxu0 %v1465
    %v7751 = vpop.f32.mrf.mxu0
    %v7752 = vadd.f32 %v2432, %v7751
    %v7753 = vpop.f32.mrf.mxu0
    %v7754 = vadd.f32 %v2436, %v7753
    %v7755 = vpop.f32.mrf.mxu0
    %v7756 = vpop.f32.mrf.mxu0
    %7757 = vdwg.mxu0
    %7758 = vmatprep.subr.bf16.mxu0 %v5860
    %7759 = vmatpush1.bf16.msra.mxu0 %v5859
    %7760 = vmatprep.subr.bf16.mxu0 %v5832
    %7761 = vmatpush1.bf16.msra.mxu0 %v5831
    %7762 = vmatprep.subr.bf16.mxu0 %v5804
    %7763 = vmatpush1.bf16.msra.mxu0 %v5803
    %7764 = vmatprep.subr.bf16.mxu0 %v5776
    %7765 = vmatpush1.bf16.msra.mxu0 %v5775
    %7766 = vmatprep.subr.bf16.mxu0 %v5748
    %7767 = vmatpush1.bf16.msra.mxu0 %v5747
    %7768 = vmatprep.subr.bf16.mxu0 %v5720
    %7769 = vmatpush1.bf16.msra.mxu0 %v5719
    %7770 = vmatprep.subr.bf16.mxu0 %v5692
    %7771 = vmatpush1.bf16.msra.mxu0 %v5691
    %7772 = vmatprep.subr.bf16.mxu0 %v5664
    %7773 = vmatpush1.bf16.msra.mxu0 %v5663
    %7774 = vmatprep.subr.bf16.mxu0 %v6084
    %7775 = vmatpush2.bf16.msra.mxu0 %v6083
    %7776 = vmatprep.subr.bf16.mxu0 %v6056
    %7777 = vmatpush2.bf16.msra.mxu0 %v6055
    %7778 = vmatprep.subr.bf16.mxu0 %v6028
    %7779 = vmatpush2.bf16.msra.mxu0 %v6027
    %7780 = vmatprep.subr.bf16.mxu0 %v6000
    %7781 = vmatpush2.bf16.msra.mxu0 %v5999
    %7782 = vmatprep.subr.bf16.mxu0 %v5972
    %7783 = vmatpush2.bf16.msra.mxu0 %v5971
    %7784 = vmatprep.subr.bf16.mxu0 %v5944
    %7785 = vmatpush2.bf16.msra.mxu0 %v5943
    %7786 = vmatprep.subr.bf16.mxu0 %v5916
    %7787 = vmatpush2.bf16.msra.mxu0 %v5915
    %7788 = vmatprep.subr.bf16.mxu0 %v5888
    %7789 = vmatpush2.bf16.msra.mxu0 %v5887
    %7790 = vmatprep.mubr.bf16.mxu0 %v1464
    %7791 = vmatmul.mubr.bf16.gmra.mxu0 %v1463
    %v7792 = vpop.f32.mrf.mxu0
    %v7793 = vadd.f32 %v7742, %v7792
    %v7794 = vpop.f32.mrf.mxu0
    %v7795 = vadd.f32 %v7744, %v7794
    %v7796 = vpop.f32.mrf.mxu0
    %v7797 = vadd.f32 %v7746, %v7796
    %v7798 = vpop.f32.mrf.mxu0
    %v7799 = vadd.f32 %v7748, %v7798
    %7800 = vmatprep.mubr.bf16.mxu0 %v1468
    %7801 = vmatmul.mubr.bf16.gmra.mxu0 %v1467
    %v7802 = vpop.f32.mrf.mxu0
    %v7803 = vadd.f32 %v7752, %v7802
    %v7804 = vpop.f32.mrf.mxu0
    %v7805 = vadd.f32 %v7754, %v7804
    %v7806 = vpop.f32.mrf.mxu0
    %v7807 = vpop.f32.mrf.mxu0
    %7808 = vdwg.mxu0
    %7809 = vmatprep.subr.bf16.mxu0 %v5414
    %7810 = vmatpush1.bf16.msra.mxu0 %v5413
    %7811 = vmatprep.subr.bf16.mxu0 %v5386
    %7812 = vmatpush1.bf16.msra.mxu0 %v5385
    %7813 = vmatprep.subr.bf16.mxu0 %v5358
    %7814 = vmatpush1.bf16.msra.mxu0 %v5357
    %7815 = vmatprep.subr.bf16.mxu0 %v5330
    %7816 = vmatpush1.bf16.msra.mxu0 %v5329
    %7817 = vmatprep.subr.bf16.mxu0 %v5302
    %7818 = vmatpush1.bf16.msra.mxu0 %v5301
    %7819 = vmatprep.subr.bf16.mxu0 %v5274
    %7820 = vmatpush1.bf16.msra.mxu0 %v5273
    %7821 = vmatprep.subr.bf16.mxu0 %v5246
    %7822 = vmatpush1.bf16.msra.mxu0 %v5245
    %7823 = vmatprep.subr.bf16.mxu0 %v5218
    %7824 = vmatpush1.bf16.msra.mxu0 %v5217
    %7825 = vmatprep.subr.bf16.mxu0 %v5638
    %7826 = vmatpush2.bf16.msra.mxu0 %v5637
    %7827 = vmatprep.subr.bf16.mxu0 %v5610
    %7828 = vmatpush2.bf16.msra.mxu0 %v5609
    %7829 = vmatprep.subr.bf16.mxu0 %v5582
    %7830 = vmatpush2.bf16.msra.mxu0 %v5581
    %7831 = vmatprep.subr.bf16.mxu0 %v5554
    %7832 = vmatpush2.bf16.msra.mxu0 %v5553
    %7833 = vmatprep.subr.bf16.mxu0 %v5526
    %7834 = vmatpush2.bf16.msra.mxu0 %v5525
    %7835 = vmatprep.subr.bf16.mxu0 %v5498
    %7836 = vmatpush2.bf16.msra.mxu0 %v5497
    %7837 = vmatprep.subr.bf16.mxu0 %v5470
    %7838 = vmatpush2.bf16.msra.mxu0 %v5469
    %7839 = vmatprep.subr.bf16.mxu0 %v5442
    %7840 = vmatpush2.bf16.msra.mxu0 %v5441
    %7841 = vmatprep.mubr.bf16.mxu0 %v1462
    %7842 = vmatmul.mubr.bf16.gmra.mxu0 %v1461
    %v7843 = vpop.f32.mrf.mxu0
    %v7844 = vadd.f32 %v2440, %v7843
    %v7845 = vpop.f32.mrf.mxu0
    %v7846 = vadd.f32 %v2444, %v7845
    %v7847 = vpop.f32.mrf.mxu0
    %v7848 = vadd.f32 %v2440, %v7847
    %v7849 = vpop.f32.mrf.mxu0
    %v7850 = vadd.f32 %v2444, %v7849
    %7851 = vmatprep.mubr.bf16.mxu0 %v1466
    %7852 = vmatmul.mubr.bf16.gmra.mxu0 %v1465
    %v7853 = vpop.f32.mrf.mxu0
    %v7854 = vadd.f32 %v2440, %v7853
    %v7855 = vpop.f32.mrf.mxu0
    %v7856 = vadd.f32 %v2444, %v7855
    %v7857 = vpop.f32.mrf.mxu0
    %v7858 = vpop.f32.mrf.mxu0
    %7859 = vdwg.mxu0
    %7860 = vmatprep.subr.bf16.mxu0 %v5862
    %7861 = vmatpush1.bf16.msra.mxu0 %v5861
    %7862 = vmatprep.subr.bf16.mxu0 %v5834
    %7863 = vmatpush1.bf16.msra.mxu0 %v5833
    %7864 = vmatprep.subr.bf16.mxu0 %v5806
    %7865 = vmatpush1.bf16.msra.mxu0 %v5805
    %7866 = vmatprep.subr.bf16.mxu0 %v5778
    %7867 = vmatpush1.bf16.msra.mxu0 %v5777
    %7868 = vmatprep.subr.bf16.mxu0 %v5750
    %7869 = vmatpush1.bf16.msra.mxu0 %v5749
    %7870 = vmatprep.subr.bf16.mxu0 %v5722
    %7871 = vmatpush1.bf16.msra.mxu0 %v5721
    %7872 = vmatprep.subr.bf16.mxu0 %v5694
    %7873 = vmatpush1.bf16.msra.mxu0 %v5693
    %7874 = vmatprep.subr.bf16.mxu0 %v5666
    %7875 = vmatpush1.bf16.msra.mxu0 %v5665
    %7876 = vmatprep.subr.bf16.mxu0 %v6086
    %7877 = vmatpush2.bf16.msra.mxu0 %v6085
    %7878 = vmatprep.subr.bf16.mxu0 %v6058
    %7879 = vmatpush2.bf16.msra.mxu0 %v6057
    %7880 = vmatprep.subr.bf16.mxu0 %v6030
    %7881 = vmatpush2.bf16.msra.mxu0 %v6029
    %7882 = vmatprep.subr.bf16.mxu0 %v6002
    %7883 = vmatpush2.bf16.msra.mxu0 %v6001
    %7884 = vmatprep.subr.bf16.mxu0 %v5974
    %7885 = vmatpush2.bf16.msra.mxu0 %v5973
    %7886 = vmatprep.subr.bf16.mxu0 %v5946
    %7887 = vmatpush2.bf16.msra.mxu0 %v5945
    %7888 = vmatprep.subr.bf16.mxu0 %v5918
    %7889 = vmatpush2.bf16.msra.mxu0 %v5917
    %7890 = vmatprep.subr.bf16.mxu0 %v5890
    %7891 = vmatpush2.bf16.msra.mxu0 %v5889
    %7892 = vmatprep.mubr.bf16.mxu0 %v1464
    %7893 = vmatmul.mubr.bf16.gmra.mxu0 %v1463
    %v7894 = vpop.f32.mrf.mxu0
    %v7895 = vadd.f32 %v7844, %v7894
    %v7896 = vpop.f32.mrf.mxu0
    %v7897 = vadd.f32 %v7846, %v7896
    %v7898 = vpop.f32.mrf.mxu0
    %v7899 = vadd.f32 %v7848, %v7898
    %v7900 = vpop.f32.mrf.mxu0
    %v7901 = vadd.f32 %v7850, %v7900
    %7902 = vmatprep.mubr.bf16.mxu0 %v1468
    %7903 = vmatmul.mubr.bf16.gmra.mxu0 %v1467
    %v7904 = vpop.f32.mrf.mxu0
    %v7905 = vadd.f32 %v7854, %v7904
    %v7906 = vpop.f32.mrf.mxu0
    %v7907 = vadd.f32 %v7856, %v7906
    %v7908 = vpop.f32.mrf.mxu0
    %v7909 = vpop.f32.mrf.mxu0
    %7910 = vdwg.mxu0
    %7911 = vmatprep.subr.bf16.mxu0 %v5416
    %7912 = vmatpush1.bf16.msra.mxu0 %v5415
    %7913 = vmatprep.subr.bf16.mxu0 %v5388
    %7914 = vmatpush1.bf16.msra.mxu0 %v5387
    %7915 = vmatprep.subr.bf16.mxu0 %v5360
    %7916 = vmatpush1.bf16.msra.mxu0 %v5359
    %7917 = vmatprep.subr.bf16.mxu0 %v5332
    %7918 = vmatpush1.bf16.msra.mxu0 %v5331
    %7919 = vmatprep.subr.bf16.mxu0 %v5304
    %7920 = vmatpush1.bf16.msra.mxu0 %v5303
    %7921 = vmatprep.subr.bf16.mxu0 %v5276
    %7922 = vmatpush1.bf16.msra.mxu0 %v5275
    %7923 = vmatprep.subr.bf16.mxu0 %v5248
    %7924 = vmatpush1.bf16.msra.mxu0 %v5247
    %7925 = vmatprep.subr.bf16.mxu0 %v5220
    %7926 = vmatpush1.bf16.msra.mxu0 %v5219
    %7927 = vmatprep.subr.bf16.mxu0 %v5640
    %7928 = vmatpush2.bf16.msra.mxu0 %v5639
    %7929 = vmatprep.subr.bf16.mxu0 %v5612
    %7930 = vmatpush2.bf16.msra.mxu0 %v5611
    %7931 = vmatprep.subr.bf16.mxu0 %v5584
    %7932 = vmatpush2.bf16.msra.mxu0 %v5583
    %7933 = vmatprep.subr.bf16.mxu0 %v5556
    %7934 = vmatpush2.bf16.msra.mxu0 %v5555
    %7935 = vmatprep.subr.bf16.mxu0 %v5528
    %7936 = vmatpush2.bf16.msra.mxu0 %v5527
    %7937 = vmatprep.subr.bf16.mxu0 %v5500
    %7938 = vmatpush2.bf16.msra.mxu0 %v5499
    %7939 = vmatprep.subr.bf16.mxu0 %v5472
    %7940 = vmatpush2.bf16.msra.mxu0 %v5471
    %7941 = vmatprep.subr.bf16.mxu0 %v5444
    %7942 = vmatpush2.bf16.msra.mxu0 %v5443
    %7943 = vmatprep.mubr.bf16.mxu0 %v1462
    %7944 = vmatmul.mubr.bf16.gmra.mxu0 %v1461
    %v7945 = vpop.f32.mrf.mxu0
    %v7946 = vadd.f32 %v2448, %v7945
    %v7947 = vpop.f32.mrf.mxu0
    %v7948 = vadd.f32 %v2452, %v7947
    %v7949 = vpop.f32.mrf.mxu0
    %v7950 = vadd.f32 %v2448, %v7949
    %v7951 = vpop.f32.mrf.mxu0
    %v7952 = vadd.f32 %v2452, %v7951
    %7953 = vmatprep.mubr.bf16.mxu0 %v1466
    %7954 = vmatmul.mubr.bf16.gmra.mxu0 %v1465
    %v7955 = vpop.f32.mrf.mxu0
    %v7956 = vadd.f32 %v2448, %v7955
    %v7957 = vpop.f32.mrf.mxu0
    %v7958 = vadd.f32 %v2452, %v7957
    %v7959 = vpop.f32.mrf.mxu0
    %v7960 = vpop.f32.mrf.mxu0
    %7961 = vdwg.mxu0
    %7962 = vmatprep.subr.bf16.mxu0 %v5864
    %7963 = vmatpush1.bf16.msra.mxu0 %v5863
    %7964 = vmatprep.subr.bf16.mxu0 %v5836
    %7965 = vmatpush1.bf16.msra.mxu0 %v5835
    %7966 = vmatprep.subr.bf16.mxu0 %v5808
    %7967 = vmatpush1.bf16.msra.mxu0 %v5807
    %7968 = vmatprep.subr.bf16.mxu0 %v5780
    %7969 = vmatpush1.bf16.msra.mxu0 %v5779
    %7970 = vmatprep.subr.bf16.mxu0 %v5752
    %7971 = vmatpush1.bf16.msra.mxu0 %v5751
    %7972 = vmatprep.subr.bf16.mxu0 %v5724
    %7973 = vmatpush1.bf16.msra.mxu0 %v5723
    %7974 = vmatprep.subr.bf16.mxu0 %v5696
    %7975 = vmatpush1.bf16.msra.mxu0 %v5695
    %7976 = vmatprep.subr.bf16.mxu0 %v5668
    %7977 = vmatpush1.bf16.msra.mxu0 %v5667
    %7978 = vmatprep.subr.bf16.mxu0 %v6088
    %7979 = vmatpush2.bf16.msra.mxu0 %v6087
    %7980 = vmatprep.subr.bf16.mxu0 %v6060
    %7981 = vmatpush2.bf16.msra.mxu0 %v6059
    %7982 = vmatprep.subr.bf16.mxu0 %v6032
    %7983 = vmatpush2.bf16.msra.mxu0 %v6031
    %7984 = vmatprep.subr.bf16.mxu0 %v6004
    %7985 = vmatpush2.bf16.msra.mxu0 %v6003
    %7986 = vmatprep.subr.bf16.mxu0 %v5976
    %7987 = vmatpush2.bf16.msra.mxu0 %v5975
    %7988 = vmatprep.subr.bf16.mxu0 %v5948
    %7989 = vmatpush2.bf16.msra.mxu0 %v5947
    %7990 = vmatprep.subr.bf16.mxu0 %v5920
    %7991 = vmatpush2.bf16.msra.mxu0 %v5919
    %7992 = vmatprep.subr.bf16.mxu0 %v5892
    %7993 = vmatpush2.bf16.msra.mxu0 %v5891
    %7994 = vmatprep.mubr.bf16.mxu0 %v1464
    %7995 = vmatmul.mubr.bf16.gmra.mxu0 %v1463
    %v7996 = vpop.f32.mrf.mxu0
    %v7997 = vadd.f32 %v7946, %v7996
    %v7998 = vpop.f32.mrf.mxu0
    %v7999 = vadd.f32 %v7948, %v7998
    %v8000 = vpop.f32.mrf.mxu0
    %v8001 = vadd.f32 %v7950, %v8000
    %v8002 = vpop.f32.mrf.mxu0
    %v8003 = vadd.f32 %v7952, %v8002
    %8004 = vmatprep.mubr.bf16.mxu0 %v1468
    %8005 = vmatmul.mubr.bf16.gmra.mxu0 %v1467
    %v8006 = vpop.f32.mrf.mxu0
    %v8007 = vadd.f32 %v7956, %v8006
    %v8008 = vpop.f32.mrf.mxu0
    %v8009 = vadd.f32 %v7958, %v8008
    %v8010 = vpop.f32.mrf.mxu0
    %v8011 = vpop.f32.mrf.mxu0
    %8012 = vdwg.mxu0
    %8013 = vmatprep.subr.bf16.mxu0 %v5418
    %8014 = vmatpush1.bf16.msra.mxu0 %v5417
    %8015 = vmatprep.subr.bf16.mxu0 %v5390
    %8016 = vmatpush1.bf16.msra.mxu0 %v5389
    %8017 = vmatprep.subr.bf16.mxu0 %v5362
    %8018 = vmatpush1.bf16.msra.mxu0 %v5361
    %8019 = vmatprep.subr.bf16.mxu0 %v5334
    %8020 = vmatpush1.bf16.msra.mxu0 %v5333
    %8021 = vmatprep.subr.bf16.mxu0 %v5306
    %8022 = vmatpush1.bf16.msra.mxu0 %v5305
    %8023 = vmatprep.subr.bf16.mxu0 %v5278
    %8024 = vmatpush1.bf16.msra.mxu0 %v5277
    %8025 = vmatprep.subr.bf16.mxu0 %v5250
    %8026 = vmatpush1.bf16.msra.mxu0 %v5249
    %8027 = vmatprep.subr.bf16.mxu0 %v5222
    %8028 = vmatpush1.bf16.msra.mxu0 %v5221
    %8029 = vmatprep.subr.bf16.mxu0 %v5642
    %8030 = vmatpush2.bf16.msra.mxu0 %v5641
    %8031 = vmatprep.subr.bf16.mxu0 %v5614
    %8032 = vmatpush2.bf16.msra.mxu0 %v5613
    %8033 = vmatprep.subr.bf16.mxu0 %v5586
    %8034 = vmatpush2.bf16.msra.mxu0 %v5585
    %8035 = vmatprep.subr.bf16.mxu0 %v5558
    %8036 = vmatpush2.bf16.msra.mxu0 %v5557
    %8037 = vmatprep.subr.bf16.mxu0 %v5530
    %8038 = vmatpush2.bf16.msra.mxu0 %v5529
    %8039 = vmatprep.subr.bf16.mxu0 %v5502
    %8040 = vmatpush2.bf16.msra.mxu0 %v5501
    %8041 = vmatprep.subr.bf16.mxu0 %v5474
    %8042 = vmatpush2.bf16.msra.mxu0 %v5473
    %8043 = vmatprep.subr.bf16.mxu0 %v5446
    %8044 = vmatpush2.bf16.msra.mxu0 %v5445
    %8045 = vmatprep.mubr.bf16.mxu0 %v1462
    %8046 = vmatmul.mubr.bf16.gmra.mxu0 %v1461
    %v8047 = vpop.f32.mrf.mxu0
    %v8048 = vadd.f32 %v2456, %v8047
    %v8049 = vpop.f32.mrf.mxu0
    %v8050 = vadd.f32 %v2460, %v8049
    %v8051 = vpop.f32.mrf.mxu0
    %v8052 = vadd.f32 %v2456, %v8051
    %v8053 = vpop.f32.mrf.mxu0
    %v8054 = vadd.f32 %v2460, %v8053
    %8055 = vmatprep.mubr.bf16.mxu0 %v1466
    %8056 = vmatmul.mubr.bf16.gmra.mxu0 %v1465
    %v8057 = vpop.f32.mrf.mxu0
    %v8058 = vadd.f32 %v2456, %v8057
    %v8059 = vpop.f32.mrf.mxu0
    %v8060 = vadd.f32 %v2460, %v8059
    %v8061 = vpop.f32.mrf.mxu0
    %v8062 = vpop.f32.mrf.mxu0
    %8063 = vdwg.mxu0
    %8064 = vmatprep.subr.bf16.mxu0 %v5866
    %8065 = vmatpush1.bf16.msra.mxu0 %v5865
    %8066 = vmatprep.subr.bf16.mxu0 %v5838
    %8067 = vmatpush1.bf16.msra.mxu0 %v5837
    %8068 = vmatprep.subr.bf16.mxu0 %v5810
    %8069 = vmatpush1.bf16.msra.mxu0 %v5809
    %8070 = vmatprep.subr.bf16.mxu0 %v5782
    %8071 = vmatpush1.bf16.msra.mxu0 %v5781
    %8072 = vmatprep.subr.bf16.mxu0 %v5754
    %8073 = vmatpush1.bf16.msra.mxu0 %v5753
    %8074 = vmatprep.subr.bf16.mxu0 %v5726
    %8075 = vmatpush1.bf16.msra.mxu0 %v5725
    %8076 = vmatprep.subr.bf16.mxu0 %v5698
    %8077 = vmatpush1.bf16.msra.mxu0 %v5697
    %8078 = vmatprep.subr.bf16.mxu0 %v5670
    %8079 = vmatpush1.bf16.msra.mxu0 %v5669
    %8080 = vmatprep.subr.bf16.mxu0 %v6090
    %8081 = vmatpush2.bf16.msra.mxu0 %v6089
    %8082 = vmatprep.subr.bf16.mxu0 %v6062
    %8083 = vmatpush2.bf16.msra.mxu0 %v6061
    %8084 = vmatprep.subr.bf16.mxu0 %v6034
    %8085 = vmatpush2.bf16.msra.mxu0 %v6033
    %8086 = vmatprep.subr.bf16.mxu0 %v6006
    %8087 = vmatpush2.bf16.msra.mxu0 %v6005
    %8088 = vmatprep.subr.bf16.mxu0 %v5978
    %8089 = vmatpush2.bf16.msra.mxu0 %v5977
    %8090 = vmatprep.subr.bf16.mxu0 %v5950
    %8091 = vmatpush2.bf16.msra.mxu0 %v5949
    %8092 = vmatprep.subr.bf16.mxu0 %v5922
    %8093 = vmatpush2.bf16.msra.mxu0 %v5921
    %8094 = vmatprep.subr.bf16.mxu0 %v5894
    %8095 = vmatpush2.bf16.msra.mxu0 %v5893
    %8096 = vmatprep.mubr.bf16.mxu0 %v1464
    %8097 = vmatmul.mubr.bf16.gmra.mxu0 %v1463
    %v8098 = vpop.f32.mrf.mxu0
    %v8099 = vadd.f32 %v8048, %v8098
    %v8100 = vpop.f32.mrf.mxu0
    %v8101 = vadd.f32 %v8050, %v8100
    %v8102 = vpop.f32.mrf.mxu0
    %v8103 = vadd.f32 %v8052, %v8102
    %v8104 = vpop.f32.mrf.mxu0
    %v8105 = vadd.f32 %v8054, %v8104
    %8106 = vmatprep.mubr.bf16.mxu0 %v1468
    %8107 = vmatmul.mubr.bf16.gmra.mxu0 %v1467
    %v8108 = vpop.f32.mrf.mxu0
    %v8109 = vadd.f32 %v8058, %v8108
    %v8110 = vpop.f32.mrf.mxu0
    %v8111 = vadd.f32 %v8060, %v8110
    %v8112 = vpop.f32.mrf.mxu0
    %v8113 = vpop.f32.mrf.mxu0
    %8114 = vdwg.mxu0
    %8115 = vmatprep.subr.bf16.mxu0 %v5420
    %8116 = vmatpush1.bf16.msra.mxu0 %v5419
    %8117 = vmatprep.subr.bf16.mxu0 %v5392
    %8118 = vmatpush1.bf16.msra.mxu0 %v5391
    %8119 = vmatprep.subr.bf16.mxu0 %v5364
    %8120 = vmatpush1.bf16.msra.mxu0 %v5363
    %8121 = vmatprep.subr.bf16.mxu0 %v5336
    %8122 = vmatpush1.bf16.msra.mxu0 %v5335
    %8123 = vmatprep.subr.bf16.mxu0 %v5308
    %8124 = vmatpush1.bf16.msra.mxu0 %v5307
    %8125 = vmatprep.subr.bf16.mxu0 %v5280
    %8126 = vmatpush1.bf16.msra.mxu0 %v5279
    %8127 = vmatprep.subr.bf16.mxu0 %v5252
    %8128 = vmatpush1.bf16.msra.mxu0 %v5251
    %8129 = vmatprep.subr.bf16.mxu0 %v5224
    %8130 = vmatpush1.bf16.msra.mxu0 %v5223
    %8131 = vmatprep.subr.bf16.mxu0 %v5644
    %8132 = vmatpush2.bf16.msra.mxu0 %v5643
    %8133 = vmatprep.subr.bf16.mxu0 %v5616
    %8134 = vmatpush2.bf16.msra.mxu0 %v5615
    %8135 = vmatprep.subr.bf16.mxu0 %v5588
    %8136 = vmatpush2.bf16.msra.mxu0 %v5587
    %8137 = vmatprep.subr.bf16.mxu0 %v5560
    %8138 = vmatpush2.bf16.msra.mxu0 %v5559
    %8139 = vmatprep.subr.bf16.mxu0 %v5532
    %8140 = vmatpush2.bf16.msra.mxu0 %v5531
    %8141 = vmatprep.subr.bf16.mxu0 %v5504
    %8142 = vmatpush2.bf16.msra.mxu0 %v5503
    %8143 = vmatprep.subr.bf16.mxu0 %v5476
    %8144 = vmatpush2.bf16.msra.mxu0 %v5475
    %8145 = vmatprep.subr.bf16.mxu0 %v5448
    %8146 = vmatpush2.bf16.msra.mxu0 %v5447
    %8147 = vmatprep.mubr.bf16.mxu0 %v1462
    %8148 = vmatmul.mubr.bf16.gmra.mxu0 %v1461
    %v8149 = vpop.f32.mrf.mxu0
    %v8150 = vadd.f32 %v2464, %v8149
    %v8151 = vpop.f32.mrf.mxu0
    %v8152 = vadd.f32 %v2468, %v8151
    %v8153 = vpop.f32.mrf.mxu0
    %v8154 = vadd.f32 %v2464, %v8153
    %v8155 = vpop.f32.mrf.mxu0
    %v8156 = vadd.f32 %v2468, %v8155
    %8157 = vmatprep.mubr.bf16.mxu0 %v1466
    %8158 = vmatmul.mubr.bf16.gmra.mxu0 %v1465
    %v8159 = vpop.f32.mrf.mxu0
    %v8160 = vadd.f32 %v2464, %v8159
    %v8161 = vpop.f32.mrf.mxu0
    %v8162 = vadd.f32 %v2468, %v8161
    %v8163 = vpop.f32.mrf.mxu0
    %v8164 = vpop.f32.mrf.mxu0
    %8165 = vdwg.mxu0
    %8166 = vmatprep.subr.bf16.mxu0 %v5868
    %8167 = vmatpush1.bf16.msra.mxu0 %v5867
    %8168 = vmatprep.subr.bf16.mxu0 %v5840
    %8169 = vmatpush1.bf16.msra.mxu0 %v5839
    %8170 = vmatprep.subr.bf16.mxu0 %v5812
    %8171 = vmatpush1.bf16.msra.mxu0 %v5811
    %8172 = vmatprep.subr.bf16.mxu0 %v5784
    %8173 = vmatpush1.bf16.msra.mxu0 %v5783
    %8174 = vmatprep.subr.bf16.mxu0 %v5756
    %8175 = vmatpush1.bf16.msra.mxu0 %v5755
    %8176 = vmatprep.subr.bf16.mxu0 %v5728
    %8177 = vmatpush1.bf16.msra.mxu0 %v5727
    %8178 = vmatprep.subr.bf16.mxu0 %v5700
    %8179 = vmatpush1.bf16.msra.mxu0 %v5699
    %8180 = vmatprep.subr.bf16.mxu0 %v5672
    %8181 = vmatpush1.bf16.msra.mxu0 %v5671
    %8182 = vmatprep.subr.bf16.mxu0 %v6092
    %8183 = vmatpush2.bf16.msra.mxu0 %v6091
    %8184 = vmatprep.subr.bf16.mxu0 %v6064
    %8185 = vmatpush2.bf16.msra.mxu0 %v6063
    %8186 = vmatprep.subr.bf16.mxu0 %v6036
    %8187 = vmatpush2.bf16.msra.mxu0 %v6035
    %8188 = vmatprep.subr.bf16.mxu0 %v6008
    %8189 = vmatpush2.bf16.msra.mxu0 %v6007
    %8190 = vmatprep.subr.bf16.mxu0 %v5980
    %8191 = vmatpush2.bf16.msra.mxu0 %v5979
    %8192 = vmatprep.subr.bf16.mxu0 %v5952
    %8193 = vmatpush2.bf16.msra.mxu0 %v5951
    %8194 = vmatprep.subr.bf16.mxu0 %v5924
    %8195 = vmatpush2.bf16.msra.mxu0 %v5923
    %8196 = vmatprep.subr.bf16.mxu0 %v5896
    %8197 = vmatpush2.bf16.msra.mxu0 %v5895
    %8198 = vmatprep.mubr.bf16.mxu0 %v1464
    %8199 = vmatmul.mubr.bf16.gmra.mxu0 %v1463
    %v8200 = vpop.f32.mrf.mxu0
    %v8201 = vadd.f32 %v8150, %v8200
    %v8202 = vpop.f32.mrf.mxu0
    %v8203 = vadd.f32 %v8152, %v8202
    %v8204 = vpop.f32.mrf.mxu0
    %v8205 = vadd.f32 %v8154, %v8204
    %v8206 = vpop.f32.mrf.mxu0
    %v8207 = vadd.f32 %v8156, %v8206
    %8208 = vmatprep.mubr.bf16.mxu0 %v1468
    %8209 = vmatmul.mubr.bf16.gmra.mxu0 %v1467
    %v8210 = vpop.f32.mrf.mxu0
    %v8211 = vadd.f32 %v8160, %v8210
    %v8212 = vpop.f32.mrf.mxu0
    %v8213 = vadd.f32 %v8162, %v8212
    %v8214 = vpop.f32.mrf.mxu0
    %v8215 = vpop.f32.mrf.mxu0
    %8216 = vdwg.mxu0
    %8217 = vmatprep.subr.bf16.mxu0 %v5422
    %8218 = vmatpush1.bf16.msra.mxu0 %v5421
    %8219 = vmatprep.subr.bf16.mxu0 %v5394
    %8220 = vmatpush1.bf16.msra.mxu0 %v5393
    %8221 = vmatprep.subr.bf16.mxu0 %v5366
    %8222 = vmatpush1.bf16.msra.mxu0 %v5365
    %8223 = vmatprep.subr.bf16.mxu0 %v5338
    %8224 = vmatpush1.bf16.msra.mxu0 %v5337
    %8225 = vmatprep.subr.bf16.mxu0 %v5310
    %8226 = vmatpush1.bf16.msra.mxu0 %v5309
    %8227 = vmatprep.subr.bf16.mxu0 %v5282
    %8228 = vmatpush1.bf16.msra.mxu0 %v5281
    %8229 = vmatprep.subr.bf16.mxu0 %v5254
    %8230 = vmatpush1.bf16.msra.mxu0 %v5253
    %8231 = vmatprep.subr.bf16.mxu0 %v5226
    %8232 = vmatpush1.bf16.msra.mxu0 %v5225
    %8233 = vmatprep.subr.bf16.mxu0 %v5646
    %8234 = vmatpush2.bf16.msra.mxu0 %v5645
    %8235 = vmatprep.subr.bf16.mxu0 %v5618
    %8236 = vmatpush2.bf16.msra.mxu0 %v5617
    %8237 = vmatprep.subr.bf16.mxu0 %v5590
    %8238 = vmatpush2.bf16.msra.mxu0 %v5589
    %8239 = vmatprep.subr.bf16.mxu0 %v5562
    %8240 = vmatpush2.bf16.msra.mxu0 %v5561
    %8241 = vmatprep.subr.bf16.mxu0 %v5534
    %8242 = vmatpush2.bf16.msra.mxu0 %v5533
    %8243 = vmatprep.subr.bf16.mxu0 %v5506
    %8244 = vmatpush2.bf16.msra.mxu0 %v5505
    %8245 = vmatprep.subr.bf16.mxu0 %v5478
    %8246 = vmatpush2.bf16.msra.mxu0 %v5477
    %8247 = vmatprep.subr.bf16.mxu0 %v5450
    %8248 = vmatpush2.bf16.msra.mxu0 %v5449
    %8249 = vmatprep.mubr.bf16.mxu0 %v1462
    %8250 = vmatmul.mubr.bf16.gmra.mxu0 %v1461
    %v8251 = vpop.f32.mrf.mxu0
    %v8252 = vadd.f32 %v2472, %v8251
    %v8253 = vpop.f32.mrf.mxu0
    %v8254 = vadd.f32 %v2476, %v8253
    %v8255 = vpop.f32.mrf.mxu0
    %v8256 = vadd.f32 %v2472, %v8255
    %v8257 = vpop.f32.mrf.mxu0
    %v8258 = vadd.f32 %v2476, %v8257
    %8259 = vmatprep.mubr.bf16.mxu0 %v1466
    %8260 = vmatmul.mubr.bf16.gmra.mxu0 %v1465
    %v8261 = vpop.f32.mrf.mxu0
    %v8262 = vadd.f32 %v2472, %v8261
    %v8263 = vpop.f32.mrf.mxu0
    %v8264 = vadd.f32 %v2476, %v8263
    %v8265 = vpop.f32.mrf.mxu0
    %v8266 = vpop.f32.mrf.mxu0
    %8267 = vdwg.mxu0
    %8268 = vmatprep.subr.bf16.mxu0 %v5870
    %8269 = vmatpush1.bf16.msra.mxu0 %v5869
    %8270 = vmatprep.subr.bf16.mxu0 %v5842
    %8271 = vmatpush1.bf16.msra.mxu0 %v5841
    %8272 = vmatprep.subr.bf16.mxu0 %v5814
    %8273 = vmatpush1.bf16.msra.mxu0 %v5813
    %8274 = vmatprep.subr.bf16.mxu0 %v5786
    %8275 = vmatpush1.bf16.msra.mxu0 %v5785
    %8276 = vmatprep.subr.bf16.mxu0 %v5758
    %8277 = vmatpush1.bf16.msra.mxu0 %v5757
    %8278 = vmatprep.subr.bf16.mxu0 %v5730
    %8279 = vmatpush1.bf16.msra.mxu0 %v5729
    %8280 = vmatprep.subr.bf16.mxu0 %v5702
    %8281 = vmatpush1.bf16.msra.mxu0 %v5701
    %8282 = vmatprep.subr.bf16.mxu0 %v5674
    %8283 = vmatpush1.bf16.msra.mxu0 %v5673
    %8284 = vmatprep.subr.bf16.mxu0 %v6094
    %8285 = vmatpush2.bf16.msra.mxu0 %v6093
    %8286 = vmatprep.subr.bf16.mxu0 %v6066
    %8287 = vmatpush2.bf16.msra.mxu0 %v6065
    %8288 = vmatprep.subr.bf16.mxu0 %v6038
    %8289 = vmatpush2.bf16.msra.mxu0 %v6037
    %8290 = vmatprep.subr.bf16.mxu0 %v6010
    %8291 = vmatpush2.bf16.msra.mxu0 %v6009
    %8292 = vmatprep.subr.bf16.mxu0 %v5982
    %8293 = vmatpush2.bf16.msra.mxu0 %v5981
    %8294 = vmatprep.subr.bf16.mxu0 %v5954
    %8295 = vmatpush2.bf16.msra.mxu0 %v5953
    %8296 = vmatprep.subr.bf16.mxu0 %v5926
    %8297 = vmatpush2.bf16.msra.mxu0 %v5925
    %8298 = vmatprep.subr.bf16.mxu0 %v5898
    %8299 = vmatpush2.bf16.msra.mxu0 %v5897
    %8300 = vmatprep.mubr.bf16.mxu0 %v1464
    %8301 = vmatmul.mubr.bf16.gmra.mxu0 %v1463
    %v8302 = vpop.f32.mrf.mxu0
    %v8303 = vadd.f32 %v8252, %v8302
    %v8304 = vpop.f32.mrf.mxu0
    %v8305 = vadd.f32 %v8254, %v8304
    %v8306 = vpop.f32.mrf.mxu0
    %v8307 = vadd.f32 %v8256, %v8306
    %v8308 = vpop.f32.mrf.mxu0
    %v8309 = vadd.f32 %v8258, %v8308
    %8310 = vmatprep.mubr.bf16.mxu0 %v1468
    %8311 = vmatmul.mubr.bf16.gmra.mxu0 %v1467
    %v8312 = vpop.f32.mrf.mxu0
    %v8313 = vadd.f32 %v8262, %v8312
    %v8314 = vpop.f32.mrf.mxu0
    %v8315 = vadd.f32 %v8264, %v8314
    %v8316 = vpop.f32.mrf.mxu0
    %v8317 = vpop.f32.mrf.mxu0
    %8318 = vdwg.mxu0
    %8319 = vmatprep.subr.bf16.mxu0 %v5424
    %8320 = vmatpush1.bf16.msra.mxu0 %v5423
    %8321 = vmatprep.subr.bf16.mxu0 %v5396
    %8322 = vmatpush1.bf16.msra.mxu0 %v5395
    %8323 = vmatprep.subr.bf16.mxu0 %v5368
    %8324 = vmatpush1.bf16.msra.mxu0 %v5367
    %8325 = vmatprep.subr.bf16.mxu0 %v5340
    %8326 = vmatpush1.bf16.msra.mxu0 %v5339
    %8327 = vmatprep.subr.bf16.mxu0 %v5312
    %8328 = vmatpush1.bf16.msra.mxu0 %v5311
    %8329 = vmatprep.subr.bf16.mxu0 %v5284
    %8330 = vmatpush1.bf16.msra.mxu0 %v5283
    %8331 = vmatprep.subr.bf16.mxu0 %v5256
    %8332 = vmatpush1.bf16.msra.mxu0 %v5255
    %8333 = vmatprep.subr.bf16.mxu0 %v5228
    %8334 = vmatpush1.bf16.msra.mxu0 %v5227
    %8335 = vmatprep.subr.bf16.mxu0 %v5648
    %8336 = vmatpush2.bf16.msra.mxu0 %v5647
    %8337 = vmatprep.subr.bf16.mxu0 %v5620
    %8338 = vmatpush2.bf16.msra.mxu0 %v5619
    %8339 = vmatprep.subr.bf16.mxu0 %v5592
    %8340 = vmatpush2.bf16.msra.mxu0 %v5591
    %8341 = vmatprep.subr.bf16.mxu0 %v5564
    %8342 = vmatpush2.bf16.msra.mxu0 %v5563
    %8343 = vmatprep.subr.bf16.mxu0 %v5536
    %8344 = vmatpush2.bf16.msra.mxu0 %v5535
    %8345 = vmatprep.subr.bf16.mxu0 %v5508
    %8346 = vmatpush2.bf16.msra.mxu0 %v5507
    %8347 = vmatprep.subr.bf16.mxu0 %v5480
    %8348 = vmatpush2.bf16.msra.mxu0 %v5479
    %8349 = vmatprep.subr.bf16.mxu0 %v5452
    %8350 = vmatpush2.bf16.msra.mxu0 %v5451
    %8351 = vmatprep.mubr.bf16.mxu0 %v1462
    %8352 = vmatmul.mubr.bf16.gmra.mxu0 %v1461
    %v8353 = vpop.f32.mrf.mxu0
    %v8354 = vadd.f32 %v2480, %v8353
    %v8355 = vpop.f32.mrf.mxu0
    %v8356 = vadd.f32 %v2484, %v8355
    %v8357 = vpop.f32.mrf.mxu0
    %v8358 = vadd.f32 %v2480, %v8357
    %v8359 = vpop.f32.mrf.mxu0
    %v8360 = vadd.f32 %v2484, %v8359
    %8361 = vmatprep.mubr.bf16.mxu0 %v1466
    %8362 = vmatmul.mubr.bf16.gmra.mxu0 %v1465
    %v8363 = vpop.f32.mrf.mxu0
    %v8364 = vadd.f32 %v2480, %v8363
    %v8365 = vpop.f32.mrf.mxu0
    %v8366 = vadd.f32 %v2484, %v8365
    %v8367 = vpop.f32.mrf.mxu0
    %v8368 = vpop.f32.mrf.mxu0
    %8369 = vdwg.mxu0
    %8370 = vmatprep.subr.bf16.mxu0 %v5872
    %8371 = vmatpush1.bf16.msra.mxu0 %v5871
    %8372 = vmatprep.subr.bf16.mxu0 %v5844
    %8373 = vmatpush1.bf16.msra.mxu0 %v5843
    %8374 = vmatprep.subr.bf16.mxu0 %v5816
    %8375 = vmatpush1.bf16.msra.mxu0 %v5815
    %8376 = vmatprep.subr.bf16.mxu0 %v5788
    %8377 = vmatpush1.bf16.msra.mxu0 %v5787
    %8378 = vmatprep.subr.bf16.mxu0 %v5760
    %8379 = vmatpush1.bf16.msra.mxu0 %v5759
    %8380 = vmatprep.subr.bf16.mxu0 %v5732
    %8381 = vmatpush1.bf16.msra.mxu0 %v5731
    %8382 = vmatprep.subr.bf16.mxu0 %v5704
    %8383 = vmatpush1.bf16.msra.mxu0 %v5703
    %8384 = vmatprep.subr.bf16.mxu0 %v5676
    %8385 = vmatpush1.bf16.msra.mxu0 %v5675
    %8386 = vmatprep.subr.bf16.mxu0 %v6096
    %8387 = vmatpush2.bf16.msra.mxu0 %v6095
    %8388 = vmatprep.subr.bf16.mxu0 %v6068
    %8389 = vmatpush2.bf16.msra.mxu0 %v6067
    %8390 = vmatprep.subr.bf16.mxu0 %v6040
    %8391 = vmatpush2.bf16.msra.mxu0 %v6039
    %8392 = vmatprep.subr.bf16.mxu0 %v6012
    %8393 = vmatpush2.bf16.msra.mxu0 %v6011
    %8394 = vmatprep.subr.bf16.mxu0 %v5984
    %8395 = vmatpush2.bf16.msra.mxu0 %v5983
    %8396 = vmatprep.subr.bf16.mxu0 %v5956
    %8397 = vmatpush2.bf16.msra.mxu0 %v5955
    %8398 = vmatprep.subr.bf16.mxu0 %v5928
    %8399 = vmatpush2.bf16.msra.mxu0 %v5927
    %8400 = vmatprep.subr.bf16.mxu0 %v5900
    %8401 = vmatpush2.bf16.msra.mxu0 %v5899
    %8402 = vmatprep.mubr.bf16.mxu0 %v1464
    %8403 = vmatmul.mubr.bf16.gmra.mxu0 %v1463
    %v8404 = vpop.f32.mrf.mxu0
    %v8405 = vadd.f32 %v8354, %v8404
    %v8406 = vpop.f32.mrf.mxu0
    %v8407 = vadd.f32 %v8356, %v8406
    %v8408 = vpop.f32.mrf.mxu0
    %v8409 = vadd.f32 %v8358, %v8408
    %v8410 = vpop.f32.mrf.mxu0
    %v8411 = vadd.f32 %v8360, %v8410
    %8412 = vmatprep.mubr.bf16.mxu0 %v1468
    %8413 = vmatmul.mubr.bf16.gmra.mxu0 %v1467
    %v8414 = vpop.f32.mrf.mxu0
    %v8415 = vadd.f32 %v8364, %v8414
    %v8416 = vpop.f32.mrf.mxu0
    %v8417 = vadd.f32 %v8366, %v8416
    %v8418 = vpop.f32.mrf.mxu0
    %v8419 = vpop.f32.mrf.mxu0
    %8420 = vdwg.mxu0
    %v8421 = vmax.f32 %v7079, 0.0
    %v8422 = vmax.f32 %v7081, 0.0
    %v8423 = vmax.f32 %v7181, 0.0
    %v8424 = vmax.f32 %v7183, 0.0
    %v8425 = vmax.f32 %v7283, 0.0
    %v8426 = vmax.f32 %v7285, 0.0
    %v8427 = vmax.f32 %v7385, 0.0
    %v8428 = vmax.f32 %v7387, 0.0
    %v8429 = vmax.f32 %v7487, 0.0
    %v8430 = vmax.f32 %v7489, 0.0
    %v8431 = vmax.f32 %v7589, 0.0
    %v8432 = vmax.f32 %v7591, 0.0
    %v8433 = vmax.f32 %v7691, 0.0
    %v8434 = vmax.f32 %v7693, 0.0
    %v8435 = vmax.f32 %v7793, 0.0
    %v8436 = vmax.f32 %v7795, 0.0
    %v8437 = vmax.f32 %v7895, 0.0
    %v8438 = vmax.f32 %v7897, 0.0
    %v8439 = vmax.f32 %v7997, 0.0
    %v8440 = vmax.f32 %v7999, 0.0
    %v8441 = vmax.f32 %v8099, 0.0
    %v8442 = vmax.f32 %v8101, 0.0
    %v8443 = vmax.f32 %v8201, 0.0
    %v8444 = vmax.f32 %v8203, 0.0
    %v8445 = vmax.f32 %v8303, 0.0
    %v8446 = vmax.f32 %v8305, 0.0
    %v8447 = vmax.f32 %v8405, 0.0
    %v8448 = vmax.f32 %v8407, 0.0
    %v8449 = vmax.f32 %v7083, 0.0
    %v8450 = vmax.f32 %v7085, 0.0
    %v8451 = vmax.f32 %v7185, 0.0
    %v8452 = vmax.f32 %v7187, 0.0
    %v8453 = vmax.f32 %v7287, 0.0
    %v8454 = vmax.f32 %v7289, 0.0
    %v8455 = vmax.f32 %v7389, 0.0
    %v8456 = vmax.f32 %v7391, 0.0
    %v8457 = vmax.f32 %v7491, 0.0
    %v8458 = vmax.f32 %v7493, 0.0
    %v8459 = vmax.f32 %v7593, 0.0
    %v8460 = vmax.f32 %v7595, 0.0
    %v8461 = vmax.f32 %v7695, 0.0
    %v8462 = vmax.f32 %v7697, 0.0
    %v8463 = vmax.f32 %v7797, 0.0
    %v8464 = vmax.f32 %v7799, 0.0
    %v8465 = vmax.f32 %v7899, 0.0
    %v8466 = vmax.f32 %v7901, 0.0
    %v8467 = vmax.f32 %v8001, 0.0
    %v8468 = vmax.f32 %v8003, 0.0
    %v8469 = vmax.f32 %v8103, 0.0
    %v8470 = vmax.f32 %v8105, 0.0
    %v8471 = vmax.f32 %v8205, 0.0
    %v8472 = vmax.f32 %v8207, 0.0
    %v8473 = vmax.f32 %v8307, 0.0
    %v8474 = vmax.f32 %v8309, 0.0
    %v8475 = vmax.f32 %v8409, 0.0
    %v8476 = vmax.f32 %v8411, 0.0
    %v8477 = vmax.f32 %v7089, 0.0
    %v8478 = vmax.f32 %v7091, 0.0
    %v8479 = vmax.f32 %v7191, 0.0
    %v8480 = vmax.f32 %v7193, 0.0
    %v8481 = vmax.f32 %v7293, 0.0
    %v8482 = vmax.f32 %v7295, 0.0
    %v8483 = vmax.f32 %v7395, 0.0
    %v8484 = vmax.f32 %v7397, 0.0
    %v8485 = vmax.f32 %v7497, 0.0
    %v8486 = vmax.f32 %v7499, 0.0
    %v8487 = vmax.f32 %v7599, 0.0
    %v8488 = vmax.f32 %v7601, 0.0
    %v8489 = vmax.f32 %v7701, 0.0
    %v8490 = vmax.f32 %v7703, 0.0
    %v8491 = vmax.f32 %v7803, 0.0
    %v8492 = vmax.f32 %v7805, 0.0
    %v8493 = vmax.f32 %v7905, 0.0
    %v8494 = vmax.f32 %v7907, 0.0
    %v8495 = vmax.f32 %v8007, 0.0
    %v8496 = vmax.f32 %v8009, 0.0
    %v8497 = vmax.f32 %v8109, 0.0
    %v8498 = vmax.f32 %v8111, 0.0
    %v8499 = vmax.f32 %v8211, 0.0
    %v8500 = vmax.f32 %v8213, 0.0
    %v8501 = vmax.f32 %v8313, 0.0
    %v8502 = vmax.f32 %v8315, 0.0
    %v8503 = vmax.f32 %v8415, 0.0
    %v8504 = vmax.f32 %v8417, 0.0
    %v8505 = vpack.c.bf16 %v8449, %v8421
    %v8506 = vpack.c.bf16 %v8450, %v8422
    %v8507 = vpack.c.bf16 %v8451, %v8423
    %v8508 = vpack.c.bf16 %v8452, %v8424
    %v8509 = vpack.c.bf16 %v8453, %v8425
    %v8510 = vpack.c.bf16 %v8454, %v8426
    %v8511 = vpack.c.bf16 %v8455, %v8427
    %v8512 = vpack.c.bf16 %v8456, %v8428
    %v8513 = vpack.c.bf16 %v8457, %v8429
    %v8514 = vpack.c.bf16 %v8458, %v8430
    %v8515 = vpack.c.bf16 %v8459, %v8431
    %v8516 = vpack.c.bf16 %v8460, %v8432
    %v8517 = vpack.c.bf16 %v8461, %v8433
    %v8518 = vpack.c.bf16 %v8462, %v8434
    %v8519 = vpack.c.bf16 %v8463, %v8435
    %v8520 = vpack.c.bf16 %v8464, %v8436
    %v8521 = vpack.c.bf16 %v8465, %v8437
    %v8522 = vpack.c.bf16 %v8466, %v8438
    %v8523 = vpack.c.bf16 %v8467, %v8439
    %v8524 = vpack.c.bf16 %v8468, %v8440
    %v8525 = vpack.c.bf16 %v8469, %v8441
    %v8526 = vpack.c.bf16 %v8470, %v8442
    %v8527 = vpack.c.bf16 %v8471, %v8443
    %v8528 = vpack.c.bf16 %v8472, %v8444
    %v8529 = vpack.c.bf16 %v8473, %v8445
    %v8530 = vpack.c.bf16 %v8474, %v8446
    %v8531 = vpack.c.bf16 %v8475, %v8447
    %v8532 = vpack.c.bf16 %v8476, %v8448
    %v8533 = vpack.c.bf16 %v8477, %v8477
    %v8534 = vpack.c.bf16 %v8478, %v8478
    %v8535 = vpack.c.bf16 %v8479, %v8479
    %v8536 = vpack.c.bf16 %v8480, %v8480
    %v8537 = vpack.c.bf16 %v8481, %v8481
    %v8538 = vpack.c.bf16 %v8482, %v8482
    %v8539 = vpack.c.bf16 %v8483, %v8483
    %v8540 = vpack.c.bf16 %v8484, %v8484
    %v8541 = vpack.c.bf16 %v8485, %v8485
    %v8542 = vpack.c.bf16 %v8486, %v8486
    %v8543 = vpack.c.bf16 %v8487, %v8487
    %v8544 = vpack.c.bf16 %v8488, %v8488
    %v8545 = vpack.c.bf16 %v8489, %v8489
    %v8546 = vpack.c.bf16 %v8490, %v8490
    %v8547 = vpack.c.bf16 %v8491, %v8491
    %v8548 = vpack.c.bf16 %v8492, %v8492
    %v8549 = vpack.c.bf16 %v8493, %v8493
    %v8550 = vpack.c.bf16 %v8494, %v8494
    %v8551 = vpack.c.bf16 %v8495, %v8495
    %v8552 = vpack.c.bf16 %v8496, %v8496
    %v8553 = vpack.c.bf16 %v8497, %v8497
    %v8554 = vpack.c.bf16 %v8498, %v8498
    %v8555 = vpack.c.bf16 %v8499, %v8499
    %v8556 = vpack.c.bf16 %v8500, %v8500
    %v8557 = vpack.c.bf16 %v8501, %v8501
    %v8558 = vpack.c.bf16 %v8502, %v8502
    %v8559 = vpack.c.bf16 %v8503, %v8503
    %v8560 = vpack.c.bf16 %v8504, %v8504
    %v8561 = vpack.c.bf16 %v1441, %v1437
    %v8562 = vpack.c.bf16 %v1442, %v1438
    %v8563 = vpack.c.bf16 %v1443, %v1439
    %v8564 = vpack.c.bf16 %v1444, %v1440
    %v8565 = vpack.c.bf16 %v1449, %v1445
    %v8566 = vpack.c.bf16 %v1450, %v1446
    %v8567 = vpack.c.bf16 %v1451, %v1447
    %v8568 = vpack.c.bf16 %v1452, %v1448
    %v8569 = vpack.c.bf16 %v1457, %v1453
    %v8570 = vpack.c.bf16 %v1458, %v1454
    %v8571 = vpack.c.bf16 %v1459, %v1455
    %v8572 = vpack.c.bf16 %v1460, %v1456
    %v8573 = vpack.c.bf16 %v1433, %v1433
    %v8574 = vpack.c.bf16 %v1434, %v1434
    %v8575 = vpack.c.bf16 %v1435, %v1435
    %v8576 = vpack.c.bf16 %v1436, %v1436
    %v8577 = vlaneseq
    %v8578 = vand.u32 %v8577, 127
    %v8579 = vmul.bf16 %v8573, %v8529
    %v8580 = vmul.bf16 %v8574, %v8530
    %v8581 = vmul.bf16 %v8575, %v8531
    %v8582 = vmul.bf16 %v8576, %v8532
    %v8583 = vunpack.c.l.bf16 %v8579
    %v8584 = vunpack.c.l.bf16 %v8580
    %v8585 = vunpack.c.l.bf16 %v8581
    %v8586 = vunpack.c.l.bf16 %v8582
    %v8587 = vmul.bf16 %v8561, %v8505
    %v8588 = vmul.bf16 %v8562, %v8506
    %v8589 = vmul.bf16 %v8563, %v8507
    %v8590 = vmul.bf16 %v8564, %v8508
    %v8591 = vunpack.c.l.bf16 %v8587
    %v8592 = vunpack.c.l.bf16 %v8588
    %v8593 = vunpack.c.l.bf16 %v8589
    %v8594 = vunpack.c.l.bf16 %v8590
    %v8595 = vadd.f32 %v8583, %v8591
    %v8596 = vadd.f32 %v8584, %v8592
    %v8597 = vadd.f32 %v8585, %v8593
    %v8598 = vadd.f32 %v8586, %v8594
    %v8603 = vrot.slane %v8509, 4
    %v8604 = vrot.slane %v8510, 4
    %v8605 = vrot.slane %v8511, 4
    %v8606 = vrot.slane %v8512, 4
    %v8611 = vmul.bf16 %v8561, %v8603
    %v8612 = vmul.bf16 %v8562, %v8604
    %v8613 = vmul.bf16 %v8563, %v8605
    %v8614 = vmul.bf16 %v8564, %v8606
    %v8619 = vrot.slane %v8611, 4
    %v8620 = vrot.slane %v8612, 4
    %v8621 = vrot.slane %v8613, 4
    %v8622 = vrot.slane %v8614, 4
    %v8627 = vunpack.c.l.bf16 %v8619
    %v8628 = vunpack.c.l.bf16 %v8620
    %v8629 = vunpack.c.l.bf16 %v8621
    %v8630 = vunpack.c.l.bf16 %v8622
    %v8631 = vadd.f32 %v8595, %v8627
    %v8632 = vadd.f32 %v8596, %v8628
    %v8633 = vadd.f32 %v8597, %v8629
    %v8634 = vadd.f32 %v8598, %v8630
    %v8635 = vmul.bf16 %v8565, %v8513
    %v8636 = vmul.bf16 %v8566, %v8514
    %v8637 = vmul.bf16 %v8567, %v8515
    %v8638 = vmul.bf16 %v8568, %v8516
    %v8639 = vunpack.c.l.bf16 %v8635
    %v8640 = vunpack.c.l.bf16 %v8636
    %v8641 = vunpack.c.l.bf16 %v8637
    %v8642 = vunpack.c.l.bf16 %v8638
    %v8643 = vadd.f32 %v8631, %v8639
    %v8644 = vadd.f32 %v8632, %v8640
    %v8645 = vadd.f32 %v8633, %v8641
    %v8646 = vadd.f32 %v8634, %v8642
    %v8651 = vrot.slane %v8517, 4
    %v8652 = vrot.slane %v8518, 4
    %v8653 = vrot.slane %v8519, 4
    %v8654 = vrot.slane %v8520, 4
    %v8659 = vmul.bf16 %v8565, %v8651
    %v8660 = vmul.bf16 %v8566, %v8652
    %v8661 = vmul.bf16 %v8567, %v8653
    %v8662 = vmul.bf16 %v8568, %v8654
    %v8667 = vrot.slane %v8659, 4
    %v8668 = vrot.slane %v8660, 4
    %v8669 = vrot.slane %v8661, 4
    %v8670 = vrot.slane %v8662, 4
    %v8675 = vunpack.c.l.bf16 %v8667
    %v8676 = vunpack.c.l.bf16 %v8668
    %v8677 = vunpack.c.l.bf16 %v8669
    %v8678 = vunpack.c.l.bf16 %v8670
    %v8679 = vadd.f32 %v8643, %v8675
    %v8680 = vadd.f32 %v8644, %v8676
    %v8681 = vadd.f32 %v8645, %v8677
    %v8682 = vadd.f32 %v8646, %v8678
    %v8683 = vmul.bf16 %v8569, %v8521
    %v8684 = vmul.bf16 %v8570, %v8522
    %v8685 = vmul.bf16 %v8571, %v8523
    %v8686 = vmul.bf16 %v8572, %v8524
    %v8687 = vunpack.c.l.bf16 %v8683
    %v8688 = vunpack.c.l.bf16 %v8684
    %v8689 = vunpack.c.l.bf16 %v8685
    %v8690 = vunpack.c.l.bf16 %v8686
    %v8691 = vadd.f32 %v8679, %v8687
    %v8692 = vadd.f32 %v8680, %v8688
    %v8693 = vadd.f32 %v8681, %v8689
    %v8694 = vadd.f32 %v8682, %v8690
    %v8699 = vrot.slane %v8525, 4
    %v8700 = vrot.slane %v8526, 4
    %v8701 = vrot.slane %v8527, 4
    %v8702 = vrot.slane %v8528, 4
    %v8707 = vmul.bf16 %v8569, %v8699
    %v8708 = vmul.bf16 %v8570, %v8700
    %v8709 = vmul.bf16 %v8571, %v8701
    %v8710 = vmul.bf16 %v8572, %v8702
    %v8715 = vrot.slane %v8707, 4
    %v8716 = vrot.slane %v8708, 4
    %v8717 = vrot.slane %v8709, 4
    %v8718 = vrot.slane %v8710, 4
    %v8723 = vunpack.c.l.bf16 %v8715
    %v8724 = vunpack.c.l.bf16 %v8716
    %v8725 = vunpack.c.l.bf16 %v8717
    %v8726 = vunpack.c.l.bf16 %v8718
    %v8727 = vadd.f32 %v8691, %v8723
    %v8728 = vadd.f32 %v8692, %v8724
    %v8729 = vadd.f32 %v8693, %v8725
    %v8730 = vadd.f32 %v8694, %v8726
    %v8731 = vadd.f32 %v8727, %v8728
    %v8732 = vadd.f32 %v8731, %v8729
    %v8733 = vadd.f32 %v8732, %v8730
    %8734 = vadd.xlane.f32.xlu0 %v8733
    %v8735 = vpop.xlane.xlu0 %8734
    %vm8736 = vcmp.eq.s32.totalorder %v8578, 0
    %v8737 = vsel %vm8736, %v8735, 0.0
    %v8742 = vrot.slane %v8529, 4
    %v8743 = vrot.slane %v8530, 4
    %v8744 = vrot.slane %v8531, 4
    %v8745 = vrot.slane %v8532, 4
    %v8750 = vmul.bf16 %v8573, %v8742
    %v8751 = vmul.bf16 %v8574, %v8743
    %v8752 = vmul.bf16 %v8575, %v8744
    %v8753 = vmul.bf16 %v8576, %v8745
    %v8754 = vunpack.c.l.bf16 %v8750
    %v8755 = vunpack.c.l.bf16 %v8751
    %v8756 = vunpack.c.l.bf16 %v8752
    %v8757 = vunpack.c.l.bf16 %v8753
    %v8762 = vrot.slane %v8505, 4
    %v8763 = vrot.slane %v8506, 4
    %v8764 = vrot.slane %v8507, 4
    %v8765 = vrot.slane %v8508, 4
    %v8770 = vmul.bf16 %v8561, %v8762
    %v8771 = vmul.bf16 %v8562, %v8763
    %v8772 = vmul.bf16 %v8563, %v8764
    %v8773 = vmul.bf16 %v8564, %v8765
    %v8774 = vunpack.c.l.bf16 %v8770
    %v8775 = vunpack.c.l.bf16 %v8771
    %v8776 = vunpack.c.l.bf16 %v8772
    %v8777 = vunpack.c.l.bf16 %v8773
    %v8778 = vadd.f32 %v8754, %v8774
    %v8779 = vadd.f32 %v8755, %v8775
    %v8780 = vadd.f32 %v8756, %v8776
    %v8781 = vadd.f32 %v8757, %v8777
    %v8782 = vmul.bf16 %v8561, %v8509
    %v8783 = vmul.bf16 %v8562, %v8510
    %v8784 = vmul.bf16 %v8563, %v8511
    %v8785 = vmul.bf16 %v8564, %v8512
    %v8790 = vrot.slane %v8782, 4
    %v8791 = vrot.slane %v8783, 4
    %v8792 = vrot.slane %v8784, 4
    %v8793 = vrot.slane %v8785, 4
    %v8798 = vunpack.c.l.bf16 %v8790
    %v8799 = vunpack.c.l.bf16 %v8791
    %v8800 = vunpack.c.l.bf16 %v8792
    %v8801 = vunpack.c.l.bf16 %v8793
    %v8802 = vadd.f32 %v8778, %v8798
    %v8803 = vadd.f32 %v8779, %v8799
    %v8804 = vadd.f32 %v8780, %v8800
    %v8805 = vadd.f32 %v8781, %v8801
    %v8810 = vrot.slane %v8513, 4
    %v8811 = vrot.slane %v8514, 4
    %v8812 = vrot.slane %v8515, 4
    %v8813 = vrot.slane %v8516, 4
    %v8818 = vmul.bf16 %v8565, %v8810
    %v8819 = vmul.bf16 %v8566, %v8811
    %v8820 = vmul.bf16 %v8567, %v8812
    %v8821 = vmul.bf16 %v8568, %v8813
    %v8822 = vunpack.c.l.bf16 %v8818
    %v8823 = vunpack.c.l.bf16 %v8819
    %v8824 = vunpack.c.l.bf16 %v8820
    %v8825 = vunpack.c.l.bf16 %v8821
    %v8826 = vadd.f32 %v8802, %v8822
    %v8827 = vadd.f32 %v8803, %v8823
    %v8828 = vadd.f32 %v8804, %v8824
    %v8829 = vadd.f32 %v8805, %v8825
    %v8830 = vmul.bf16 %v8565, %v8517
    %v8831 = vmul.bf16 %v8566, %v8518
    %v8832 = vmul.bf16 %v8567, %v8519
    %v8833 = vmul.bf16 %v8568, %v8520
    %v8838 = vrot.slane %v8830, 4
    %v8839 = vrot.slane %v8831, 4
    %v8840 = vrot.slane %v8832, 4
    %v8841 = vrot.slane %v8833, 4
    %v8846 = vunpack.c.l.bf16 %v8838
    %v8847 = vunpack.c.l.bf16 %v8839
    %v8848 = vunpack.c.l.bf16 %v8840
    %v8849 = vunpack.c.l.bf16 %v8841
    %v8850 = vadd.f32 %v8826, %v8846
    %v8851 = vadd.f32 %v8827, %v8847
    %v8852 = vadd.f32 %v8828, %v8848
    %v8853 = vadd.f32 %v8829, %v8849
    %v8858 = vrot.slane %v8521, 4
    %v8859 = vrot.slane %v8522, 4
    %v8860 = vrot.slane %v8523, 4
    %v8861 = vrot.slane %v8524, 4
    %v8866 = vmul.bf16 %v8569, %v8858
    %v8867 = vmul.bf16 %v8570, %v8859
    %v8868 = vmul.bf16 %v8571, %v8860
    %v8869 = vmul.bf16 %v8572, %v8861
    %v8870 = vunpack.c.l.bf16 %v8866
    %v8871 = vunpack.c.l.bf16 %v8867
    %v8872 = vunpack.c.l.bf16 %v8868
    %v8873 = vunpack.c.l.bf16 %v8869
    %v8874 = vadd.f32 %v8850, %v8870
    %v8875 = vadd.f32 %v8851, %v8871
    %v8876 = vadd.f32 %v8852, %v8872
    %v8877 = vadd.f32 %v8853, %v8873
    %v8878 = vmul.bf16 %v8569, %v8525
    %v8879 = vmul.bf16 %v8570, %v8526
    %v8880 = vmul.bf16 %v8571, %v8527
    %v8881 = vmul.bf16 %v8572, %v8528
    %v8886 = vrot.slane %v8878, 4
    %v8887 = vrot.slane %v8879, 4
    %v8888 = vrot.slane %v8880, 4
    %v8889 = vrot.slane %v8881, 4
    %v8894 = vunpack.c.l.bf16 %v8886
    %v8895 = vunpack.c.l.bf16 %v8887
    %v8896 = vunpack.c.l.bf16 %v8888
    %v8897 = vunpack.c.l.bf16 %v8889
    %v8898 = vadd.f32 %v8874, %v8894
    %v8899 = vadd.f32 %v8875, %v8895
    %v8900 = vadd.f32 %v8876, %v8896
    %v8901 = vadd.f32 %v8877, %v8897
    %v8902 = vadd.f32 %v8898, %v8899
    %v8903 = vadd.f32 %v8902, %v8900
    %v8904 = vadd.f32 %v8903, %v8901
    %8905 = vadd.xlane.f32.xlu0 %v8904
    %v8906 = vpop.xlane.xlu0 %8905
    %vm8907 = vcmp.eq.s32.totalorder %v8578, 1
    %v8908 = vsel %vm8907, %v8906, %v8737
    %v8909 = vmul.bf16 %v8573, %v8557
    %v8910 = vmul.bf16 %v8574, %v8558
    %v8911 = vmul.bf16 %v8575, %v8559
    %v8912 = vmul.bf16 %v8576, %v8560
    %v8913 = vunpack.c.l.bf16 %v8909
    %v8914 = vunpack.c.l.bf16 %v8910
    %v8915 = vunpack.c.l.bf16 %v8911
    %v8916 = vunpack.c.l.bf16 %v8912
    %v8917 = vmul.bf16 %v8561, %v8533
    %v8918 = vmul.bf16 %v8562, %v8534
    %v8919 = vmul.bf16 %v8563, %v8535
    %v8920 = vmul.bf16 %v8564, %v8536
    %v8921 = vunpack.c.l.bf16 %v8917
    %v8922 = vunpack.c.l.bf16 %v8918
    %v8923 = vunpack.c.l.bf16 %v8919
    %v8924 = vunpack.c.l.bf16 %v8920
    %v8925 = vadd.f32 %v8913, %v8921
    %v8926 = vadd.f32 %v8914, %v8922
    %v8927 = vadd.f32 %v8915, %v8923
    %v8928 = vadd.f32 %v8916, %v8924
    %v8933 = vrot.slane %v8537, 4
    %v8934 = vrot.slane %v8538, 4
    %v8935 = vrot.slane %v8539, 4
    %v8936 = vrot.slane %v8540, 4
    %v8941 = vmul.bf16 %v8561, %v8933
    %v8942 = vmul.bf16 %v8562, %v8934
    %v8943 = vmul.bf16 %v8563, %v8935
    %v8944 = vmul.bf16 %v8564, %v8936
    %v8949 = vrot.slane %v8941, 4
    %v8950 = vrot.slane %v8942, 4
    %v8951 = vrot.slane %v8943, 4
    %v8952 = vrot.slane %v8944, 4
    %v8957 = vunpack.c.l.bf16 %v8949
    %v8958 = vunpack.c.l.bf16 %v8950
    %v8959 = vunpack.c.l.bf16 %v8951
    %v8960 = vunpack.c.l.bf16 %v8952
    %v8961 = vadd.f32 %v8925, %v8957
    %v8962 = vadd.f32 %v8926, %v8958
    %v8963 = vadd.f32 %v8927, %v8959
    %v8964 = vadd.f32 %v8928, %v8960
    %v8965 = vmul.bf16 %v8565, %v8541
    %v8966 = vmul.bf16 %v8566, %v8542
    %v8967 = vmul.bf16 %v8567, %v8543
    %v8968 = vmul.bf16 %v8568, %v8544
    %v8969 = vunpack.c.l.bf16 %v8965
    %v8970 = vunpack.c.l.bf16 %v8966
    %v8971 = vunpack.c.l.bf16 %v8967
    %v8972 = vunpack.c.l.bf16 %v8968
    %v8973 = vadd.f32 %v8961, %v8969
    %v8974 = vadd.f32 %v8962, %v8970
    %v8975 = vadd.f32 %v8963, %v8971
    %v8976 = vadd.f32 %v8964, %v8972
    %v8981 = vrot.slane %v8545, 4
    %v8982 = vrot.slane %v8546, 4
    %v8983 = vrot.slane %v8547, 4
    %v8984 = vrot.slane %v8548, 4
    %v8989 = vmul.bf16 %v8565, %v8981
    %v8990 = vmul.bf16 %v8566, %v8982
    %v8991 = vmul.bf16 %v8567, %v8983
    %v8992 = vmul.bf16 %v8568, %v8984
    %v8997 = vrot.slane %v8989, 4
    %v8998 = vrot.slane %v8990, 4
    %v8999 = vrot.slane %v8991, 4
    %v9000 = vrot.slane %v8992, 4
    %v9005 = vunpack.c.l.bf16 %v8997
    %v9006 = vunpack.c.l.bf16 %v8998
    %v9007 = vunpack.c.l.bf16 %v8999
    %v9008 = vunpack.c.l.bf16 %v9000
    %v9009 = vadd.f32 %v8973, %v9005
    %v9010 = vadd.f32 %v8974, %v9006
    %v9011 = vadd.f32 %v8975, %v9007
    %v9012 = vadd.f32 %v8976, %v9008
    %v9013 = vmul.bf16 %v8569, %v8549
    %v9014 = vmul.bf16 %v8570, %v8550
    %v9015 = vmul.bf16 %v8571, %v8551
    %v9016 = vmul.bf16 %v8572, %v8552
    %v9017 = vunpack.c.l.bf16 %v9013
    %v9018 = vunpack.c.l.bf16 %v9014
    %v9019 = vunpack.c.l.bf16 %v9015
    %v9020 = vunpack.c.l.bf16 %v9016
    %v9021 = vadd.f32 %v9009, %v9017
    %v9022 = vadd.f32 %v9010, %v9018
    %v9023 = vadd.f32 %v9011, %v9019
    %v9024 = vadd.f32 %v9012, %v9020
    %v9029 = vrot.slane %v8553, 4
    %v9030 = vrot.slane %v8554, 4
    %v9031 = vrot.slane %v8555, 4
    %v9032 = vrot.slane %v8556, 4
    %v9037 = vmul.bf16 %v8569, %v9029
    %v9038 = vmul.bf16 %v8570, %v9030
    %v9039 = vmul.bf16 %v8571, %v9031
    %v9040 = vmul.bf16 %v8572, %v9032
    %v9045 = vrot.slane %v9037, 4
    %v9046 = vrot.slane %v9038, 4
    %v9047 = vrot.slane %v9039, 4
    %v9048 = vrot.slane %v9040, 4
    %v9053 = vunpack.c.l.bf16 %v9045
    %v9054 = vunpack.c.l.bf16 %v9046
    %v9055 = vunpack.c.l.bf16 %v9047
    %v9056 = vunpack.c.l.bf16 %v9048
    %v9057 = vadd.f32 %v9021, %v9053
    %v9058 = vadd.f32 %v9022, %v9054
    %v9059 = vadd.f32 %v9023, %v9055
    %v9060 = vadd.f32 %v9024, %v9056
    %v9061 = vadd.f32 %v9057, %v9058
    %v9062 = vadd.f32 %v9061, %v9059
    %v9063 = vadd.f32 %v9062, %v9060
    %9064 = vadd.xlane.f32.xlu0 %v9063
    %v9065 = vpop.xlane.xlu0 %9064
    %vm9066 = vcmp.eq.s32.totalorder %v8578, 2
    %v9067 = vsel %vm9066, %v9065, %v8908
    %v9068 = vsub.f32 %v9067, %v9067
    %v9069 = vadd.f32 %v9068, 1.0
    %9070 = vst [vmem:[#allocation14] sm:$0xff] %v9069
    // Predicated region
    $region62: #{tpu_custom_call.1} parent=1 // pred_check
      _
    $region63: #{tpu_custom_call.1} parent=1 // pred_check_branch
      %9072 = sbr.rel (0) target = $region65
    $region64: #{tpu_custom_call.1} parent=1 // pred_region
      %s9074 = ssub.s32 128, 128
      %9075 = vsyncadd [#allocation4], %s9074
      %s9077 = sshll.u32 [#allocation14], 4
      %s9078 = int_to_ptr.vmem [resolvable:$true] %s9077
      %9080 = dma.vmem_to_hbm [thread:$0]  %s9078, 128, %s8, [#allocation4]
    $region65: #{tpu_custom_call.1} parent=1 // pred_fallthru
      _
    // Predicated region
    $region66: #{tpu_custom_call.1} parent=1 // pred_check
      _
    $region67: #{tpu_custom_call.1} parent=1 // pred_check_branch
      %9082 = sbr.rel (0) target = $region69
    $region68: #{tpu_custom_call.1} parent=1 // pred_region
      %9083 = dma.done [#allocation4], 128
    $region69: #{tpu_custom_call.1} parent=1 // pred_fallthru
      _
    %9084 = vsyncpa [#allocation3], 1
    %9085 = vsyncpa [#allocation6], 1
    %9086 = vsyncpa [#allocation9], 1
    %9087 = vsyncpa [#allocation12], 1
    %9088 = vsyncpa [#allocation4], 1

</llo_original>
